<compile_context>
chip_gen: v7x
topology: tpu7x:2x2x1
jax: 0.10.0
libtpu: 0.0.40
codegen_flags: <defaults>
</compile_context>

<pallas_src>
import functools

import numpy as np
import jax
import jax.numpy as jnp
from jax import lax
from jax.experimental import pallas as pl
from jax.experimental.pallas import tpu as pltpu

# ---- Module hyper-parameters (PyTorch defaults) -------------------------------------
IN_CH = 3                      # conv1 in channels
OUT_CH = 6                     # conv1 out channels
KSZ = 5                        # conv kernel size
POOL = 5                       # maxpool kernel == stride
IMG = 224                      # SimpleCNN.fc expects 6*44*44  ->  (224-4)//5 == 44
CONV_OUT = IMG - KSZ + 1       # 220
POOLED = CONV_OUT // POOL      # 44
CELLS = POOLED * POOLED        # 1936 pooled cells
CPAD = 2048                    # CELLS padded to a lane multiple
KDIM = IN_CH * KSZ * KSZ       # 75 conv reduction size
NPW = POOL * POOL              # 25 positions inside a pool window
KBIG = 4 * IN_CH * NPW         # 300: phase basis (qy,qx) x ic x (uy,ux)
HID = 6                        # enc_rnn_hidden_dim
LAT = 5                        # enc_dim_lat_space
G4 = 4 * HID                   # 24 LSTM gate width
PREC = lax.Precision.HIGHEST   # reference / tiny recurrent dots only


# ---- constant selection matrix mapping conv-taps to the phase basis ------------------
def _phase_select_matrix():
    m = np.zeros((NPW, KDIM, KBIG), np.float32)
    for py in range(POOL):
        for px in range(POOL):
            p = py * POOL + px
            for ic in range(IN_CH):
                for ky in range(KSZ):
                    for kx in range(KSZ):
                        qy, uy = divmod(py + ky, POOL)
                        qx, ux = divmod(px + kx, POOL)
                        k = (ic * KSZ + ky) * KSZ + kx
                        kk = ((qy * 2 + qx) * IN_CH + ic) * NPW + uy * POOL + ux
                        m[p, k, kk] = 1.0
    return m


_PHASE_M = _phase_select_matrix()


# ======================================================================================
# Host-side (XLA) re-packing: cheap, ~4x the raw frame bytes (vs 24x before)
#   SLAB[f, K, i*44+j] = frame[f, ic, 5*(i+qy)+uy, 5*(j+qx)+ux]
#   with K = ((qy*2+qx)*3 + ic)*25 + uy*5 + ux
# ======================================================================================
def _build_phase_slab(frames):
    """frames: (F, 3, 224, 224) f32 -> (F, 300, 2048) bf16."""
    f = frames.shape[0]
    x = frames.astype(jnp.bfloat16)
    x = jnp.pad(x, ((0, 0), (0, 0), (0, 1), (0, 1)))                       # (F,3,225,225)
    x = x.reshape(f, IN_CH, POOLED + 1, POOL, POOLED + 1, POOL)            # [f,ic,A,uy,B,ux]
    blocks = [x[:, :, qy:qy + POOLED, :, qx:qx + POOLED, :]
              for qy in (0, 1) for qx in (0, 1)]                           # [f,ic,i,uy,j,ux]
    s = jnp.stack(blocks, axis=1)                                          # (F,4,3,44,5,44,5)
    s = s.transpose(0, 1, 2, 4, 6, 3, 5)                                   # [f,q,ic,uy,ux,i,j]
    s = s.reshape(f, KBIG, CELLS)
    s = jnp.pad(s, ((0, 0), (0, 0), (0, CPAD - CELLS)))                    # (F, 300, 2048)
    return s


def _prep_cnn_params(params):
    # conv weights regrouped into (oc*25 + pool_window_pos, phase-K) rows.
    w2 = params["conv_w"].reshape(OUT_CH, KDIM)
    wpw = jnp.einsum("ok,pkK->opK", w2, jnp.asarray(_PHASE_M))             # (6,25,300)
    wpw = wpw.reshape(OUT_CH * NPW, KBIG).astype(jnp.bfloat16)             # row = oc*25 + p
    bc = params["conv_b"].reshape(OUT_CH, 1).astype(jnp.float32)

    # SimpleCNN.fc fused with LSTM input projection:  gates_x = W_ih @ (fc_w @ pooled + fc_b) + b
    wc = jnp.dot(params["lstm_w_ih"], params["fc_w"])                      # (24, 11616)
    wc = wc.reshape(G4, OUT_CH, CELLS).transpose(1, 2, 0)                  # (6, 1936, 24)
    wc = jnp.pad(wc, ((0, 0), (0, CPAD - CELLS), (0, 0)))                  # (6, 2048, 24)
    wc = wc.transpose(1, 0, 2).reshape(CPAD, OUT_CH * G4)                  # [c, oc*24+g]
    bg = (jnp.dot(params["lstm_w_ih"], params["fc_b"])
          + params["lstm_b_ih"] + params["lstm_b_hh"]).reshape(1, G4)
    return wpw, bc, wc.astype(jnp.float32), bg.astype(jnp.float32)


# ======================================================================================
# Kernel 1: per-frame SimpleCNN (+ fused LSTM input projection)
#   grid = (F,), one frame per step, "parallel" -> megacore sharding on v7x.
#   conv for all 25 pool-window offsets:  (150,300)bf16 @ (300,2048)bf16 -> (150,2048)f32
#   maxpool: per-channel max over its 25 rows, + bias, relu -> pooled (6,2048) f32
#   fc + W_ih: one (6,2048)@(2048,144) matmul, diagonal 24-wide blocks summed.
# ======================================================================================
def _cnn_kernel(slab_ref, wpw_ref, bc_ref, wc_ref, bg_ref, out_ref, pooled_ref):
    r = jnp.dot(wpw_ref[...], slab_ref[...],
                preferred_element_type=jnp.float32)                        # (150, 2048)
    for oc in range(OUT_CH):
        seg = r[oc * NPW:(oc + 1) * NPW, :]                                # (25, 2048)
        rowmax = jnp.max(seg, axis=0, keepdims=True)                       # max-pool
        pooled_ref[oc:oc + 1, :] = jnp.maximum(rowmax + bc_ref[oc:oc + 1, :], 0.0)

    z = jnp.dot(pooled_ref[...], wc_ref[...],
                preferred_element_type=jnp.float32)                        # (6, 144)
    g = bg_ref[...]                                                        # (1, 24)
    for oc in range(OUT_CH):
        g = g + z[oc:oc + 1, oc * G4:(oc + 1) * G4]
    out_ref[...] = g


def cnn_gates_pallas(slab, wpw, bc, wc, bg):
    f = slab.shape[0]
    out = pl.pallas_call(
        _cnn_kernel,
        out_shape=jax.ShapeDtypeStruct((f, 1, G4), jnp.float32),
        grid_spec=pltpu.PrefetchScalarGridSpec(
            num_scalar_prefetch=0,
            grid=(f,),
            in_specs=[
                pl.BlockSpec((None, KBIG, CPAD), lambda i: (i, 0, 0)),
                pl.BlockSpec((OUT_CH * NPW, KBIG), lambda i: (0, 0)),
                pl.BlockSpec((OUT_CH, 1), lambda i: (0, 0)),
                pl.BlockSpec((CPAD, OUT_CH * G4), lambda i: (0, 0)),
                pl.BlockSpec((1, G4), lambda i: (0, 0)),
            ],
            out_specs=pl.BlockSpec((None, 1, G4), lambda i: (i, 0, 0)),
            scratch_shapes=[pltpu.VMEM((OUT_CH, CPAD), jnp.float32)],
        ),
        compiler_params=pltpu.CompilerParams(dimension_semantics=("parallel",)),
    )(slab, wpw, bc, wc, bg)
    return out.reshape(f, G4)


# ======================================================================================
# Kernel 2: LSTM recurrence + fc_out.
#   Input projection / biases are already folded into gates_x (kernel 1), so each serial
#   step only does h @ W_hh + gates; h, c live in the fori_loop carry (vregs).  The last
#   `batch` steps (== out[:, -1] of the reference) run in a static unrolled tail where
#   fc_out is applied and written to the output rows.
# ======================================================================================
def _lstm_kernel(gx_ref, whh_ref, wout_ref, bout_ref, out_ref, *, batch):
    n = gx_ref.shape[0]
    whh = whh_ref[...]                                                     # (HID, 24)

    def cell(gx, h, c):
        gates = gx + jnp.dot(h, whh, preferred_element_type=jnp.float32, precision=PREC)
        i_g = jax.nn.sigmoid(gates[:, 0 * HID:1 * HID])
        f_g = jax.nn.sigmoid(gates[:, 1 * HID:2 * HID])
        g_g = jnp.tanh(gates[:, 2 * HID:3 * HID])
        o_g = jax.nn.sigmoid(gates[:, 3 * HID:4 * HID])
        c_new = f_g * c + i_g * g_g
        h_new = o_g * jnp.tanh(c_new)
        return h_new, c_new

    def body(s, carry):
        h, c = carry
        return cell(gx_ref[pl.ds(s, 1), :], h, c)

    h0 = jnp.zeros((1, HID), jnp.float32)
    c0 = jnp.zeros((1, HID), jnp.float32)
    h, c = lax.fori_loop(0, n - batch, body, (h0, c0))

    for r in range(batch):                                                 # static tail
        s = n - batch + r
        h, c = cell(gx_ref[s:s + 1, :], h, c)
        out_ref[r:r + 1, :] = (jnp.dot(h, wout_ref[...],
                                       preferred_element_type=jnp.float32, precision=PREC)
                               + bout_ref[...])


def lstm_fcout_pallas(gates_x, whh_t, wout_t, bout, *, batch):
    f = gates_x.shape[0]
    return pl.pallas_call(
        functools.partial(_lstm_kernel, batch=batch),
        out_shape=jax.ShapeDtypeStruct((batch, LAT), jnp.float32),
        grid_spec=pltpu.PrefetchScalarGridSpec(
            num_scalar_prefetch=0,
            grid=(1,),
            in_specs=[
                pl.BlockSpec((f, G4), lambda i: (0, 0)),
                pl.BlockSpec((HID, G4), lambda i: (0, 0)),
                pl.BlockSpec((HID, LAT), lambda i: (0, 0)),
                pl.BlockSpec((1, LAT), lambda i: (0, 0)),
            ],
            out_specs=pl.BlockSpec((batch, LAT), lambda i: (0, 0)),
        ),
    )(gates_x, whh_t, wout_t, bout)


# ======================================================================================
# Encoder forward (Pallas) and pure-JAX reference
# ======================================================================================
def encoder_forward(videos, params):
    # videos NCTHW (B, 3, T, 224, 224) float32, same layout as the PyTorch module.
    b, c, t, h, w = videos.shape
    frames = jnp.transpose(videos, (2, 0, 1, 3, 4)).reshape(t * b, c, h, w)   # t-major, b-minor
    slab = _build_phase_slab(frames)                                          # (F, 300, 2048) bf16
    wpw, bc2, wc, bg = _prep_cnn_params(params)
    gates_x = cnn_gates_pallas(slab, wpw, bc2, wc, bg)                        # (F, 24)
    # TODO(synk): dropout has p=0.0 (module default) -> identity; nonzero rates omitted.
    out = lstm_fcout_pallas(gates_x,
                            params["lstm_w_hh"].T.astype(jnp.float32),
                            params["fc_out_w"].T.astype(jnp.float32),
                            params["fc_out_b"].reshape(1, LAT).astype(jnp.float32),
                            batch=b)
    return out                                                                # (B, LAT)


def encoder_reference(videos, params):
    """Pure-JAX mirror of the PyTorch forward (for verification)."""
    b, _, t, _, _ = videos.shape

    def cnn(frame):                                                 # (3, H, W)
        conv = lax.conv_general_dilated(
            frame[None], params["conv_w"], (1, 1), "VALID",
            dimension_numbers=("NCHW", "OIHW", "NCHW"), precision=PREC)[0]
        conv = jnp.maximum(conv + params["conv_b"][:, None, None], 0.0)
        pooled = conv.reshape(OUT_CH, POOLED, POOL, POOLED, POOL).max(axis=(2, 4))
        flat = pooled.reshape(1, OUT_CH * CELLS)
        return jnp.dot(flat, params["fc_w"].T, precision=PREC) + params["fc_b"]

    h = jnp.zeros((1, HID), jnp.float32)
    c = jnp.zeros((1, HID), jnp.float32)
    wih, whh = params["lstm_w_ih"], params["lstm_w_hh"]
    bsum = params["lstm_b_ih"] + params["lstm_b_hh"]
    last = None
    for ti in range(t):
        outs_t = []
        for bi in range(b):                       # PyTorch: seq dim of the LSTM is B
            x = cnn(videos[bi, :, ti])
            gates = (jnp.dot(x, wih.T, precision=PREC)
                     + jnp.dot(h, whh.T, precision=PREC) + bsum)
            i_g = jax.nn.sigmoid(gates[:, 0 * HID:1 * HID])
            f_g = jax.nn.sigmoid(gates[:, 1 * HID:2 * HID])
            g_g = jnp.tanh(gates[:, 2 * HID:3 * HID])
            o_g = jax.nn.sigmoid(gates[:, 3 * HID:4 * HID])
            c = f_g * c + i_g * g_g
            h = o_g * jnp.tanh(c)
            outs_t.append(h)
        last = outs_t
    out = jnp.concatenate(last, axis=0)          # == out[:, -1] of the reference
    return jnp.dot(out, params["fc_out_w"].T, precision=PREC) + params["fc_out_b"]


def init_params(key):
    ks = jax.random.split(key, 10)
    n = lambda k, s, sc: (jax.random.normal(k, s, jnp.float32) * sc)
    return {
        "conv_w": n(ks[0], (OUT_CH, IN_CH, KSZ, KSZ), 0.05),
        "conv_b": n(ks[1], (OUT_CH,), 0.05),
        "fc_w": n(ks[2], (HID, OUT_CH * CELLS), 0.01),
        "fc_b": n(ks[3], (HID,), 0.05),
        "lstm_w_ih": n(ks[4], (4 * HID, HID), 0.2),
        "lstm_w_hh": n(ks[5], (4 * HID, HID), 0.2),
        "lstm_b_ih": n(ks[6], (4 * HID,), 0.1),
        "lstm_b_hh": n(ks[7], (4 * HID,), 0.1),
        "fc_out_w": n(ks[8], (LAT, HID), 0.2),
        "fc_out_b": n(ks[9], (LAT,), 0.1),
    }


if __name__ == "__main__":
    key = jax.random.PRNGKey(0)
    pkey, vkey = jax.random.split(key)
    params = init_params(pkey)

    B, T = 2, 2                                  # small batch / seq; spatial fixed at 224
    videos = jax.random.normal(vkey, (B, IN_CH, T, IMG, IMG), jnp.float32)

    fwd = jax.jit(encoder_forward)
    out = jax.block_until_ready(fwd(videos, params))

    ref = jax.block_until_ready(encoder_reference(videos, params))
    err = float(jnp.max(jnp.abs(out - ref)))
    assert out.shape == (B, LAT), out.shape
    # bf16 activation streaming -> slightly looser tolerance than pure-f32 version.
    assert err < 2e-2, f"mismatch vs reference: max abs err = {err}"

    print("KERNEL_OK")
</pallas_src>

<mosaic_0001>
module attributes {stable_mosaic.version = 11 : i64} {
  func.func @_cnn_kernel(%arg0: i32, %arg1: memref<1x300x2048xbf16, #tpu.memory_space<vmem>>, %arg2: memref<150x300xbf16, #tpu.memory_space<vmem>>, %arg3: memref<6x1xf32, #tpu.memory_space<vmem>>, %arg4: memref<2048x144xf32, #tpu.memory_space<vmem>>, %arg5: memref<1x24xf32, #tpu.memory_space<vmem>>, %arg6: memref<1x1x24xf32, #tpu.memory_space<vmem>>, %arg7: memref<6x2048xf32, #tpu.memory_space<vmem>>) attributes {dimension_semantics = [#tpu.dimension_semantics<parallel>], iteration_bounds = array<i64: 4>, scalar_prefetch = 0 : i64, scratch_operands = 1 : i64, tpu.core_type = #tpu.core_type<tc>, window_params = [{transform_indices = @transform_0, window_bounds = array<i64: 1, 300, 2048>}, {pipeline_mode = #tpu.pipeline_mode<synchronous>, transform_indices = @transform_1, window_bounds = array<i64: 150, 300>}, {pipeline_mode = #tpu.pipeline_mode<synchronous>, transform_indices = @transform_2, window_bounds = array<i64: 6, 1>}, {pipeline_mode = #tpu.pipeline_mode<synchronous>, transform_indices = @transform_3, window_bounds = array<i64: 2048, 144>}, {pipeline_mode = #tpu.pipeline_mode<synchronous>, transform_indices = @transform_4, window_bounds = array<i64: 1, 24>}, {transform_indices = @transform_5, window_bounds = array<i64: 1, 1, 24>}]} {
    %c0 = arith.constant 0 : index
    %c0_0 = arith.constant 0 : index
    %0 = vector.load %arg2[%c0, %c0_0] : memref<150x300xbf16, #tpu.memory_space<vmem>>, vector<150x300xbf16>
    %c0_1 = arith.constant 0 : index
    %c0_2 = arith.constant 0 : index
    %c0_3 = arith.constant 0 : index
    %1 = vector.load %arg1[%c0_1, %c0_2, %c0_3] : memref<1x300x2048xbf16, #tpu.memory_space<vmem>>, vector<1x300x2048xbf16>
    %2 = vector.shape_cast %1 : vector<1x300x2048xbf16> to vector<300x2048xbf16>
    %cst = arith.constant dense<0.000000e+00> : vector<150x2048xf32>
    %3 = tpu.matmul %0, %2, %cst {dimension_numbers = #tpu.dot_dimension_numbers<[1], [0], [0], [1], [0, 0, 1, 1], [], []>} : vector<150x300xbf16>, vector<300x2048xbf16>, vector<150x2048xf32> -> vector<150x2048xf32>
    %4 = vector.extract_strided_slice %3 {offsets = [0, 0], sizes = [25, 2048], strides = [1, 1]} : vector<150x2048xf32> to vector<25x2048xf32>
    %cst_4 = arith.constant dense<0xFF800000> : vector<2048xf32>
    %5 = vector.multi_reduction <maximumf>, %4, %cst_4 [0] : vector<25x2048xf32> to vector<2048xf32>
    %6 = vector.shape_cast %5 : vector<2048xf32> to vector<1x2048xf32>
    %c0_5 = arith.constant 0 : index
    %c0_6 = arith.constant 0 : index
    %7 = vector.load %arg3[%c0_5, %c0_6] : memref<6x1xf32, #tpu.memory_space<vmem>>, vector<1x1xf32>
    %8 = vector.broadcast %7 : vector<1x1xf32> to vector<1x2048xf32>
    %9 = arith.addf %6, %8 : vector<1x2048xf32>
    %cst_7 = arith.constant 0.000000e+00 : f32
    %10 = vector.broadcast %cst_7 : f32 to vector<1x2048xf32>
    %11 = arith.maximumf %9, %10 : vector<1x2048xf32>
    %c0_8 = arith.constant 0 : index
    %c0_9 = arith.constant 0 : index
    %12 = vector.load %arg7[%c0_8, %c0_9] : memref<6x2048xf32, #tpu.memory_space<vmem>>, vector<1x2048xf32>
    tpu.vector_store %arg7[%c0_8, %c0_9], %11 {strides = array<i32>} : memref<6x2048xf32, #tpu.memory_space<vmem>>, vector<1x2048xf32>,
    %13 = vector.extract_strided_slice %3 {offsets = [25, 0], sizes = [25, 2048], strides = [1, 1]} : vector<150x2048xf32> to vector<25x2048xf32>
    %cst_10 = arith.constant dense<0xFF800000> : vector<2048xf32>
    %14 = vector.multi_reduction <maximumf>, %13, %cst_10 [0] : vector<25x2048xf32> to vector<2048xf32>
    %15 = vector.shape_cast %14 : vector<2048xf32> to vector<1x2048xf32>
    %c1 = arith.constant 1 : index
    %c0_11 = arith.constant 0 : index
    %16 = vector.load %arg3[%c1, %c0_11] : memref<6x1xf32, #tpu.memory_space<vmem>>, vector<1x1xf32>
    %17 = vector.broadcast %16 : vector<1x1xf32> to vector<1x2048xf32>
    %18 = arith.addf %15, %17 : vector<1x2048xf32>
    %cst_12 = arith.constant 0.000000e+00 : f32
    %19 = vector.broadcast %cst_12 : f32 to vector<1x2048xf32>
    %20 = arith.maximumf %18, %19 : vector<1x2048xf32>
    %c1_13 = arith.constant 1 : index
    %c0_14 = arith.constant 0 : index
    %21 = vector.load %arg7[%c1_13, %c0_14] : memref<6x2048xf32, #tpu.memory_space<vmem>>, vector<1x2048xf32>
    tpu.vector_store %arg7[%c1_13, %c0_14], %20 {strides = array<i32>} : memref<6x2048xf32, #tpu.memory_space<vmem>>, vector<1x2048xf32>,
    %22 = vector.extract_strided_slice %3 {offsets = [50, 0], sizes = [25, 2048], strides = [1, 1]} : vector<150x2048xf32> to vector<25x2048xf32>
    %cst_15 = arith.constant dense<0xFF800000> : vector<2048xf32>
    %23 = vector.multi_reduction <maximumf>, %22, %cst_15 [0] : vector<25x2048xf32> to vector<2048xf32>
    %24 = vector.shape_cast %23 : vector<2048xf32> to vector<1x2048xf32>
    %c2 = arith.constant 2 : index
    %c0_16 = arith.constant 0 : index
    %25 = vector.load %arg3[%c2, %c0_16] : memref<6x1xf32, #tpu.memory_space<vmem>>, vector<1x1xf32>
    %26 = vector.broadcast %25 : vector<1x1xf32> to vector<1x2048xf32>
    %27 = arith.addf %24, %26 : vector<1x2048xf32>
    %cst_17 = arith.constant 0.000000e+00 : f32
    %28 = vector.broadcast %cst_17 : f32 to vector<1x2048xf32>
    %29 = arith.maximumf %27, %28 : vector<1x2048xf32>
    %c2_18 = arith.constant 2 : index
    %c0_19 = arith.constant 0 : index
    %30 = vector.load %arg7[%c2_18, %c0_19] : memref<6x2048xf32, #tpu.memory_space<vmem>>, vector<1x2048xf32>
    tpu.vector_store %arg7[%c2_18, %c0_19], %29 {strides = array<i32>} : memref<6x2048xf32, #tpu.memory_space<vmem>>, vector<1x2048xf32>,
    %31 = vector.extract_strided_slice %3 {offsets = [75, 0], sizes = [25, 2048], strides = [1, 1]} : vector<150x2048xf32> to vector<25x2048xf32>
    %cst_20 = arith.constant dense<0xFF800000> : vector<2048xf32>
    %32 = vector.multi_reduction <maximumf>, %31, %cst_20 [0] : vector<25x2048xf32> to vector<2048xf32>
    %33 = vector.shape_cast %32 : vector<2048xf32> to vector<1x2048xf32>
    %c3 = arith.constant 3 : index
    %c0_21 = arith.constant 0 : index
    %34 = vector.load %arg3[%c3, %c0_21] : memref<6x1xf32, #tpu.memory_space<vmem>>, vector<1x1xf32>
    %35 = vector.broadcast %34 : vector<1x1xf32> to vector<1x2048xf32>
    %36 = arith.addf %33, %35 : vector<1x2048xf32>
    %cst_22 = arith.constant 0.000000e+00 : f32
    %37 = vector.broadcast %cst_22 : f32 to vector<1x2048xf32>
    %38 = arith.maximumf %36, %37 : vector<1x2048xf32>
    %c3_23 = arith.constant 3 : index
    %c0_24 = arith.constant 0 : index
    %39 = vector.load %arg7[%c3_23, %c0_24] : memref<6x2048xf32, #tpu.memory_space<vmem>>, vector<1x2048xf32>
    tpu.vector_store %arg7[%c3_23, %c0_24], %38 {strides = array<i32>} : memref<6x2048xf32, #tpu.memory_space<vmem>>, vector<1x2048xf32>,
    %40 = vector.extract_strided_slice %3 {offsets = [100, 0], sizes = [25, 2048], strides = [1, 1]} : vector<150x2048xf32> to vector<25x2048xf32>
    %cst_25 = arith.constant dense<0xFF800000> : vector<2048xf32>
    %41 = vector.multi_reduction <maximumf>, %40, %cst_25 [0] : vector<25x2048xf32> to vector<2048xf32>
    %42 = vector.shape_cast %41 : vector<2048xf32> to vector<1x2048xf32>
    %c4 = arith.constant 4 : index
    %c0_26 = arith.constant 0 : index
    %43 = vector.load %arg3[%c4, %c0_26] : memref<6x1xf32, #tpu.memory_space<vmem>>, vector<1x1xf32>
    %44 = vector.broadcast %43 : vector<1x1xf32> to vector<1x2048xf32>
    %45 = arith.addf %42, %44 : vector<1x2048xf32>
    %cst_27 = arith.constant 0.000000e+00 : f32
    %46 = vector.broadcast %cst_27 : f32 to vector<1x2048xf32>
    %47 = arith.maximumf %45, %46 : vector<1x2048xf32>
    %c4_28 = arith.constant 4 : index
    %c0_29 = arith.constant 0 : index
    %48 = vector.load %arg7[%c4_28, %c0_29] : memref<6x2048xf32, #tpu.memory_space<vmem>>, vector<1x2048xf32>
    tpu.vector_store %arg7[%c4_28, %c0_29], %47 {strides = array<i32>} : memref<6x2048xf32, #tpu.memory_space<vmem>>, vector<1x2048xf32>,
    %49 = vector.extract_strided_slice %3 {offsets = [125, 0], sizes = [25, 2048], strides = [1, 1]} : vector<150x2048xf32> to vector<25x2048xf32>
    %cst_30 = arith.constant dense<0xFF800000> : vector<2048xf32>
    %50 = vector.multi_reduction <maximumf>, %49, %cst_30 [0] : vector<25x2048xf32> to vector<2048xf32>
    %51 = vector.shape_cast %50 : vector<2048xf32> to vector<1x2048xf32>
    %c5 = arith.constant 5 : index
    %c0_31 = arith.constant 0 : index
    %52 = vector.load %arg3[%c5, %c0_31] : memref<6x1xf32, #tpu.memory_space<vmem>>, vector<1x1xf32>
    %53 = vector.broadcast %52 : vector<1x1xf32> to vector<1x2048xf32>
    %54 = arith.addf %51, %53 : vector<1x2048xf32>
    %cst_32 = arith.constant 0.000000e+00 : f32
    %55 = vector.broadcast %cst_32 : f32 to vector<1x2048xf32>
    %56 = arith.maximumf %54, %55 : vector<1x2048xf32>
    %c5_33 = arith.constant 5 : index
    %c0_34 = arith.constant 0 : index
    %57 = vector.load %arg7[%c5_33, %c0_34] : memref<6x2048xf32, #tpu.memory_space<vmem>>, vector<1x2048xf32>
    tpu.vector_store %arg7[%c5_33, %c0_34], %56 {strides = array<i32>} : memref<6x2048xf32, #tpu.memory_space<vmem>>, vector<1x2048xf32>,
    %c0_35 = arith.constant 0 : index
    %c0_36 = arith.constant 0 : index
    %58 = vector.load %arg7[%c0_35, %c0_36] : memref<6x2048xf32, #tpu.memory_space<vmem>>, vector<6x2048xf32>
    %c0_37 = arith.constant 0 : index
    %c0_38 = arith.constant 0 : index
    %59 = vector.load %arg4[%c0_37, %c0_38] : memref<2048x144xf32, #tpu.memory_space<vmem>>, vector<2048x144xf32>
    %cst_39 = arith.constant dense<0.000000e+00> : vector<6x144xf32>
    %60 = tpu.matmul %58, %59, %cst_39 {dimension_numbers = #tpu.dot_dimension_numbers<[1], [0], [0], [1], [0, 0, 1, 1], [], []>} : vector<6x2048xf32>, vector<2048x144xf32>, vector<6x144xf32> -> vector<6x144xf32>
    %c0_40 = arith.constant 0 : index
    %c0_41 = arith.constant 0 : index
    %61 = vector.load %arg5[%c0_40, %c0_41] : memref<1x24xf32, #tpu.memory_space<vmem>>, vector<1x24xf32>
    %62 = vector.extract_strided_slice %60 {offsets = [0, 0], sizes = [1, 24], strides = [1, 1]} : vector<6x144xf32> to vector<1x24xf32>
    %63 = arith.addf %61, %62 : vector<1x24xf32>
    %64 = vector.extract_strided_slice %60 {offsets = [1, 24], sizes = [1, 24], strides = [1, 1]} : vector<6x144xf32> to vector<1x24xf32>
    %65 = arith.addf %63, %64 : vector<1x24xf32>
    %66 = vector.extract_strided_slice %60 {offsets = [2, 48], sizes = [1, 24], strides = [1, 1]} : vector<6x144xf32> to vector<1x24xf32>
    %67 = arith.addf %65, %66 : vector<1x24xf32>
    %68 = vector.extract_strided_slice %60 {offsets = [3, 72], sizes = [1, 24], strides = [1, 1]} : vector<6x144xf32> to vector<1x24xf32>
    %69 = arith.addf %67, %68 : vector<1x24xf32>
    %70 = vector.extract_strided_slice %60 {offsets = [4, 96], sizes = [1, 24], strides = [1, 1]} : vector<6x144xf32> to vector<1x24xf32>
    %71 = arith.addf %69, %70 : vector<1x24xf32>
    %72 = vector.extract_strided_slice %60 {offsets = [5, 120], sizes = [1, 24], strides = [1, 1]} : vector<6x144xf32> to vector<1x24xf32>
    %73 = arith.addf %71, %72 : vector<1x24xf32>
    %c0_42 = arith.constant 0 : index
    %c0_43 = arith.constant 0 : index
    %c0_44 = arith.constant 0 : index
    %74 = vector.load %arg6[%c0_42, %c0_43, %c0_44] : memref<1x1x24xf32, #tpu.memory_space<vmem>>, vector<1x1x24xf32>
    %75 = vector.shape_cast %74 : vector<1x1x24xf32> to vector<1x24xf32>
    %76 = vector.shape_cast %73 : vector<1x24xf32> to vector<1x1x24xf32>
    tpu.vector_store %arg6[%c0_42, %c0_43, %c0_44], %76 {strides = array<i32>} : memref<1x1x24xf32, #tpu.memory_space<vmem>>, vector<1x1x24xf32>,
    return
  }
  func.func @transform_0(%arg0: i32) -> (i32, i32, i32) {
    %c0_i32 = arith.constant 0 : i32
    %c0_i32_0 = arith.constant 0 : i32
    %c0_i32_1 = arith.constant 0 : i32
    return %arg0, %c0_i32, %c0_i32_0 : i32, i32, i32
  }
  func.func @transform_1(%arg0: i32) -> (i32, i32) {
    %c0_i32 = arith.constant 0 : i32
    %c0_i32_0 = arith.constant 0 : i32
    %c0_i32_1 = arith.constant 0 : i32
    return %c0_i32, %c0_i32_0 : i32, i32
  }
  func.func @transform_2(%arg0: i32) -> (i32, i32) {
    %c0_i32 = arith.constant 0 : i32
    %c0_i32_0 = arith.constant 0 : i32
    %c0_i32_1 = arith.constant 0 : i32
    return %c0_i32, %c0_i32_0 : i32, i32
  }
  func.func @transform_3(%arg0: i32) -> (i32, i32) {
    %c0_i32 = arith.constant 0 : i32
    %c0_i32_0 = arith.constant 0 : i32
    %c0_i32_1 = arith.constant 0 : i32
    return %c0_i32, %c0_i32_0 : i32, i32
  }
  func.func @transform_4(%arg0: i32) -> (i32, i32) {
    %c0_i32 = arith.constant 0 : i32
    %c0_i32_0 = arith.constant 0 : i32
    %c0_i32_1 = arith.constant 0 : i32
    return %c0_i32, %c0_i32_0 : i32, i32
  }
  func.func @transform_5(%arg0: i32) -> (i32, i32, i32) {
    %c0_i32 = arith.constant 0 : i32
    %c0_i32_0 = arith.constant 0 : i32
    %c0_i32_1 = arith.constant 0 : i32
    return %arg0, %c0_i32, %c0_i32_0 : i32, i32, i32
  }
}

module attributes {stable_mosaic.version = 11 : i64} {
  func.func @_lstm_kernel(%arg0: i32, %arg1: memref<4x24xf32, #tpu.memory_space<vmem>>, %arg2: memref<6x24xf32, #tpu.memory_space<vmem>>, %arg3: memref<6x5xf32, #tpu.memory_space<vmem>>, %arg4: memref<1x5xf32, #tpu.memory_space<vmem>>, %arg5: memref<2x5xf32, #tpu.memory_space<vmem>>) attributes {dimension_semantics = [#tpu.dimension_semantics<arbitrary>], iteration_bounds = array<i64: 1>, scalar_prefetch = 0 : i64, scratch_operands = 0 : i64, tpu.core_type = #tpu.core_type<tc>, window_params = [{pipeline_mode = #tpu.pipeline_mode<synchronous>, transform_indices = @transform_0, window_bounds = array<i64: 4, 24>}, {pipeline_mode = #tpu.pipeline_mode<synchronous>, transform_indices = @transform_1, window_bounds = array<i64: 6, 24>}, {pipeline_mode = #tpu.pipeline_mode<synchronous>, transform_indices = @transform_2, window_bounds = array<i64: 6, 5>}, {pipeline_mode = #tpu.pipeline_mode<synchronous>, transform_indices = @transform_3, window_bounds = array<i64: 1, 5>}, {pipeline_mode = #tpu.pipeline_mode<synchronous>, transform_indices = @transform_4, window_bounds = array<i64: 2, 5>}]} {
    %c0 = arith.constant 0 : index
    %c0_0 = arith.constant 0 : index
    %0 = vector.load %arg2[%c0, %c0_0] : memref<6x24xf32, #tpu.memory_space<vmem>>, vector<6x24xf32>
    %cst = arith.constant 0.000000e+00 : f32
    %1 = vector.broadcast %cst : f32 to vector<1x6xf32>
    %cst_1 = arith.constant 0.000000e+00 : f32
    %2 = vector.broadcast %cst_1 : f32 to vector<1x6xf32>
    %c0_i32 = arith.constant 0 : i32
    %c2_i32 = arith.constant 2 : i32
    %3 = arith.addi %c0_i32, %c2_i32 : i32
    %c1_i32 = arith.constant 1 : i32
    %4:2 = scf.for %arg6 = %c0_i32 to %3 step %c1_i32 iter_args(%arg7 = %1, %arg8 = %2) -> (vector<1x6xf32>, vector<1x6xf32>)  : i32 {
      %71 = arith.index_cast %arg6 : i32 to index
      %c0_26 = arith.constant 0 : index
      %72 = vector.load %arg1[%71, %c0_26] : memref<4x24xf32, #tpu.memory_space<vmem>>, vector<1x24xf32>
      %cst_27 = arith.constant dense<0.000000e+00> : vector<1x24xf32>
      %73 = tpu.matmul %arg7, %0, %cst_27 {dimension_numbers = #tpu.dot_dimension_numbers<[1], [0], [0], [1], [0, 0, 1, 1], [], []>, precision = #tpu.contract_precision<fp32>} : vector<1x6xf32>, vector<6x24xf32>, vector<1x24xf32> -> vector<1x24xf32>
      %74 = arith.addf %72, %73 : vector<1x24xf32>
      %75 = vector.extract_strided_slice %74 {offsets = [0, 0], sizes = [1, 6], strides = [1, 1]} : vector<1x24xf32> to vector<1x6xf32>
      %76 = arith.negf %75 : vector<1x6xf32>
      %77 = math.exp %76 : vector<1x6xf32>
      %cst_28 = arith.constant 1.000000e+00 : f32
      %78 = vector.broadcast %cst_28 : f32 to vector<1x6xf32>
      %79 = arith.addf %78, %77 : vector<1x6xf32>
      %80 = arith.divf %78, %79 : vector<1x6xf32>
      %81 = vector.extract_strided_slice %74 {offsets = [0, 6], sizes = [1, 6], strides = [1, 1]} : vector<1x24xf32> to vector<1x6xf32>
      %82 = arith.negf %81 : vector<1x6xf32>
      %83 = math.exp %82 : vector<1x6xf32>
      %cst_29 = arith.constant 1.000000e+00 : f32
      %84 = vector.broadcast %cst_29 : f32 to vector<1x6xf32>
      %85 = arith.addf %84, %83 : vector<1x6xf32>
      %86 = arith.divf %84, %85 : vector<1x6xf32>
      %87 = vector.extract_strided_slice %74 {offsets = [0, 12], sizes = [1, 6], strides = [1, 1]} : vector<1x24xf32> to vector<1x6xf32>
      %88 = math.tanh %87 : vector<1x6xf32>
      %89 = vector.extract_strided_slice %74 {offsets = [0, 18], sizes = [1, 6], strides = [1, 1]} : vector<1x24xf32> to vector<1x6xf32>
      %90 = arith.negf %89 : vector<1x6xf32>
      %91 = math.exp %90 : vector<1x6xf32>
      %cst_30 = arith.constant 1.000000e+00 : f32
      %92 = vector.broadcast %cst_30 : f32 to vector<1x6xf32>
      %93 = arith.addf %92, %91 : vector<1x6xf32>
      %94 = arith.divf %92, %93 : vector<1x6xf32>
      %95 = arith.mulf %86, %arg8 : vector<1x6xf32>
      %96 = arith.mulf %80, %88 : vector<1x6xf32>
      %97 = arith.addf %95, %96 : vector<1x6xf32>
      %98 = math.tanh %97 : vector<1x6xf32>
      %99 = arith.mulf %94, %98 : vector<1x6xf32>
      scf.yield %99, %97 : vector<1x6xf32>, vector<1x6xf32>
    }
    %c2_i32_2 = arith.constant 2 : i32
    %c2 = arith.constant 2 : index
    %c0_3 = arith.constant 0 : index
    %5 = vector.load %arg1[%c2, %c0_3] : memref<4x24xf32, #tpu.memory_space<vmem>>, vector<1x24xf32>
    %cst_4 = arith.constant dense<0.000000e+00> : vector<1x24xf32>
    %6 = tpu.matmul %4#0, %0, %cst_4 {dimension_numbers = #tpu.dot_dimension_numbers<[1], [0], [0], [1], [0, 0, 1, 1], [], []>, precision = #tpu.contract_precision<fp32>} : vector<1x6xf32>, vector<6x24xf32>, vector<1x24xf32> -> vector<1x24xf32>
    %7 = arith.addf %5, %6 : vector<1x24xf32>
    %8 = vector.extract_strided_slice %7 {offsets = [0, 0], sizes = [1, 6], strides = [1, 1]} : vector<1x24xf32> to vector<1x6xf32>
    %9 = arith.negf %8 : vector<1x6xf32>
    %10 = math.exp %9 : vector<1x6xf32>
    %cst_5 = arith.constant 1.000000e+00 : f32
    %11 = vector.broadcast %cst_5 : f32 to vector<1x6xf32>
    %12 = arith.addf %11, %10 : vector<1x6xf32>
    %13 = arith.divf %11, %12 : vector<1x6xf32>
    %14 = vector.extract_strided_slice %7 {offsets = [0, 6], sizes = [1, 6], strides = [1, 1]} : vector<1x24xf32> to vector<1x6xf32>
    %15 = arith.negf %14 : vector<1x6xf32>
    %16 = math.exp %15 : vector<1x6xf32>
    %cst_6 = arith.constant 1.000000e+00 : f32
    %17 = vector.broadcast %cst_6 : f32 to vector<1x6xf32>
    %18 = arith.addf %17, %16 : vector<1x6xf32>
    %19 = arith.divf %17, %18 : vector<1x6xf32>
    %20 = vector.extract_strided_slice %7 {offsets = [0, 12], sizes = [1, 6], strides = [1, 1]} : vector<1x24xf32> to vector<1x6xf32>
    %21 = math.tanh %20 : vector<1x6xf32>
    %22 = vector.extract_strided_slice %7 {offsets = [0, 18], sizes = [1, 6], strides = [1, 1]} : vector<1x24xf32> to vector<1x6xf32>
    %23 = arith.negf %22 : vector<1x6xf32>
    %24 = math.exp %23 : vector<1x6xf32>
    %cst_7 = arith.constant 1.000000e+00 : f32
    %25 = vector.broadcast %cst_7 : f32 to vector<1x6xf32>
    %26 = arith.addf %25, %24 : vector<1x6xf32>
    %27 = arith.divf %25, %26 : vector<1x6xf32>
    %28 = arith.mulf %19, %4#1 : vector<1x6xf32>
    %29 = arith.mulf %13, %21 : vector<1x6xf32>
    %30 = arith.addf %28, %29 : vector<1x6xf32>
    %31 = math.tanh %30 : vector<1x6xf32>
    %32 = arith.mulf %27, %31 : vector<1x6xf32>
    %c0_8 = arith.constant 0 : index
    %c0_9 = arith.constant 0 : index
    %33 = vector.load %arg3[%c0_8, %c0_9] : memref<6x5xf32, #tpu.memory_space<vmem>>, vector<6x5xf32>
    %cst_10 = arith.constant dense<0.000000e+00> : vector<1x5xf32>
    %34 = tpu.matmul %32, %33, %cst_10 {dimension_numbers = #tpu.dot_dimension_numbers<[1], [0], [0], [1], [0, 0, 1, 1], [], []>, precision = #tpu.contract_precision<fp32>} : vector<1x6xf32>, vector<6x5xf32>, vector<1x5xf32> -> vector<1x5xf32>
    %c0_11 = arith.constant 0 : index
    %c0_12 = arith.constant 0 : index
    %35 = vector.load %arg4[%c0_11, %c0_12] : memref<1x5xf32, #tpu.memory_space<vmem>>, vector<1x5xf32>
    %36 = arith.addf %34, %35 : vector<1x5xf32>
    %c0_13 = arith.constant 0 : index
    %c0_14 = arith.constant 0 : index
    %37 = vector.load %arg5[%c0_13, %c0_14] : memref<2x5xf32, #tpu.memory_space<vmem>>, vector<1x5xf32>
    tpu.vector_store %arg5[%c0_13, %c0_14], %36 {strides = array<i32>} : memref<2x5xf32, #tpu.memory_space<vmem>>, vector<1x5xf32>,
    %c3 = arith.constant 3 : index
    %c0_15 = arith.constant 0 : index
    %38 = vector.load %arg1[%c3, %c0_15] : memref<4x24xf32, #tpu.memory_space<vmem>>, vector<1x24xf32>
    %cst_16 = arith.constant dense<0.000000e+00> : vector<1x24xf32>
    %39 = tpu.matmul %32, %0, %cst_16 {dimension_numbers = #tpu.dot_dimension_numbers<[1], [0], [0], [1], [0, 0, 1, 1], [], []>, precision = #tpu.contract_precision<fp32>} : vector<1x6xf32>, vector<6x24xf32>, vector<1x24xf32> -> vector<1x24xf32>
    %40 = arith.addf %38, %39 : vector<1x24xf32>
    %41 = vector.extract_strided_slice %40 {offsets = [0, 0], sizes = [1, 6], strides = [1, 1]} : vector<1x24xf32> to vector<1x6xf32>
    %42 = arith.negf %41 : vector<1x6xf32>
    %43 = math.exp %42 : vector<1x6xf32>
    %cst_17 = arith.constant 1.000000e+00 : f32
    %44 = vector.broadcast %cst_17 : f32 to vector<1x6xf32>
    %45 = arith.addf %44, %43 : vector<1x6xf32>
    %46 = arith.divf %44, %45 : vector<1x6xf32>
    %47 = vector.extract_strided_slice %40 {offsets = [0, 6], sizes = [1, 6], strides = [1, 1]} : vector<1x24xf32> to vector<1x6xf32>
    %48 = arith.negf %47 : vector<1x6xf32>
    %49 = math.exp %48 : vector<1x6xf32>
    %cst_18 = arith.constant 1.000000e+00 : f32
    %50 = vector.broadcast %cst_18 : f32 to vector<1x6xf32>
    %51 = arith.addf %50, %49 : vector<1x6xf32>
    %52 = arith.divf %50, %51 : vector<1x6xf32>
    %53 = vector.extract_strided_slice %40 {offsets = [0, 12], sizes = [1, 6], strides = [1, 1]} : vector<1x24xf32> to vector<1x6xf32>
    %54 = math.tanh %53 : vector<1x6xf32>
    %55 = vector.extract_strided_slice %40 {offsets = [0, 18], sizes = [1, 6], strides = [1, 1]} : vector<1x24xf32> to vector<1x6xf32>
    %56 = arith.negf %55 : vector<1x6xf32>
    %57 = math.exp %56 : vector<1x6xf32>
    %cst_19 = arith.constant 1.000000e+00 : f32
    %58 = vector.broadcast %cst_19 : f32 to vector<1x6xf32>
    %59 = arith.addf %58, %57 : vector<1x6xf32>
    %60 = arith.divf %58, %59 : vector<1x6xf32>
    %61 = arith.mulf %52, %30 : vector<1x6xf32>
    %62 = arith.mulf %46, %54 : vector<1x6xf32>
    %63 = arith.addf %61, %62 : vector<1x6xf32>
    %64 = math.tanh %63 : vector<1x6xf32>
    %65 = arith.mulf %60, %64 : vector<1x6xf32>
    %c0_20 = arith.constant 0 : index
    %c0_21 = arith.constant 0 : index
    %66 = vector.load %arg3[%c0_20, %c0_21] : memref<6x5xf32, #tpu.memory_space<vmem>>, vector<6x5xf32>
    %cst_22 = arith.constant dense<0.000000e+00> : vector<1x5xf32>
    %67 = tpu.matmul %65, %66, %cst_22 {dimension_numbers = #tpu.dot_dimension_numbers<[1], [0], [0], [1], [0, 0, 1, 1], [], []>, precision = #tpu.contract_precision<fp32>} : vector<1x6xf32>, vector<6x5xf32>, vector<1x5xf32> -> vector<1x5xf32>
    %c0_23 = arith.constant 0 : index
    %c0_24 = arith.constant 0 : index
    %68 = vector.load %arg4[%c0_23, %c0_24] : memref<1x5xf32, #tpu.memory_space<vmem>>, vector<1x5xf32>
    %69 = arith.addf %67, %68 : vector<1x5xf32>
    %c1 = arith.constant 1 : index
    %c0_25 = arith.constant 0 : index
    %70 = vector.load %arg5[%c1, %c0_25] : memref<2x5xf32, #tpu.memory_space<vmem>>, vector<1x5xf32>
    tpu.vector_store %arg5[%c1, %c0_25], %69 {strides = array<i32>} : memref<2x5xf32, #tpu.memory_space<vmem>>, vector<1x5xf32>,
    return
  }
  func.func @transform_0(%arg0: i32) -> (i32, i32) {
    %c0_i32 = arith.constant 0 : i32
    %c0_i32_0 = arith.constant 0 : i32
    %c0_i32_1 = arith.constant 0 : i32
    return %c0_i32, %c0_i32_0 : i32, i32
  }
  func.func @transform_1(%arg0: i32) -> (i32, i32) {
    %c0_i32 = arith.constant 0 : i32
    %c0_i32_0 = arith.constant 0 : i32
    %c0_i32_1 = arith.constant 0 : i32
    return %c0_i32, %c0_i32_0 : i32, i32
  }
  func.func @transform_2(%arg0: i32) -> (i32, i32) {
    %c0_i32 = arith.constant 0 : i32
    %c0_i32_0 = arith.constant 0 : i32
    %c0_i32_1 = arith.constant 0 : i32
    return %c0_i32, %c0_i32_0 : i32, i32
  }
  func.func @transform_3(%arg0: i32) -> (i32, i32) {
    %c0_i32 = arith.constant 0 : i32
    %c0_i32_0 = arith.constant 0 : i32
    %c0_i32_1 = arith.constant 0 : i32
    return %c0_i32, %c0_i32_0 : i32, i32
  }
  func.func @transform_4(%arg0: i32) -> (i32, i32) {
    %c0_i32 = arith.constant 0 : i32
    %c0_i32_0 = arith.constant 0 : i32
    %c0_i32_1 = arith.constant 0 : i32
    return %c0_i32, %c0_i32_0 : i32, i32
  }
}

</mosaic_0001>

<llo_original>
// kernel: encoder_forward.3
$region0: #{encoder_forward.3}
  #allocation0 [shape = 'u32[]', space=smem, size = 0x4, offset = 0x4, fixed_abs, tag = 'smem constant byte address 0x4 - core index']
  #allocation1 [shape = 'u32[144,128]{1,0:T(1,128)}', space=vmem, size = 0x12000, scoped, tag = 'internal scratch']
  %s0 = inlined_call_operand.vmem [shape: f32[4,24], index: 0, kind: input, shape index: {}]
  %s1 = inlined_call_operand.vmem [shape: f32[6,24], index: 1, kind: input, shape index: {}]
  %s2 = inlined_call_operand.vmem [shape: f32[6,5], index: 2, kind: input, shape index: {}]
  %s3 = inlined_call_operand.vmem [shape: f32[1,5], index: 3, kind: input, shape index: {}]
  %s4 = inlined_call_operand.hbm [shape: f32[2,5], index: 4, kind: output, shape index: {}]
  %s5 = sld [smem:[#allocation0]]
  $region33: #{encoder_forward.3} parent=0
    _
  %s7 = ssub.s32 1, %s5
  %s8 = scalar_select 0, %s7, %s5
  $region1: #{encoder_forward.3} parent=0
    #allocation2 [shape = 'u8[1024]{0}', space=vmem, size = 0x400, scoped, tag = 'output window, operand 0, single buffered']
    #allocation3 [shape = 's32[1]{0}', space=sflag, size = 0x4, scoped, tag = 'scoped memory for encoder_forward.3']
    %9 = vsyncpa [#allocation3], 0
    // Predicated region
    $region2: #{encoder_forward.3} parent=1 // pred_check
      _
    $region3: #{encoder_forward.3} parent=1 // pred_check_branch
      %11 = sbr.rel (0) target = $region5
    $region4: #{encoder_forward.3} parent=1 // pred_region
      _
    $region5: #{encoder_forward.3} parent=1 // pred_fallthru
      _
    // Predicated region
    $region6: #{encoder_forward.3} parent=1 // pred_check
      _
    $region7: #{encoder_forward.3} parent=1 // pred_check_branch
      %13 = sbr.rel (0) target = $region9
    $region8: #{encoder_forward.3} parent=1 // pred_region
      _
    $region9: #{encoder_forward.3} parent=1 // pred_fallthru
      _
    // Predicated region
    $region10: #{encoder_forward.3} parent=1 // pred_check
      _
    $region11: #{encoder_forward.3} parent=1 // pred_check_branch
      %15 = sbr.rel (0) target = $region13
    $region12: #{encoder_forward.3} parent=1 // pred_region
      _
    $region13: #{encoder_forward.3} parent=1 // pred_fallthru
      _
    // Predicated region
    $region14: #{encoder_forward.3} parent=1 // pred_check
      _
    $region15: #{encoder_forward.3} parent=1 // pred_check_branch
      %17 = sbr.rel (0) target = $region17
    $region16: #{encoder_forward.3} parent=1 // pred_region
      _
    $region17: #{encoder_forward.3} parent=1 // pred_fallthru
      _
    %v18 = vld [vmem:[%s1] sm:$0x3f]
    loop: start=0, step=1, limit=2
    $region18: #{encoder_forward.3} parent=1 // loop_pre_header
      _
    $region19: #{encoder_forward.3} parent=1 // loop_header
      %s20 = sphi 0, %s24
      %p21 = scmp.ge.s32.totalorder %s20, 2
      %v25 = vphi 0.0, %v509
      %v26 = vphi 0.0, %v503
    $region20: #{encoder_forward.3} parent=1 // loop_header_branch
      %23 = sbr.rel (%p21) target = $region24
    $region21: #{encoder_forward.3} parent=1 // loop_body
      %s27 = scalar_lea.vmem %s0, %s20
      %v28 = vld [vmem:[%s27] sm:$0x1]
      %30 = vrot.lane.b32.xlu0 %v25, 110
      %v31 = vpop.permute.xlu0 %30
      %vm32 = vcmask 48128
      %v33 = vsel %vm32, %v31, 0
      %vm35 = vcmask 1045504
      %v37 = vsel %vm35, %v18, 0
      %39 = vmatprep.subr.mxu0 0.0
      %v40 = vand.u32 %v37, 4294901760
      %41 = vmatpush1.msra.mxu0 %v40
      %42 = vmatprep.subr.mxu0 0.0
      %43 = vmatpush1.msra.mxu0 0.0
      %44 = vmatprep.subr.mxu0 0.0
      %45 = vmatpush1.msra.mxu0 0.0
      %46 = vmatprep.subr.mxu0 0.0
      %47 = vmatpush1.msra.mxu0 0.0
      %48 = vmatprep.subr.mxu0 0.0
      %49 = vmatpush1.msra.mxu0 0.0
      %50 = vmatprep.subr.mxu0 0.0
      %51 = vmatpush1.msra.mxu0 0.0
      %52 = vmatprep.subr.mxu0 0.0
      %53 = vmatpush1.msra.mxu0 0.0
      %54 = vmatprep.subr.mxu0 0.0
      %55 = vmatpush1.msra.mxu0 0.0
      %56 = vmatprep.subr.mxu0 0.0
      %57 = vmatpush1.msra.mxu0 0.0
      %58 = vmatprep.subr.mxu0 0.0
      %59 = vmatpush1.msra.mxu0 0.0
      %60 = vmatprep.subr.mxu0 0.0
      %61 = vmatpush1.msra.mxu0 0.0
      %62 = vmatprep.subr.mxu0 0.0
      %63 = vmatpush1.msra.mxu0 0.0
      %64 = vmatprep.subr.mxu0 0.0
      %65 = vmatpush1.msra.mxu0 0.0
      %66 = vmatprep.subr.mxu0 0.0
      %67 = vmatpush1.msra.mxu0 0.0
      %68 = vmatprep.subr.mxu0 0.0
      %69 = vmatpush1.msra.mxu0 0.0
      %70 = vmatprep.subr.mxu0 0.0
      %71 = vmatpush1.msra.mxu0 0.0
      %72 = vmatprep.subr.mxu0 0.0
      %73 = vmatpush1.msra.mxu0 0.0
      %74 = vmatprep.subr.mxu0 0.0
      %75 = vmatpush1.msra.mxu0 0.0
      %76 = vmatprep.subr.mxu0 0.0
      %77 = vmatpush1.msra.mxu0 0.0
      %78 = vmatprep.subr.mxu0 0.0
      %79 = vmatpush1.msra.mxu0 0.0
      %80 = vmatprep.subr.mxu0 0.0
      %81 = vmatpush1.msra.mxu0 0.0
      %82 = vmatprep.subr.mxu0 0.0
      %83 = vmatpush1.msra.mxu0 0.0
      %84 = vmatprep.subr.mxu0 0.0
      %85 = vmatpush1.msra.mxu0 0.0
      %86 = vmatprep.subr.mxu0 0.0
      %87 = vmatpush1.msra.mxu0 0.0
      %88 = vmatprep.subr.mxu0 0.0
      %89 = vmatpush1.msra.mxu0 0.0
      %90 = vmatprep.subr.mxu0 0.0
      %91 = vmatpush1.msra.mxu0 0.0
      %92 = vmatprep.subr.mxu0 0.0
      %93 = vmatpush1.msra.mxu0 0.0
      %94 = vmatprep.subr.mxu0 0.0
      %95 = vmatpush1.msra.mxu0 0.0
      %96 = vmatprep.subr.mxu0 0.0
      %97 = vmatpush1.msra.mxu0 0.0
      %98 = vmatprep.subr.mxu0 0.0
      %99 = vmatpush1.msra.mxu0 0.0
      %100 = vmatprep.subr.mxu0 0.0
      %101 = vmatpush1.msra.mxu0 0.0
      %102 = vmatprep.subr.mxu0 0.0
      %103 = vmatpush1.msra.mxu0 0.0
      %104 = vmatprep.mubr.f32.mxu0 0.0
      %v105 = vand.u32 %v33, 4294901760
      %v106 = vsub.f32 %v33, %v105
      %v107 = vand.u32 %v106, 4294901760
      %v108 = vsub.f32 %v106, %v107
      %v109 = vand.u32 %v108, 4294901760
      %110 = vmatmul.mubr.f32.gmra.mrb[0].mxu0 %v109
      %v111 = vpop.f32.mrb[0].mxu0
      %v112 = vadd.f32 0.0, %v111
      %v113 = vpop.f32.mrb[0].mxu0
      %114 = vdwg.mxu0
      %115 = vmatprep.subr.mxu0 0.0
      %v116 = vand.u32 %v37, 4294901760
      %v117 = vsub.f32 %v37, %v116
      %v118 = vand.u32 %v117, 4294901760
      %v119 = vsub.f32 %v117, %v118
      %v120 = vand.u32 %v119, 4294901760
      %121 = vmatpush1.msra.mxu0 %v120
      %122 = vmatprep.subr.mxu0 0.0
      %123 = vmatpush1.msra.mxu0 0.0
      %124 = vmatprep.subr.mxu0 0.0
      %125 = vmatpush1.msra.mxu0 0.0
      %126 = vmatprep.subr.mxu0 0.0
      %127 = vmatpush1.msra.mxu0 0.0
      %128 = vmatprep.subr.mxu0 0.0
      %129 = vmatpush1.msra.mxu0 0.0
      %130 = vmatprep.subr.mxu0 0.0
      %131 = vmatpush1.msra.mxu0 0.0
      %132 = vmatprep.subr.mxu0 0.0
      %133 = vmatpush1.msra.mxu0 0.0
      %134 = vmatprep.subr.mxu0 0.0
      %135 = vmatpush1.msra.mxu0 0.0
      %136 = vmatprep.subr.mxu0 0.0
      %137 = vmatpush1.msra.mxu0 0.0
      %138 = vmatprep.subr.mxu0 0.0
      %139 = vmatpush1.msra.mxu0 0.0
      %140 = vmatprep.subr.mxu0 0.0
      %141 = vmatpush1.msra.mxu0 0.0
      %142 = vmatprep.subr.mxu0 0.0
      %143 = vmatpush1.msra.mxu0 0.0
      %144 = vmatprep.subr.mxu0 0.0
      %145 = vmatpush1.msra.mxu0 0.0
      %146 = vmatprep.subr.mxu0 0.0
      %147 = vmatpush1.msra.mxu0 0.0
      %148 = vmatprep.subr.mxu0 0.0
      %149 = vmatpush1.msra.mxu0 0.0
      %150 = vmatprep.subr.mxu0 0.0
      %151 = vmatpush1.msra.mxu0 0.0
      %152 = vmatprep.subr.mxu0 0.0
      %153 = vmatpush1.msra.mxu0 0.0
      %154 = vmatprep.subr.mxu0 0.0
      %155 = vmatpush1.msra.mxu0 0.0
      %156 = vmatprep.subr.mxu0 0.0
      %157 = vmatpush1.msra.mxu0 0.0
      %158 = vmatprep.subr.mxu0 0.0
      %159 = vmatpush1.msra.mxu0 0.0
      %160 = vmatprep.subr.mxu0 0.0
      %161 = vmatpush1.msra.mxu0 0.0
      %162 = vmatprep.subr.mxu0 0.0
      %163 = vmatpush1.msra.mxu0 0.0
      %164 = vmatprep.subr.mxu0 0.0
      %165 = vmatpush1.msra.mxu0 0.0
      %166 = vmatprep.subr.mxu0 0.0
      %167 = vmatpush1.msra.mxu0 0.0
      %168 = vmatprep.subr.mxu0 0.0
      %169 = vmatpush1.msra.mxu0 0.0
      %170 = vmatprep.subr.mxu0 0.0
      %171 = vmatpush1.msra.mxu0 0.0
      %172 = vmatprep.subr.mxu0 0.0
      %173 = vmatpush1.msra.mxu0 0.0
      %174 = vmatprep.subr.mxu0 0.0
      %175 = vmatpush1.msra.mxu0 0.0
      %176 = vmatprep.subr.mxu0 0.0
      %177 = vmatpush1.msra.mxu0 0.0
      %178 = vmatprep.subr.mxu0 0.0
      %179 = vmatpush1.msra.mxu0 0.0
      %180 = vmatprep.subr.mxu0 0.0
      %181 = vmatpush1.msra.mxu0 0.0
      %182 = vmatprep.subr.mxu0 0.0
      %183 = vmatpush1.msra.mxu0 0.0
      %184 = vmatprep.mubr.f32.mxu0 0.0
      %v185 = vand.u32 %v33, 4294901760
      %186 = vmatmul.mubr.f32.gmra.mrb[0].mxu0 %v185
      %v187 = vpop.f32.mrb[0].mxu0
      %v188 = vadd.f32 %v112, %v187
      %v189 = vpop.f32.mrb[0].mxu0
      %190 = vdwg.mxu0
      %191 = vmatprep.subr.mxu0 0.0
      %v192 = vand.u32 %v37, 4294901760
      %v193 = vsub.f32 %v37, %v192
      %194 = vmatpush1.msra.mxu0 %v193
      %195 = vmatprep.subr.mxu0 0.0
      %196 = vmatpush1.msra.mxu0 0.0
      %197 = vmatprep.subr.mxu0 0.0
      %198 = vmatpush1.msra.mxu0 0.0
      %199 = vmatprep.subr.mxu0 0.0
      %200 = vmatpush1.msra.mxu0 0.0
      %201 = vmatprep.subr.mxu0 0.0
      %202 = vmatpush1.msra.mxu0 0.0
      %203 = vmatprep.subr.mxu0 0.0
      %204 = vmatpush1.msra.mxu0 0.0
      %205 = vmatprep.subr.mxu0 0.0
      %206 = vmatpush1.msra.mxu0 0.0
      %207 = vmatprep.subr.mxu0 0.0
      %208 = vmatpush1.msra.mxu0 0.0
      %209 = vmatprep.subr.mxu0 0.0
      %210 = vmatpush1.msra.mxu0 0.0
      %211 = vmatprep.subr.mxu0 0.0
      %212 = vmatpush1.msra.mxu0 0.0
      %213 = vmatprep.subr.mxu0 0.0
      %214 = vmatpush1.msra.mxu0 0.0
      %215 = vmatprep.subr.mxu0 0.0
      %216 = vmatpush1.msra.mxu0 0.0
      %217 = vmatprep.subr.mxu0 0.0
      %218 = vmatpush1.msra.mxu0 0.0
      %219 = vmatprep.subr.mxu0 0.0
      %220 = vmatpush1.msra.mxu0 0.0
      %221 = vmatprep.subr.mxu0 0.0
      %222 = vmatpush1.msra.mxu0 0.0
      %223 = vmatprep.subr.mxu0 0.0
      %224 = vmatpush1.msra.mxu0 0.0
      %225 = vmatprep.subr.mxu0 0.0
      %226 = vmatpush1.msra.mxu0 0.0
      %227 = vmatprep.subr.mxu0 0.0
      %228 = vmatpush1.msra.mxu0 0.0
      %229 = vmatprep.subr.mxu0 0.0
      %230 = vmatpush1.msra.mxu0 0.0
      %231 = vmatprep.subr.mxu0 0.0
      %232 = vmatpush1.msra.mxu0 0.0
      %233 = vmatprep.subr.mxu0 0.0
      %234 = vmatpush1.msra.mxu0 0.0
      %235 = vmatprep.subr.mxu0 0.0
      %236 = vmatpush1.msra.mxu0 0.0
      %237 = vmatprep.subr.mxu0 0.0
      %238 = vmatpush1.msra.mxu0 0.0
      %239 = vmatprep.subr.mxu0 0.0
      %240 = vmatpush1.msra.mxu0 0.0
      %241 = vmatprep.subr.mxu0 0.0
      %242 = vmatpush1.msra.mxu0 0.0
      %243 = vmatprep.subr.mxu0 0.0
      %244 = vmatpush1.msra.mxu0 0.0
      %245 = vmatprep.subr.mxu0 0.0
      %246 = vmatpush1.msra.mxu0 0.0
      %247 = vmatprep.subr.mxu0 0.0
      %248 = vmatpush1.msra.mxu0 0.0
      %249 = vmatprep.subr.mxu0 0.0
      %250 = vmatpush1.msra.mxu0 0.0
      %251 = vmatprep.subr.mxu0 0.0
      %252 = vmatpush1.msra.mxu0 0.0
      %253 = vmatprep.subr.mxu0 0.0
      %254 = vmatpush1.msra.mxu0 0.0
      %255 = vmatprep.subr.mxu0 0.0
      %256 = vmatpush1.msra.mxu0 0.0
      %257 = vmatprep.mubr.f32.mxu0 0.0
      %v258 = vand.u32 %v33, 4294901760
      %v259 = vsub.f32 %v33, %v258
      %260 = vmatmul.mubr.f32.gmra.mrb[0].mxu0 %v259
      %v261 = vpop.f32.mrb[0].mxu0
      %v262 = vadd.f32 %v188, %v261
      %v263 = vpop.f32.mrb[0].mxu0
      %264 = vdwg.mxu0
      %265 = vmatprep.subr.mxu0 0.0
      %v266 = vand.u32 %v37, 4294901760
      %267 = vmatpush1.msra.mxu0 %v266
      %268 = vmatprep.subr.mxu0 0.0
      %269 = vmatpush1.msra.mxu0 0.0
      %270 = vmatprep.subr.mxu0 0.0
      %271 = vmatpush1.msra.mxu0 0.0
      %272 = vmatprep.subr.mxu0 0.0
      %273 = vmatpush1.msra.mxu0 0.0
      %274 = vmatprep.subr.mxu0 0.0
      %275 = vmatpush1.msra.mxu0 0.0
      %276 = vmatprep.subr.mxu0 0.0
      %277 = vmatpush1.msra.mxu0 0.0
      %278 = vmatprep.subr.mxu0 0.0
      %279 = vmatpush1.msra.mxu0 0.0
      %280 = vmatprep.subr.mxu0 0.0
      %281 = vmatpush1.msra.mxu0 0.0
      %282 = vmatprep.subr.mxu0 0.0
      %283 = vmatpush1.msra.mxu0 0.0
      %284 = vmatprep.subr.mxu0 0.0
      %285 = vmatpush1.msra.mxu0 0.0
      %286 = vmatprep.subr.mxu0 0.0
      %287 = vmatpush1.msra.mxu0 0.0
      %288 = vmatprep.subr.mxu0 0.0
      %289 = vmatpush1.msra.mxu0 0.0
      %290 = vmatprep.subr.mxu0 0.0
      %291 = vmatpush1.msra.mxu0 0.0
      %292 = vmatprep.subr.mxu0 0.0
      %293 = vmatpush1.msra.mxu0 0.0
      %294 = vmatprep.subr.mxu0 0.0
      %295 = vmatpush1.msra.mxu0 0.0
      %296 = vmatprep.subr.mxu0 0.0
      %297 = vmatpush1.msra.mxu0 0.0
      %298 = vmatprep.subr.mxu0 0.0
      %299 = vmatpush1.msra.mxu0 0.0
      %300 = vmatprep.subr.mxu0 0.0
      %301 = vmatpush1.msra.mxu0 0.0
      %302 = vmatprep.subr.mxu0 0.0
      %303 = vmatpush1.msra.mxu0 0.0
      %304 = vmatprep.subr.mxu0 0.0
      %305 = vmatpush1.msra.mxu0 0.0
      %306 = vmatprep.subr.mxu0 0.0
      %307 = vmatpush1.msra.mxu0 0.0
      %308 = vmatprep.subr.mxu0 0.0
      %309 = vmatpush1.msra.mxu0 0.0
      %310 = vmatprep.subr.mxu0 0.0
      %311 = vmatpush1.msra.mxu0 0.0
      %312 = vmatprep.subr.mxu0 0.0
      %313 = vmatpush1.msra.mxu0 0.0
      %314 = vmatprep.subr.mxu0 0.0
      %315 = vmatpush1.msra.mxu0 0.0
      %316 = vmatprep.subr.mxu0 0.0
      %317 = vmatpush1.msra.mxu0 0.0
      %318 = vmatprep.subr.mxu0 0.0
      %319 = vmatpush1.msra.mxu0 0.0
      %320 = vmatprep.subr.mxu0 0.0
      %321 = vmatpush1.msra.mxu0 0.0
      %322 = vmatprep.subr.mxu0 0.0
      %323 = vmatpush1.msra.mxu0 0.0
      %324 = vmatprep.subr.mxu0 0.0
      %325 = vmatpush1.msra.mxu0 0.0
      %326 = vmatprep.subr.mxu0 0.0
      %327 = vmatpush1.msra.mxu0 0.0
      %328 = vmatprep.subr.mxu0 0.0
      %329 = vmatpush1.msra.mxu0 0.0
      %330 = vmatprep.mubr.f32.mxu0 0.0
      %v331 = vand.u32 %v33, 4294901760
      %v332 = vsub.f32 %v33, %v331
      %v333 = vand.u32 %v332, 4294901760
      %334 = vmatmul.mubr.f32.gmra.mrb[0].mxu0 %v333
      %v335 = vpop.f32.mrb[0].mxu0
      %v336 = vadd.f32 %v262, %v335
      %v337 = vpop.f32.mrb[0].mxu0
      %338 = vdwg.mxu0
      %339 = vmatprep.subr.mxu0 0.0
      %v340 = vand.u32 %v37, 4294901760
      %v341 = vsub.f32 %v37, %v340
      %v342 = vand.u32 %v341, 4294901760
      %343 = vmatpush1.msra.mxu0 %v342
      %344 = vmatprep.subr.mxu0 0.0
      %345 = vmatpush1.msra.mxu0 0.0
      %346 = vmatprep.subr.mxu0 0.0
      %347 = vmatpush1.msra.mxu0 0.0
      %348 = vmatprep.subr.mxu0 0.0
      %349 = vmatpush1.msra.mxu0 0.0
      %350 = vmatprep.subr.mxu0 0.0
      %351 = vmatpush1.msra.mxu0 0.0
      %352 = vmatprep.subr.mxu0 0.0
      %353 = vmatpush1.msra.mxu0 0.0
      %354 = vmatprep.subr.mxu0 0.0
      %355 = vmatpush1.msra.mxu0 0.0
      %356 = vmatprep.subr.mxu0 0.0
      %357 = vmatpush1.msra.mxu0 0.0
      %358 = vmatprep.subr.mxu0 0.0
      %359 = vmatpush1.msra.mxu0 0.0
      %360 = vmatprep.subr.mxu0 0.0
      %361 = vmatpush1.msra.mxu0 0.0
      %362 = vmatprep.subr.mxu0 0.0
      %363 = vmatpush1.msra.mxu0 0.0
      %364 = vmatprep.subr.mxu0 0.0
      %365 = vmatpush1.msra.mxu0 0.0
      %366 = vmatprep.subr.mxu0 0.0
      %367 = vmatpush1.msra.mxu0 0.0
      %368 = vmatprep.subr.mxu0 0.0
      %369 = vmatpush1.msra.mxu0 0.0
      %370 = vmatprep.subr.mxu0 0.0
      %371 = vmatpush1.msra.mxu0 0.0
      %372 = vmatprep.subr.mxu0 0.0
      %373 = vmatpush1.msra.mxu0 0.0
      %374 = vmatprep.subr.mxu0 0.0
      %375 = vmatpush1.msra.mxu0 0.0
      %376 = vmatprep.subr.mxu0 0.0
      %377 = vmatpush1.msra.mxu0 0.0
      %378 = vmatprep.subr.mxu0 0.0
      %379 = vmatpush1.msra.mxu0 0.0
      %380 = vmatprep.subr.mxu0 0.0
      %381 = vmatpush1.msra.mxu0 0.0
      %382 = vmatprep.subr.mxu0 0.0
      %383 = vmatpush1.msra.mxu0 0.0
      %384 = vmatprep.subr.mxu0 0.0
      %385 = vmatpush1.msra.mxu0 0.0
      %386 = vmatprep.subr.mxu0 0.0
      %387 = vmatpush1.msra.mxu0 0.0
      %388 = vmatprep.subr.mxu0 0.0
      %389 = vmatpush1.msra.mxu0 0.0
      %390 = vmatprep.subr.mxu0 0.0
      %391 = vmatpush1.msra.mxu0 0.0
      %392 = vmatprep.subr.mxu0 0.0
      %393 = vmatpush1.msra.mxu0 0.0
      %394 = vmatprep.subr.mxu0 0.0
      %395 = vmatpush1.msra.mxu0 0.0
      %396 = vmatprep.subr.mxu0 0.0
      %397 = vmatpush1.msra.mxu0 0.0
      %398 = vmatprep.subr.mxu0 0.0
      %399 = vmatpush1.msra.mxu0 0.0
      %400 = vmatprep.subr.mxu0 0.0
      %401 = vmatpush1.msra.mxu0 0.0
      %402 = vmatprep.subr.mxu0 0.0
      %403 = vmatpush1.msra.mxu0 0.0
      %404 = vmatprep.subr.mxu0 0.0
      %405 = vmatpush1.msra.mxu0 0.0
      %406 = vmatprep.mubr.f32.mxu0 0.0
      %v407 = vand.u32 %v33, 4294901760
      %408 = vmatmul.mubr.f32.gmra.mrb[0].mxu0 %v407
      %v409 = vpop.f32.mrb[0].mxu0
      %v410 = vadd.f32 %v336, %v409
      %v411 = vpop.f32.mrb[0].mxu0
      %412 = vdwg.mxu0
      %413 = vmatprep.subr.mxu0 0.0
      %v414 = vand.u32 %v37, 4294901760
      %415 = vmatpush1.msra.mxu0 %v414
      %416 = vmatprep.subr.mxu0 0.0
      %417 = vmatpush1.msra.mxu0 0.0
      %418 = vmatprep.subr.mxu0 0.0
      %419 = vmatpush1.msra.mxu0 0.0
      %420 = vmatprep.subr.mxu0 0.0
      %421 = vmatpush1.msra.mxu0 0.0
      %422 = vmatprep.subr.mxu0 0.0
      %423 = vmatpush1.msra.mxu0 0.0
      %424 = vmatprep.subr.mxu0 0.0
      %425 = vmatpush1.msra.mxu0 0.0
      %426 = vmatprep.subr.mxu0 0.0
      %427 = vmatpush1.msra.mxu0 0.0
      %428 = vmatprep.subr.mxu0 0.0
      %429 = vmatpush1.msra.mxu0 0.0
      %430 = vmatprep.subr.mxu0 0.0
      %431 = vmatpush1.msra.mxu0 0.0
      %432 = vmatprep.subr.mxu0 0.0
      %433 = vmatpush1.msra.mxu0 0.0
      %434 = vmatprep.subr.mxu0 0.0
      %435 = vmatpush1.msra.mxu0 0.0
      %436 = vmatprep.subr.mxu0 0.0
      %437 = vmatpush1.msra.mxu0 0.0
      %438 = vmatprep.subr.mxu0 0.0
      %439 = vmatpush1.msra.mxu0 0.0
      %440 = vmatprep.subr.mxu0 0.0
      %441 = vmatpush1.msra.mxu0 0.0
      %442 = vmatprep.subr.mxu0 0.0
      %443 = vmatpush1.msra.mxu0 0.0
      %444 = vmatprep.subr.mxu0 0.0
      %445 = vmatpush1.msra.mxu0 0.0
      %446 = vmatprep.subr.mxu0 0.0
      %447 = vmatpush1.msra.mxu0 0.0
      %448 = vmatprep.subr.mxu0 0.0
      %449 = vmatpush1.msra.mxu0 0.0
      %450 = vmatprep.subr.mxu0 0.0
      %451 = vmatpush1.msra.mxu0 0.0
      %452 = vmatprep.subr.mxu0 0.0
      %453 = vmatpush1.msra.mxu0 0.0
      %454 = vmatprep.subr.mxu0 0.0
      %455 = vmatpush1.msra.mxu0 0.0
      %456 = vmatprep.subr.mxu0 0.0
      %457 = vmatpush1.msra.mxu0 0.0
      %458 = vmatprep.subr.mxu0 0.0
      %459 = vmatpush1.msra.mxu0 0.0
      %460 = vmatprep.subr.mxu0 0.0
      %461 = vmatpush1.msra.mxu0 0.0
      %462 = vmatprep.subr.mxu0 0.0
      %463 = vmatpush1.msra.mxu0 0.0
      %464 = vmatprep.subr.mxu0 0.0
      %465 = vmatpush1.msra.mxu0 0.0
      %466 = vmatprep.subr.mxu0 0.0
      %467 = vmatpush1.msra.mxu0 0.0
      %468 = vmatprep.subr.mxu0 0.0
      %469 = vmatpush1.msra.mxu0 0.0
      %470 = vmatprep.subr.mxu0 0.0
      %471 = vmatpush1.msra.mxu0 0.0
      %472 = vmatprep.subr.mxu0 0.0
      %473 = vmatpush1.msra.mxu0 0.0
      %474 = vmatprep.subr.mxu0 0.0
      %475 = vmatpush1.msra.mxu0 0.0
      %476 = vmatprep.subr.mxu0 0.0
      %477 = vmatpush1.msra.mxu0 0.0
      %478 = vmatprep.mubr.f32.mxu0 0.0
      %v479 = vand.u32 %v33, 4294901760
      %480 = vmatmul.mubr.f32.gmra.mrb[0].mxu0 %v479
      %v481 = vpop.f32.mrb[0].mxu0
      %v482 = vadd.f32 %v410, %v481
      %v483 = vpop.f32.mrb[0].mxu0
      %484 = vdwg.mxu0
      %v485 = vadd.f32 %v28, %v482
      %v486 = vxor.u32 %v485, 2147483648
      %v487 = vmul.f32 %v486, 1.442695
      %v488 = vpow.pop %v487
      %v489 = vadd.f32 %v488, 1.0
      %v490 = vrcp.pop %v489
      %v491 = vmul.f32 1.0, %v490
      %v492 = vtanh.pop %v485
      %v493 = vmul.f32 %v491, %v26
      %495 = vrot.lane.b32.xlu0 %v492, 116
      %v496 = vpop.permute.xlu0 %495
      %v498 = vmul.f32 %v491, %v496
      %500 = vrot.lane.b32.xlu0 %v498, 6
      %v501 = vpop.permute.xlu0 %500
      %v503 = vadd.f32 %v493, %v501
      %v504 = vtanh.pop %v503
      %506 = vrot.lane.b32.xlu0 %v504, 12
      %v507 = vpop.permute.xlu0 %506
      %v509 = vmul.f32 %v491, %v507
    $region22: #{encoder_forward.3} parent=1 // loop_footer
      %s24 = sadd.s32 1, %s20
    $region23: #{encoder_forward.3} parent=1 // loop_footer_branch
      %19 = sbr.rel target = $region19
    $region24: #{encoder_forward.3} parent=1 // loop_exit
      _
    %v510 = vld [vmem:[%s0 + $0x2] sm:$0x1]
    %512 = vrot.lane.b32.xlu0 %v25, 110
    %v513 = vpop.permute.xlu0 %512
    %vm514 = vcmask 48128
    %v515 = vsel %vm514, %v513, 0
    %vm517 = vcmask 1045504
    %v519 = vsel %vm517, %v18, 0
    %521 = vmatprep.subr.mxu0 0.0
    %v522 = vand.u32 %v519, 4294901760
    %523 = vmatpush1.msra.mxu0 %v522
    %524 = vmatprep.subr.mxu0 0.0
    %525 = vmatpush1.msra.mxu0 0.0
    %526 = vmatprep.subr.mxu0 0.0
    %527 = vmatpush1.msra.mxu0 0.0
    %528 = vmatprep.subr.mxu0 0.0
    %529 = vmatpush1.msra.mxu0 0.0
    %530 = vmatprep.subr.mxu0 0.0
    %531 = vmatpush1.msra.mxu0 0.0
    %532 = vmatprep.subr.mxu0 0.0
    %533 = vmatpush1.msra.mxu0 0.0
    %534 = vmatprep.subr.mxu0 0.0
    %535 = vmatpush1.msra.mxu0 0.0
    %536 = vmatprep.subr.mxu0 0.0
    %537 = vmatpush1.msra.mxu0 0.0
    %538 = vmatprep.subr.mxu0 0.0
    %539 = vmatpush1.msra.mxu0 0.0
    %540 = vmatprep.subr.mxu0 0.0
    %541 = vmatpush1.msra.mxu0 0.0
    %542 = vmatprep.subr.mxu0 0.0
    %543 = vmatpush1.msra.mxu0 0.0
    %544 = vmatprep.subr.mxu0 0.0
    %545 = vmatpush1.msra.mxu0 0.0
    %546 = vmatprep.subr.mxu0 0.0
    %547 = vmatpush1.msra.mxu0 0.0
    %548 = vmatprep.subr.mxu0 0.0
    %549 = vmatpush1.msra.mxu0 0.0
    %550 = vmatprep.subr.mxu0 0.0
    %551 = vmatpush1.msra.mxu0 0.0
    %552 = vmatprep.subr.mxu0 0.0
    %553 = vmatpush1.msra.mxu0 0.0
    %554 = vmatprep.subr.mxu0 0.0
    %555 = vmatpush1.msra.mxu0 0.0
    %556 = vmatprep.subr.mxu0 0.0
    %557 = vmatpush1.msra.mxu0 0.0
    %558 = vmatprep.subr.mxu0 0.0
    %559 = vmatpush1.msra.mxu0 0.0
    %560 = vmatprep.subr.mxu0 0.0
    %561 = vmatpush1.msra.mxu0 0.0
    %562 = vmatprep.subr.mxu0 0.0
    %563 = vmatpush1.msra.mxu0 0.0
    %564 = vmatprep.subr.mxu0 0.0
    %565 = vmatpush1.msra.mxu0 0.0
    %566 = vmatprep.subr.mxu0 0.0
    %567 = vmatpush1.msra.mxu0 0.0
    %568 = vmatprep.subr.mxu0 0.0
    %569 = vmatpush1.msra.mxu0 0.0
    %570 = vmatprep.subr.mxu0 0.0
    %571 = vmatpush1.msra.mxu0 0.0
    %572 = vmatprep.subr.mxu0 0.0
    %573 = vmatpush1.msra.mxu0 0.0
    %574 = vmatprep.subr.mxu0 0.0
    %575 = vmatpush1.msra.mxu0 0.0
    %576 = vmatprep.subr.mxu0 0.0
    %577 = vmatpush1.msra.mxu0 0.0
    %578 = vmatprep.subr.mxu0 0.0
    %579 = vmatpush1.msra.mxu0 0.0
    %580 = vmatprep.subr.mxu0 0.0
    %581 = vmatpush1.msra.mxu0 0.0
    %582 = vmatprep.subr.mxu0 0.0
    %583 = vmatpush1.msra.mxu0 0.0
    %584 = vmatprep.subr.mxu0 0.0
    %585 = vmatpush1.msra.mxu0 0.0
    %586 = vmatprep.mubr.f32.mxu0 0.0
    %v587 = vand.u32 %v515, 4294901760
    %v588 = vsub.f32 %v515, %v587
    %v589 = vand.u32 %v588, 4294901760
    %v590 = vsub.f32 %v588, %v589
    %v591 = vand.u32 %v590, 4294901760
    %592 = vmatmul.mubr.f32.gmra.mrb[0].mxu0 %v591
    %v593 = vpop.f32.mrb[0].mxu0
    %v594 = vadd.f32 0.0, %v593
    %v595 = vpop.f32.mrb[0].mxu0
    %596 = vdwg.mxu0
    %597 = vmatprep.subr.mxu0 0.0
    %v598 = vand.u32 %v519, 4294901760
    %v599 = vsub.f32 %v519, %v598
    %v600 = vand.u32 %v599, 4294901760
    %v601 = vsub.f32 %v599, %v600
    %v602 = vand.u32 %v601, 4294901760
    %603 = vmatpush1.msra.mxu0 %v602
    %604 = vmatprep.subr.mxu0 0.0
    %605 = vmatpush1.msra.mxu0 0.0
    %606 = vmatprep.subr.mxu0 0.0
    %607 = vmatpush1.msra.mxu0 0.0
    %608 = vmatprep.subr.mxu0 0.0
    %609 = vmatpush1.msra.mxu0 0.0
    %610 = vmatprep.subr.mxu0 0.0
    %611 = vmatpush1.msra.mxu0 0.0
    %612 = vmatprep.subr.mxu0 0.0
    %613 = vmatpush1.msra.mxu0 0.0
    %614 = vmatprep.subr.mxu0 0.0
    %615 = vmatpush1.msra.mxu0 0.0
    %616 = vmatprep.subr.mxu0 0.0
    %617 = vmatpush1.msra.mxu0 0.0
    %618 = vmatprep.subr.mxu0 0.0
    %619 = vmatpush1.msra.mxu0 0.0
    %620 = vmatprep.subr.mxu0 0.0
    %621 = vmatpush1.msra.mxu0 0.0
    %622 = vmatprep.subr.mxu0 0.0
    %623 = vmatpush1.msra.mxu0 0.0
    %624 = vmatprep.subr.mxu0 0.0
    %625 = vmatpush1.msra.mxu0 0.0
    %626 = vmatprep.subr.mxu0 0.0
    %627 = vmatpush1.msra.mxu0 0.0
    %628 = vmatprep.subr.mxu0 0.0
    %629 = vmatpush1.msra.mxu0 0.0
    %630 = vmatprep.subr.mxu0 0.0
    %631 = vmatpush1.msra.mxu0 0.0
    %632 = vmatprep.subr.mxu0 0.0
    %633 = vmatpush1.msra.mxu0 0.0
    %634 = vmatprep.subr.mxu0 0.0
    %635 = vmatpush1.msra.mxu0 0.0
    %636 = vmatprep.subr.mxu0 0.0
    %637 = vmatpush1.msra.mxu0 0.0
    %638 = vmatprep.subr.mxu0 0.0
    %639 = vmatpush1.msra.mxu0 0.0
    %640 = vmatprep.subr.mxu0 0.0
    %641 = vmatpush1.msra.mxu0 0.0
    %642 = vmatprep.subr.mxu0 0.0
    %643 = vmatpush1.msra.mxu0 0.0
    %644 = vmatprep.subr.mxu0 0.0
    %645 = vmatpush1.msra.mxu0 0.0
    %646 = vmatprep.subr.mxu0 0.0
    %647 = vmatpush1.msra.mxu0 0.0
    %648 = vmatprep.subr.mxu0 0.0
    %649 = vmatpush1.msra.mxu0 0.0
    %650 = vmatprep.subr.mxu0 0.0
    %651 = vmatpush1.msra.mxu0 0.0
    %652 = vmatprep.subr.mxu0 0.0
    %653 = vmatpush1.msra.mxu0 0.0
    %654 = vmatprep.subr.mxu0 0.0
    %655 = vmatpush1.msra.mxu0 0.0
    %656 = vmatprep.subr.mxu0 0.0
    %657 = vmatpush1.msra.mxu0 0.0
    %658 = vmatprep.subr.mxu0 0.0
    %659 = vmatpush1.msra.mxu0 0.0
    %660 = vmatprep.subr.mxu0 0.0
    %661 = vmatpush1.msra.mxu0 0.0
    %662 = vmatprep.subr.mxu0 0.0
    %663 = vmatpush1.msra.mxu0 0.0
    %664 = vmatprep.subr.mxu0 0.0
    %665 = vmatpush1.msra.mxu0 0.0
    %666 = vmatprep.mubr.f32.mxu0 0.0
    %v667 = vand.u32 %v515, 4294901760
    %668 = vmatmul.mubr.f32.gmra.mrb[0].mxu0 %v667
    %v669 = vpop.f32.mrb[0].mxu0
    %v670 = vadd.f32 %v594, %v669
    %v671 = vpop.f32.mrb[0].mxu0
    %672 = vdwg.mxu0
    %673 = vmatprep.subr.mxu0 0.0
    %v674 = vand.u32 %v519, 4294901760
    %v675 = vsub.f32 %v519, %v674
    %676 = vmatpush1.msra.mxu0 %v675
    %677 = vmatprep.subr.mxu0 0.0
    %678 = vmatpush1.msra.mxu0 0.0
    %679 = vmatprep.subr.mxu0 0.0
    %680 = vmatpush1.msra.mxu0 0.0
    %681 = vmatprep.subr.mxu0 0.0
    %682 = vmatpush1.msra.mxu0 0.0
    %683 = vmatprep.subr.mxu0 0.0
    %684 = vmatpush1.msra.mxu0 0.0
    %685 = vmatprep.subr.mxu0 0.0
    %686 = vmatpush1.msra.mxu0 0.0
    %687 = vmatprep.subr.mxu0 0.0
    %688 = vmatpush1.msra.mxu0 0.0
    %689 = vmatprep.subr.mxu0 0.0
    %690 = vmatpush1.msra.mxu0 0.0
    %691 = vmatprep.subr.mxu0 0.0
    %692 = vmatpush1.msra.mxu0 0.0
    %693 = vmatprep.subr.mxu0 0.0
    %694 = vmatpush1.msra.mxu0 0.0
    %695 = vmatprep.subr.mxu0 0.0
    %696 = vmatpush1.msra.mxu0 0.0
    %697 = vmatprep.subr.mxu0 0.0
    %698 = vmatpush1.msra.mxu0 0.0
    %699 = vmatprep.subr.mxu0 0.0
    %700 = vmatpush1.msra.mxu0 0.0
    %701 = vmatprep.subr.mxu0 0.0
    %702 = vmatpush1.msra.mxu0 0.0
    %703 = vmatprep.subr.mxu0 0.0
    %704 = vmatpush1.msra.mxu0 0.0
    %705 = vmatprep.subr.mxu0 0.0
    %706 = vmatpush1.msra.mxu0 0.0
    %707 = vmatprep.subr.mxu0 0.0
    %708 = vmatpush1.msra.mxu0 0.0
    %709 = vmatprep.subr.mxu0 0.0
    %710 = vmatpush1.msra.mxu0 0.0
    %711 = vmatprep.subr.mxu0 0.0
    %712 = vmatpush1.msra.mxu0 0.0
    %713 = vmatprep.subr.mxu0 0.0
    %714 = vmatpush1.msra.mxu0 0.0
    %715 = vmatprep.subr.mxu0 0.0
    %716 = vmatpush1.msra.mxu0 0.0
    %717 = vmatprep.subr.mxu0 0.0
    %718 = vmatpush1.msra.mxu0 0.0
    %719 = vmatprep.subr.mxu0 0.0
    %720 = vmatpush1.msra.mxu0 0.0
    %721 = vmatprep.subr.mxu0 0.0
    %722 = vmatpush1.msra.mxu0 0.0
    %723 = vmatprep.subr.mxu0 0.0
    %724 = vmatpush1.msra.mxu0 0.0
    %725 = vmatprep.subr.mxu0 0.0
    %726 = vmatpush1.msra.mxu0 0.0
    %727 = vmatprep.subr.mxu0 0.0
    %728 = vmatpush1.msra.mxu0 0.0
    %729 = vmatprep.subr.mxu0 0.0
    %730 = vmatpush1.msra.mxu0 0.0
    %731 = vmatprep.subr.mxu0 0.0
    %732 = vmatpush1.msra.mxu0 0.0
    %733 = vmatprep.subr.mxu0 0.0
    %734 = vmatpush1.msra.mxu0 0.0
    %735 = vmatprep.subr.mxu0 0.0
    %736 = vmatpush1.msra.mxu0 0.0
    %737 = vmatprep.subr.mxu0 0.0
    %738 = vmatpush1.msra.mxu0 0.0
    %739 = vmatprep.mubr.f32.mxu0 0.0
    %v740 = vand.u32 %v515, 4294901760
    %v741 = vsub.f32 %v515, %v740
    %742 = vmatmul.mubr.f32.gmra.mrb[0].mxu0 %v741
    %v743 = vpop.f32.mrb[0].mxu0
    %v744 = vadd.f32 %v670, %v743
    %v745 = vpop.f32.mrb[0].mxu0
    %746 = vdwg.mxu0
    %747 = vmatprep.subr.mxu0 0.0
    %v748 = vand.u32 %v519, 4294901760
    %749 = vmatpush1.msra.mxu0 %v748
    %750 = vmatprep.subr.mxu0 0.0
    %751 = vmatpush1.msra.mxu0 0.0
    %752 = vmatprep.subr.mxu0 0.0
    %753 = vmatpush1.msra.mxu0 0.0
    %754 = vmatprep.subr.mxu0 0.0
    %755 = vmatpush1.msra.mxu0 0.0
    %756 = vmatprep.subr.mxu0 0.0
    %757 = vmatpush1.msra.mxu0 0.0
    %758 = vmatprep.subr.mxu0 0.0
    %759 = vmatpush1.msra.mxu0 0.0
    %760 = vmatprep.subr.mxu0 0.0
    %761 = vmatpush1.msra.mxu0 0.0
    %762 = vmatprep.subr.mxu0 0.0
    %763 = vmatpush1.msra.mxu0 0.0
    %764 = vmatprep.subr.mxu0 0.0
    %765 = vmatpush1.msra.mxu0 0.0
    %766 = vmatprep.subr.mxu0 0.0
    %767 = vmatpush1.msra.mxu0 0.0
    %768 = vmatprep.subr.mxu0 0.0
    %769 = vmatpush1.msra.mxu0 0.0
    %770 = vmatprep.subr.mxu0 0.0
    %771 = vmatpush1.msra.mxu0 0.0
    %772 = vmatprep.subr.mxu0 0.0
    %773 = vmatpush1.msra.mxu0 0.0
    %774 = vmatprep.subr.mxu0 0.0
    %775 = vmatpush1.msra.mxu0 0.0
    %776 = vmatprep.subr.mxu0 0.0
    %777 = vmatpush1.msra.mxu0 0.0
    %778 = vmatprep.subr.mxu0 0.0
    %779 = vmatpush1.msra.mxu0 0.0
    %780 = vmatprep.subr.mxu0 0.0
    %781 = vmatpush1.msra.mxu0 0.0
    %782 = vmatprep.subr.mxu0 0.0
    %783 = vmatpush1.msra.mxu0 0.0
    %784 = vmatprep.subr.mxu0 0.0
    %785 = vmatpush1.msra.mxu0 0.0
    %786 = vmatprep.subr.mxu0 0.0
    %787 = vmatpush1.msra.mxu0 0.0
    %788 = vmatprep.subr.mxu0 0.0
    %789 = vmatpush1.msra.mxu0 0.0
    %790 = vmatprep.subr.mxu0 0.0
    %791 = vmatpush1.msra.mxu0 0.0
    %792 = vmatprep.subr.mxu0 0.0
    %793 = vmatpush1.msra.mxu0 0.0
    %794 = vmatprep.subr.mxu0 0.0
    %795 = vmatpush1.msra.mxu0 0.0
    %796 = vmatprep.subr.mxu0 0.0
    %797 = vmatpush1.msra.mxu0 0.0
    %798 = vmatprep.subr.mxu0 0.0
    %799 = vmatpush1.msra.mxu0 0.0
    %800 = vmatprep.subr.mxu0 0.0
    %801 = vmatpush1.msra.mxu0 0.0
    %802 = vmatprep.subr.mxu0 0.0
    %803 = vmatpush1.msra.mxu0 0.0
    %804 = vmatprep.subr.mxu0 0.0
    %805 = vmatpush1.msra.mxu0 0.0
    %806 = vmatprep.subr.mxu0 0.0
    %807 = vmatpush1.msra.mxu0 0.0
    %808 = vmatprep.subr.mxu0 0.0
    %809 = vmatpush1.msra.mxu0 0.0
    %810 = vmatprep.subr.mxu0 0.0
    %811 = vmatpush1.msra.mxu0 0.0
    %812 = vmatprep.mubr.f32.mxu0 0.0
    %v813 = vand.u32 %v515, 4294901760
    %v814 = vsub.f32 %v515, %v813
    %v815 = vand.u32 %v814, 4294901760
    %816 = vmatmul.mubr.f32.gmra.mrb[0].mxu0 %v815
    %v817 = vpop.f32.mrb[0].mxu0
    %v818 = vadd.f32 %v744, %v817
    %v819 = vpop.f32.mrb[0].mxu0
    %820 = vdwg.mxu0
    %821 = vmatprep.subr.mxu0 0.0
    %v822 = vand.u32 %v519, 4294901760
    %v823 = vsub.f32 %v519, %v822
    %v824 = vand.u32 %v823, 4294901760
    %825 = vmatpush1.msra.mxu0 %v824
    %826 = vmatprep.subr.mxu0 0.0
    %827 = vmatpush1.msra.mxu0 0.0
    %828 = vmatprep.subr.mxu0 0.0
    %829 = vmatpush1.msra.mxu0 0.0
    %830 = vmatprep.subr.mxu0 0.0
    %831 = vmatpush1.msra.mxu0 0.0
    %832 = vmatprep.subr.mxu0 0.0
    %833 = vmatpush1.msra.mxu0 0.0
    %834 = vmatprep.subr.mxu0 0.0
    %835 = vmatpush1.msra.mxu0 0.0
    %836 = vmatprep.subr.mxu0 0.0
    %837 = vmatpush1.msra.mxu0 0.0
    %838 = vmatprep.subr.mxu0 0.0
    %839 = vmatpush1.msra.mxu0 0.0
    %840 = vmatprep.subr.mxu0 0.0
    %841 = vmatpush1.msra.mxu0 0.0
    %842 = vmatprep.subr.mxu0 0.0
    %843 = vmatpush1.msra.mxu0 0.0
    %844 = vmatprep.subr.mxu0 0.0
    %845 = vmatpush1.msra.mxu0 0.0
    %846 = vmatprep.subr.mxu0 0.0
    %847 = vmatpush1.msra.mxu0 0.0
    %848 = vmatprep.subr.mxu0 0.0
    %849 = vmatpush1.msra.mxu0 0.0
    %850 = vmatprep.subr.mxu0 0.0
    %851 = vmatpush1.msra.mxu0 0.0
    %852 = vmatprep.subr.mxu0 0.0
    %853 = vmatpush1.msra.mxu0 0.0
    %854 = vmatprep.subr.mxu0 0.0
    %855 = vmatpush1.msra.mxu0 0.0
    %856 = vmatprep.subr.mxu0 0.0
    %857 = vmatpush1.msra.mxu0 0.0
    %858 = vmatprep.subr.mxu0 0.0
    %859 = vmatpush1.msra.mxu0 0.0
    %860 = vmatprep.subr.mxu0 0.0
    %861 = vmatpush1.msra.mxu0 0.0
    %862 = vmatprep.subr.mxu0 0.0
    %863 = vmatpush1.msra.mxu0 0.0
    %864 = vmatprep.subr.mxu0 0.0
    %865 = vmatpush1.msra.mxu0 0.0
    %866 = vmatprep.subr.mxu0 0.0
    %867 = vmatpush1.msra.mxu0 0.0
    %868 = vmatprep.subr.mxu0 0.0
    %869 = vmatpush1.msra.mxu0 0.0
    %870 = vmatprep.subr.mxu0 0.0
    %871 = vmatpush1.msra.mxu0 0.0
    %872 = vmatprep.subr.mxu0 0.0
    %873 = vmatpush1.msra.mxu0 0.0
    %874 = vmatprep.subr.mxu0 0.0
    %875 = vmatpush1.msra.mxu0 0.0
    %876 = vmatprep.subr.mxu0 0.0
    %877 = vmatpush1.msra.mxu0 0.0
    %878 = vmatprep.subr.mxu0 0.0
    %879 = vmatpush1.msra.mxu0 0.0
    %880 = vmatprep.subr.mxu0 0.0
    %881 = vmatpush1.msra.mxu0 0.0
    %882 = vmatprep.subr.mxu0 0.0
    %883 = vmatpush1.msra.mxu0 0.0
    %884 = vmatprep.subr.mxu0 0.0
    %885 = vmatpush1.msra.mxu0 0.0
    %886 = vmatprep.subr.mxu0 0.0
    %887 = vmatpush1.msra.mxu0 0.0
    %888 = vmatprep.mubr.f32.mxu0 0.0
    %v889 = vand.u32 %v515, 4294901760
    %890 = vmatmul.mubr.f32.gmra.mrb[0].mxu0 %v889
    %v891 = vpop.f32.mrb[0].mxu0
    %v892 = vadd.f32 %v818, %v891
    %v893 = vpop.f32.mrb[0].mxu0
    %894 = vdwg.mxu0
    %895 = vmatprep.subr.mxu0 0.0
    %v896 = vand.u32 %v519, 4294901760
    %897 = vmatpush1.msra.mxu0 %v896
    %898 = vmatprep.subr.mxu0 0.0
    %899 = vmatpush1.msra.mxu0 0.0
    %900 = vmatprep.subr.mxu0 0.0
    %901 = vmatpush1.msra.mxu0 0.0
    %902 = vmatprep.subr.mxu0 0.0
    %903 = vmatpush1.msra.mxu0 0.0
    %904 = vmatprep.subr.mxu0 0.0
    %905 = vmatpush1.msra.mxu0 0.0
    %906 = vmatprep.subr.mxu0 0.0
    %907 = vmatpush1.msra.mxu0 0.0
    %908 = vmatprep.subr.mxu0 0.0
    %909 = vmatpush1.msra.mxu0 0.0
    %910 = vmatprep.subr.mxu0 0.0
    %911 = vmatpush1.msra.mxu0 0.0
    %912 = vmatprep.subr.mxu0 0.0
    %913 = vmatpush1.msra.mxu0 0.0
    %914 = vmatprep.subr.mxu0 0.0
    %915 = vmatpush1.msra.mxu0 0.0
    %916 = vmatprep.subr.mxu0 0.0
    %917 = vmatpush1.msra.mxu0 0.0
    %918 = vmatprep.subr.mxu0 0.0
    %919 = vmatpush1.msra.mxu0 0.0
    %920 = vmatprep.subr.mxu0 0.0
    %921 = vmatpush1.msra.mxu0 0.0
    %922 = vmatprep.subr.mxu0 0.0
    %923 = vmatpush1.msra.mxu0 0.0
    %924 = vmatprep.subr.mxu0 0.0
    %925 = vmatpush1.msra.mxu0 0.0
    %926 = vmatprep.subr.mxu0 0.0
    %927 = vmatpush1.msra.mxu0 0.0
    %928 = vmatprep.subr.mxu0 0.0
    %929 = vmatpush1.msra.mxu0 0.0
    %930 = vmatprep.subr.mxu0 0.0
    %931 = vmatpush1.msra.mxu0 0.0
    %932 = vmatprep.subr.mxu0 0.0
    %933 = vmatpush1.msra.mxu0 0.0
    %934 = vmatprep.subr.mxu0 0.0
    %935 = vmatpush1.msra.mxu0 0.0
    %936 = vmatprep.subr.mxu0 0.0
    %937 = vmatpush1.msra.mxu0 0.0
    %938 = vmatprep.subr.mxu0 0.0
    %939 = vmatpush1.msra.mxu0 0.0
    %940 = vmatprep.subr.mxu0 0.0
    %941 = vmatpush1.msra.mxu0 0.0
    %942 = vmatprep.subr.mxu0 0.0
    %943 = vmatpush1.msra.mxu0 0.0
    %944 = vmatprep.subr.mxu0 0.0
    %945 = vmatpush1.msra.mxu0 0.0
    %946 = vmatprep.subr.mxu0 0.0
    %947 = vmatpush1.msra.mxu0 0.0
    %948 = vmatprep.subr.mxu0 0.0
    %949 = vmatpush1.msra.mxu0 0.0
    %950 = vmatprep.subr.mxu0 0.0
    %951 = vmatpush1.msra.mxu0 0.0
    %952 = vmatprep.subr.mxu0 0.0
    %953 = vmatpush1.msra.mxu0 0.0
    %954 = vmatprep.subr.mxu0 0.0
    %955 = vmatpush1.msra.mxu0 0.0
    %956 = vmatprep.subr.mxu0 0.0
    %957 = vmatpush1.msra.mxu0 0.0
    %958 = vmatprep.subr.mxu0 0.0
    %959 = vmatpush1.msra.mxu0 0.0
    %960 = vmatprep.mubr.f32.mxu0 0.0
    %v961 = vand.u32 %v515, 4294901760
    %962 = vmatmul.mubr.f32.gmra.mrb[0].mxu0 %v961
    %v963 = vpop.f32.mrb[0].mxu0
    %v964 = vadd.f32 %v892, %v963
    %v965 = vpop.f32.mrb[0].mxu0
    %966 = vdwg.mxu0
    %v967 = vadd.f32 %v510, %v964
    %v968 = vxor.u32 %v967, 2147483648
    %v969 = vmul.f32 %v968, 1.442695
    %v970 = vpow.pop %v969
    %v971 = vadd.f32 %v970, 1.0
    %v972 = vrcp.pop %v971
    %v973 = vmul.f32 1.0, %v972
    %v974 = vtanh.pop %v967
    %v975 = vmul.f32 %v973, %v26
    %977 = vrot.lane.b32.xlu0 %v974, 116
    %v978 = vpop.permute.xlu0 %977
    %v980 = vmul.f32 %v973, %v978
    %982 = vrot.lane.b32.xlu0 %v980, 6
    %v983 = vpop.permute.xlu0 %982
    %v985 = vadd.f32 %v975, %v983
    %v986 = vtanh.pop %v985
    %988 = vrot.lane.b32.xlu0 %v986, 12
    %v989 = vpop.permute.xlu0 %988
    %v991 = vmul.f32 %v973, %v989
    %v992 = vld [vmem:[%s2] sm:$0x3f]
    %v993 = vld [vmem:[%s3] sm:$0x1]
    %995 = vrot.lane.b32.xlu0 %v991, 110
    %v996 = vpop.permute.xlu0 %995
    %v997 = vsel %vm514, %v996, 0
    %v1000 = vsel %vm517, %v992, 0
    %1002 = vmatprep.subr.mxu0 0.0
    %v1003 = vand.u32 %v1000, 4294901760
    %1004 = vmatpush1.msra.mxu0 %v1003
    %1005 = vmatprep.subr.mxu0 0.0
    %1006 = vmatpush1.msra.mxu0 0.0
    %1007 = vmatprep.subr.mxu0 0.0
    %1008 = vmatpush1.msra.mxu0 0.0
    %1009 = vmatprep.subr.mxu0 0.0
    %1010 = vmatpush1.msra.mxu0 0.0
    %1011 = vmatprep.subr.mxu0 0.0
    %1012 = vmatpush1.msra.mxu0 0.0
    %1013 = vmatprep.subr.mxu0 0.0
    %1014 = vmatpush1.msra.mxu0 0.0
    %1015 = vmatprep.subr.mxu0 0.0
    %1016 = vmatpush1.msra.mxu0 0.0
    %1017 = vmatprep.subr.mxu0 0.0
    %1018 = vmatpush1.msra.mxu0 0.0
    %1019 = vmatprep.subr.mxu0 0.0
    %1020 = vmatpush1.msra.mxu0 0.0
    %1021 = vmatprep.subr.mxu0 0.0
    %1022 = vmatpush1.msra.mxu0 0.0
    %1023 = vmatprep.subr.mxu0 0.0
    %1024 = vmatpush1.msra.mxu0 0.0
    %1025 = vmatprep.subr.mxu0 0.0
    %1026 = vmatpush1.msra.mxu0 0.0
    %1027 = vmatprep.subr.mxu0 0.0
    %1028 = vmatpush1.msra.mxu0 0.0
    %1029 = vmatprep.subr.mxu0 0.0
    %1030 = vmatpush1.msra.mxu0 0.0
    %1031 = vmatprep.subr.mxu0 0.0
    %1032 = vmatpush1.msra.mxu0 0.0
    %1033 = vmatprep.subr.mxu0 0.0
    %1034 = vmatpush1.msra.mxu0 0.0
    %1035 = vmatprep.subr.mxu0 0.0
    %1036 = vmatpush1.msra.mxu0 0.0
    %1037 = vmatprep.subr.mxu0 0.0
    %1038 = vmatpush1.msra.mxu0 0.0
    %1039 = vmatprep.subr.mxu0 0.0
    %1040 = vmatpush1.msra.mxu0 0.0
    %1041 = vmatprep.subr.mxu0 0.0
    %1042 = vmatpush1.msra.mxu0 0.0
    %1043 = vmatprep.subr.mxu0 0.0
    %1044 = vmatpush1.msra.mxu0 0.0
    %1045 = vmatprep.subr.mxu0 0.0
    %1046 = vmatpush1.msra.mxu0 0.0
    %1047 = vmatprep.subr.mxu0 0.0
    %1048 = vmatpush1.msra.mxu0 0.0
    %1049 = vmatprep.subr.mxu0 0.0
    %1050 = vmatpush1.msra.mxu0 0.0
    %1051 = vmatprep.subr.mxu0 0.0
    %1052 = vmatpush1.msra.mxu0 0.0
    %1053 = vmatprep.subr.mxu0 0.0
    %1054 = vmatpush1.msra.mxu0 0.0
    %1055 = vmatprep.subr.mxu0 0.0
    %1056 = vmatpush1.msra.mxu0 0.0
    %1057 = vmatprep.subr.mxu0 0.0
    %1058 = vmatpush1.msra.mxu0 0.0
    %1059 = vmatprep.subr.mxu0 0.0
    %1060 = vmatpush1.msra.mxu0 0.0
    %1061 = vmatprep.subr.mxu0 0.0
    %1062 = vmatpush1.msra.mxu0 0.0
    %1063 = vmatprep.subr.mxu0 0.0
    %1064 = vmatpush1.msra.mxu0 0.0
    %1065 = vmatprep.subr.mxu0 0.0
    %1066 = vmatpush1.msra.mxu0 0.0
    %1067 = vmatprep.mubr.f32.mxu0 0.0
    %v1068 = vand.u32 %v997, 4294901760
    %v1069 = vsub.f32 %v997, %v1068
    %v1070 = vand.u32 %v1069, 4294901760
    %v1071 = vsub.f32 %v1069, %v1070
    %v1072 = vand.u32 %v1071, 4294901760
    %1073 = vmatmul.mubr.f32.gmra.mrb[0].mxu0 %v1072
    %v1074 = vpop.f32.mrb[0].mxu0
    %v1075 = vadd.f32 %v993, %v1074
    %v1076 = vpop.f32.mrb[0].mxu0
    %1077 = vdwg.mxu0
    %1078 = vmatprep.subr.mxu0 0.0
    %v1079 = vand.u32 %v1000, 4294901760
    %v1080 = vsub.f32 %v1000, %v1079
    %v1081 = vand.u32 %v1080, 4294901760
    %v1082 = vsub.f32 %v1080, %v1081
    %v1083 = vand.u32 %v1082, 4294901760
    %1084 = vmatpush1.msra.mxu0 %v1083
    %1085 = vmatprep.subr.mxu0 0.0
    %1086 = vmatpush1.msra.mxu0 0.0
    %1087 = vmatprep.subr.mxu0 0.0
    %1088 = vmatpush1.msra.mxu0 0.0
    %1089 = vmatprep.subr.mxu0 0.0
    %1090 = vmatpush1.msra.mxu0 0.0
    %1091 = vmatprep.subr.mxu0 0.0
    %1092 = vmatpush1.msra.mxu0 0.0
    %1093 = vmatprep.subr.mxu0 0.0
    %1094 = vmatpush1.msra.mxu0 0.0
    %1095 = vmatprep.subr.mxu0 0.0
    %1096 = vmatpush1.msra.mxu0 0.0
    %1097 = vmatprep.subr.mxu0 0.0
    %1098 = vmatpush1.msra.mxu0 0.0
    %1099 = vmatprep.subr.mxu0 0.0
    %1100 = vmatpush1.msra.mxu0 0.0
    %1101 = vmatprep.subr.mxu0 0.0
    %1102 = vmatpush1.msra.mxu0 0.0
    %1103 = vmatprep.subr.mxu0 0.0
    %1104 = vmatpush1.msra.mxu0 0.0
    %1105 = vmatprep.subr.mxu0 0.0
    %1106 = vmatpush1.msra.mxu0 0.0
    %1107 = vmatprep.subr.mxu0 0.0
    %1108 = vmatpush1.msra.mxu0 0.0
    %1109 = vmatprep.subr.mxu0 0.0
    %1110 = vmatpush1.msra.mxu0 0.0
    %1111 = vmatprep.subr.mxu0 0.0
    %1112 = vmatpush1.msra.mxu0 0.0
    %1113 = vmatprep.subr.mxu0 0.0
    %1114 = vmatpush1.msra.mxu0 0.0
    %1115 = vmatprep.subr.mxu0 0.0
    %1116 = vmatpush1.msra.mxu0 0.0
    %1117 = vmatprep.subr.mxu0 0.0
    %1118 = vmatpush1.msra.mxu0 0.0
    %1119 = vmatprep.subr.mxu0 0.0
    %1120 = vmatpush1.msra.mxu0 0.0
    %1121 = vmatprep.subr.mxu0 0.0
    %1122 = vmatpush1.msra.mxu0 0.0
    %1123 = vmatprep.subr.mxu0 0.0
    %1124 = vmatpush1.msra.mxu0 0.0
    %1125 = vmatprep.subr.mxu0 0.0
    %1126 = vmatpush1.msra.mxu0 0.0
    %1127 = vmatprep.subr.mxu0 0.0
    %1128 = vmatpush1.msra.mxu0 0.0
    %1129 = vmatprep.subr.mxu0 0.0
    %1130 = vmatpush1.msra.mxu0 0.0
    %1131 = vmatprep.subr.mxu0 0.0
    %1132 = vmatpush1.msra.mxu0 0.0
    %1133 = vmatprep.subr.mxu0 0.0
    %1134 = vmatpush1.msra.mxu0 0.0
    %1135 = vmatprep.subr.mxu0 0.0
    %1136 = vmatpush1.msra.mxu0 0.0
    %1137 = vmatprep.subr.mxu0 0.0
    %1138 = vmatpush1.msra.mxu0 0.0
    %1139 = vmatprep.subr.mxu0 0.0
    %1140 = vmatpush1.msra.mxu0 0.0
    %1141 = vmatprep.subr.mxu0 0.0
    %1142 = vmatpush1.msra.mxu0 0.0
    %1143 = vmatprep.subr.mxu0 0.0
    %1144 = vmatpush1.msra.mxu0 0.0
    %1145 = vmatprep.subr.mxu0 0.0
    %1146 = vmatpush1.msra.mxu0 0.0
    %1147 = vmatprep.mubr.f32.mxu0 0.0
    %v1148 = vand.u32 %v997, 4294901760
    %1149 = vmatmul.mubr.f32.gmra.mrb[0].mxu0 %v1148
    %v1150 = vpop.f32.mrb[0].mxu0
    %v1151 = vadd.f32 %v1075, %v1150
    %v1152 = vpop.f32.mrb[0].mxu0
    %1153 = vdwg.mxu0
    %1154 = vmatprep.subr.mxu0 0.0
    %v1155 = vand.u32 %v1000, 4294901760
    %v1156 = vsub.f32 %v1000, %v1155
    %1157 = vmatpush1.msra.mxu0 %v1156
    %1158 = vmatprep.subr.mxu0 0.0
    %1159 = vmatpush1.msra.mxu0 0.0
    %1160 = vmatprep.subr.mxu0 0.0
    %1161 = vmatpush1.msra.mxu0 0.0
    %1162 = vmatprep.subr.mxu0 0.0
    %1163 = vmatpush1.msra.mxu0 0.0
    %1164 = vmatprep.subr.mxu0 0.0
    %1165 = vmatpush1.msra.mxu0 0.0
    %1166 = vmatprep.subr.mxu0 0.0
    %1167 = vmatpush1.msra.mxu0 0.0
    %1168 = vmatprep.subr.mxu0 0.0
    %1169 = vmatpush1.msra.mxu0 0.0
    %1170 = vmatprep.subr.mxu0 0.0
    %1171 = vmatpush1.msra.mxu0 0.0
    %1172 = vmatprep.subr.mxu0 0.0
    %1173 = vmatpush1.msra.mxu0 0.0
    %1174 = vmatprep.subr.mxu0 0.0
    %1175 = vmatpush1.msra.mxu0 0.0
    %1176 = vmatprep.subr.mxu0 0.0
    %1177 = vmatpush1.msra.mxu0 0.0
    %1178 = vmatprep.subr.mxu0 0.0
    %1179 = vmatpush1.msra.mxu0 0.0
    %1180 = vmatprep.subr.mxu0 0.0
    %1181 = vmatpush1.msra.mxu0 0.0
    %1182 = vmatprep.subr.mxu0 0.0
    %1183 = vmatpush1.msra.mxu0 0.0
    %1184 = vmatprep.subr.mxu0 0.0
    %1185 = vmatpush1.msra.mxu0 0.0
    %1186 = vmatprep.subr.mxu0 0.0
    %1187 = vmatpush1.msra.mxu0 0.0
    %1188 = vmatprep.subr.mxu0 0.0
    %1189 = vmatpush1.msra.mxu0 0.0
    %1190 = vmatprep.subr.mxu0 0.0
    %1191 = vmatpush1.msra.mxu0 0.0
    %1192 = vmatprep.subr.mxu0 0.0
    %1193 = vmatpush1.msra.mxu0 0.0
    %1194 = vmatprep.subr.mxu0 0.0
    %1195 = vmatpush1.msra.mxu0 0.0
    %1196 = vmatprep.subr.mxu0 0.0
    %1197 = vmatpush1.msra.mxu0 0.0
    %1198 = vmatprep.subr.mxu0 0.0
    %1199 = vmatpush1.msra.mxu0 0.0
    %1200 = vmatprep.subr.mxu0 0.0
    %1201 = vmatpush1.msra.mxu0 0.0
    %1202 = vmatprep.subr.mxu0 0.0
    %1203 = vmatpush1.msra.mxu0 0.0
    %1204 = vmatprep.subr.mxu0 0.0
    %1205 = vmatpush1.msra.mxu0 0.0
    %1206 = vmatprep.subr.mxu0 0.0
    %1207 = vmatpush1.msra.mxu0 0.0
    %1208 = vmatprep.subr.mxu0 0.0
    %1209 = vmatpush1.msra.mxu0 0.0
    %1210 = vmatprep.subr.mxu0 0.0
    %1211 = vmatpush1.msra.mxu0 0.0
    %1212 = vmatprep.subr.mxu0 0.0
    %1213 = vmatpush1.msra.mxu0 0.0
    %1214 = vmatprep.subr.mxu0 0.0
    %1215 = vmatpush1.msra.mxu0 0.0
    %1216 = vmatprep.subr.mxu0 0.0
    %1217 = vmatpush1.msra.mxu0 0.0
    %1218 = vmatprep.subr.mxu0 0.0
    %1219 = vmatpush1.msra.mxu0 0.0
    %1220 = vmatprep.mubr.f32.mxu0 0.0
    %v1221 = vand.u32 %v997, 4294901760
    %v1222 = vsub.f32 %v997, %v1221
    %1223 = vmatmul.mubr.f32.gmra.mrb[0].mxu0 %v1222
    %v1224 = vpop.f32.mrb[0].mxu0
    %v1225 = vadd.f32 %v1151, %v1224
    %v1226 = vpop.f32.mrb[0].mxu0
    %1227 = vdwg.mxu0
    %1228 = vmatprep.subr.mxu0 0.0
    %v1229 = vand.u32 %v1000, 4294901760
    %1230 = vmatpush1.msra.mxu0 %v1229
    %1231 = vmatprep.subr.mxu0 0.0
    %1232 = vmatpush1.msra.mxu0 0.0
    %1233 = vmatprep.subr.mxu0 0.0
    %1234 = vmatpush1.msra.mxu0 0.0
    %1235 = vmatprep.subr.mxu0 0.0
    %1236 = vmatpush1.msra.mxu0 0.0
    %1237 = vmatprep.subr.mxu0 0.0
    %1238 = vmatpush1.msra.mxu0 0.0
    %1239 = vmatprep.subr.mxu0 0.0
    %1240 = vmatpush1.msra.mxu0 0.0
    %1241 = vmatprep.subr.mxu0 0.0
    %1242 = vmatpush1.msra.mxu0 0.0
    %1243 = vmatprep.subr.mxu0 0.0
    %1244 = vmatpush1.msra.mxu0 0.0
    %1245 = vmatprep.subr.mxu0 0.0
    %1246 = vmatpush1.msra.mxu0 0.0
    %1247 = vmatprep.subr.mxu0 0.0
    %1248 = vmatpush1.msra.mxu0 0.0
    %1249 = vmatprep.subr.mxu0 0.0
    %1250 = vmatpush1.msra.mxu0 0.0
    %1251 = vmatprep.subr.mxu0 0.0
    %1252 = vmatpush1.msra.mxu0 0.0
    %1253 = vmatprep.subr.mxu0 0.0
    %1254 = vmatpush1.msra.mxu0 0.0
    %1255 = vmatprep.subr.mxu0 0.0
    %1256 = vmatpush1.msra.mxu0 0.0
    %1257 = vmatprep.subr.mxu0 0.0
    %1258 = vmatpush1.msra.mxu0 0.0
    %1259 = vmatprep.subr.mxu0 0.0
    %1260 = vmatpush1.msra.mxu0 0.0
    %1261 = vmatprep.subr.mxu0 0.0
    %1262 = vmatpush1.msra.mxu0 0.0
    %1263 = vmatprep.subr.mxu0 0.0
    %1264 = vmatpush1.msra.mxu0 0.0
    %1265 = vmatprep.subr.mxu0 0.0
    %1266 = vmatpush1.msra.mxu0 0.0
    %1267 = vmatprep.subr.mxu0 0.0
    %1268 = vmatpush1.msra.mxu0 0.0
    %1269 = vmatprep.subr.mxu0 0.0
    %1270 = vmatpush1.msra.mxu0 0.0
    %1271 = vmatprep.subr.mxu0 0.0
    %1272 = vmatpush1.msra.mxu0 0.0
    %1273 = vmatprep.subr.mxu0 0.0
    %1274 = vmatpush1.msra.mxu0 0.0
    %1275 = vmatprep.subr.mxu0 0.0
    %1276 = vmatpush1.msra.mxu0 0.0
    %1277 = vmatprep.subr.mxu0 0.0
    %1278 = vmatpush1.msra.mxu0 0.0
    %1279 = vmatprep.subr.mxu0 0.0
    %1280 = vmatpush1.msra.mxu0 0.0
    %1281 = vmatprep.subr.mxu0 0.0
    %1282 = vmatpush1.msra.mxu0 0.0
    %1283 = vmatprep.subr.mxu0 0.0
    %1284 = vmatpush1.msra.mxu0 0.0
    %1285 = vmatprep.subr.mxu0 0.0
    %1286 = vmatpush1.msra.mxu0 0.0
    %1287 = vmatprep.subr.mxu0 0.0
    %1288 = vmatpush1.msra.mxu0 0.0
    %1289 = vmatprep.subr.mxu0 0.0
    %1290 = vmatpush1.msra.mxu0 0.0
    %1291 = vmatprep.subr.mxu0 0.0
    %1292 = vmatpush1.msra.mxu0 0.0
    %1293 = vmatprep.mubr.f32.mxu0 0.0
    %v1294 = vand.u32 %v997, 4294901760
    %v1295 = vsub.f32 %v997, %v1294
    %v1296 = vand.u32 %v1295, 4294901760
    %1297 = vmatmul.mubr.f32.gmra.mrb[0].mxu0 %v1296
    %v1298 = vpop.f32.mrb[0].mxu0
    %v1299 = vadd.f32 %v1225, %v1298
    %v1300 = vpop.f32.mrb[0].mxu0
    %1301 = vdwg.mxu0
    %1302 = vmatprep.subr.mxu0 0.0
    %v1303 = vand.u32 %v1000, 4294901760
    %v1304 = vsub.f32 %v1000, %v1303
    %v1305 = vand.u32 %v1304, 4294901760
    %1306 = vmatpush1.msra.mxu0 %v1305
    %1307 = vmatprep.subr.mxu0 0.0
    %1308 = vmatpush1.msra.mxu0 0.0
    %1309 = vmatprep.subr.mxu0 0.0
    %1310 = vmatpush1.msra.mxu0 0.0
    %1311 = vmatprep.subr.mxu0 0.0
    %1312 = vmatpush1.msra.mxu0 0.0
    %1313 = vmatprep.subr.mxu0 0.0
    %1314 = vmatpush1.msra.mxu0 0.0
    %1315 = vmatprep.subr.mxu0 0.0
    %1316 = vmatpush1.msra.mxu0 0.0
    %1317 = vmatprep.subr.mxu0 0.0
    %1318 = vmatpush1.msra.mxu0 0.0
    %1319 = vmatprep.subr.mxu0 0.0
    %1320 = vmatpush1.msra.mxu0 0.0
    %1321 = vmatprep.subr.mxu0 0.0
    %1322 = vmatpush1.msra.mxu0 0.0
    %1323 = vmatprep.subr.mxu0 0.0
    %1324 = vmatpush1.msra.mxu0 0.0
    %1325 = vmatprep.subr.mxu0 0.0
    %1326 = vmatpush1.msra.mxu0 0.0
    %1327 = vmatprep.subr.mxu0 0.0
    %1328 = vmatpush1.msra.mxu0 0.0
    %1329 = vmatprep.subr.mxu0 0.0
    %1330 = vmatpush1.msra.mxu0 0.0
    %1331 = vmatprep.subr.mxu0 0.0
    %1332 = vmatpush1.msra.mxu0 0.0
    %1333 = vmatprep.subr.mxu0 0.0
    %1334 = vmatpush1.msra.mxu0 0.0
    %1335 = vmatprep.subr.mxu0 0.0
    %1336 = vmatpush1.msra.mxu0 0.0
    %1337 = vmatprep.subr.mxu0 0.0
    %1338 = vmatpush1.msra.mxu0 0.0
    %1339 = vmatprep.subr.mxu0 0.0
    %1340 = vmatpush1.msra.mxu0 0.0
    %1341 = vmatprep.subr.mxu0 0.0
    %1342 = vmatpush1.msra.mxu0 0.0
    %1343 = vmatprep.subr.mxu0 0.0
    %1344 = vmatpush1.msra.mxu0 0.0
    %1345 = vmatprep.subr.mxu0 0.0
    %1346 = vmatpush1.msra.mxu0 0.0
    %1347 = vmatprep.subr.mxu0 0.0
    %1348 = vmatpush1.msra.mxu0 0.0
    %1349 = vmatprep.subr.mxu0 0.0
    %1350 = vmatpush1.msra.mxu0 0.0
    %1351 = vmatprep.subr.mxu0 0.0
    %1352 = vmatpush1.msra.mxu0 0.0
    %1353 = vmatprep.subr.mxu0 0.0
    %1354 = vmatpush1.msra.mxu0 0.0
    %1355 = vmatprep.subr.mxu0 0.0
    %1356 = vmatpush1.msra.mxu0 0.0
    %1357 = vmatprep.subr.mxu0 0.0
    %1358 = vmatpush1.msra.mxu0 0.0
    %1359 = vmatprep.subr.mxu0 0.0
    %1360 = vmatpush1.msra.mxu0 0.0
    %1361 = vmatprep.subr.mxu0 0.0
    %1362 = vmatpush1.msra.mxu0 0.0
    %1363 = vmatprep.subr.mxu0 0.0
    %1364 = vmatpush1.msra.mxu0 0.0
    %1365 = vmatprep.subr.mxu0 0.0
    %1366 = vmatpush1.msra.mxu0 0.0
    %1367 = vmatprep.subr.mxu0 0.0
    %1368 = vmatpush1.msra.mxu0 0.0
    %1369 = vmatprep.mubr.f32.mxu0 0.0
    %v1370 = vand.u32 %v997, 4294901760
    %1371 = vmatmul.mubr.f32.gmra.mrb[0].mxu0 %v1370
    %v1372 = vpop.f32.mrb[0].mxu0
    %v1373 = vadd.f32 %v1299, %v1372
    %v1374 = vpop.f32.mrb[0].mxu0
    %1375 = vdwg.mxu0
    %1376 = vmatprep.subr.mxu0 0.0
    %v1377 = vand.u32 %v1000, 4294901760
    %1378 = vmatpush1.msra.mxu0 %v1377
    %1379 = vmatprep.subr.mxu0 0.0
    %1380 = vmatpush1.msra.mxu0 0.0
    %1381 = vmatprep.subr.mxu0 0.0
    %1382 = vmatpush1.msra.mxu0 0.0
    %1383 = vmatprep.subr.mxu0 0.0
    %1384 = vmatpush1.msra.mxu0 0.0
    %1385 = vmatprep.subr.mxu0 0.0
    %1386 = vmatpush1.msra.mxu0 0.0
    %1387 = vmatprep.subr.mxu0 0.0
    %1388 = vmatpush1.msra.mxu0 0.0
    %1389 = vmatprep.subr.mxu0 0.0
    %1390 = vmatpush1.msra.mxu0 0.0
    %1391 = vmatprep.subr.mxu0 0.0
    %1392 = vmatpush1.msra.mxu0 0.0
    %1393 = vmatprep.subr.mxu0 0.0
    %1394 = vmatpush1.msra.mxu0 0.0
    %1395 = vmatprep.subr.mxu0 0.0
    %1396 = vmatpush1.msra.mxu0 0.0
    %1397 = vmatprep.subr.mxu0 0.0
    %1398 = vmatpush1.msra.mxu0 0.0
    %1399 = vmatprep.subr.mxu0 0.0
    %1400 = vmatpush1.msra.mxu0 0.0
    %1401 = vmatprep.subr.mxu0 0.0
    %1402 = vmatpush1.msra.mxu0 0.0
    %1403 = vmatprep.subr.mxu0 0.0
    %1404 = vmatpush1.msra.mxu0 0.0
    %1405 = vmatprep.subr.mxu0 0.0
    %1406 = vmatpush1.msra.mxu0 0.0
    %1407 = vmatprep.subr.mxu0 0.0
    %1408 = vmatpush1.msra.mxu0 0.0
    %1409 = vmatprep.subr.mxu0 0.0
    %1410 = vmatpush1.msra.mxu0 0.0
    %1411 = vmatprep.subr.mxu0 0.0
    %1412 = vmatpush1.msra.mxu0 0.0
    %1413 = vmatprep.subr.mxu0 0.0
    %1414 = vmatpush1.msra.mxu0 0.0
    %1415 = vmatprep.subr.mxu0 0.0
    %1416 = vmatpush1.msra.mxu0 0.0
    %1417 = vmatprep.subr.mxu0 0.0
    %1418 = vmatpush1.msra.mxu0 0.0
    %1419 = vmatprep.subr.mxu0 0.0
    %1420 = vmatpush1.msra.mxu0 0.0
    %1421 = vmatprep.subr.mxu0 0.0
    %1422 = vmatpush1.msra.mxu0 0.0
    %1423 = vmatprep.subr.mxu0 0.0
    %1424 = vmatpush1.msra.mxu0 0.0
    %1425 = vmatprep.subr.mxu0 0.0
    %1426 = vmatpush1.msra.mxu0 0.0
    %1427 = vmatprep.subr.mxu0 0.0
    %1428 = vmatpush1.msra.mxu0 0.0
    %1429 = vmatprep.subr.mxu0 0.0
    %1430 = vmatpush1.msra.mxu0 0.0
    %1431 = vmatprep.subr.mxu0 0.0
    %1432 = vmatpush1.msra.mxu0 0.0
    %1433 = vmatprep.subr.mxu0 0.0
    %1434 = vmatpush1.msra.mxu0 0.0
    %1435 = vmatprep.subr.mxu0 0.0
    %1436 = vmatpush1.msra.mxu0 0.0
    %1437 = vmatprep.subr.mxu0 0.0
    %1438 = vmatpush1.msra.mxu0 0.0
    %1439 = vmatprep.subr.mxu0 0.0
    %1440 = vmatpush1.msra.mxu0 0.0
    %1441 = vmatprep.mubr.f32.mxu0 0.0
    %v1442 = vand.u32 %v997, 4294901760
    %1443 = vmatmul.mubr.f32.gmra.mrb[0].mxu0 %v1442
    %v1444 = vpop.f32.mrb[0].mxu0
    %v1445 = vadd.f32 %v1373, %v1444
    %v1446 = vpop.f32.mrb[0].mxu0
    %1447 = vdwg.mxu0
    %vm1448 = vcmask 32768
    %1449 = vst.msk [vmem:[#allocation2] sm:$0x1] %vm1448, %v1445
    %v1450 = vld [vmem:[%s0 + $0x3] sm:$0x1]
    %1451 = vmatprep.subr.mxu0 0.0
    %v1452 = vand.u32 %v519, 4294901760
    %1453 = vmatpush1.msra.mxu0 %v1452
    %1454 = vmatprep.subr.mxu0 0.0
    %1455 = vmatpush1.msra.mxu0 0.0
    %1456 = vmatprep.subr.mxu0 0.0
    %1457 = vmatpush1.msra.mxu0 0.0
    %1458 = vmatprep.subr.mxu0 0.0
    %1459 = vmatpush1.msra.mxu0 0.0
    %1460 = vmatprep.subr.mxu0 0.0
    %1461 = vmatpush1.msra.mxu0 0.0
    %1462 = vmatprep.subr.mxu0 0.0
    %1463 = vmatpush1.msra.mxu0 0.0
    %1464 = vmatprep.subr.mxu0 0.0
    %1465 = vmatpush1.msra.mxu0 0.0
    %1466 = vmatprep.subr.mxu0 0.0
    %1467 = vmatpush1.msra.mxu0 0.0
    %1468 = vmatprep.subr.mxu0 0.0
    %1469 = vmatpush1.msra.mxu0 0.0
    %1470 = vmatprep.subr.mxu0 0.0
    %1471 = vmatpush1.msra.mxu0 0.0
    %1472 = vmatprep.subr.mxu0 0.0
    %1473 = vmatpush1.msra.mxu0 0.0
    %1474 = vmatprep.subr.mxu0 0.0
    %1475 = vmatpush1.msra.mxu0 0.0
    %1476 = vmatprep.subr.mxu0 0.0
    %1477 = vmatpush1.msra.mxu0 0.0
    %1478 = vmatprep.subr.mxu0 0.0
    %1479 = vmatpush1.msra.mxu0 0.0
    %1480 = vmatprep.subr.mxu0 0.0
    %1481 = vmatpush1.msra.mxu0 0.0
    %1482 = vmatprep.subr.mxu0 0.0
    %1483 = vmatpush1.msra.mxu0 0.0
    %1484 = vmatprep.subr.mxu0 0.0
    %1485 = vmatpush1.msra.mxu0 0.0
    %1486 = vmatprep.subr.mxu0 0.0
    %1487 = vmatpush1.msra.mxu0 0.0
    %1488 = vmatprep.subr.mxu0 0.0
    %1489 = vmatpush1.msra.mxu0 0.0
    %1490 = vmatprep.subr.mxu0 0.0
    %1491 = vmatpush1.msra.mxu0 0.0
    %1492 = vmatprep.subr.mxu0 0.0
    %1493 = vmatpush1.msra.mxu0 0.0
    %1494 = vmatprep.subr.mxu0 0.0
    %1495 = vmatpush1.msra.mxu0 0.0
    %1496 = vmatprep.subr.mxu0 0.0
    %1497 = vmatpush1.msra.mxu0 0.0
    %1498 = vmatprep.subr.mxu0 0.0
    %1499 = vmatpush1.msra.mxu0 0.0
    %1500 = vmatprep.subr.mxu0 0.0
    %1501 = vmatpush1.msra.mxu0 0.0
    %1502 = vmatprep.subr.mxu0 0.0
    %1503 = vmatpush1.msra.mxu0 0.0
    %1504 = vmatprep.subr.mxu0 0.0
    %1505 = vmatpush1.msra.mxu0 0.0
    %1506 = vmatprep.subr.mxu0 0.0
    %1507 = vmatpush1.msra.mxu0 0.0
    %1508 = vmatprep.subr.mxu0 0.0
    %1509 = vmatpush1.msra.mxu0 0.0
    %1510 = vmatprep.subr.mxu0 0.0
    %1511 = vmatpush1.msra.mxu0 0.0
    %1512 = vmatprep.subr.mxu0 0.0
    %1513 = vmatpush1.msra.mxu0 0.0
    %1514 = vmatprep.subr.mxu0 0.0
    %1515 = vmatpush1.msra.mxu0 0.0
    %1516 = vmatprep.mubr.f32.mxu0 0.0
    %v1517 = vand.u32 %v997, 4294901760
    %v1518 = vsub.f32 %v997, %v1517
    %v1519 = vand.u32 %v1518, 4294901760
    %v1520 = vsub.f32 %v1518, %v1519
    %v1521 = vand.u32 %v1520, 4294901760
    %1522 = vmatmul.mubr.f32.gmra.mrb[0].mxu0 %v1521
    %v1523 = vpop.f32.mrb[0].mxu0
    %v1524 = vadd.f32 0.0, %v1523
    %v1525 = vpop.f32.mrb[0].mxu0
    %1526 = vdwg.mxu0
    %1527 = vmatprep.subr.mxu0 0.0
    %v1528 = vand.u32 %v519, 4294901760
    %v1529 = vsub.f32 %v519, %v1528
    %v1530 = vand.u32 %v1529, 4294901760
    %v1531 = vsub.f32 %v1529, %v1530
    %v1532 = vand.u32 %v1531, 4294901760
    %1533 = vmatpush1.msra.mxu0 %v1532
    %1534 = vmatprep.subr.mxu0 0.0
    %1535 = vmatpush1.msra.mxu0 0.0
    %1536 = vmatprep.subr.mxu0 0.0
    %1537 = vmatpush1.msra.mxu0 0.0
    %1538 = vmatprep.subr.mxu0 0.0
    %1539 = vmatpush1.msra.mxu0 0.0
    %1540 = vmatprep.subr.mxu0 0.0
    %1541 = vmatpush1.msra.mxu0 0.0
    %1542 = vmatprep.subr.mxu0 0.0
    %1543 = vmatpush1.msra.mxu0 0.0
    %1544 = vmatprep.subr.mxu0 0.0
    %1545 = vmatpush1.msra.mxu0 0.0
    %1546 = vmatprep.subr.mxu0 0.0
    %1547 = vmatpush1.msra.mxu0 0.0
    %1548 = vmatprep.subr.mxu0 0.0
    %1549 = vmatpush1.msra.mxu0 0.0
    %1550 = vmatprep.subr.mxu0 0.0
    %1551 = vmatpush1.msra.mxu0 0.0
    %1552 = vmatprep.subr.mxu0 0.0
    %1553 = vmatpush1.msra.mxu0 0.0
    %1554 = vmatprep.subr.mxu0 0.0
    %1555 = vmatpush1.msra.mxu0 0.0
    %1556 = vmatprep.subr.mxu0 0.0
    %1557 = vmatpush1.msra.mxu0 0.0
    %1558 = vmatprep.subr.mxu0 0.0
    %1559 = vmatpush1.msra.mxu0 0.0
    %1560 = vmatprep.subr.mxu0 0.0
    %1561 = vmatpush1.msra.mxu0 0.0
    %1562 = vmatprep.subr.mxu0 0.0
    %1563 = vmatpush1.msra.mxu0 0.0
    %1564 = vmatprep.subr.mxu0 0.0
    %1565 = vmatpush1.msra.mxu0 0.0
    %1566 = vmatprep.subr.mxu0 0.0
    %1567 = vmatpush1.msra.mxu0 0.0
    %1568 = vmatprep.subr.mxu0 0.0
    %1569 = vmatpush1.msra.mxu0 0.0
    %1570 = vmatprep.subr.mxu0 0.0
    %1571 = vmatpush1.msra.mxu0 0.0
    %1572 = vmatprep.subr.mxu0 0.0
    %1573 = vmatpush1.msra.mxu0 0.0
    %1574 = vmatprep.subr.mxu0 0.0
    %1575 = vmatpush1.msra.mxu0 0.0
    %1576 = vmatprep.subr.mxu0 0.0
    %1577 = vmatpush1.msra.mxu0 0.0
    %1578 = vmatprep.subr.mxu0 0.0
    %1579 = vmatpush1.msra.mxu0 0.0
    %1580 = vmatprep.subr.mxu0 0.0
    %1581 = vmatpush1.msra.mxu0 0.0
    %1582 = vmatprep.subr.mxu0 0.0
    %1583 = vmatpush1.msra.mxu0 0.0
    %1584 = vmatprep.subr.mxu0 0.0
    %1585 = vmatpush1.msra.mxu0 0.0
    %1586 = vmatprep.subr.mxu0 0.0
    %1587 = vmatpush1.msra.mxu0 0.0
    %1588 = vmatprep.subr.mxu0 0.0
    %1589 = vmatpush1.msra.mxu0 0.0
    %1590 = vmatprep.subr.mxu0 0.0
    %1591 = vmatpush1.msra.mxu0 0.0
    %1592 = vmatprep.subr.mxu0 0.0
    %1593 = vmatpush1.msra.mxu0 0.0
    %1594 = vmatprep.subr.mxu0 0.0
    %1595 = vmatpush1.msra.mxu0 0.0
    %1596 = vmatprep.mubr.f32.mxu0 0.0
    %v1597 = vand.u32 %v997, 4294901760
    %1598 = vmatmul.mubr.f32.gmra.mrb[0].mxu0 %v1597
    %v1599 = vpop.f32.mrb[0].mxu0
    %v1600 = vadd.f32 %v1524, %v1599
    %v1601 = vpop.f32.mrb[0].mxu0
    %1602 = vdwg.mxu0
    %1603 = vmatprep.subr.mxu0 0.0
    %v1604 = vand.u32 %v519, 4294901760
    %v1605 = vsub.f32 %v519, %v1604
    %1606 = vmatpush1.msra.mxu0 %v1605
    %1607 = vmatprep.subr.mxu0 0.0
    %1608 = vmatpush1.msra.mxu0 0.0
    %1609 = vmatprep.subr.mxu0 0.0
    %1610 = vmatpush1.msra.mxu0 0.0
    %1611 = vmatprep.subr.mxu0 0.0
    %1612 = vmatpush1.msra.mxu0 0.0
    %1613 = vmatprep.subr.mxu0 0.0
    %1614 = vmatpush1.msra.mxu0 0.0
    %1615 = vmatprep.subr.mxu0 0.0
    %1616 = vmatpush1.msra.mxu0 0.0
    %1617 = vmatprep.subr.mxu0 0.0
    %1618 = vmatpush1.msra.mxu0 0.0
    %1619 = vmatprep.subr.mxu0 0.0
    %1620 = vmatpush1.msra.mxu0 0.0
    %1621 = vmatprep.subr.mxu0 0.0
    %1622 = vmatpush1.msra.mxu0 0.0
    %1623 = vmatprep.subr.mxu0 0.0
    %1624 = vmatpush1.msra.mxu0 0.0
    %1625 = vmatprep.subr.mxu0 0.0
    %1626 = vmatpush1.msra.mxu0 0.0
    %1627 = vmatprep.subr.mxu0 0.0
    %1628 = vmatpush1.msra.mxu0 0.0
    %1629 = vmatprep.subr.mxu0 0.0
    %1630 = vmatpush1.msra.mxu0 0.0
    %1631 = vmatprep.subr.mxu0 0.0
    %1632 = vmatpush1.msra.mxu0 0.0
    %1633 = vmatprep.subr.mxu0 0.0
    %1634 = vmatpush1.msra.mxu0 0.0
    %1635 = vmatprep.subr.mxu0 0.0
    %1636 = vmatpush1.msra.mxu0 0.0
    %1637 = vmatprep.subr.mxu0 0.0
    %1638 = vmatpush1.msra.mxu0 0.0
    %1639 = vmatprep.subr.mxu0 0.0
    %1640 = vmatpush1.msra.mxu0 0.0
    %1641 = vmatprep.subr.mxu0 0.0
    %1642 = vmatpush1.msra.mxu0 0.0
    %1643 = vmatprep.subr.mxu0 0.0
    %1644 = vmatpush1.msra.mxu0 0.0
    %1645 = vmatprep.subr.mxu0 0.0
    %1646 = vmatpush1.msra.mxu0 0.0
    %1647 = vmatprep.subr.mxu0 0.0
    %1648 = vmatpush1.msra.mxu0 0.0
    %1649 = vmatprep.subr.mxu0 0.0
    %1650 = vmatpush1.msra.mxu0 0.0
    %1651 = vmatprep.subr.mxu0 0.0
    %1652 = vmatpush1.msra.mxu0 0.0
    %1653 = vmatprep.subr.mxu0 0.0
    %1654 = vmatpush1.msra.mxu0 0.0
    %1655 = vmatprep.subr.mxu0 0.0
    %1656 = vmatpush1.msra.mxu0 0.0
    %1657 = vmatprep.subr.mxu0 0.0
    %1658 = vmatpush1.msra.mxu0 0.0
    %1659 = vmatprep.subr.mxu0 0.0
    %1660 = vmatpush1.msra.mxu0 0.0
    %1661 = vmatprep.subr.mxu0 0.0
    %1662 = vmatpush1.msra.mxu0 0.0
    %1663 = vmatprep.subr.mxu0 0.0
    %1664 = vmatpush1.msra.mxu0 0.0
    %1665 = vmatprep.subr.mxu0 0.0
    %1666 = vmatpush1.msra.mxu0 0.0
    %1667 = vmatprep.subr.mxu0 0.0
    %1668 = vmatpush1.msra.mxu0 0.0
    %1669 = vmatprep.mubr.f32.mxu0 0.0
    %v1670 = vand.u32 %v997, 4294901760
    %v1671 = vsub.f32 %v997, %v1670
    %1672 = vmatmul.mubr.f32.gmra.mrb[0].mxu0 %v1671
    %v1673 = vpop.f32.mrb[0].mxu0
    %v1674 = vadd.f32 %v1600, %v1673
    %v1675 = vpop.f32.mrb[0].mxu0
    %1676 = vdwg.mxu0
    %1677 = vmatprep.subr.mxu0 0.0
    %v1678 = vand.u32 %v519, 4294901760
    %1679 = vmatpush1.msra.mxu0 %v1678
    %1680 = vmatprep.subr.mxu0 0.0
    %1681 = vmatpush1.msra.mxu0 0.0
    %1682 = vmatprep.subr.mxu0 0.0
    %1683 = vmatpush1.msra.mxu0 0.0
    %1684 = vmatprep.subr.mxu0 0.0
    %1685 = vmatpush1.msra.mxu0 0.0
    %1686 = vmatprep.subr.mxu0 0.0
    %1687 = vmatpush1.msra.mxu0 0.0
    %1688 = vmatprep.subr.mxu0 0.0
    %1689 = vmatpush1.msra.mxu0 0.0
    %1690 = vmatprep.subr.mxu0 0.0
    %1691 = vmatpush1.msra.mxu0 0.0
    %1692 = vmatprep.subr.mxu0 0.0
    %1693 = vmatpush1.msra.mxu0 0.0
    %1694 = vmatprep.subr.mxu0 0.0
    %1695 = vmatpush1.msra.mxu0 0.0
    %1696 = vmatprep.subr.mxu0 0.0
    %1697 = vmatpush1.msra.mxu0 0.0
    %1698 = vmatprep.subr.mxu0 0.0
    %1699 = vmatpush1.msra.mxu0 0.0
    %1700 = vmatprep.subr.mxu0 0.0
    %1701 = vmatpush1.msra.mxu0 0.0
    %1702 = vmatprep.subr.mxu0 0.0
    %1703 = vmatpush1.msra.mxu0 0.0
    %1704 = vmatprep.subr.mxu0 0.0
    %1705 = vmatpush1.msra.mxu0 0.0
    %1706 = vmatprep.subr.mxu0 0.0
    %1707 = vmatpush1.msra.mxu0 0.0
    %1708 = vmatprep.subr.mxu0 0.0
    %1709 = vmatpush1.msra.mxu0 0.0
    %1710 = vmatprep.subr.mxu0 0.0
    %1711 = vmatpush1.msra.mxu0 0.0
    %1712 = vmatprep.subr.mxu0 0.0
    %1713 = vmatpush1.msra.mxu0 0.0
    %1714 = vmatprep.subr.mxu0 0.0
    %1715 = vmatpush1.msra.mxu0 0.0
    %1716 = vmatprep.subr.mxu0 0.0
    %1717 = vmatpush1.msra.mxu0 0.0
    %1718 = vmatprep.subr.mxu0 0.0
    %1719 = vmatpush1.msra.mxu0 0.0
    %1720 = vmatprep.subr.mxu0 0.0
    %1721 = vmatpush1.msra.mxu0 0.0
    %1722 = vmatprep.subr.mxu0 0.0
    %1723 = vmatpush1.msra.mxu0 0.0
    %1724 = vmatprep.subr.mxu0 0.0
    %1725 = vmatpush1.msra.mxu0 0.0
    %1726 = vmatprep.subr.mxu0 0.0
    %1727 = vmatpush1.msra.mxu0 0.0
    %1728 = vmatprep.subr.mxu0 0.0
    %1729 = vmatpush1.msra.mxu0 0.0
    %1730 = vmatprep.subr.mxu0 0.0
    %1731 = vmatpush1.msra.mxu0 0.0
    %1732 = vmatprep.subr.mxu0 0.0
    %1733 = vmatpush1.msra.mxu0 0.0
    %1734 = vmatprep.subr.mxu0 0.0
    %1735 = vmatpush1.msra.mxu0 0.0
    %1736 = vmatprep.subr.mxu0 0.0
    %1737 = vmatpush1.msra.mxu0 0.0
    %1738 = vmatprep.subr.mxu0 0.0
    %1739 = vmatpush1.msra.mxu0 0.0
    %1740 = vmatprep.subr.mxu0 0.0
    %1741 = vmatpush1.msra.mxu0 0.0
    %1742 = vmatprep.mubr.f32.mxu0 0.0
    %v1743 = vand.u32 %v997, 4294901760
    %v1744 = vsub.f32 %v997, %v1743
    %v1745 = vand.u32 %v1744, 4294901760
    %1746 = vmatmul.mubr.f32.gmra.mrb[0].mxu0 %v1745
    %v1747 = vpop.f32.mrb[0].mxu0
    %v1748 = vadd.f32 %v1674, %v1747
    %v1749 = vpop.f32.mrb[0].mxu0
    %1750 = vdwg.mxu0
    %1751 = vmatprep.subr.mxu0 0.0
    %v1752 = vand.u32 %v519, 4294901760
    %v1753 = vsub.f32 %v519, %v1752
    %v1754 = vand.u32 %v1753, 4294901760
    %1755 = vmatpush1.msra.mxu0 %v1754
    %1756 = vmatprep.subr.mxu0 0.0
    %1757 = vmatpush1.msra.mxu0 0.0
    %1758 = vmatprep.subr.mxu0 0.0
    %1759 = vmatpush1.msra.mxu0 0.0
    %1760 = vmatprep.subr.mxu0 0.0
    %1761 = vmatpush1.msra.mxu0 0.0
    %1762 = vmatprep.subr.mxu0 0.0
    %1763 = vmatpush1.msra.mxu0 0.0
    %1764 = vmatprep.subr.mxu0 0.0
    %1765 = vmatpush1.msra.mxu0 0.0
    %1766 = vmatprep.subr.mxu0 0.0
    %1767 = vmatpush1.msra.mxu0 0.0
    %1768 = vmatprep.subr.mxu0 0.0
    %1769 = vmatpush1.msra.mxu0 0.0
    %1770 = vmatprep.subr.mxu0 0.0
    %1771 = vmatpush1.msra.mxu0 0.0
    %1772 = vmatprep.subr.mxu0 0.0
    %1773 = vmatpush1.msra.mxu0 0.0
    %1774 = vmatprep.subr.mxu0 0.0
    %1775 = vmatpush1.msra.mxu0 0.0
    %1776 = vmatprep.subr.mxu0 0.0
    %1777 = vmatpush1.msra.mxu0 0.0
    %1778 = vmatprep.subr.mxu0 0.0
    %1779 = vmatpush1.msra.mxu0 0.0
    %1780 = vmatprep.subr.mxu0 0.0
    %1781 = vmatpush1.msra.mxu0 0.0
    %1782 = vmatprep.subr.mxu0 0.0
    %1783 = vmatpush1.msra.mxu0 0.0
    %1784 = vmatprep.subr.mxu0 0.0
    %1785 = vmatpush1.msra.mxu0 0.0
    %1786 = vmatprep.subr.mxu0 0.0
    %1787 = vmatpush1.msra.mxu0 0.0
    %1788 = vmatprep.subr.mxu0 0.0
    %1789 = vmatpush1.msra.mxu0 0.0
    %1790 = vmatprep.subr.mxu0 0.0
    %1791 = vmatpush1.msra.mxu0 0.0
    %1792 = vmatprep.subr.mxu0 0.0
    %1793 = vmatpush1.msra.mxu0 0.0
    %1794 = vmatprep.subr.mxu0 0.0
    %1795 = vmatpush1.msra.mxu0 0.0
    %1796 = vmatprep.subr.mxu0 0.0
    %1797 = vmatpush1.msra.mxu0 0.0
    %1798 = vmatprep.subr.mxu0 0.0
    %1799 = vmatpush1.msra.mxu0 0.0
    %1800 = vmatprep.subr.mxu0 0.0
    %1801 = vmatpush1.msra.mxu0 0.0
    %1802 = vmatprep.subr.mxu0 0.0
    %1803 = vmatpush1.msra.mxu0 0.0
    %1804 = vmatprep.subr.mxu0 0.0
    %1805 = vmatpush1.msra.mxu0 0.0
    %1806 = vmatprep.subr.mxu0 0.0
    %1807 = vmatpush1.msra.mxu0 0.0
    %1808 = vmatprep.subr.mxu0 0.0
    %1809 = vmatpush1.msra.mxu0 0.0
    %1810 = vmatprep.subr.mxu0 0.0
    %1811 = vmatpush1.msra.mxu0 0.0
    %1812 = vmatprep.subr.mxu0 0.0
    %1813 = vmatpush1.msra.mxu0 0.0
    %1814 = vmatprep.subr.mxu0 0.0
    %1815 = vmatpush1.msra.mxu0 0.0
    %1816 = vmatprep.subr.mxu0 0.0
    %1817 = vmatpush1.msra.mxu0 0.0
    %1818 = vmatprep.mubr.f32.mxu0 0.0
    %v1819 = vand.u32 %v997, 4294901760
    %1820 = vmatmul.mubr.f32.gmra.mrb[0].mxu0 %v1819
    %v1821 = vpop.f32.mrb[0].mxu0
    %v1822 = vadd.f32 %v1748, %v1821
    %v1823 = vpop.f32.mrb[0].mxu0
    %1824 = vdwg.mxu0
    %1825 = vmatprep.subr.mxu0 0.0
    %v1826 = vand.u32 %v519, 4294901760
    %1827 = vmatpush1.msra.mxu0 %v1826
    %1828 = vmatprep.subr.mxu0 0.0
    %1829 = vmatpush1.msra.mxu0 0.0
    %1830 = vmatprep.subr.mxu0 0.0
    %1831 = vmatpush1.msra.mxu0 0.0
    %1832 = vmatprep.subr.mxu0 0.0
    %1833 = vmatpush1.msra.mxu0 0.0
    %1834 = vmatprep.subr.mxu0 0.0
    %1835 = vmatpush1.msra.mxu0 0.0
    %1836 = vmatprep.subr.mxu0 0.0
    %1837 = vmatpush1.msra.mxu0 0.0
    %1838 = vmatprep.subr.mxu0 0.0
    %1839 = vmatpush1.msra.mxu0 0.0
    %1840 = vmatprep.subr.mxu0 0.0
    %1841 = vmatpush1.msra.mxu0 0.0
    %1842 = vmatprep.subr.mxu0 0.0
    %1843 = vmatpush1.msra.mxu0 0.0
    %1844 = vmatprep.subr.mxu0 0.0
    %1845 = vmatpush1.msra.mxu0 0.0
    %1846 = vmatprep.subr.mxu0 0.0
    %1847 = vmatpush1.msra.mxu0 0.0
    %1848 = vmatprep.subr.mxu0 0.0
    %1849 = vmatpush1.msra.mxu0 0.0
    %1850 = vmatprep.subr.mxu0 0.0
    %1851 = vmatpush1.msra.mxu0 0.0
    %1852 = vmatprep.subr.mxu0 0.0
    %1853 = vmatpush1.msra.mxu0 0.0
    %1854 = vmatprep.subr.mxu0 0.0
    %1855 = vmatpush1.msra.mxu0 0.0
    %1856 = vmatprep.subr.mxu0 0.0
    %1857 = vmatpush1.msra.mxu0 0.0
    %1858 = vmatprep.subr.mxu0 0.0
    %1859 = vmatpush1.msra.mxu0 0.0
    %1860 = vmatprep.subr.mxu0 0.0
    %1861 = vmatpush1.msra.mxu0 0.0
    %1862 = vmatprep.subr.mxu0 0.0
    %1863 = vmatpush1.msra.mxu0 0.0
    %1864 = vmatprep.subr.mxu0 0.0
    %1865 = vmatpush1.msra.mxu0 0.0
    %1866 = vmatprep.subr.mxu0 0.0
    %1867 = vmatpush1.msra.mxu0 0.0
    %1868 = vmatprep.subr.mxu0 0.0
    %1869 = vmatpush1.msra.mxu0 0.0
    %1870 = vmatprep.subr.mxu0 0.0
    %1871 = vmatpush1.msra.mxu0 0.0
    %1872 = vmatprep.subr.mxu0 0.0
    %1873 = vmatpush1.msra.mxu0 0.0
    %1874 = vmatprep.subr.mxu0 0.0
    %1875 = vmatpush1.msra.mxu0 0.0
    %1876 = vmatprep.subr.mxu0 0.0
    %1877 = vmatpush1.msra.mxu0 0.0
    %1878 = vmatprep.subr.mxu0 0.0
    %1879 = vmatpush1.msra.mxu0 0.0
    %1880 = vmatprep.subr.mxu0 0.0
    %1881 = vmatpush1.msra.mxu0 0.0
    %1882 = vmatprep.subr.mxu0 0.0
    %1883 = vmatpush1.msra.mxu0 0.0
    %1884 = vmatprep.subr.mxu0 0.0
    %1885 = vmatpush1.msra.mxu0 0.0
    %1886 = vmatprep.subr.mxu0 0.0
    %1887 = vmatpush1.msra.mxu0 0.0
    %1888 = vmatprep.subr.mxu0 0.0
    %1889 = vmatpush1.msra.mxu0 0.0
    %1890 = vmatprep.mubr.f32.mxu0 0.0
    %v1891 = vand.u32 %v997, 4294901760
    %1892 = vmatmul.mubr.f32.gmra.mrb[0].mxu0 %v1891
    %v1893 = vpop.f32.mrb[0].mxu0
    %v1894 = vadd.f32 %v1822, %v1893
    %v1895 = vpop.f32.mrb[0].mxu0
    %1896 = vdwg.mxu0
    %v1897 = vadd.f32 %v1450, %v1894
    %v1898 = vxor.u32 %v1897, 2147483648
    %v1899 = vmul.f32 %v1898, 1.442695
    %v1900 = vpow.pop %v1899
    %v1901 = vadd.f32 %v1900, 1.0
    %v1902 = vrcp.pop %v1901
    %v1903 = vmul.f32 1.0, %v1902
    %v1904 = vtanh.pop %v1897
    %v1905 = vmul.f32 %v1903, %v985
    %1907 = vrot.lane.b32.xlu0 %v1904, 116
    %v1908 = vpop.permute.xlu0 %1907
    %v1910 = vmul.f32 %v1903, %v1908
    %1912 = vrot.lane.b32.xlu0 %v1910, 6
    %v1913 = vpop.permute.xlu0 %1912
    %v1915 = vadd.f32 %v1905, %v1913
    %v1916 = vtanh.pop %v1915
    %1918 = vrot.lane.b32.xlu0 %v1916, 12
    %v1919 = vpop.permute.xlu0 %1918
    %v1921 = vmul.f32 %v1903, %v1919
    %v1922 = vld [vmem:[%s2] sm:$0x3f]
    %v1923 = vld [vmem:[%s3] sm:$0x1]
    %1925 = vrot.lane.b32.xlu0 %v1921, 110
    %v1926 = vpop.permute.xlu0 %1925
    %v1927 = vsel %vm514, %v1926, 0
    %v1930 = vsel %vm517, %v1922, 0
    %1932 = vmatprep.subr.mxu0 0.0
    %v1933 = vand.u32 %v1930, 4294901760
    %1934 = vmatpush1.msra.mxu0 %v1933
    %1935 = vmatprep.subr.mxu0 0.0
    %1936 = vmatpush1.msra.mxu0 0.0
    %1937 = vmatprep.subr.mxu0 0.0
    %1938 = vmatpush1.msra.mxu0 0.0
    %1939 = vmatprep.subr.mxu0 0.0
    %1940 = vmatpush1.msra.mxu0 0.0
    %1941 = vmatprep.subr.mxu0 0.0
    %1942 = vmatpush1.msra.mxu0 0.0
    %1943 = vmatprep.subr.mxu0 0.0
    %1944 = vmatpush1.msra.mxu0 0.0
    %1945 = vmatprep.subr.mxu0 0.0
    %1946 = vmatpush1.msra.mxu0 0.0
    %1947 = vmatprep.subr.mxu0 0.0
    %1948 = vmatpush1.msra.mxu0 0.0
    %1949 = vmatprep.subr.mxu0 0.0
    %1950 = vmatpush1.msra.mxu0 0.0
    %1951 = vmatprep.subr.mxu0 0.0
    %1952 = vmatpush1.msra.mxu0 0.0
    %1953 = vmatprep.subr.mxu0 0.0
    %1954 = vmatpush1.msra.mxu0 0.0
    %1955 = vmatprep.subr.mxu0 0.0
    %1956 = vmatpush1.msra.mxu0 0.0
    %1957 = vmatprep.subr.mxu0 0.0
    %1958 = vmatpush1.msra.mxu0 0.0
    %1959 = vmatprep.subr.mxu0 0.0
    %1960 = vmatpush1.msra.mxu0 0.0
    %1961 = vmatprep.subr.mxu0 0.0
    %1962 = vmatpush1.msra.mxu0 0.0
    %1963 = vmatprep.subr.mxu0 0.0
    %1964 = vmatpush1.msra.mxu0 0.0
    %1965 = vmatprep.subr.mxu0 0.0
    %1966 = vmatpush1.msra.mxu0 0.0
    %1967 = vmatprep.subr.mxu0 0.0
    %1968 = vmatpush1.msra.mxu0 0.0
    %1969 = vmatprep.subr.mxu0 0.0
    %1970 = vmatpush1.msra.mxu0 0.0
    %1971 = vmatprep.subr.mxu0 0.0
    %1972 = vmatpush1.msra.mxu0 0.0
    %1973 = vmatprep.subr.mxu0 0.0
    %1974 = vmatpush1.msra.mxu0 0.0
    %1975 = vmatprep.subr.mxu0 0.0
    %1976 = vmatpush1.msra.mxu0 0.0
    %1977 = vmatprep.subr.mxu0 0.0
    %1978 = vmatpush1.msra.mxu0 0.0
    %1979 = vmatprep.subr.mxu0 0.0
    %1980 = vmatpush1.msra.mxu0 0.0
    %1981 = vmatprep.subr.mxu0 0.0
    %1982 = vmatpush1.msra.mxu0 0.0
    %1983 = vmatprep.subr.mxu0 0.0
    %1984 = vmatpush1.msra.mxu0 0.0
    %1985 = vmatprep.subr.mxu0 0.0
    %1986 = vmatpush1.msra.mxu0 0.0
    %1987 = vmatprep.subr.mxu0 0.0
    %1988 = vmatpush1.msra.mxu0 0.0
    %1989 = vmatprep.subr.mxu0 0.0
    %1990 = vmatpush1.msra.mxu0 0.0
    %1991 = vmatprep.subr.mxu0 0.0
    %1992 = vmatpush1.msra.mxu0 0.0
    %1993 = vmatprep.subr.mxu0 0.0
    %1994 = vmatpush1.msra.mxu0 0.0
    %1995 = vmatprep.subr.mxu0 0.0
    %1996 = vmatpush1.msra.mxu0 0.0
    %1997 = vmatprep.mubr.f32.mxu0 0.0
    %v1998 = vand.u32 %v1927, 4294901760
    %v1999 = vsub.f32 %v1927, %v1998
    %v2000 = vand.u32 %v1999, 4294901760
    %v2001 = vsub.f32 %v1999, %v2000
    %v2002 = vand.u32 %v2001, 4294901760
    %2003 = vmatmul.mubr.f32.gmra.mrb[0].mxu0 %v2002
    %v2004 = vpop.f32.mrb[0].mxu0
    %v2005 = vadd.f32 %v1923, %v2004
    %v2006 = vpop.f32.mrb[0].mxu0
    %2007 = vdwg.mxu0
    %2008 = vmatprep.subr.mxu0 0.0
    %v2009 = vand.u32 %v1930, 4294901760
    %v2010 = vsub.f32 %v1930, %v2009
    %v2011 = vand.u32 %v2010, 4294901760
    %v2012 = vsub.f32 %v2010, %v2011
    %v2013 = vand.u32 %v2012, 4294901760
    %2014 = vmatpush1.msra.mxu0 %v2013
    %2015 = vmatprep.subr.mxu0 0.0
    %2016 = vmatpush1.msra.mxu0 0.0
    %2017 = vmatprep.subr.mxu0 0.0
    %2018 = vmatpush1.msra.mxu0 0.0
    %2019 = vmatprep.subr.mxu0 0.0
    %2020 = vmatpush1.msra.mxu0 0.0
    %2021 = vmatprep.subr.mxu0 0.0
    %2022 = vmatpush1.msra.mxu0 0.0
    %2023 = vmatprep.subr.mxu0 0.0
    %2024 = vmatpush1.msra.mxu0 0.0
    %2025 = vmatprep.subr.mxu0 0.0
    %2026 = vmatpush1.msra.mxu0 0.0
    %2027 = vmatprep.subr.mxu0 0.0
    %2028 = vmatpush1.msra.mxu0 0.0
    %2029 = vmatprep.subr.mxu0 0.0
    %2030 = vmatpush1.msra.mxu0 0.0
    %2031 = vmatprep.subr.mxu0 0.0
    %2032 = vmatpush1.msra.mxu0 0.0
    %2033 = vmatprep.subr.mxu0 0.0
    %2034 = vmatpush1.msra.mxu0 0.0
    %2035 = vmatprep.subr.mxu0 0.0
    %2036 = vmatpush1.msra.mxu0 0.0
    %2037 = vmatprep.subr.mxu0 0.0
    %2038 = vmatpush1.msra.mxu0 0.0
    %2039 = vmatprep.subr.mxu0 0.0
    %2040 = vmatpush1.msra.mxu0 0.0
    %2041 = vmatprep.subr.mxu0 0.0
    %2042 = vmatpush1.msra.mxu0 0.0
    %2043 = vmatprep.subr.mxu0 0.0
    %2044 = vmatpush1.msra.mxu0 0.0
    %2045 = vmatprep.subr.mxu0 0.0
    %2046 = vmatpush1.msra.mxu0 0.0
    %2047 = vmatprep.subr.mxu0 0.0
    %2048 = vmatpush1.msra.mxu0 0.0
    %2049 = vmatprep.subr.mxu0 0.0
    %2050 = vmatpush1.msra.mxu0 0.0
    %2051 = vmatprep.subr.mxu0 0.0
    %2052 = vmatpush1.msra.mxu0 0.0
    %2053 = vmatprep.subr.mxu0 0.0
    %2054 = vmatpush1.msra.mxu0 0.0
    %2055 = vmatprep.subr.mxu0 0.0
    %2056 = vmatpush1.msra.mxu0 0.0
    %2057 = vmatprep.subr.mxu0 0.0
    %2058 = vmatpush1.msra.mxu0 0.0
    %2059 = vmatprep.subr.mxu0 0.0
    %2060 = vmatpush1.msra.mxu0 0.0
    %2061 = vmatprep.subr.mxu0 0.0
    %2062 = vmatpush1.msra.mxu0 0.0
    %2063 = vmatprep.subr.mxu0 0.0
    %2064 = vmatpush1.msra.mxu0 0.0
    %2065 = vmatprep.subr.mxu0 0.0
    %2066 = vmatpush1.msra.mxu0 0.0
    %2067 = vmatprep.subr.mxu0 0.0
    %2068 = vmatpush1.msra.mxu0 0.0
    %2069 = vmatprep.subr.mxu0 0.0
    %2070 = vmatpush1.msra.mxu0 0.0
    %2071 = vmatprep.subr.mxu0 0.0
    %2072 = vmatpush1.msra.mxu0 0.0
    %2073 = vmatprep.subr.mxu0 0.0
    %2074 = vmatpush1.msra.mxu0 0.0
    %2075 = vmatprep.subr.mxu0 0.0
    %2076 = vmatpush1.msra.mxu0 0.0
    %2077 = vmatprep.mubr.f32.mxu0 0.0
    %v2078 = vand.u32 %v1927, 4294901760
    %2079 = vmatmul.mubr.f32.gmra.mrb[0].mxu0 %v2078
    %v2080 = vpop.f32.mrb[0].mxu0
    %v2081 = vadd.f32 %v2005, %v2080
    %v2082 = vpop.f32.mrb[0].mxu0
    %2083 = vdwg.mxu0
    %2084 = vmatprep.subr.mxu0 0.0
    %v2085 = vand.u32 %v1930, 4294901760
    %v2086 = vsub.f32 %v1930, %v2085
    %2087 = vmatpush1.msra.mxu0 %v2086
    %2088 = vmatprep.subr.mxu0 0.0
    %2089 = vmatpush1.msra.mxu0 0.0
    %2090 = vmatprep.subr.mxu0 0.0
    %2091 = vmatpush1.msra.mxu0 0.0
    %2092 = vmatprep.subr.mxu0 0.0
    %2093 = vmatpush1.msra.mxu0 0.0
    %2094 = vmatprep.subr.mxu0 0.0
    %2095 = vmatpush1.msra.mxu0 0.0
    %2096 = vmatprep.subr.mxu0 0.0
    %2097 = vmatpush1.msra.mxu0 0.0
    %2098 = vmatprep.subr.mxu0 0.0
    %2099 = vmatpush1.msra.mxu0 0.0
    %2100 = vmatprep.subr.mxu0 0.0
    %2101 = vmatpush1.msra.mxu0 0.0
    %2102 = vmatprep.subr.mxu0 0.0
    %2103 = vmatpush1.msra.mxu0 0.0
    %2104 = vmatprep.subr.mxu0 0.0
    %2105 = vmatpush1.msra.mxu0 0.0
    %2106 = vmatprep.subr.mxu0 0.0
    %2107 = vmatpush1.msra.mxu0 0.0
    %2108 = vmatprep.subr.mxu0 0.0
    %2109 = vmatpush1.msra.mxu0 0.0
    %2110 = vmatprep.subr.mxu0 0.0
    %2111 = vmatpush1.msra.mxu0 0.0
    %2112 = vmatprep.subr.mxu0 0.0
    %2113 = vmatpush1.msra.mxu0 0.0
    %2114 = vmatprep.subr.mxu0 0.0
    %2115 = vmatpush1.msra.mxu0 0.0
    %2116 = vmatprep.subr.mxu0 0.0
    %2117 = vmatpush1.msra.mxu0 0.0
    %2118 = vmatprep.subr.mxu0 0.0
    %2119 = vmatpush1.msra.mxu0 0.0
    %2120 = vmatprep.subr.mxu0 0.0
    %2121 = vmatpush1.msra.mxu0 0.0
    %2122 = vmatprep.subr.mxu0 0.0
    %2123 = vmatpush1.msra.mxu0 0.0
    %2124 = vmatprep.subr.mxu0 0.0
    %2125 = vmatpush1.msra.mxu0 0.0
    %2126 = vmatprep.subr.mxu0 0.0
    %2127 = vmatpush1.msra.mxu0 0.0
    %2128 = vmatprep.subr.mxu0 0.0
    %2129 = vmatpush1.msra.mxu0 0.0
    %2130 = vmatprep.subr.mxu0 0.0
    %2131 = vmatpush1.msra.mxu0 0.0
    %2132 = vmatprep.subr.mxu0 0.0
    %2133 = vmatpush1.msra.mxu0 0.0
    %2134 = vmatprep.subr.mxu0 0.0
    %2135 = vmatpush1.msra.mxu0 0.0
    %2136 = vmatprep.subr.mxu0 0.0
    %2137 = vmatpush1.msra.mxu0 0.0
    %2138 = vmatprep.subr.mxu0 0.0
    %2139 = vmatpush1.msra.mxu0 0.0
    %2140 = vmatprep.subr.mxu0 0.0
    %2141 = vmatpush1.msra.mxu0 0.0
    %2142 = vmatprep.subr.mxu0 0.0
    %2143 = vmatpush1.msra.mxu0 0.0
    %2144 = vmatprep.subr.mxu0 0.0
    %2145 = vmatpush1.msra.mxu0 0.0
    %2146 = vmatprep.subr.mxu0 0.0
    %2147 = vmatpush1.msra.mxu0 0.0
    %2148 = vmatprep.subr.mxu0 0.0
    %2149 = vmatpush1.msra.mxu0 0.0
    %2150 = vmatprep.mubr.f32.mxu0 0.0
    %v2151 = vand.u32 %v1927, 4294901760
    %v2152 = vsub.f32 %v1927, %v2151
    %2153 = vmatmul.mubr.f32.gmra.mrb[0].mxu0 %v2152
    %v2154 = vpop.f32.mrb[0].mxu0
    %v2155 = vadd.f32 %v2081, %v2154
    %v2156 = vpop.f32.mrb[0].mxu0
    %2157 = vdwg.mxu0
    %2158 = vmatprep.subr.mxu0 0.0
    %v2159 = vand.u32 %v1930, 4294901760
    %2160 = vmatpush1.msra.mxu0 %v2159
    %2161 = vmatprep.subr.mxu0 0.0
    %2162 = vmatpush1.msra.mxu0 0.0
    %2163 = vmatprep.subr.mxu0 0.0
    %2164 = vmatpush1.msra.mxu0 0.0
    %2165 = vmatprep.subr.mxu0 0.0
    %2166 = vmatpush1.msra.mxu0 0.0
    %2167 = vmatprep.subr.mxu0 0.0
    %2168 = vmatpush1.msra.mxu0 0.0
    %2169 = vmatprep.subr.mxu0 0.0
    %2170 = vmatpush1.msra.mxu0 0.0
    %2171 = vmatprep.subr.mxu0 0.0
    %2172 = vmatpush1.msra.mxu0 0.0
    %2173 = vmatprep.subr.mxu0 0.0
    %2174 = vmatpush1.msra.mxu0 0.0
    %2175 = vmatprep.subr.mxu0 0.0
    %2176 = vmatpush1.msra.mxu0 0.0
    %2177 = vmatprep.subr.mxu0 0.0
    %2178 = vmatpush1.msra.mxu0 0.0
    %2179 = vmatprep.subr.mxu0 0.0
    %2180 = vmatpush1.msra.mxu0 0.0
    %2181 = vmatprep.subr.mxu0 0.0
    %2182 = vmatpush1.msra.mxu0 0.0
    %2183 = vmatprep.subr.mxu0 0.0
    %2184 = vmatpush1.msra.mxu0 0.0
    %2185 = vmatprep.subr.mxu0 0.0
    %2186 = vmatpush1.msra.mxu0 0.0
    %2187 = vmatprep.subr.mxu0 0.0
    %2188 = vmatpush1.msra.mxu0 0.0
    %2189 = vmatprep.subr.mxu0 0.0
    %2190 = vmatpush1.msra.mxu0 0.0
    %2191 = vmatprep.subr.mxu0 0.0
    %2192 = vmatpush1.msra.mxu0 0.0
    %2193 = vmatprep.subr.mxu0 0.0
    %2194 = vmatpush1.msra.mxu0 0.0
    %2195 = vmatprep.subr.mxu0 0.0
    %2196 = vmatpush1.msra.mxu0 0.0
    %2197 = vmatprep.subr.mxu0 0.0
    %2198 = vmatpush1.msra.mxu0 0.0
    %2199 = vmatprep.subr.mxu0 0.0
    %2200 = vmatpush1.msra.mxu0 0.0
    %2201 = vmatprep.subr.mxu0 0.0
    %2202 = vmatpush1.msra.mxu0 0.0
    %2203 = vmatprep.subr.mxu0 0.0
    %2204 = vmatpush1.msra.mxu0 0.0
    %2205 = vmatprep.subr.mxu0 0.0
    %2206 = vmatpush1.msra.mxu0 0.0
    %2207 = vmatprep.subr.mxu0 0.0
    %2208 = vmatpush1.msra.mxu0 0.0
    %2209 = vmatprep.subr.mxu0 0.0
    %2210 = vmatpush1.msra.mxu0 0.0
    %2211 = vmatprep.subr.mxu0 0.0
    %2212 = vmatpush1.msra.mxu0 0.0
    %2213 = vmatprep.subr.mxu0 0.0
    %2214 = vmatpush1.msra.mxu0 0.0
    %2215 = vmatprep.subr.mxu0 0.0
    %2216 = vmatpush1.msra.mxu0 0.0
    %2217 = vmatprep.subr.mxu0 0.0
    %2218 = vmatpush1.msra.mxu0 0.0
    %2219 = vmatprep.subr.mxu0 0.0
    %2220 = vmatpush1.msra.mxu0 0.0
    %2221 = vmatprep.subr.mxu0 0.0
    %2222 = vmatpush1.msra.mxu0 0.0
    %2223 = vmatprep.mubr.f32.mxu0 0.0
    %v2224 = vand.u32 %v1927, 4294901760
    %v2225 = vsub.f32 %v1927, %v2224
    %v2226 = vand.u32 %v2225, 4294901760
    %2227 = vmatmul.mubr.f32.gmra.mrb[0].mxu0 %v2226
    %v2228 = vpop.f32.mrb[0].mxu0
    %v2229 = vadd.f32 %v2155, %v2228
    %v2230 = vpop.f32.mrb[0].mxu0
    %2231 = vdwg.mxu0
    %2232 = vmatprep.subr.mxu0 0.0
    %v2233 = vand.u32 %v1930, 4294901760
    %v2234 = vsub.f32 %v1930, %v2233
    %v2235 = vand.u32 %v2234, 4294901760
    %2236 = vmatpush1.msra.mxu0 %v2235
    %2237 = vmatprep.subr.mxu0 0.0
    %2238 = vmatpush1.msra.mxu0 0.0
    %2239 = vmatprep.subr.mxu0 0.0
    %2240 = vmatpush1.msra.mxu0 0.0
    %2241 = vmatprep.subr.mxu0 0.0
    %2242 = vmatpush1.msra.mxu0 0.0
    %2243 = vmatprep.subr.mxu0 0.0
    %2244 = vmatpush1.msra.mxu0 0.0
    %2245 = vmatprep.subr.mxu0 0.0
    %2246 = vmatpush1.msra.mxu0 0.0
    %2247 = vmatprep.subr.mxu0 0.0
    %2248 = vmatpush1.msra.mxu0 0.0
    %2249 = vmatprep.subr.mxu0 0.0
    %2250 = vmatpush1.msra.mxu0 0.0
    %2251 = vmatprep.subr.mxu0 0.0
    %2252 = vmatpush1.msra.mxu0 0.0
    %2253 = vmatprep.subr.mxu0 0.0
    %2254 = vmatpush1.msra.mxu0 0.0
    %2255 = vmatprep.subr.mxu0 0.0
    %2256 = vmatpush1.msra.mxu0 0.0
    %2257 = vmatprep.subr.mxu0 0.0
    %2258 = vmatpush1.msra.mxu0 0.0
    %2259 = vmatprep.subr.mxu0 0.0
    %2260 = vmatpush1.msra.mxu0 0.0
    %2261 = vmatprep.subr.mxu0 0.0
    %2262 = vmatpush1.msra.mxu0 0.0
    %2263 = vmatprep.subr.mxu0 0.0
    %2264 = vmatpush1.msra.mxu0 0.0
    %2265 = vmatprep.subr.mxu0 0.0
    %2266 = vmatpush1.msra.mxu0 0.0
    %2267 = vmatprep.subr.mxu0 0.0
    %2268 = vmatpush1.msra.mxu0 0.0
    %2269 = vmatprep.subr.mxu0 0.0
    %2270 = vmatpush1.msra.mxu0 0.0
    %2271 = vmatprep.subr.mxu0 0.0
    %2272 = vmatpush1.msra.mxu0 0.0
    %2273 = vmatprep.subr.mxu0 0.0
    %2274 = vmatpush1.msra.mxu0 0.0
    %2275 = vmatprep.subr.mxu0 0.0
    %2276 = vmatpush1.msra.mxu0 0.0
    %2277 = vmatprep.subr.mxu0 0.0
    %2278 = vmatpush1.msra.mxu0 0.0
    %2279 = vmatprep.subr.mxu0 0.0
    %2280 = vmatpush1.msra.mxu0 0.0
    %2281 = vmatprep.subr.mxu0 0.0
    %2282 = vmatpush1.msra.mxu0 0.0
    %2283 = vmatprep.subr.mxu0 0.0
    %2284 = vmatpush1.msra.mxu0 0.0
    %2285 = vmatprep.subr.mxu0 0.0
    %2286 = vmatpush1.msra.mxu0 0.0
    %2287 = vmatprep.subr.mxu0 0.0
    %2288 = vmatpush1.msra.mxu0 0.0
    %2289 = vmatprep.subr.mxu0 0.0
    %2290 = vmatpush1.msra.mxu0 0.0
    %2291 = vmatprep.subr.mxu0 0.0
    %2292 = vmatpush1.msra.mxu0 0.0
    %2293 = vmatprep.subr.mxu0 0.0
    %2294 = vmatpush1.msra.mxu0 0.0
    %2295 = vmatprep.subr.mxu0 0.0
    %2296 = vmatpush1.msra.mxu0 0.0
    %2297 = vmatprep.subr.mxu0 0.0
    %2298 = vmatpush1.msra.mxu0 0.0
    %2299 = vmatprep.mubr.f32.mxu0 0.0
    %v2300 = vand.u32 %v1927, 4294901760
    %2301 = vmatmul.mubr.f32.gmra.mrb[0].mxu0 %v2300
    %v2302 = vpop.f32.mrb[0].mxu0
    %v2303 = vadd.f32 %v2229, %v2302
    %v2304 = vpop.f32.mrb[0].mxu0
    %2305 = vdwg.mxu0
    %2306 = vmatprep.subr.mxu0 0.0
    %v2307 = vand.u32 %v1930, 4294901760
    %2308 = vmatpush1.msra.mxu0 %v2307
    %2309 = vmatprep.subr.mxu0 0.0
    %2310 = vmatpush1.msra.mxu0 0.0
    %2311 = vmatprep.subr.mxu0 0.0
    %2312 = vmatpush1.msra.mxu0 0.0
    %2313 = vmatprep.subr.mxu0 0.0
    %2314 = vmatpush1.msra.mxu0 0.0
    %2315 = vmatprep.subr.mxu0 0.0
    %2316 = vmatpush1.msra.mxu0 0.0
    %2317 = vmatprep.subr.mxu0 0.0
    %2318 = vmatpush1.msra.mxu0 0.0
    %2319 = vmatprep.subr.mxu0 0.0
    %2320 = vmatpush1.msra.mxu0 0.0
    %2321 = vmatprep.subr.mxu0 0.0
    %2322 = vmatpush1.msra.mxu0 0.0
    %2323 = vmatprep.subr.mxu0 0.0
    %2324 = vmatpush1.msra.mxu0 0.0
    %2325 = vmatprep.subr.mxu0 0.0
    %2326 = vmatpush1.msra.mxu0 0.0
    %2327 = vmatprep.subr.mxu0 0.0
    %2328 = vmatpush1.msra.mxu0 0.0
    %2329 = vmatprep.subr.mxu0 0.0
    %2330 = vmatpush1.msra.mxu0 0.0
    %2331 = vmatprep.subr.mxu0 0.0
    %2332 = vmatpush1.msra.mxu0 0.0
    %2333 = vmatprep.subr.mxu0 0.0
    %2334 = vmatpush1.msra.mxu0 0.0
    %2335 = vmatprep.subr.mxu0 0.0
    %2336 = vmatpush1.msra.mxu0 0.0
    %2337 = vmatprep.subr.mxu0 0.0
    %2338 = vmatpush1.msra.mxu0 0.0
    %2339 = vmatprep.subr.mxu0 0.0
    %2340 = vmatpush1.msra.mxu0 0.0
    %2341 = vmatprep.subr.mxu0 0.0
    %2342 = vmatpush1.msra.mxu0 0.0
    %2343 = vmatprep.subr.mxu0 0.0
    %2344 = vmatpush1.msra.mxu0 0.0
    %2345 = vmatprep.subr.mxu0 0.0
    %2346 = vmatpush1.msra.mxu0 0.0
    %2347 = vmatprep.subr.mxu0 0.0
    %2348 = vmatpush1.msra.mxu0 0.0
    %2349 = vmatprep.subr.mxu0 0.0
    %2350 = vmatpush1.msra.mxu0 0.0
    %2351 = vmatprep.subr.mxu0 0.0
    %2352 = vmatpush1.msra.mxu0 0.0
    %2353 = vmatprep.subr.mxu0 0.0
    %2354 = vmatpush1.msra.mxu0 0.0
    %2355 = vmatprep.subr.mxu0 0.0
    %2356 = vmatpush1.msra.mxu0 0.0
    %2357 = vmatprep.subr.mxu0 0.0
    %2358 = vmatpush1.msra.mxu0 0.0
    %2359 = vmatprep.subr.mxu0 0.0
    %2360 = vmatpush1.msra.mxu0 0.0
    %2361 = vmatprep.subr.mxu0 0.0
    %2362 = vmatpush1.msra.mxu0 0.0
    %2363 = vmatprep.subr.mxu0 0.0
    %2364 = vmatpush1.msra.mxu0 0.0
    %2365 = vmatprep.subr.mxu0 0.0
    %2366 = vmatpush1.msra.mxu0 0.0
    %2367 = vmatprep.subr.mxu0 0.0
    %2368 = vmatpush1.msra.mxu0 0.0
    %2369 = vmatprep.subr.mxu0 0.0
    %2370 = vmatpush1.msra.mxu0 0.0
    %2371 = vmatprep.mubr.f32.mxu0 0.0
    %v2372 = vand.u32 %v1927, 4294901760
    %2373 = vmatmul.mubr.f32.gmra.mrb[0].mxu0 %v2372
    %v2374 = vpop.f32.mrb[0].mxu0
    %v2375 = vadd.f32 %v2303, %v2374
    %v2376 = vpop.f32.mrb[0].mxu0
    %2377 = vdwg.mxu0
    %2378 = vst.msk [vmem:[#allocation2 + $0x1] sm:$0x1] %vm1448, %v2375
    // Predicated region
    $region25: #{encoder_forward.3} parent=1 // pred_check
      _
    $region26: #{encoder_forward.3} parent=1 // pred_check_branch
      %2380 = sbr.rel (0) target = $region28
    $region27: #{encoder_forward.3} parent=1 // pred_region
      %s2382 = ssub.s32 32, 32
      %2383 = vsyncadd [#allocation3], %s2382
      %s2385 = sshll.u32 [#allocation2], 4
      %s2386 = int_to_ptr.vmem [resolvable:$true] %s2385
      %2388 = dma.vmem_to_hbm [thread:$0]  %s2386, 32, %s4, [#allocation3]
    $region28: #{encoder_forward.3} parent=1 // pred_fallthru
      _
    // Predicated region
    $region29: #{encoder_forward.3} parent=1 // pred_check
      _
    $region30: #{encoder_forward.3} parent=1 // pred_check_branch
      %2390 = sbr.rel (0) target = $region32
    $region31: #{encoder_forward.3} parent=1 // pred_region
      %2391 = dma.done [#allocation3], 32
    $region32: #{encoder_forward.3} parent=1 // pred_fallthru
      _
    %2392 = vsyncpa [#allocation3], 1

// kernel: encoder_forward.2
$region0: #{encoder_forward.2}
  #allocation0 [shape = 'u32[]', space=smem, size = 0x4, offset = 0x4, fixed_abs, tag = 'smem constant byte address 0x4 - core index']
  #allocation1 [shape = 'u32[144,128]{1,0:T(1,128)}', space=vmem, size = 0x12000, scoped, tag = 'internal scratch']
  #allocation2 [shape = 'f32[6,2048]{1,0:T(8,128)}', space=vmem, size = 0x10000, scoped, tag = 'scratch operand']
  %s0 = inlined_call_operand.vmem [shape: bf16[4,300,2048], index: 0, kind: input, shape index: {}]
  %s1 = inlined_call_operand.vmem [shape: bf16[150,300], index: 1, kind: input, shape index: {}]
  %s2 = inlined_call_operand.vmem [shape: f32[6,1], index: 2, kind: input, shape index: {}]
  %s3 = inlined_call_operand.vmem [shape: f32[2048,144], index: 3, kind: input, shape index: {}]
  %s4 = inlined_call_operand.vmem [shape: f32[1,24], index: 4, kind: input, shape index: {}]
  %s5 = inlined_call_operand.vmem [shape: f32[4,1,24], index: 5, kind: output, shape index: {}]
  %s6 = sld [smem:[#allocation0]]
  $region53: #{encoder_forward.2} parent=0
    _
  %s8 = ssub.s32 1, %s6
  %s9 = scalar_select 0, %s8, %s6
  loop: start=0, step=1, limit=6
  $region2: #{encoder_forward.2} parent=0 // loop_pre_header
    _
  $region3: #{encoder_forward.2} parent=0 // loop_header
    %s11 = sphi 0, %s15
    %p12 = scmp.ge.s32.totalorder %s11, 6
    %s21 = sphi 0, %s23
    %s24 = sphi 0, %s21
    %s25 = sphi 0, %s24
    %s41 = sphi 0, %s25
    %s45 = sphi 0, %s45
    %s47 = sphi 0, %s45
    %s48 = sphi 0, %s47
    %s62 = sphi 0, %s48
    %s66 = sphi 0, %s66
    %s68 = sphi 0, %s66
    %s69 = sphi 0, %s68
    %s83 = sphi 0, %s69
    %s87 = sphi 0, %s87
    %s89 = sphi 0, %s87
    %s90 = sphi 0, %s89
    %s104 = sphi 0, %s90
    %s108 = sphi 0, %s108
    %s110 = sphi 0, %s108
    %s111 = sphi 0, %s110
    %s125 = sphi 0, %s111
    %s131 = sphi 0, %s133
    %s134 = sphi 0, %s131
    %s135 = sphi 0, %s134
    %s151 = sphi 0, %s135
  $region4: #{encoder_forward.2} parent=0 // loop_header_branch
    %14 = sbr.rel (%p12) target = $region8
  $region5: #{encoder_forward.2} parent=0 // loop_body
    %s16 = ssub.s32 %s11, 1
    %s17 = ssub.s32 %s11, 2
    %s18 = sadd.s32 %s11, 1
    %s19 = ssub.s32 %s11, %s18
    %p20 = scmp.eq.s32.totalorder %s19, 0
    %s22 = sadd.s32 %s21, 1
    %s23 = scalar_select %p20, %s21, %s22
    %p26 = pneg %p20
    %p27 = scmp.eq.s32.totalorder %s11, 3
    %p28 = por %p26, %p27
    %p29 = scmp.ne.s32.totalorder %s21, %s24
    %p30 = scmp.eq.s32.totalorder %s11, 0
    %p31 = por %p29, %p30
    %p32 = scmp.ne.s32.totalorder %s21, %s24
    %p33 = scmp.eq.s32.totalorder %s16, 3
    %p34 = por %p32, %p33
    %p35 = scmp.ne.s32.totalorder %s24, %s25
    %p36 = scmp.eq.s32.totalorder %s16, 0
    %p37 = por %p35, %p36
    %p38 = scmp.ne.s32.totalorder %s24, %s25
    %p39 = scmp.eq.s32.totalorder %s17, 3
    %p40 = por %p38, %p39
    %p42 = scmp.ne.s32.totalorder %s25, %s41
    %p43 = scmp.eq.s32.totalorder %s17, 0
    %p44 = por %p42, %p43
    %s46 = sadd.s32 %s45, 1
    %p49 = scmp.eq.s32.totalorder %s11, 3
    %p50 = scmp.ne.s32.totalorder %s45, %s47
    %p51 = scmp.eq.s32.totalorder %s11, 0
    %p52 = por %p50, %p51
    %p53 = scmp.ne.s32.totalorder %s45, %s47
    %p54 = scmp.eq.s32.totalorder %s16, 3
    %p55 = por %p53, %p54
    %p56 = scmp.ne.s32.totalorder %s47, %s48
    %p57 = scmp.eq.s32.totalorder %s16, 0
    %p58 = por %p56, %p57
    %p59 = scmp.ne.s32.totalorder %s47, %s48
    %p60 = scmp.eq.s32.totalorder %s17, 3
    %p61 = por %p59, %p60
    %p63 = scmp.ne.s32.totalorder %s48, %s62
    %p64 = scmp.eq.s32.totalorder %s17, 0
    %p65 = por %p63, %p64
    %s67 = sadd.s32 %s66, 1
    %p70 = scmp.eq.s32.totalorder %s11, 3
    %p71 = scmp.ne.s32.totalorder %s66, %s68
    %p72 = scmp.eq.s32.totalorder %s11, 0
    %p73 = por %p71, %p72
    %p74 = scmp.ne.s32.totalorder %s66, %s68
    %p75 = scmp.eq.s32.totalorder %s16, 3
    %p76 = por %p74, %p75
    %p77 = scmp.ne.s32.totalorder %s68, %s69
    %p78 = scmp.eq.s32.totalorder %s16, 0
    %p79 = por %p77, %p78
    %p80 = scmp.ne.s32.totalorder %s68, %s69
    %p81 = scmp.eq.s32.totalorder %s17, 3
    %p82 = por %p80, %p81
    %p84 = scmp.ne.s32.totalorder %s69, %s83
    %p85 = scmp.eq.s32.totalorder %s17, 0
    %p86 = por %p84, %p85
    %s88 = sadd.s32 %s87, 1
    %p91 = scmp.eq.s32.totalorder %s11, 3
    %p92 = scmp.ne.s32.totalorder %s87, %s89
    %p93 = scmp.eq.s32.totalorder %s11, 0
    %p94 = por %p92, %p93
    %p95 = scmp.ne.s32.totalorder %s87, %s89
    %p96 = scmp.eq.s32.totalorder %s16, 3
    %p97 = por %p95, %p96
    %p98 = scmp.ne.s32.totalorder %s89, %s90
    %p99 = scmp.eq.s32.totalorder %s16, 0
    %p100 = por %p98, %p99
    %p101 = scmp.ne.s32.totalorder %s89, %s90
    %p102 = scmp.eq.s32.totalorder %s17, 3
    %p103 = por %p101, %p102
    %p105 = scmp.ne.s32.totalorder %s90, %s104
    %p106 = scmp.eq.s32.totalorder %s17, 0
    %p107 = por %p105, %p106
    %s109 = sadd.s32 %s108, 1
    %p112 = scmp.eq.s32.totalorder %s11, 3
    %p113 = scmp.ne.s32.totalorder %s108, %s110
    %p114 = scmp.eq.s32.totalorder %s11, 0
    %p115 = por %p113, %p114
    %p116 = scmp.ne.s32.totalorder %s108, %s110
    %p117 = scmp.eq.s32.totalorder %s16, 3
    %p118 = por %p116, %p117
    %p119 = scmp.ne.s32.totalorder %s110, %s111
    %p120 = scmp.eq.s32.totalorder %s16, 0
    %p121 = por %p119, %p120
    %p122 = scmp.ne.s32.totalorder %s110, %s111
    %p123 = scmp.eq.s32.totalorder %s17, 3
    %p124 = por %p122, %p123
    %p126 = scmp.ne.s32.totalorder %s111, %s125
    %p127 = scmp.eq.s32.totalorder %s17, 0
    %p128 = por %p126, %p127
    %s129 = ssub.s32 %s11, %s18
    %p130 = scmp.eq.s32.totalorder %s129, 0
    %s132 = sadd.s32 %s131, 1
    %s133 = scalar_select %p130, %s131, %s132
    %p136 = pneg %p130
    %p137 = scmp.eq.s32.totalorder %s11, 3
    %p138 = por %p136, %p137
    %p139 = scmp.ne.s32.totalorder %s131, %s134
    %p140 = scmp.eq.s32.totalorder %s11, 0
    %p141 = por %p139, %p140
    %p142 = scmp.ne.s32.totalorder %s131, %s134
    %p143 = scmp.eq.s32.totalorder %s16, 3
    %p144 = por %p142, %p143
    %p145 = scmp.ne.s32.totalorder %s134, %s135
    %p146 = scmp.eq.s32.totalorder %s16, 0
    %p147 = por %p145, %p146
    %p148 = scmp.ne.s32.totalorder %s134, %s135
    %p149 = scmp.eq.s32.totalorder %s17, 3
    %p150 = por %p148, %p149
    %p152 = scmp.ne.s32.totalorder %s135, %s151
    %p153 = scmp.eq.s32.totalorder %s17, 0
    %p154 = por %p152, %p153
    %p155 = scmp.le.s32.totalorder 1, %s11
    %p156 = scmp.lt.s32.totalorder %s11, 5
    %p157 = pnand %p155, %p156
    %p158 = pneg %p157
    // Predicated region
    $region9: #{encoder_forward.2} parent=5 // pred_check
      _
    $region10: #{encoder_forward.2} parent=5 // pred_check_branch
      %160 = sbr.rel (%p157) target = $region12
    $region11: #{encoder_forward.2} parent=5 // pred_region
      %s161 = ssub.s32 %s11, 1
      // Predicated region
      $region13: #{encoder_forward.2} parent=11 // pred_check
        %p162 = pneg %p58
      $region14: #{encoder_forward.2} parent=11 // pred_check_branch
        %164 = sbr.rel (%p162) target = $region16
      $region15: #{encoder_forward.2} parent=11 // pred_region
        _
      $region16: #{encoder_forward.2} parent=11 // pred_fallthru
        _
      // Predicated region
      $region17: #{encoder_forward.2} parent=11 // pred_check
        %p165 = pneg %p79
      $region18: #{encoder_forward.2} parent=11 // pred_check_branch
        %167 = sbr.rel (%p165) target = $region20
      $region19: #{encoder_forward.2} parent=11 // pred_region
        _
      $region20: #{encoder_forward.2} parent=11 // pred_fallthru
        _
      // Predicated region
      $region21: #{encoder_forward.2} parent=11 // pred_check
        %p168 = pneg %p100
      $region22: #{encoder_forward.2} parent=11 // pred_check_branch
        %170 = sbr.rel (%p168) target = $region24
      $region23: #{encoder_forward.2} parent=11 // pred_region
        _
      $region24: #{encoder_forward.2} parent=11 // pred_fallthru
        _
      // Predicated region
      $region25: #{encoder_forward.2} parent=11 // pred_check
        %p171 = pneg %p121
      $region26: #{encoder_forward.2} parent=11 // pred_check_branch
        %173 = sbr.rel (%p171) target = $region28
      $region27: #{encoder_forward.2} parent=11 // pred_region
        _
      $region28: #{encoder_forward.2} parent=11 // pred_fallthru
        _
    $region12: #{encoder_forward.2} parent=5 // pred_fallthru
      _
    %p174 = scmp.lt.s32.totalorder %s11, 4
    // Predicated region
    $region29: #{encoder_forward.2} parent=5 // pred_check
      %p175 = pneg %p174
    $region30: #{encoder_forward.2} parent=5 // pred_check_branch
      %177 = sbr.rel (%p175) target = $region32
    $region31: #{encoder_forward.2} parent=5 // pred_region
      // Predicated region
      $region33: #{encoder_forward.2} parent=31 // pred_check
        %p178 = pneg %p31
      $region34: #{encoder_forward.2} parent=31 // pred_check_branch
        %180 = sbr.rel (%p178) target = $region36
      $region35: #{encoder_forward.2} parent=31 // pred_region
        %p181 = scmp.lt.s32.totalorder %s11, 3
        %s182 = scalar_select %p181, %s11, 3
        %s183 = smul.addr %s182, 608
        %s184 = smul.addr %s183, 4
        %s185 = scalar_lea.vmem %s0, %s184
      $region36: #{encoder_forward.2} parent=31 // pred_fallthru
        _
    $region32: #{encoder_forward.2} parent=5 // pred_fallthru
      _
    %p186 = scmp.le.s32.totalorder 1, %s11
    %p187 = scmp.lt.s32.totalorder %s11, 5
    %p188 = pnand %p186, %p187
    %p189 = pneg %p188
    // Predicated region
    $region37: #{encoder_forward.2} parent=5 // pred_check
      _
    $region38: #{encoder_forward.2} parent=5 // pred_check_branch
      %191 = sbr.rel (%p188) target = $region40
    $region39: #{encoder_forward.2} parent=5 // pred_region
      %s192 = ssub.s32 %s11, 1
      %p193 = scmp.lt.s32.totalorder %s16, 3
      %s194 = scalar_select %p193, %s16, 3
      %s195 = smul.addr %s194, 608
      %s196 = smul.addr %s195, 4
      %s197 = scalar_lea.vmem %s0, %s196
      %p198 = pneg %p37
      %p199 = pneg %p34
      %p200 = pneg %p58
      %p201 = pneg %p55
      %p202 = pneg %p79
      %p203 = pneg %p76
      %p204 = pneg %p100
      %p205 = pneg %p97
      %p206 = pneg %p121
      %p207 = pneg %p118
      %p208 = pneg %p147
      %p209 = pneg %p144
      %p210 = scmp.lt.s32.totalorder %s16, 3
      %s211 = scalar_select %p210, %s16, 3
      %s212 = scalar_lea.vmem %s5, %s211
      %p213 = scmp.lt.s32.totalorder %s16, 3
      %s214 = scalar_select %p213, %s16, 3
      %s215 = smul.addr %s214, 608
      %s216 = smul.addr %s215, 4
      %s217 = scalar_lea.vmem %s0, %s216
      %p218 = scmp.lt.s32.totalorder %s16, 3
      %s219 = scalar_select %p218, %s16, 3
      %s220 = scalar_lea.vmem %s5, %s219
      %v222 = vld [vmem:[%s1] sm:$0xff]
      %v223 = vld [vmem:[%s1 + $0x8] sm:$0xf]
      %v224 = vld [vmem:[%s1 + $0xc] sm:$0xff]
      %v225 = vld [vmem:[%s1 + $0x14] sm:$0xf]
      %v226 = vld [vmem:[%s1 + $0x18] sm:$0xff]
      %v227 = vld [vmem:[%s1 + $0x20] sm:$0xf]
      %v228 = vld [vmem:[%s1 + $0x24] sm:$0xff]
      %v229 = vld [vmem:[%s1 + $0x2c] sm:$0xf]
      %v230 = vld [vmem:[%s1 + $0x30] sm:$0xff]
      %v231 = vld [vmem:[%s1 + $0x38] sm:$0xf]
      %v232 = vld [vmem:[%s1 + $0x3c] sm:$0xff]
      %v233 = vld [vmem:[%s1 + $0x44] sm:$0xf]
      %v234 = vld [vmem:[%s1 + $0x48] sm:$0xff]
      %v235 = vld [vmem:[%s1 + $0x50] sm:$0xf]
      %v236 = vld [vmem:[%s1 + $0x54] sm:$0xff]
      %v237 = vld [vmem:[%s1 + $0x5c] sm:$0xf]
      %v238 = vld [vmem:[%s1 + $0x60] sm:$0xff]
      %v239 = vld [vmem:[%s1 + $0x68] sm:$0xf]
      %v240 = vld [vmem:[%s1 + $0x6c] sm:$0xff]
      %v241 = vld [vmem:[%s1 + $0x74] sm:$0xf]
      %v242 = vld [vmem:[%s1 + $0x78] sm:$0xff]
      %v243 = vld [vmem:[%s1 + $0x80] sm:$0xf]
      %v244 = vld [vmem:[%s1 + $0x84] sm:$0xff]
      %v245 = vld [vmem:[%s1 + $0x8c] sm:$0xf]
      %v246 = vld [vmem:[%s1 + $0x90] sm:$0xff]
      %v247 = vld [vmem:[%s1 + $0x98] sm:$0xf]
      %v248 = vld [vmem:[%s1 + $0x9c] sm:$0xff]
      %v249 = vld [vmem:[%s1 + $0xa4] sm:$0xf]
      %v250 = vld [vmem:[%s1 + $0xa8] sm:$0xff]
      %v251 = vld [vmem:[%s1 + $0xb0] sm:$0xf]
      %v252 = vld [vmem:[%s1 + $0xb4] sm:$0xff]
      %v253 = vld [vmem:[%s1 + $0xbc] sm:$0xf]
      %v254 = vld [vmem:[%s1 + $0xc0] sm:$0xff]
      %v255 = vld [vmem:[%s1 + $0xc8] sm:$0xf]
      %v256 = vld [vmem:[%s1 + $0xcc] sm:$0xff]
      %v257 = vld [vmem:[%s1 + $0xd4] sm:$0xf]
      %v258 = vld [vmem:[%s1 + $0xd8] sm:$0x77]
      %v259 = vld [vmem:[%s1 + $0xe0] sm:$0x7]
      %v260 = vld [vmem:[%s217] sm:$0xff]
      %v261 = vld [vmem:[%s217 + $0x8] sm:$0xff]
      %v262 = vld [vmem:[%s217 + $0x10] sm:$0xff]
      %v263 = vld [vmem:[%s217 + $0x18] sm:$0xff]
      %v264 = vld [vmem:[%s217 + $0x20] sm:$0xff]
      %v265 = vld [vmem:[%s217 + $0x28] sm:$0xff]
      %v266 = vld [vmem:[%s217 + $0x30] sm:$0xff]
      %v267 = vld [vmem:[%s217 + $0x38] sm:$0xff]
      %v268 = vld [vmem:[%s217 + $0x40] sm:$0xff]
      %v269 = vld [vmem:[%s217 + $0x48] sm:$0xff]
      %v270 = vld [vmem:[%s217 + $0x50] sm:$0xff]
      %v271 = vld [vmem:[%s217 + $0x58] sm:$0xff]
      %v272 = vld [vmem:[%s217 + $0x60] sm:$0xff]
      %v273 = vld [vmem:[%s217 + $0x68] sm:$0xff]
      %v274 = vld [vmem:[%s217 + $0x70] sm:$0xff]
      %v275 = vld [vmem:[%s217 + $0x78] sm:$0xff]
      %v276 = vld [vmem:[%s217 + $0x80] sm:$0xff]
      %v277 = vld [vmem:[%s217 + $0x88] sm:$0xff]
      %v278 = vld [vmem:[%s217 + $0x90] sm:$0xff]
      %v279 = vld [vmem:[%s217 + $0x98] sm:$0xff]
      %v280 = vld [vmem:[%s217 + $0xa0] sm:$0xff]
      %v281 = vld [vmem:[%s217 + $0xa8] sm:$0xff]
      %v282 = vld [vmem:[%s217 + $0xb0] sm:$0xff]
      %v283 = vld [vmem:[%s217 + $0xb8] sm:$0xff]
      %v284 = vld [vmem:[%s217 + $0xc0] sm:$0xff]
      %v285 = vld [vmem:[%s217 + $0xc8] sm:$0xff]
      %v286 = vld [vmem:[%s217 + $0xd0] sm:$0xff]
      %v287 = vld [vmem:[%s217 + $0xd8] sm:$0xff]
      %v288 = vld [vmem:[%s217 + $0xe0] sm:$0xff]
      %v289 = vld [vmem:[%s217 + $0xe8] sm:$0xff]
      %v290 = vld [vmem:[%s217 + $0xf0] sm:$0xff]
      %v291 = vld [vmem:[%s217 + $0xf8] sm:$0xff]
      %v292 = vld [vmem:[%s217 + $0x100] sm:$0xff]
      %v293 = vld [vmem:[%s217 + $0x108] sm:$0xff]
      %v294 = vld [vmem:[%s217 + $0x110] sm:$0xff]
      %v295 = vld [vmem:[%s217 + $0x118] sm:$0xff]
      %v296 = vld [vmem:[%s217 + $0x120] sm:$0xff]
      %v297 = vld [vmem:[%s217 + $0x128] sm:$0xff]
      %v298 = vld [vmem:[%s217 + $0x130] sm:$0xff]
      %v299 = vld [vmem:[%s217 + $0x138] sm:$0xff]
      %v300 = vld [vmem:[%s217 + $0x140] sm:$0xff]
      %v301 = vld [vmem:[%s217 + $0x148] sm:$0xff]
      %v302 = vld [vmem:[%s217 + $0x150] sm:$0xff]
      %v303 = vld [vmem:[%s217 + $0x158] sm:$0xff]
      %v304 = vld [vmem:[%s217 + $0x160] sm:$0xff]
      %v305 = vld [vmem:[%s217 + $0x168] sm:$0xff]
      %v306 = vld [vmem:[%s217 + $0x170] sm:$0xff]
      %v307 = vld [vmem:[%s217 + $0x178] sm:$0xff]
      %v308 = vld [vmem:[%s217 + $0x180] sm:$0xff]
      %v309 = vld [vmem:[%s217 + $0x188] sm:$0xff]
      %v310 = vld [vmem:[%s217 + $0x190] sm:$0xff]
      %v311 = vld [vmem:[%s217 + $0x198] sm:$0xff]
      %v312 = vld [vmem:[%s217 + $0x1a0] sm:$0xff]
      %v313 = vld [vmem:[%s217 + $0x1a8] sm:$0xff]
      %v314 = vld [vmem:[%s217 + $0x1b0] sm:$0xff]
      %v315 = vld [vmem:[%s217 + $0x1b8] sm:$0xff]
      %v316 = vld [vmem:[%s217 + $0x1c0] sm:$0xff]
      %v317 = vld [vmem:[%s217 + $0x1c8] sm:$0xff]
      %v318 = vld [vmem:[%s217 + $0x1d0] sm:$0xff]
      %v319 = vld [vmem:[%s217 + $0x1d8] sm:$0xff]
      %v320 = vld [vmem:[%s217 + $0x1e0] sm:$0xff]
      %v321 = vld [vmem:[%s217 + $0x1e8] sm:$0xff]
      %v322 = vld [vmem:[%s217 + $0x1f0] sm:$0xff]
      %v323 = vld [vmem:[%s217 + $0x1f8] sm:$0xff]
      %v324 = vld [vmem:[%s217 + $0x200] sm:$0xff]
      %v325 = vld [vmem:[%s217 + $0x208] sm:$0xff]
      %v326 = vld [vmem:[%s217 + $0x210] sm:$0xff]
      %v327 = vld [vmem:[%s217 + $0x218] sm:$0xff]
      %v328 = vld [vmem:[%s217 + $0x220] sm:$0xff]
      %v329 = vld [vmem:[%s217 + $0x228] sm:$0xff]
      %v330 = vld [vmem:[%s217 + $0x230] sm:$0xff]
      %v331 = vld [vmem:[%s217 + $0x238] sm:$0xff]
      %v332 = vld [vmem:[%s217 + $0x240] sm:$0xff]
      %v333 = vld [vmem:[%s217 + $0x248] sm:$0xff]
      %v334 = vld [vmem:[%s217 + $0x250] sm:$0xff]
      %v335 = vld [vmem:[%s217 + $0x258] sm:$0xff]
      %v336 = vld [vmem:[%s217 + $0x260] sm:$0xff]
      %v337 = vld [vmem:[%s217 + $0x268] sm:$0xff]
      %v338 = vld [vmem:[%s217 + $0x270] sm:$0xff]
      %v339 = vld [vmem:[%s217 + $0x278] sm:$0xff]
      %v340 = vld [vmem:[%s217 + $0x280] sm:$0xff]
      %v341 = vld [vmem:[%s217 + $0x288] sm:$0xff]
      %v342 = vld [vmem:[%s217 + $0x290] sm:$0xff]
      %v343 = vld [vmem:[%s217 + $0x298] sm:$0xff]
      %v344 = vld [vmem:[%s217 + $0x2a0] sm:$0xff]
      %v345 = vld [vmem:[%s217 + $0x2a8] sm:$0xff]
      %v346 = vld [vmem:[%s217 + $0x2b0] sm:$0xff]
      %v347 = vld [vmem:[%s217 + $0x2b8] sm:$0xff]
      %v348 = vld [vmem:[%s217 + $0x2c0] sm:$0xff]
      %v349 = vld [vmem:[%s217 + $0x2c8] sm:$0xff]
      %v350 = vld [vmem:[%s217 + $0x2d0] sm:$0xff]
      %v351 = vld [vmem:[%s217 + $0x2d8] sm:$0xff]
      %v352 = vld [vmem:[%s217 + $0x2e0] sm:$0xff]
      %v353 = vld [vmem:[%s217 + $0x2e8] sm:$0xff]
      %v354 = vld [vmem:[%s217 + $0x2f0] sm:$0xff]
      %v355 = vld [vmem:[%s217 + $0x2f8] sm:$0xff]
      %v356 = vld [vmem:[%s217 + $0x300] sm:$0xff]
      %v357 = vld [vmem:[%s217 + $0x308] sm:$0xff]
      %v358 = vld [vmem:[%s217 + $0x310] sm:$0xff]
      %v359 = vld [vmem:[%s217 + $0x318] sm:$0xff]
      %v360 = vld [vmem:[%s217 + $0x320] sm:$0xff]
      %v361 = vld [vmem:[%s217 + $0x328] sm:$0xff]
      %v362 = vld [vmem:[%s217 + $0x330] sm:$0xff]
      %v363 = vld [vmem:[%s217 + $0x338] sm:$0xff]
      %v364 = vld [vmem:[%s217 + $0x340] sm:$0xff]
      %v365 = vld [vmem:[%s217 + $0x348] sm:$0xff]
      %v366 = vld [vmem:[%s217 + $0x350] sm:$0xff]
      %v367 = vld [vmem:[%s217 + $0x358] sm:$0xff]
      %v368 = vld [vmem:[%s217 + $0x360] sm:$0xff]
      %v369 = vld [vmem:[%s217 + $0x368] sm:$0xff]
      %v370 = vld [vmem:[%s217 + $0x370] sm:$0xff]
      %v371 = vld [vmem:[%s217 + $0x378] sm:$0xff]
      %v372 = vld [vmem:[%s217 + $0x380] sm:$0xff]
      %v373 = vld [vmem:[%s217 + $0x388] sm:$0xff]
      %v374 = vld [vmem:[%s217 + $0x390] sm:$0xff]
      %v375 = vld [vmem:[%s217 + $0x398] sm:$0xff]
      %v376 = vld [vmem:[%s217 + $0x3a0] sm:$0xff]
      %v377 = vld [vmem:[%s217 + $0x3a8] sm:$0xff]
      %v378 = vld [vmem:[%s217 + $0x3b0] sm:$0xff]
      %v379 = vld [vmem:[%s217 + $0x3b8] sm:$0xff]
      %v380 = vld [vmem:[%s217 + $0x3c0] sm:$0xff]
      %v381 = vld [vmem:[%s217 + $0x3c8] sm:$0xff]
      %v382 = vld [vmem:[%s217 + $0x3d0] sm:$0xff]
      %v383 = vld [vmem:[%s217 + $0x3d8] sm:$0xff]
      %v384 = vld [vmem:[%s217 + $0x3e0] sm:$0xff]
      %v385 = vld [vmem:[%s217 + $0x3e8] sm:$0xff]
      %v386 = vld [vmem:[%s217 + $0x3f0] sm:$0xff]
      %v387 = vld [vmem:[%s217 + $0x3f8] sm:$0xff]
      %v388 = vld [vmem:[%s217 + $0x400] sm:$0xff]
      %v389 = vld [vmem:[%s217 + $0x408] sm:$0xff]
      %v390 = vld [vmem:[%s217 + $0x410] sm:$0xff]
      %v391 = vld [vmem:[%s217 + $0x418] sm:$0xff]
      %v392 = vld [vmem:[%s217 + $0x420] sm:$0xff]
      %v393 = vld [vmem:[%s217 + $0x428] sm:$0xff]
      %v394 = vld [vmem:[%s217 + $0x430] sm:$0xff]
      %v395 = vld [vmem:[%s217 + $0x438] sm:$0xff]
      %v396 = vld [vmem:[%s217 + $0x440] sm:$0xff]
      %v397 = vld [vmem:[%s217 + $0x448] sm:$0xff]
      %v398 = vld [vmem:[%s217 + $0x450] sm:$0xff]
      %v399 = vld [vmem:[%s217 + $0x458] sm:$0xff]
      %v400 = vld [vmem:[%s217 + $0x460] sm:$0xff]
      %v401 = vld [vmem:[%s217 + $0x468] sm:$0xff]
      %v402 = vld [vmem:[%s217 + $0x470] sm:$0xff]
      %v403 = vld [vmem:[%s217 + $0x478] sm:$0xff]
      %v404 = vld [vmem:[%s217 + $0x480] sm:$0xff]
      %v405 = vld [vmem:[%s217 + $0x488] sm:$0xff]
      %v406 = vld [vmem:[%s217 + $0x490] sm:$0xff]
      %v407 = vld [vmem:[%s217 + $0x498] sm:$0xff]
      %v408 = vld [vmem:[%s217 + $0x4a0] sm:$0xff]
      %v409 = vld [vmem:[%s217 + $0x4a8] sm:$0xff]
      %v410 = vld [vmem:[%s217 + $0x4b0] sm:$0xff]
      %v411 = vld [vmem:[%s217 + $0x4b8] sm:$0xff]
      %v412 = vld [vmem:[%s217 + $0x4c0] sm:$0xff]
      %v413 = vld [vmem:[%s217 + $0x4c8] sm:$0xff]
      %v414 = vld [vmem:[%s217 + $0x4d0] sm:$0xff]
      %v415 = vld [vmem:[%s217 + $0x4d8] sm:$0xff]
      %v416 = vld [vmem:[%s217 + $0x4e0] sm:$0xff]
      %v417 = vld [vmem:[%s217 + $0x4e8] sm:$0xff]
      %v418 = vld [vmem:[%s217 + $0x4f0] sm:$0xff]
      %v419 = vld [vmem:[%s217 + $0x4f8] sm:$0xff]
      %v420 = vld [vmem:[%s217 + $0x500] sm:$0xff]
      %v421 = vld [vmem:[%s217 + $0x508] sm:$0xff]
      %v422 = vld [vmem:[%s217 + $0x510] sm:$0xff]
      %v423 = vld [vmem:[%s217 + $0x518] sm:$0xff]
      %v424 = vld [vmem:[%s217 + $0x520] sm:$0xff]
      %v425 = vld [vmem:[%s217 + $0x528] sm:$0xff]
      %v426 = vld [vmem:[%s217 + $0x530] sm:$0xff]
      %v427 = vld [vmem:[%s217 + $0x538] sm:$0xff]
      %v428 = vld [vmem:[%s217 + $0x540] sm:$0xff]
      %v429 = vld [vmem:[%s217 + $0x548] sm:$0xff]
      %v430 = vld [vmem:[%s217 + $0x550] sm:$0xff]
      %v431 = vld [vmem:[%s217 + $0x558] sm:$0xff]
      %v432 = vld [vmem:[%s217 + $0x560] sm:$0xff]
      %v433 = vld [vmem:[%s217 + $0x568] sm:$0xff]
      %v434 = vld [vmem:[%s217 + $0x570] sm:$0xff]
      %v435 = vld [vmem:[%s217 + $0x578] sm:$0xff]
      %v436 = vld [vmem:[%s217 + $0x580] sm:$0xff]
      %v437 = vld [vmem:[%s217 + $0x588] sm:$0xff]
      %v438 = vld [vmem:[%s217 + $0x590] sm:$0xff]
      %v439 = vld [vmem:[%s217 + $0x598] sm:$0xff]
      %v440 = vld [vmem:[%s217 + $0x5a0] sm:$0xff]
      %v441 = vld [vmem:[%s217 + $0x5a8] sm:$0xff]
      %v442 = vld [vmem:[%s217 + $0x5b0] sm:$0xff]
      %v443 = vld [vmem:[%s217 + $0x5b8] sm:$0xff]
      %v444 = vld [vmem:[%s217 + $0x5c0] sm:$0xff]
      %v445 = vld [vmem:[%s217 + $0x5c8] sm:$0xff]
      %v446 = vld [vmem:[%s217 + $0x5d0] sm:$0xff]
      %v447 = vld [vmem:[%s217 + $0x5d8] sm:$0xff]
      %v448 = vld [vmem:[%s217 + $0x5e0] sm:$0xff]
      %v449 = vld [vmem:[%s217 + $0x5e8] sm:$0xff]
      %v450 = vld [vmem:[%s217 + $0x5f0] sm:$0xff]
      %v451 = vld [vmem:[%s217 + $0x5f8] sm:$0xff]
      %v452 = vld [vmem:[%s217 + $0x600] sm:$0xff]
      %v453 = vld [vmem:[%s217 + $0x608] sm:$0xff]
      %v454 = vld [vmem:[%s217 + $0x610] sm:$0xff]
      %v455 = vld [vmem:[%s217 + $0x618] sm:$0xff]
      %v456 = vld [vmem:[%s217 + $0x620] sm:$0xff]
      %v457 = vld [vmem:[%s217 + $0x628] sm:$0xff]
      %v458 = vld [vmem:[%s217 + $0x630] sm:$0xff]
      %v459 = vld [vmem:[%s217 + $0x638] sm:$0xff]
      %v460 = vld [vmem:[%s217 + $0x640] sm:$0xff]
      %v461 = vld [vmem:[%s217 + $0x648] sm:$0xff]
      %v462 = vld [vmem:[%s217 + $0x650] sm:$0xff]
      %v463 = vld [vmem:[%s217 + $0x658] sm:$0xff]
      %v464 = vld [vmem:[%s217 + $0x660] sm:$0xff]
      %v465 = vld [vmem:[%s217 + $0x668] sm:$0xff]
      %v466 = vld [vmem:[%s217 + $0x670] sm:$0xff]
      %v467 = vld [vmem:[%s217 + $0x678] sm:$0xff]
      %v468 = vld [vmem:[%s217 + $0x680] sm:$0xff]
      %v469 = vld [vmem:[%s217 + $0x688] sm:$0xff]
      %v470 = vld [vmem:[%s217 + $0x690] sm:$0xff]
      %v471 = vld [vmem:[%s217 + $0x698] sm:$0xff]
      %v472 = vld [vmem:[%s217 + $0x6a0] sm:$0xff]
      %v473 = vld [vmem:[%s217 + $0x6a8] sm:$0xff]
      %v474 = vld [vmem:[%s217 + $0x6b0] sm:$0xff]
      %v475 = vld [vmem:[%s217 + $0x6b8] sm:$0xff]
      %v476 = vld [vmem:[%s217 + $0x6c0] sm:$0xff]
      %v477 = vld [vmem:[%s217 + $0x6c8] sm:$0xff]
      %v478 = vld [vmem:[%s217 + $0x6d0] sm:$0xff]
      %v479 = vld [vmem:[%s217 + $0x6d8] sm:$0xff]
      %v480 = vld [vmem:[%s217 + $0x6e0] sm:$0xff]
      %v481 = vld [vmem:[%s217 + $0x6e8] sm:$0xff]
      %v482 = vld [vmem:[%s217 + $0x6f0] sm:$0xff]
      %v483 = vld [vmem:[%s217 + $0x6f8] sm:$0xff]
      %v484 = vld [vmem:[%s217 + $0x700] sm:$0xff]
      %v485 = vld [vmem:[%s217 + $0x708] sm:$0xff]
      %v486 = vld [vmem:[%s217 + $0x710] sm:$0xff]
      %v487 = vld [vmem:[%s217 + $0x718] sm:$0xff]
      %v488 = vld [vmem:[%s217 + $0x720] sm:$0xff]
      %v489 = vld [vmem:[%s217 + $0x728] sm:$0xff]
      %v490 = vld [vmem:[%s217 + $0x730] sm:$0xff]
      %v491 = vld [vmem:[%s217 + $0x738] sm:$0xff]
      %v492 = vld [vmem:[%s217 + $0x740] sm:$0xff]
      %v493 = vld [vmem:[%s217 + $0x748] sm:$0xff]
      %v494 = vld [vmem:[%s217 + $0x750] sm:$0xff]
      %v495 = vld [vmem:[%s217 + $0x758] sm:$0xff]
      %v496 = vld [vmem:[%s217 + $0x760] sm:$0xff]
      %v497 = vld [vmem:[%s217 + $0x768] sm:$0xff]
      %v498 = vld [vmem:[%s217 + $0x770] sm:$0xff]
      %v499 = vld [vmem:[%s217 + $0x778] sm:$0xff]
      %v500 = vld [vmem:[%s217 + $0x780] sm:$0xff]
      %v501 = vld [vmem:[%s217 + $0x788] sm:$0xff]
      %v502 = vld [vmem:[%s217 + $0x790] sm:$0xff]
      %v503 = vld [vmem:[%s217 + $0x798] sm:$0xff]
      %v504 = vld [vmem:[%s217 + $0x7a0] sm:$0xff]
      %v505 = vld [vmem:[%s217 + $0x7a8] sm:$0xff]
      %v506 = vld [vmem:[%s217 + $0x7b0] sm:$0xff]
      %v507 = vld [vmem:[%s217 + $0x7b8] sm:$0xff]
      %v508 = vld [vmem:[%s217 + $0x7c0] sm:$0xff]
      %v509 = vld [vmem:[%s217 + $0x7c8] sm:$0xff]
      %v510 = vld [vmem:[%s217 + $0x7d0] sm:$0xff]
      %v511 = vld [vmem:[%s217 + $0x7d8] sm:$0xff]
      %v512 = vld [vmem:[%s217 + $0x7e0] sm:$0xff]
      %v513 = vld [vmem:[%s217 + $0x7e8] sm:$0xff]
      %v514 = vld [vmem:[%s217 + $0x7f0] sm:$0xff]
      %v515 = vld [vmem:[%s217 + $0x7f8] sm:$0xff]
      %v516 = vld [vmem:[%s217 + $0x800] sm:$0xff]
      %v517 = vld [vmem:[%s217 + $0x808] sm:$0xff]
      %v518 = vld [vmem:[%s217 + $0x810] sm:$0xff]
      %v519 = vld [vmem:[%s217 + $0x818] sm:$0xff]
      %v520 = vld [vmem:[%s217 + $0x820] sm:$0xff]
      %v521 = vld [vmem:[%s217 + $0x828] sm:$0xff]
      %v522 = vld [vmem:[%s217 + $0x830] sm:$0xff]
      %v523 = vld [vmem:[%s217 + $0x838] sm:$0xff]
      %v524 = vld [vmem:[%s217 + $0x840] sm:$0xff]
      %v525 = vld [vmem:[%s217 + $0x848] sm:$0xff]
      %v526 = vld [vmem:[%s217 + $0x850] sm:$0xff]
      %v527 = vld [vmem:[%s217 + $0x858] sm:$0xff]
      %v528 = vld [vmem:[%s217 + $0x860] sm:$0xff]
      %v529 = vld [vmem:[%s217 + $0x868] sm:$0xff]
      %v530 = vld [vmem:[%s217 + $0x870] sm:$0xff]
      %v531 = vld [vmem:[%s217 + $0x878] sm:$0xff]
      %v532 = vld [vmem:[%s217 + $0x880] sm:$0xff]
      %v533 = vld [vmem:[%s217 + $0x888] sm:$0xff]
      %v534 = vld [vmem:[%s217 + $0x890] sm:$0xff]
      %v535 = vld [vmem:[%s217 + $0x898] sm:$0xff]
      %v536 = vld [vmem:[%s217 + $0x8a0] sm:$0xff]
      %v537 = vld [vmem:[%s217 + $0x8a8] sm:$0xff]
      %v538 = vld [vmem:[%s217 + $0x8b0] sm:$0xff]
      %v539 = vld [vmem:[%s217 + $0x8b8] sm:$0xff]
      %v540 = vld [vmem:[%s217 + $0x8c0] sm:$0xff]
      %v541 = vld [vmem:[%s217 + $0x8c8] sm:$0xff]
      %v542 = vld [vmem:[%s217 + $0x8d0] sm:$0xff]
      %v543 = vld [vmem:[%s217 + $0x8d8] sm:$0xff]
      %v544 = vld [vmem:[%s217 + $0x8e0] sm:$0xff]
      %v545 = vld [vmem:[%s217 + $0x8e8] sm:$0xff]
      %v546 = vld [vmem:[%s217 + $0x8f0] sm:$0xff]
      %v547 = vld [vmem:[%s217 + $0x8f8] sm:$0xff]
      %v548 = vld [vmem:[%s217 + $0x900] sm:$0xff]
      %v549 = vld [vmem:[%s217 + $0x908] sm:$0xff]
      %v550 = vld [vmem:[%s217 + $0x910] sm:$0xff]
      %v551 = vld [vmem:[%s217 + $0x918] sm:$0xff]
      %v552 = vld [vmem:[%s217 + $0x920] sm:$0xff]
      %v553 = vld [vmem:[%s217 + $0x928] sm:$0xff]
      %v554 = vld [vmem:[%s217 + $0x930] sm:$0xff]
      %v555 = vld [vmem:[%s217 + $0x938] sm:$0xff]
      %v556 = vld [vmem:[%s217 + $0x940] sm:$0x33]
      %v557 = vld [vmem:[%s217 + $0x948] sm:$0x33]
      %v558 = vld [vmem:[%s217 + $0x950] sm:$0x33]
      %v559 = vld [vmem:[%s217 + $0x958] sm:$0x33]
      %v560 = vld [vmem:[%s217 + $0x960] sm:$0x33]
      %v561 = vld [vmem:[%s217 + $0x968] sm:$0x33]
      %v562 = vld [vmem:[%s217 + $0x970] sm:$0x33]
      %v563 = vld [vmem:[%s217 + $0x978] sm:$0x33]
      %v602 = vunpack.c.l.b16 %v222
      %v603 = vunpack.c.h.b16 %v222
      %v604 = vunpack.c.l.b16 %v223
      %v605 = vunpack.c.l.b16 %v224
      %v606 = vunpack.c.h.b16 %v224
      %v607 = vunpack.c.l.b16 %v225
      %v608 = vunpack.c.l.b16 %v226
      %v609 = vunpack.c.h.b16 %v226
      %v610 = vunpack.c.l.b16 %v227
      %v611 = vunpack.c.l.b16 %v228
      %v612 = vunpack.c.h.b16 %v228
      %v613 = vunpack.c.l.b16 %v229
      %v614 = vunpack.c.l.b16 %v230
      %v615 = vunpack.c.h.b16 %v230
      %v616 = vunpack.c.l.b16 %v231
      %v617 = vunpack.c.l.b16 %v232
      %v618 = vunpack.c.h.b16 %v232
      %v619 = vunpack.c.l.b16 %v233
      %v620 = vunpack.c.l.b16 %v234
      %v621 = vunpack.c.h.b16 %v234
      %v622 = vunpack.c.l.b16 %v235
      %v623 = vunpack.c.l.b16 %v236
      %v624 = vunpack.c.h.b16 %v236
      %v625 = vunpack.c.l.b16 %v237
      %v626 = vunpack.c.l.b16 %v238
      %v627 = vunpack.c.h.b16 %v238
      %v628 = vunpack.c.l.b16 %v239
      %v629 = vunpack.c.l.b16 %v240
      %v630 = vunpack.c.h.b16 %v240
      %v631 = vunpack.c.l.b16 %v241
      %v632 = vunpack.c.l.b16 %v242
      %v633 = vunpack.c.h.b16 %v242
      %v634 = vunpack.c.l.b16 %v243
      %v635 = vunpack.c.l.b16 %v244
      %v636 = vunpack.c.h.b16 %v244
      %v637 = vunpack.c.l.b16 %v245
      %v638 = vunpack.c.l.b16 %v246
      %v639 = vunpack.c.h.b16 %v246
      %v640 = vunpack.c.l.b16 %v247
      %v641 = vunpack.c.l.b16 %v248
      %v642 = vunpack.c.h.b16 %v248
      %v643 = vunpack.c.l.b16 %v249
      %v644 = vunpack.c.l.b16 %v250
      %v645 = vunpack.c.h.b16 %v250
      %v646 = vunpack.c.l.b16 %v251
      %v647 = vunpack.c.l.b16 %v252
      %v648 = vunpack.c.h.b16 %v252
      %v649 = vunpack.c.l.b16 %v253
      %v650 = vunpack.c.l.b16 %v254
      %v651 = vunpack.c.h.b16 %v254
      %v652 = vunpack.c.l.b16 %v255
      %v653 = vunpack.c.l.b16 %v256
      %v654 = vunpack.c.h.b16 %v256
      %v655 = vunpack.c.l.b16 %v257
      %v656 = vunpack.c.l.b16 %v258
      %v657 = vunpack.c.h.b16 %v258
      %v658 = vunpack.c.l.b16 %v259
      %v659 = vpack.c.b16 %v605, %v602
      %v660 = vpack.c.b16 %v606, %v603
      %v661 = vpack.c.b16 %v607, %v604
      %v662 = vpack.c.b16 %v611, %v608
      %v663 = vpack.c.b16 %v612, %v609
      %v664 = vpack.c.b16 %v613, %v610
      %v665 = vpack.c.b16 %v617, %v614
      %v666 = vpack.c.b16 %v618, %v615
      %v667 = vpack.c.b16 %v619, %v616
      %v668 = vpack.c.b16 %v623, %v620
      %v669 = vpack.c.b16 %v624, %v621
      %v670 = vpack.c.b16 %v625, %v622
      %v671 = vpack.c.b16 %v629, %v626
      %v672 = vpack.c.b16 %v630, %v627
      %v673 = vpack.c.b16 %v631, %v628
      %v674 = vpack.c.b16 %v635, %v632
      %v675 = vpack.c.b16 %v636, %v633
      %v676 = vpack.c.b16 %v637, %v634
      %v677 = vpack.c.b16 %v641, %v638
      %v678 = vpack.c.b16 %v642, %v639
      %v679 = vpack.c.b16 %v643, %v640
      %v680 = vpack.c.b16 %v647, %v644
      %v681 = vpack.c.b16 %v648, %v645
      %v682 = vpack.c.b16 %v649, %v646
      %v683 = vpack.c.b16 %v653, %v650
      %v684 = vpack.c.b16 %v654, %v651
      %v685 = vpack.c.b16 %v655, %v652
      %v686 = vpack.c.b16 %v656, %v656
      %v687 = vpack.c.b16 %v657, %v657
      %v688 = vpack.c.b16 %v658, %v658
      %v1013 = vunpack.c.l.b16 %v260
      %v1014 = vunpack.c.h.b16 %v260
      %v1015 = vunpack.c.l.b16 %v261
      %v1016 = vunpack.c.h.b16 %v261
      %v1017 = vunpack.c.l.b16 %v262
      %v1018 = vunpack.c.h.b16 %v262
      %v1019 = vunpack.c.l.b16 %v263
      %v1020 = vunpack.c.h.b16 %v263
      %v1021 = vunpack.c.l.b16 %v264
      %v1022 = vunpack.c.h.b16 %v264
      %v1023 = vunpack.c.l.b16 %v265
      %v1024 = vunpack.c.h.b16 %v265
      %v1025 = vunpack.c.l.b16 %v266
      %v1026 = vunpack.c.h.b16 %v266
      %v1027 = vunpack.c.l.b16 %v267
      %v1028 = vunpack.c.h.b16 %v267
      %v1029 = vunpack.c.l.b16 %v268
      %v1030 = vunpack.c.h.b16 %v268
      %v1031 = vunpack.c.l.b16 %v269
      %v1032 = vunpack.c.h.b16 %v269
      %v1033 = vunpack.c.l.b16 %v270
      %v1034 = vunpack.c.h.b16 %v270
      %v1035 = vunpack.c.l.b16 %v271
      %v1036 = vunpack.c.h.b16 %v271
      %v1037 = vunpack.c.l.b16 %v272
      %v1038 = vunpack.c.h.b16 %v272
      %v1039 = vunpack.c.l.b16 %v273
      %v1040 = vunpack.c.h.b16 %v273
      %v1041 = vunpack.c.l.b16 %v274
      %v1042 = vunpack.c.h.b16 %v274
      %v1043 = vunpack.c.l.b16 %v275
      %v1044 = vunpack.c.h.b16 %v275
      %v1045 = vunpack.c.l.b16 %v276
      %v1046 = vunpack.c.h.b16 %v276
      %v1047 = vunpack.c.l.b16 %v277
      %v1048 = vunpack.c.h.b16 %v277
      %v1049 = vunpack.c.l.b16 %v278
      %v1050 = vunpack.c.h.b16 %v278
      %v1051 = vunpack.c.l.b16 %v279
      %v1052 = vunpack.c.h.b16 %v279
      %v1053 = vunpack.c.l.b16 %v280
      %v1054 = vunpack.c.h.b16 %v280
      %v1055 = vunpack.c.l.b16 %v281
      %v1056 = vunpack.c.h.b16 %v281
      %v1057 = vunpack.c.l.b16 %v282
      %v1058 = vunpack.c.h.b16 %v282
      %v1059 = vunpack.c.l.b16 %v283
      %v1060 = vunpack.c.h.b16 %v283
      %v1061 = vunpack.c.l.b16 %v284
      %v1062 = vunpack.c.h.b16 %v284
      %v1063 = vunpack.c.l.b16 %v285
      %v1064 = vunpack.c.h.b16 %v285
      %v1065 = vunpack.c.l.b16 %v286
      %v1066 = vunpack.c.h.b16 %v286
      %v1067 = vunpack.c.l.b16 %v287
      %v1068 = vunpack.c.h.b16 %v287
      %v1069 = vunpack.c.l.b16 %v288
      %v1070 = vunpack.c.h.b16 %v288
      %v1071 = vunpack.c.l.b16 %v289
      %v1072 = vunpack.c.h.b16 %v289
      %v1073 = vunpack.c.l.b16 %v290
      %v1074 = vunpack.c.h.b16 %v290
      %v1075 = vunpack.c.l.b16 %v291
      %v1076 = vunpack.c.h.b16 %v291
      %v1077 = vunpack.c.l.b16 %v292
      %v1078 = vunpack.c.h.b16 %v292
      %v1079 = vunpack.c.l.b16 %v293
      %v1080 = vunpack.c.h.b16 %v293
      %v1081 = vunpack.c.l.b16 %v294
      %v1082 = vunpack.c.h.b16 %v294
      %v1083 = vunpack.c.l.b16 %v295
      %v1084 = vunpack.c.h.b16 %v295
      %v1085 = vunpack.c.l.b16 %v296
      %v1086 = vunpack.c.h.b16 %v296
      %v1087 = vunpack.c.l.b16 %v297
      %v1088 = vunpack.c.h.b16 %v297
      %v1089 = vunpack.c.l.b16 %v298
      %v1090 = vunpack.c.h.b16 %v298
      %v1091 = vunpack.c.l.b16 %v299
      %v1092 = vunpack.c.h.b16 %v299
      %v1093 = vunpack.c.l.b16 %v300
      %v1094 = vunpack.c.h.b16 %v300
      %v1095 = vunpack.c.l.b16 %v301
      %v1096 = vunpack.c.h.b16 %v301
      %v1097 = vunpack.c.l.b16 %v302
      %v1098 = vunpack.c.h.b16 %v302
      %v1099 = vunpack.c.l.b16 %v303
      %v1100 = vunpack.c.h.b16 %v303
      %v1101 = vunpack.c.l.b16 %v304
      %v1102 = vunpack.c.h.b16 %v304
      %v1103 = vunpack.c.l.b16 %v305
      %v1104 = vunpack.c.h.b16 %v305
      %v1105 = vunpack.c.l.b16 %v306
      %v1106 = vunpack.c.h.b16 %v306
      %v1107 = vunpack.c.l.b16 %v307
      %v1108 = vunpack.c.h.b16 %v307
      %v1109 = vunpack.c.l.b16 %v308
      %v1110 = vunpack.c.h.b16 %v308
      %v1111 = vunpack.c.l.b16 %v309
      %v1112 = vunpack.c.h.b16 %v309
      %v1113 = vunpack.c.l.b16 %v310
      %v1114 = vunpack.c.h.b16 %v310
      %v1115 = vunpack.c.l.b16 %v311
      %v1116 = vunpack.c.h.b16 %v311
      %v1117 = vunpack.c.l.b16 %v312
      %v1118 = vunpack.c.h.b16 %v312
      %v1119 = vunpack.c.l.b16 %v313
      %v1120 = vunpack.c.h.b16 %v313
      %v1121 = vunpack.c.l.b16 %v314
      %v1122 = vunpack.c.h.b16 %v314
      %v1123 = vunpack.c.l.b16 %v315
      %v1124 = vunpack.c.h.b16 %v315
      %v1125 = vunpack.c.l.b16 %v316
      %v1126 = vunpack.c.h.b16 %v316
      %v1127 = vunpack.c.l.b16 %v317
      %v1128 = vunpack.c.h.b16 %v317
      %v1129 = vunpack.c.l.b16 %v318
      %v1130 = vunpack.c.h.b16 %v318
      %v1131 = vunpack.c.l.b16 %v319
      %v1132 = vunpack.c.h.b16 %v319
      %v1133 = vunpack.c.l.b16 %v320
      %v1134 = vunpack.c.h.b16 %v320
      %v1135 = vunpack.c.l.b16 %v321
      %v1136 = vunpack.c.h.b16 %v321
      %v1137 = vunpack.c.l.b16 %v322
      %v1138 = vunpack.c.h.b16 %v322
      %v1139 = vunpack.c.l.b16 %v323
      %v1140 = vunpack.c.h.b16 %v323
      %v1141 = vunpack.c.l.b16 %v324
      %v1142 = vunpack.c.h.b16 %v324
      %v1143 = vunpack.c.l.b16 %v325
      %v1144 = vunpack.c.h.b16 %v325
      %v1145 = vunpack.c.l.b16 %v326
      %v1146 = vunpack.c.h.b16 %v326
      %v1147 = vunpack.c.l.b16 %v327
      %v1148 = vunpack.c.h.b16 %v327
      %v1149 = vunpack.c.l.b16 %v328
      %v1150 = vunpack.c.h.b16 %v328
      %v1151 = vunpack.c.l.b16 %v329
      %v1152 = vunpack.c.h.b16 %v329
      %v1153 = vunpack.c.l.b16 %v330
      %v1154 = vunpack.c.h.b16 %v330
      %v1155 = vunpack.c.l.b16 %v331
      %v1156 = vunpack.c.h.b16 %v331
      %v1157 = vunpack.c.l.b16 %v332
      %v1158 = vunpack.c.h.b16 %v332
      %v1159 = vunpack.c.l.b16 %v333
      %v1160 = vunpack.c.h.b16 %v333
      %v1161 = vunpack.c.l.b16 %v334
      %v1162 = vunpack.c.h.b16 %v334
      %v1163 = vunpack.c.l.b16 %v335
      %v1164 = vunpack.c.h.b16 %v335
      %v1165 = vunpack.c.l.b16 %v336
      %v1166 = vunpack.c.h.b16 %v336
      %v1167 = vunpack.c.l.b16 %v337
      %v1168 = vunpack.c.h.b16 %v337
      %v1169 = vunpack.c.l.b16 %v338
      %v1170 = vunpack.c.h.b16 %v338
      %v1171 = vunpack.c.l.b16 %v339
      %v1172 = vunpack.c.h.b16 %v339
      %v1173 = vunpack.c.l.b16 %v340
      %v1174 = vunpack.c.h.b16 %v340
      %v1175 = vunpack.c.l.b16 %v341
      %v1176 = vunpack.c.h.b16 %v341
      %v1177 = vunpack.c.l.b16 %v342
      %v1178 = vunpack.c.h.b16 %v342
      %v1179 = vunpack.c.l.b16 %v343
      %v1180 = vunpack.c.h.b16 %v343
      %v1181 = vunpack.c.l.b16 %v344
      %v1182 = vunpack.c.h.b16 %v344
      %v1183 = vunpack.c.l.b16 %v345
      %v1184 = vunpack.c.h.b16 %v345
      %v1185 = vunpack.c.l.b16 %v346
      %v1186 = vunpack.c.h.b16 %v346
      %v1187 = vunpack.c.l.b16 %v347
      %v1188 = vunpack.c.h.b16 %v347
      %v1189 = vunpack.c.l.b16 %v348
      %v1190 = vunpack.c.h.b16 %v348
      %v1191 = vunpack.c.l.b16 %v349
      %v1192 = vunpack.c.h.b16 %v349
      %v1193 = vunpack.c.l.b16 %v350
      %v1194 = vunpack.c.h.b16 %v350
      %v1195 = vunpack.c.l.b16 %v351
      %v1196 = vunpack.c.h.b16 %v351
      %v1197 = vunpack.c.l.b16 %v352
      %v1198 = vunpack.c.h.b16 %v352
      %v1199 = vunpack.c.l.b16 %v353
      %v1200 = vunpack.c.h.b16 %v353
      %v1201 = vunpack.c.l.b16 %v354
      %v1202 = vunpack.c.h.b16 %v354
      %v1203 = vunpack.c.l.b16 %v355
      %v1204 = vunpack.c.h.b16 %v355
      %v1205 = vunpack.c.l.b16 %v356
      %v1206 = vunpack.c.h.b16 %v356
      %v1207 = vunpack.c.l.b16 %v357
      %v1208 = vunpack.c.h.b16 %v357
      %v1209 = vunpack.c.l.b16 %v358
      %v1210 = vunpack.c.h.b16 %v358
      %v1211 = vunpack.c.l.b16 %v359
      %v1212 = vunpack.c.h.b16 %v359
      %v1213 = vunpack.c.l.b16 %v360
      %v1214 = vunpack.c.h.b16 %v360
      %v1215 = vunpack.c.l.b16 %v361
      %v1216 = vunpack.c.h.b16 %v361
      %v1217 = vunpack.c.l.b16 %v362
      %v1218 = vunpack.c.h.b16 %v362
      %v1219 = vunpack.c.l.b16 %v363
      %v1220 = vunpack.c.h.b16 %v363
      %v1221 = vunpack.c.l.b16 %v364
      %v1222 = vunpack.c.h.b16 %v364
      %v1223 = vunpack.c.l.b16 %v365
      %v1224 = vunpack.c.h.b16 %v365
      %v1225 = vunpack.c.l.b16 %v366
      %v1226 = vunpack.c.h.b16 %v366
      %v1227 = vunpack.c.l.b16 %v367
      %v1228 = vunpack.c.h.b16 %v367
      %v1229 = vunpack.c.l.b16 %v368
      %v1230 = vunpack.c.h.b16 %v368
      %v1231 = vunpack.c.l.b16 %v369
      %v1232 = vunpack.c.h.b16 %v369
      %v1233 = vunpack.c.l.b16 %v370
      %v1234 = vunpack.c.h.b16 %v370
      %v1235 = vunpack.c.l.b16 %v371
      %v1236 = vunpack.c.h.b16 %v371
      %v1237 = vunpack.c.l.b16 %v372
      %v1238 = vunpack.c.h.b16 %v372
      %v1239 = vunpack.c.l.b16 %v373
      %v1240 = vunpack.c.h.b16 %v373
      %v1241 = vunpack.c.l.b16 %v374
      %v1242 = vunpack.c.h.b16 %v374
      %v1243 = vunpack.c.l.b16 %v375
      %v1244 = vunpack.c.h.b16 %v375
      %v1245 = vunpack.c.l.b16 %v376
      %v1246 = vunpack.c.h.b16 %v376
      %v1247 = vunpack.c.l.b16 %v377
      %v1248 = vunpack.c.h.b16 %v377
      %v1249 = vunpack.c.l.b16 %v378
      %v1250 = vunpack.c.h.b16 %v378
      %v1251 = vunpack.c.l.b16 %v379
      %v1252 = vunpack.c.h.b16 %v379
      %v1253 = vunpack.c.l.b16 %v380
      %v1254 = vunpack.c.h.b16 %v380
      %v1255 = vunpack.c.l.b16 %v381
      %v1256 = vunpack.c.h.b16 %v381
      %v1257 = vunpack.c.l.b16 %v382
      %v1258 = vunpack.c.h.b16 %v382
      %v1259 = vunpack.c.l.b16 %v383
      %v1260 = vunpack.c.h.b16 %v383
      %v1261 = vunpack.c.l.b16 %v384
      %v1262 = vunpack.c.h.b16 %v384
      %v1263 = vunpack.c.l.b16 %v385
      %v1264 = vunpack.c.h.b16 %v385
      %v1265 = vunpack.c.l.b16 %v386
      %v1266 = vunpack.c.h.b16 %v386
      %v1267 = vunpack.c.l.b16 %v387
      %v1268 = vunpack.c.h.b16 %v387
      %v1269 = vunpack.c.l.b16 %v388
      %v1270 = vunpack.c.h.b16 %v388
      %v1271 = vunpack.c.l.b16 %v389
      %v1272 = vunpack.c.h.b16 %v389
      %v1273 = vunpack.c.l.b16 %v390
      %v1274 = vunpack.c.h.b16 %v390
      %v1275 = vunpack.c.l.b16 %v391
      %v1276 = vunpack.c.h.b16 %v391
      %v1277 = vunpack.c.l.b16 %v392
      %v1278 = vunpack.c.h.b16 %v392
      %v1279 = vunpack.c.l.b16 %v393
      %v1280 = vunpack.c.h.b16 %v393
      %v1281 = vunpack.c.l.b16 %v394
      %v1282 = vunpack.c.h.b16 %v394
      %v1283 = vunpack.c.l.b16 %v395
      %v1284 = vunpack.c.h.b16 %v395
      %v1285 = vunpack.c.l.b16 %v396
      %v1286 = vunpack.c.h.b16 %v396
      %v1287 = vunpack.c.l.b16 %v397
      %v1288 = vunpack.c.h.b16 %v397
      %v1289 = vunpack.c.l.b16 %v398
      %v1290 = vunpack.c.h.b16 %v398
      %v1291 = vunpack.c.l.b16 %v399
      %v1292 = vunpack.c.h.b16 %v399
      %v1293 = vunpack.c.l.b16 %v400
      %v1294 = vunpack.c.h.b16 %v400
      %v1295 = vunpack.c.l.b16 %v401
      %v1296 = vunpack.c.h.b16 %v401
      %v1297 = vunpack.c.l.b16 %v402
      %v1298 = vunpack.c.h.b16 %v402
      %v1299 = vunpack.c.l.b16 %v403
      %v1300 = vunpack.c.h.b16 %v403
      %v1301 = vunpack.c.l.b16 %v404
      %v1302 = vunpack.c.h.b16 %v404
      %v1303 = vunpack.c.l.b16 %v405
      %v1304 = vunpack.c.h.b16 %v405
      %v1305 = vunpack.c.l.b16 %v406
      %v1306 = vunpack.c.h.b16 %v406
      %v1307 = vunpack.c.l.b16 %v407
      %v1308 = vunpack.c.h.b16 %v407
      %v1309 = vunpack.c.l.b16 %v408
      %v1310 = vunpack.c.h.b16 %v408
      %v1311 = vunpack.c.l.b16 %v409
      %v1312 = vunpack.c.h.b16 %v409
      %v1313 = vunpack.c.l.b16 %v410
      %v1314 = vunpack.c.h.b16 %v410
      %v1315 = vunpack.c.l.b16 %v411
      %v1316 = vunpack.c.h.b16 %v411
      %v1317 = vunpack.c.l.b16 %v412
      %v1318 = vunpack.c.h.b16 %v412
      %v1319 = vunpack.c.l.b16 %v413
      %v1320 = vunpack.c.h.b16 %v413
      %v1321 = vunpack.c.l.b16 %v414
      %v1322 = vunpack.c.h.b16 %v414
      %v1323 = vunpack.c.l.b16 %v415
      %v1324 = vunpack.c.h.b16 %v415
      %v1325 = vunpack.c.l.b16 %v416
      %v1326 = vunpack.c.h.b16 %v416
      %v1327 = vunpack.c.l.b16 %v417
      %v1328 = vunpack.c.h.b16 %v417
      %v1329 = vunpack.c.l.b16 %v418
      %v1330 = vunpack.c.h.b16 %v418
      %v1331 = vunpack.c.l.b16 %v419
      %v1332 = vunpack.c.h.b16 %v419
      %v1333 = vunpack.c.l.b16 %v420
      %v1334 = vunpack.c.h.b16 %v420
      %v1335 = vunpack.c.l.b16 %v421
      %v1336 = vunpack.c.h.b16 %v421
      %v1337 = vunpack.c.l.b16 %v422
      %v1338 = vunpack.c.h.b16 %v422
      %v1339 = vunpack.c.l.b16 %v423
      %v1340 = vunpack.c.h.b16 %v423
      %v1341 = vunpack.c.l.b16 %v424
      %v1342 = vunpack.c.h.b16 %v424
      %v1343 = vunpack.c.l.b16 %v425
      %v1344 = vunpack.c.h.b16 %v425
      %v1345 = vunpack.c.l.b16 %v426
      %v1346 = vunpack.c.h.b16 %v426
      %v1347 = vunpack.c.l.b16 %v427
      %v1348 = vunpack.c.h.b16 %v427
      %v1349 = vunpack.c.l.b16 %v428
      %v1350 = vunpack.c.h.b16 %v428
      %v1351 = vunpack.c.l.b16 %v429
      %v1352 = vunpack.c.h.b16 %v429
      %v1353 = vunpack.c.l.b16 %v430
      %v1354 = vunpack.c.h.b16 %v430
      %v1355 = vunpack.c.l.b16 %v431
      %v1356 = vunpack.c.h.b16 %v431
      %v1357 = vunpack.c.l.b16 %v432
      %v1358 = vunpack.c.h.b16 %v432
      %v1359 = vunpack.c.l.b16 %v433
      %v1360 = vunpack.c.h.b16 %v433
      %v1361 = vunpack.c.l.b16 %v434
      %v1362 = vunpack.c.h.b16 %v434
      %v1363 = vunpack.c.l.b16 %v435
      %v1364 = vunpack.c.h.b16 %v435
      %v1365 = vunpack.c.l.b16 %v436
      %v1366 = vunpack.c.h.b16 %v436
      %v1367 = vunpack.c.l.b16 %v437
      %v1368 = vunpack.c.h.b16 %v437
      %v1369 = vunpack.c.l.b16 %v438
      %v1370 = vunpack.c.h.b16 %v438
      %v1371 = vunpack.c.l.b16 %v439
      %v1372 = vunpack.c.h.b16 %v439
      %v1373 = vunpack.c.l.b16 %v440
      %v1374 = vunpack.c.h.b16 %v440
      %v1375 = vunpack.c.l.b16 %v441
      %v1376 = vunpack.c.h.b16 %v441
      %v1377 = vunpack.c.l.b16 %v442
      %v1378 = vunpack.c.h.b16 %v442
      %v1379 = vunpack.c.l.b16 %v443
      %v1380 = vunpack.c.h.b16 %v443
      %v1381 = vunpack.c.l.b16 %v444
      %v1382 = vunpack.c.h.b16 %v444
      %v1383 = vunpack.c.l.b16 %v445
      %v1384 = vunpack.c.h.b16 %v445
      %v1385 = vunpack.c.l.b16 %v446
      %v1386 = vunpack.c.h.b16 %v446
      %v1387 = vunpack.c.l.b16 %v447
      %v1388 = vunpack.c.h.b16 %v447
      %v1389 = vunpack.c.l.b16 %v448
      %v1390 = vunpack.c.h.b16 %v448
      %v1391 = vunpack.c.l.b16 %v449
      %v1392 = vunpack.c.h.b16 %v449
      %v1393 = vunpack.c.l.b16 %v450
      %v1394 = vunpack.c.h.b16 %v450
      %v1395 = vunpack.c.l.b16 %v451
      %v1396 = vunpack.c.h.b16 %v451
      %v1397 = vunpack.c.l.b16 %v452
      %v1398 = vunpack.c.h.b16 %v452
      %v1399 = vunpack.c.l.b16 %v453
      %v1400 = vunpack.c.h.b16 %v453
      %v1401 = vunpack.c.l.b16 %v454
      %v1402 = vunpack.c.h.b16 %v454
      %v1403 = vunpack.c.l.b16 %v455
      %v1404 = vunpack.c.h.b16 %v455
      %v1405 = vunpack.c.l.b16 %v456
      %v1406 = vunpack.c.h.b16 %v456
      %v1407 = vunpack.c.l.b16 %v457
      %v1408 = vunpack.c.h.b16 %v457
      %v1409 = vunpack.c.l.b16 %v458
      %v1410 = vunpack.c.h.b16 %v458
      %v1411 = vunpack.c.l.b16 %v459
      %v1412 = vunpack.c.h.b16 %v459
      %v1413 = vunpack.c.l.b16 %v460
      %v1414 = vunpack.c.h.b16 %v460
      %v1415 = vunpack.c.l.b16 %v461
      %v1416 = vunpack.c.h.b16 %v461
      %v1417 = vunpack.c.l.b16 %v462
      %v1418 = vunpack.c.h.b16 %v462
      %v1419 = vunpack.c.l.b16 %v463
      %v1420 = vunpack.c.h.b16 %v463
      %v1421 = vunpack.c.l.b16 %v464
      %v1422 = vunpack.c.h.b16 %v464
      %v1423 = vunpack.c.l.b16 %v465
      %v1424 = vunpack.c.h.b16 %v465
      %v1425 = vunpack.c.l.b16 %v466
      %v1426 = vunpack.c.h.b16 %v466
      %v1427 = vunpack.c.l.b16 %v467
      %v1428 = vunpack.c.h.b16 %v467
      %v1429 = vunpack.c.l.b16 %v468
      %v1430 = vunpack.c.h.b16 %v468
      %v1431 = vunpack.c.l.b16 %v469
      %v1432 = vunpack.c.h.b16 %v469
      %v1433 = vunpack.c.l.b16 %v470
      %v1434 = vunpack.c.h.b16 %v470
      %v1435 = vunpack.c.l.b16 %v471
      %v1436 = vunpack.c.h.b16 %v471
      %v1437 = vunpack.c.l.b16 %v472
      %v1438 = vunpack.c.h.b16 %v472
      %v1439 = vunpack.c.l.b16 %v473
      %v1440 = vunpack.c.h.b16 %v473
      %v1441 = vunpack.c.l.b16 %v474
      %v1442 = vunpack.c.h.b16 %v474
      %v1443 = vunpack.c.l.b16 %v475
      %v1444 = vunpack.c.h.b16 %v475
      %v1445 = vunpack.c.l.b16 %v476
      %v1446 = vunpack.c.h.b16 %v476
      %v1447 = vunpack.c.l.b16 %v477
      %v1448 = vunpack.c.h.b16 %v477
      %v1449 = vunpack.c.l.b16 %v478
      %v1450 = vunpack.c.h.b16 %v478
      %v1451 = vunpack.c.l.b16 %v479
      %v1452 = vunpack.c.h.b16 %v479
      %v1453 = vunpack.c.l.b16 %v480
      %v1454 = vunpack.c.h.b16 %v480
      %v1455 = vunpack.c.l.b16 %v481
      %v1456 = vunpack.c.h.b16 %v481
      %v1457 = vunpack.c.l.b16 %v482
      %v1458 = vunpack.c.h.b16 %v482
      %v1459 = vunpack.c.l.b16 %v483
      %v1460 = vunpack.c.h.b16 %v483
      %v1461 = vunpack.c.l.b16 %v484
      %v1462 = vunpack.c.h.b16 %v484
      %v1463 = vunpack.c.l.b16 %v485
      %v1464 = vunpack.c.h.b16 %v485
      %v1465 = vunpack.c.l.b16 %v486
      %v1466 = vunpack.c.h.b16 %v486
      %v1467 = vunpack.c.l.b16 %v487
      %v1468 = vunpack.c.h.b16 %v487
      %v1469 = vunpack.c.l.b16 %v488
      %v1470 = vunpack.c.h.b16 %v488
      %v1471 = vunpack.c.l.b16 %v489
      %v1472 = vunpack.c.h.b16 %v489
      %v1473 = vunpack.c.l.b16 %v490
      %v1474 = vunpack.c.h.b16 %v490
      %v1475 = vunpack.c.l.b16 %v491
      %v1476 = vunpack.c.h.b16 %v491
      %v1477 = vunpack.c.l.b16 %v492
      %v1478 = vunpack.c.h.b16 %v492
      %v1479 = vunpack.c.l.b16 %v493
      %v1480 = vunpack.c.h.b16 %v493
      %v1481 = vunpack.c.l.b16 %v494
      %v1482 = vunpack.c.h.b16 %v494
      %v1483 = vunpack.c.l.b16 %v495
      %v1484 = vunpack.c.h.b16 %v495
      %v1485 = vunpack.c.l.b16 %v496
      %v1486 = vunpack.c.h.b16 %v496
      %v1487 = vunpack.c.l.b16 %v497
      %v1488 = vunpack.c.h.b16 %v497
      %v1489 = vunpack.c.l.b16 %v498
      %v1490 = vunpack.c.h.b16 %v498
      %v1491 = vunpack.c.l.b16 %v499
      %v1492 = vunpack.c.h.b16 %v499
      %v1493 = vunpack.c.l.b16 %v500
      %v1494 = vunpack.c.h.b16 %v500
      %v1495 = vunpack.c.l.b16 %v501
      %v1496 = vunpack.c.h.b16 %v501
      %v1497 = vunpack.c.l.b16 %v502
      %v1498 = vunpack.c.h.b16 %v502
      %v1499 = vunpack.c.l.b16 %v503
      %v1500 = vunpack.c.h.b16 %v503
      %v1501 = vunpack.c.l.b16 %v504
      %v1502 = vunpack.c.h.b16 %v504
      %v1503 = vunpack.c.l.b16 %v505
      %v1504 = vunpack.c.h.b16 %v505
      %v1505 = vunpack.c.l.b16 %v506
      %v1506 = vunpack.c.h.b16 %v506
      %v1507 = vunpack.c.l.b16 %v507
      %v1508 = vunpack.c.h.b16 %v507
      %v1509 = vunpack.c.l.b16 %v508
      %v1510 = vunpack.c.h.b16 %v508
      %v1511 = vunpack.c.l.b16 %v509
      %v1512 = vunpack.c.h.b16 %v509
      %v1513 = vunpack.c.l.b16 %v510
      %v1514 = vunpack.c.h.b16 %v510
      %v1515 = vunpack.c.l.b16 %v511
      %v1516 = vunpack.c.h.b16 %v511
      %v1517 = vunpack.c.l.b16 %v512
      %v1518 = vunpack.c.h.b16 %v512
      %v1519 = vunpack.c.l.b16 %v513
      %v1520 = vunpack.c.h.b16 %v513
      %v1521 = vunpack.c.l.b16 %v514
      %v1522 = vunpack.c.h.b16 %v514
      %v1523 = vunpack.c.l.b16 %v515
      %v1524 = vunpack.c.h.b16 %v515
      %v1525 = vunpack.c.l.b16 %v516
      %v1526 = vunpack.c.h.b16 %v516
      %v1527 = vunpack.c.l.b16 %v517
      %v1528 = vunpack.c.h.b16 %v517
      %v1529 = vunpack.c.l.b16 %v518
      %v1530 = vunpack.c.h.b16 %v518
      %v1531 = vunpack.c.l.b16 %v519
      %v1532 = vunpack.c.h.b16 %v519
      %v1533 = vunpack.c.l.b16 %v520
      %v1534 = vunpack.c.h.b16 %v520
      %v1535 = vunpack.c.l.b16 %v521
      %v1536 = vunpack.c.h.b16 %v521
      %v1537 = vunpack.c.l.b16 %v522
      %v1538 = vunpack.c.h.b16 %v522
      %v1539 = vunpack.c.l.b16 %v523
      %v1540 = vunpack.c.h.b16 %v523
      %v1541 = vunpack.c.l.b16 %v524
      %v1542 = vunpack.c.h.b16 %v524
      %v1543 = vunpack.c.l.b16 %v525
      %v1544 = vunpack.c.h.b16 %v525
      %v1545 = vunpack.c.l.b16 %v526
      %v1546 = vunpack.c.h.b16 %v526
      %v1547 = vunpack.c.l.b16 %v527
      %v1548 = vunpack.c.h.b16 %v527
      %v1549 = vunpack.c.l.b16 %v528
      %v1550 = vunpack.c.h.b16 %v528
      %v1551 = vunpack.c.l.b16 %v529
      %v1552 = vunpack.c.h.b16 %v529
      %v1553 = vunpack.c.l.b16 %v530
      %v1554 = vunpack.c.h.b16 %v530
      %v1555 = vunpack.c.l.b16 %v531
      %v1556 = vunpack.c.h.b16 %v531
      %v1557 = vunpack.c.l.b16 %v532
      %v1558 = vunpack.c.h.b16 %v532
      %v1559 = vunpack.c.l.b16 %v533
      %v1560 = vunpack.c.h.b16 %v533
      %v1561 = vunpack.c.l.b16 %v534
      %v1562 = vunpack.c.h.b16 %v534
      %v1563 = vunpack.c.l.b16 %v535
      %v1564 = vunpack.c.h.b16 %v535
      %v1565 = vunpack.c.l.b16 %v536
      %v1566 = vunpack.c.h.b16 %v536
      %v1567 = vunpack.c.l.b16 %v537
      %v1568 = vunpack.c.h.b16 %v537
      %v1569 = vunpack.c.l.b16 %v538
      %v1570 = vunpack.c.h.b16 %v538
      %v1571 = vunpack.c.l.b16 %v539
      %v1572 = vunpack.c.h.b16 %v539
      %v1573 = vunpack.c.l.b16 %v540
      %v1574 = vunpack.c.h.b16 %v540
      %v1575 = vunpack.c.l.b16 %v541
      %v1576 = vunpack.c.h.b16 %v541
      %v1577 = vunpack.c.l.b16 %v542
      %v1578 = vunpack.c.h.b16 %v542
      %v1579 = vunpack.c.l.b16 %v543
      %v1580 = vunpack.c.h.b16 %v543
      %v1581 = vunpack.c.l.b16 %v544
      %v1582 = vunpack.c.h.b16 %v544
      %v1583 = vunpack.c.l.b16 %v545
      %v1584 = vunpack.c.h.b16 %v545
      %v1585 = vunpack.c.l.b16 %v546
      %v1586 = vunpack.c.h.b16 %v546
      %v1587 = vunpack.c.l.b16 %v547
      %v1588 = vunpack.c.h.b16 %v547
      %v1589 = vunpack.c.l.b16 %v548
      %v1590 = vunpack.c.h.b16 %v548
      %v1591 = vunpack.c.l.b16 %v549
      %v1592 = vunpack.c.h.b16 %v549
      %v1593 = vunpack.c.l.b16 %v550
      %v1594 = vunpack.c.h.b16 %v550
      %v1595 = vunpack.c.l.b16 %v551
      %v1596 = vunpack.c.h.b16 %v551
      %v1597 = vunpack.c.l.b16 %v552
      %v1598 = vunpack.c.h.b16 %v552
      %v1599 = vunpack.c.l.b16 %v553
      %v1600 = vunpack.c.h.b16 %v553
      %v1601 = vunpack.c.l.b16 %v554
      %v1602 = vunpack.c.h.b16 %v554
      %v1603 = vunpack.c.l.b16 %v555
      %v1604 = vunpack.c.h.b16 %v555
      %v1605 = vunpack.c.l.b16 %v556
      %v1606 = vunpack.c.h.b16 %v556
      %v1607 = vunpack.c.l.b16 %v557
      %v1608 = vunpack.c.h.b16 %v557
      %v1609 = vunpack.c.l.b16 %v558
      %v1610 = vunpack.c.h.b16 %v558
      %v1611 = vunpack.c.l.b16 %v559
      %v1612 = vunpack.c.h.b16 %v559
      %v1613 = vunpack.c.l.b16 %v560
      %v1614 = vunpack.c.h.b16 %v560
      %v1615 = vunpack.c.l.b16 %v561
      %v1616 = vunpack.c.h.b16 %v561
      %v1617 = vunpack.c.l.b16 %v562
      %v1618 = vunpack.c.h.b16 %v562
      %v1619 = vunpack.c.l.b16 %v563
      %v1620 = vunpack.c.h.b16 %v563
      %v1621 = vpack.c.b16 %v1029, %v1013
      %v1622 = vpack.c.b16 %v1030, %v1014
      %v1623 = vpack.c.b16 %v1031, %v1015
      %v1624 = vpack.c.b16 %v1032, %v1016
      %v1625 = vpack.c.b16 %v1033, %v1017
      %v1626 = vpack.c.b16 %v1034, %v1018
      %v1627 = vpack.c.b16 %v1035, %v1019
      %v1628 = vpack.c.b16 %v1036, %v1020
      %v1629 = vpack.c.b16 %v1037, %v1021
      %v1630 = vpack.c.b16 %v1038, %v1022
      %v1631 = vpack.c.b16 %v1039, %v1023
      %v1632 = vpack.c.b16 %v1040, %v1024
      %v1633 = vpack.c.b16 %v1041, %v1025
      %v1634 = vpack.c.b16 %v1042, %v1026
      %v1635 = vpack.c.b16 %v1043, %v1027
      %v1636 = vpack.c.b16 %v1044, %v1028
      %v1637 = vpack.c.b16 %v1061, %v1045
      %v1638 = vpack.c.b16 %v1062, %v1046
      %v1639 = vpack.c.b16 %v1063, %v1047
      %v1640 = vpack.c.b16 %v1064, %v1048
      %v1641 = vpack.c.b16 %v1065, %v1049
      %v1642 = vpack.c.b16 %v1066, %v1050
      %v1643 = vpack.c.b16 %v1067, %v1051
      %v1644 = vpack.c.b16 %v1068, %v1052
      %v1645 = vpack.c.b16 %v1069, %v1053
      %v1646 = vpack.c.b16 %v1070, %v1054
      %v1647 = vpack.c.b16 %v1071, %v1055
      %v1648 = vpack.c.b16 %v1072, %v1056
      %v1649 = vpack.c.b16 %v1073, %v1057
      %v1650 = vpack.c.b16 %v1074, %v1058
      %v1651 = vpack.c.b16 %v1075, %v1059
      %v1652 = vpack.c.b16 %v1076, %v1060
      %v1653 = vpack.c.b16 %v1093, %v1077
      %v1654 = vpack.c.b16 %v1094, %v1078
      %v1655 = vpack.c.b16 %v1095, %v1079
      %v1656 = vpack.c.b16 %v1096, %v1080
      %v1657 = vpack.c.b16 %v1097, %v1081
      %v1658 = vpack.c.b16 %v1098, %v1082
      %v1659 = vpack.c.b16 %v1099, %v1083
      %v1660 = vpack.c.b16 %v1100, %v1084
      %v1661 = vpack.c.b16 %v1101, %v1085
      %v1662 = vpack.c.b16 %v1102, %v1086
      %v1663 = vpack.c.b16 %v1103, %v1087
      %v1664 = vpack.c.b16 %v1104, %v1088
      %v1665 = vpack.c.b16 %v1105, %v1089
      %v1666 = vpack.c.b16 %v1106, %v1090
      %v1667 = vpack.c.b16 %v1107, %v1091
      %v1668 = vpack.c.b16 %v1108, %v1092
      %v1669 = vpack.c.b16 %v1125, %v1109
      %v1670 = vpack.c.b16 %v1126, %v1110
      %v1671 = vpack.c.b16 %v1127, %v1111
      %v1672 = vpack.c.b16 %v1128, %v1112
      %v1673 = vpack.c.b16 %v1129, %v1113
      %v1674 = vpack.c.b16 %v1130, %v1114
      %v1675 = vpack.c.b16 %v1131, %v1115
      %v1676 = vpack.c.b16 %v1132, %v1116
      %v1677 = vpack.c.b16 %v1133, %v1117
      %v1678 = vpack.c.b16 %v1134, %v1118
      %v1679 = vpack.c.b16 %v1135, %v1119
      %v1680 = vpack.c.b16 %v1136, %v1120
      %v1681 = vpack.c.b16 %v1137, %v1121
      %v1682 = vpack.c.b16 %v1138, %v1122
      %v1683 = vpack.c.b16 %v1139, %v1123
      %v1684 = vpack.c.b16 %v1140, %v1124
      %v1685 = vpack.c.b16 %v1157, %v1141
      %v1686 = vpack.c.b16 %v1158, %v1142
      %v1687 = vpack.c.b16 %v1159, %v1143
      %v1688 = vpack.c.b16 %v1160, %v1144
      %v1689 = vpack.c.b16 %v1161, %v1145
      %v1690 = vpack.c.b16 %v1162, %v1146
      %v1691 = vpack.c.b16 %v1163, %v1147
      %v1692 = vpack.c.b16 %v1164, %v1148
      %v1693 = vpack.c.b16 %v1165, %v1149
      %v1694 = vpack.c.b16 %v1166, %v1150
      %v1695 = vpack.c.b16 %v1167, %v1151
      %v1696 = vpack.c.b16 %v1168, %v1152
      %v1697 = vpack.c.b16 %v1169, %v1153
      %v1698 = vpack.c.b16 %v1170, %v1154
      %v1699 = vpack.c.b16 %v1171, %v1155
      %v1700 = vpack.c.b16 %v1172, %v1156
      %v1701 = vpack.c.b16 %v1189, %v1173
      %v1702 = vpack.c.b16 %v1190, %v1174
      %v1703 = vpack.c.b16 %v1191, %v1175
      %v1704 = vpack.c.b16 %v1192, %v1176
      %v1705 = vpack.c.b16 %v1193, %v1177
      %v1706 = vpack.c.b16 %v1194, %v1178
      %v1707 = vpack.c.b16 %v1195, %v1179
      %v1708 = vpack.c.b16 %v1196, %v1180
      %v1709 = vpack.c.b16 %v1197, %v1181
      %v1710 = vpack.c.b16 %v1198, %v1182
      %v1711 = vpack.c.b16 %v1199, %v1183
      %v1712 = vpack.c.b16 %v1200, %v1184
      %v1713 = vpack.c.b16 %v1201, %v1185
      %v1714 = vpack.c.b16 %v1202, %v1186
      %v1715 = vpack.c.b16 %v1203, %v1187
      %v1716 = vpack.c.b16 %v1204, %v1188
      %v1717 = vpack.c.b16 %v1221, %v1205
      %v1718 = vpack.c.b16 %v1222, %v1206
      %v1719 = vpack.c.b16 %v1223, %v1207
      %v1720 = vpack.c.b16 %v1224, %v1208
      %v1721 = vpack.c.b16 %v1225, %v1209
      %v1722 = vpack.c.b16 %v1226, %v1210
      %v1723 = vpack.c.b16 %v1227, %v1211
      %v1724 = vpack.c.b16 %v1228, %v1212
      %v1725 = vpack.c.b16 %v1229, %v1213
      %v1726 = vpack.c.b16 %v1230, %v1214
      %v1727 = vpack.c.b16 %v1231, %v1215
      %v1728 = vpack.c.b16 %v1232, %v1216
      %v1729 = vpack.c.b16 %v1233, %v1217
      %v1730 = vpack.c.b16 %v1234, %v1218
      %v1731 = vpack.c.b16 %v1235, %v1219
      %v1732 = vpack.c.b16 %v1236, %v1220
      %v1733 = vpack.c.b16 %v1253, %v1237
      %v1734 = vpack.c.b16 %v1254, %v1238
      %v1735 = vpack.c.b16 %v1255, %v1239
      %v1736 = vpack.c.b16 %v1256, %v1240
      %v1737 = vpack.c.b16 %v1257, %v1241
      %v1738 = vpack.c.b16 %v1258, %v1242
      %v1739 = vpack.c.b16 %v1259, %v1243
      %v1740 = vpack.c.b16 %v1260, %v1244
      %v1741 = vpack.c.b16 %v1261, %v1245
      %v1742 = vpack.c.b16 %v1262, %v1246
      %v1743 = vpack.c.b16 %v1263, %v1247
      %v1744 = vpack.c.b16 %v1264, %v1248
      %v1745 = vpack.c.b16 %v1265, %v1249
      %v1746 = vpack.c.b16 %v1266, %v1250
      %v1747 = vpack.c.b16 %v1267, %v1251
      %v1748 = vpack.c.b16 %v1268, %v1252
      %v1749 = vpack.c.b16 %v1285, %v1269
      %v1750 = vpack.c.b16 %v1286, %v1270
      %v1751 = vpack.c.b16 %v1287, %v1271
      %v1752 = vpack.c.b16 %v1288, %v1272
      %v1753 = vpack.c.b16 %v1289, %v1273
      %v1754 = vpack.c.b16 %v1290, %v1274
      %v1755 = vpack.c.b16 %v1291, %v1275
      %v1756 = vpack.c.b16 %v1292, %v1276
      %v1757 = vpack.c.b16 %v1293, %v1277
      %v1758 = vpack.c.b16 %v1294, %v1278
      %v1759 = vpack.c.b16 %v1295, %v1279
      %v1760 = vpack.c.b16 %v1296, %v1280
      %v1761 = vpack.c.b16 %v1297, %v1281
      %v1762 = vpack.c.b16 %v1298, %v1282
      %v1763 = vpack.c.b16 %v1299, %v1283
      %v1764 = vpack.c.b16 %v1300, %v1284
      %v1765 = vpack.c.b16 %v1317, %v1301
      %v1766 = vpack.c.b16 %v1318, %v1302
      %v1767 = vpack.c.b16 %v1319, %v1303
      %v1768 = vpack.c.b16 %v1320, %v1304
      %v1769 = vpack.c.b16 %v1321, %v1305
      %v1770 = vpack.c.b16 %v1322, %v1306
      %v1771 = vpack.c.b16 %v1323, %v1307
      %v1772 = vpack.c.b16 %v1324, %v1308
      %v1773 = vpack.c.b16 %v1325, %v1309
      %v1774 = vpack.c.b16 %v1326, %v1310
      %v1775 = vpack.c.b16 %v1327, %v1311
      %v1776 = vpack.c.b16 %v1328, %v1312
      %v1777 = vpack.c.b16 %v1329, %v1313
      %v1778 = vpack.c.b16 %v1330, %v1314
      %v1779 = vpack.c.b16 %v1331, %v1315
      %v1780 = vpack.c.b16 %v1332, %v1316
      %v1781 = vpack.c.b16 %v1349, %v1333
      %v1782 = vpack.c.b16 %v1350, %v1334
      %v1783 = vpack.c.b16 %v1351, %v1335
      %v1784 = vpack.c.b16 %v1352, %v1336
      %v1785 = vpack.c.b16 %v1353, %v1337
      %v1786 = vpack.c.b16 %v1354, %v1338
      %v1787 = vpack.c.b16 %v1355, %v1339
      %v1788 = vpack.c.b16 %v1356, %v1340
      %v1789 = vpack.c.b16 %v1357, %v1341
      %v1790 = vpack.c.b16 %v1358, %v1342
      %v1791 = vpack.c.b16 %v1359, %v1343
      %v1792 = vpack.c.b16 %v1360, %v1344
      %v1793 = vpack.c.b16 %v1361, %v1345
      %v1794 = vpack.c.b16 %v1362, %v1346
      %v1795 = vpack.c.b16 %v1363, %v1347
      %v1796 = vpack.c.b16 %v1364, %v1348
      %v1797 = vpack.c.b16 %v1381, %v1365
      %v1798 = vpack.c.b16 %v1382, %v1366
      %v1799 = vpack.c.b16 %v1383, %v1367
      %v1800 = vpack.c.b16 %v1384, %v1368
      %v1801 = vpack.c.b16 %v1385, %v1369
      %v1802 = vpack.c.b16 %v1386, %v1370
      %v1803 = vpack.c.b16 %v1387, %v1371
      %v1804 = vpack.c.b16 %v1388, %v1372
      %v1805 = vpack.c.b16 %v1389, %v1373
      %v1806 = vpack.c.b16 %v1390, %v1374
      %v1807 = vpack.c.b16 %v1391, %v1375
      %v1808 = vpack.c.b16 %v1392, %v1376
      %v1809 = vpack.c.b16 %v1393, %v1377
      %v1810 = vpack.c.b16 %v1394, %v1378
      %v1811 = vpack.c.b16 %v1395, %v1379
      %v1812 = vpack.c.b16 %v1396, %v1380
      %v1813 = vpack.c.b16 %v1413, %v1397
      %v1814 = vpack.c.b16 %v1414, %v1398
      %v1815 = vpack.c.b16 %v1415, %v1399
      %v1816 = vpack.c.b16 %v1416, %v1400
      %v1817 = vpack.c.b16 %v1417, %v1401
      %v1818 = vpack.c.b16 %v1418, %v1402
      %v1819 = vpack.c.b16 %v1419, %v1403
      %v1820 = vpack.c.b16 %v1420, %v1404
      %v1821 = vpack.c.b16 %v1421, %v1405
      %v1822 = vpack.c.b16 %v1422, %v1406
      %v1823 = vpack.c.b16 %v1423, %v1407
      %v1824 = vpack.c.b16 %v1424, %v1408
      %v1825 = vpack.c.b16 %v1425, %v1409
      %v1826 = vpack.c.b16 %v1426, %v1410
      %v1827 = vpack.c.b16 %v1427, %v1411
      %v1828 = vpack.c.b16 %v1428, %v1412
      %v1829 = vpack.c.b16 %v1445, %v1429
      %v1830 = vpack.c.b16 %v1446, %v1430
      %v1831 = vpack.c.b16 %v1447, %v1431
      %v1832 = vpack.c.b16 %v1448, %v1432
      %v1833 = vpack.c.b16 %v1449, %v1433
      %v1834 = vpack.c.b16 %v1450, %v1434
      %v1835 = vpack.c.b16 %v1451, %v1435
      %v1836 = vpack.c.b16 %v1452, %v1436
      %v1837 = vpack.c.b16 %v1453, %v1437
      %v1838 = vpack.c.b16 %v1454, %v1438
      %v1839 = vpack.c.b16 %v1455, %v1439
      %v1840 = vpack.c.b16 %v1456, %v1440
      %v1841 = vpack.c.b16 %v1457, %v1441
      %v1842 = vpack.c.b16 %v1458, %v1442
      %v1843 = vpack.c.b16 %v1459, %v1443
      %v1844 = vpack.c.b16 %v1460, %v1444
      %v1845 = vpack.c.b16 %v1477, %v1461
      %v1846 = vpack.c.b16 %v1478, %v1462
      %v1847 = vpack.c.b16 %v1479, %v1463
      %v1848 = vpack.c.b16 %v1480, %v1464
      %v1849 = vpack.c.b16 %v1481, %v1465
      %v1850 = vpack.c.b16 %v1482, %v1466
      %v1851 = vpack.c.b16 %v1483, %v1467
      %v1852 = vpack.c.b16 %v1484, %v1468
      %v1853 = vpack.c.b16 %v1485, %v1469
      %v1854 = vpack.c.b16 %v1486, %v1470
      %v1855 = vpack.c.b16 %v1487, %v1471
      %v1856 = vpack.c.b16 %v1488, %v1472
      %v1857 = vpack.c.b16 %v1489, %v1473
      %v1858 = vpack.c.b16 %v1490, %v1474
      %v1859 = vpack.c.b16 %v1491, %v1475
      %v1860 = vpack.c.b16 %v1492, %v1476
      %v1861 = vpack.c.b16 %v1509, %v1493
      %v1862 = vpack.c.b16 %v1510, %v1494
      %v1863 = vpack.c.b16 %v1511, %v1495
      %v1864 = vpack.c.b16 %v1512, %v1496
      %v1865 = vpack.c.b16 %v1513, %v1497
      %v1866 = vpack.c.b16 %v1514, %v1498
      %v1867 = vpack.c.b16 %v1515, %v1499
      %v1868 = vpack.c.b16 %v1516, %v1500
      %v1869 = vpack.c.b16 %v1517, %v1501
      %v1870 = vpack.c.b16 %v1518, %v1502
      %v1871 = vpack.c.b16 %v1519, %v1503
      %v1872 = vpack.c.b16 %v1520, %v1504
      %v1873 = vpack.c.b16 %v1521, %v1505
      %v1874 = vpack.c.b16 %v1522, %v1506
      %v1875 = vpack.c.b16 %v1523, %v1507
      %v1876 = vpack.c.b16 %v1524, %v1508
      %v1877 = vpack.c.b16 %v1541, %v1525
      %v1878 = vpack.c.b16 %v1542, %v1526
      %v1879 = vpack.c.b16 %v1543, %v1527
      %v1880 = vpack.c.b16 %v1544, %v1528
      %v1881 = vpack.c.b16 %v1545, %v1529
      %v1882 = vpack.c.b16 %v1546, %v1530
      %v1883 = vpack.c.b16 %v1547, %v1531
      %v1884 = vpack.c.b16 %v1548, %v1532
      %v1885 = vpack.c.b16 %v1549, %v1533
      %v1886 = vpack.c.b16 %v1550, %v1534
      %v1887 = vpack.c.b16 %v1551, %v1535
      %v1888 = vpack.c.b16 %v1552, %v1536
      %v1889 = vpack.c.b16 %v1553, %v1537
      %v1890 = vpack.c.b16 %v1554, %v1538
      %v1891 = vpack.c.b16 %v1555, %v1539
      %v1892 = vpack.c.b16 %v1556, %v1540
      %v1893 = vpack.c.b16 %v1573, %v1557
      %v1894 = vpack.c.b16 %v1574, %v1558
      %v1895 = vpack.c.b16 %v1575, %v1559
      %v1896 = vpack.c.b16 %v1576, %v1560
      %v1897 = vpack.c.b16 %v1577, %v1561
      %v1898 = vpack.c.b16 %v1578, %v1562
      %v1899 = vpack.c.b16 %v1579, %v1563
      %v1900 = vpack.c.b16 %v1580, %v1564
      %v1901 = vpack.c.b16 %v1581, %v1565
      %v1902 = vpack.c.b16 %v1582, %v1566
      %v1903 = vpack.c.b16 %v1583, %v1567
      %v1904 = vpack.c.b16 %v1584, %v1568
      %v1905 = vpack.c.b16 %v1585, %v1569
      %v1906 = vpack.c.b16 %v1586, %v1570
      %v1907 = vpack.c.b16 %v1587, %v1571
      %v1908 = vpack.c.b16 %v1588, %v1572
      %v1909 = vpack.c.b16 %v1605, %v1589
      %v1910 = vpack.c.b16 %v1606, %v1590
      %v1911 = vpack.c.b16 %v1607, %v1591
      %v1912 = vpack.c.b16 %v1608, %v1592
      %v1913 = vpack.c.b16 %v1609, %v1593
      %v1914 = vpack.c.b16 %v1610, %v1594
      %v1915 = vpack.c.b16 %v1611, %v1595
      %v1916 = vpack.c.b16 %v1612, %v1596
      %v1917 = vpack.c.b16 %v1613, %v1597
      %v1918 = vpack.c.b16 %v1614, %v1598
      %v1919 = vpack.c.b16 %v1615, %v1599
      %v1920 = vpack.c.b16 %v1616, %v1600
      %v1921 = vpack.c.b16 %v1617, %v1601
      %v1922 = vpack.c.b16 %v1618, %v1602
      %v1923 = vpack.c.b16 %v1619, %v1603
      %v1924 = vpack.c.b16 %v1620, %v1604
      %vm2213 = vcmask 359424
      %v2215 = vsel %vm2213, %v661, 0
      %v2218 = vsel %vm2213, %v664, 0
      %v2221 = vsel %vm2213, %v667, 0
      %v2224 = vsel %vm2213, %v670, 0
      %v2227 = vsel %vm2213, %v673, 0
      %v2230 = vsel %vm2213, %v676, 0
      %v2233 = vsel %vm2213, %v679, 0
      %v2236 = vsel %vm2213, %v682, 0
      %v2239 = vsel %vm2213, %v685, 0
      %v2242 = vsel %vm2213, %v688, 0
      %vm2244 = vcmask 1045504
      %v2246 = vsel %vm2244, %v1909, 0
      %v2249 = vsel %vm2244, %v1910, 0
      %v2252 = vsel %vm2244, %v1911, 0
      %v2255 = vsel %vm2244, %v1912, 0
      %v2258 = vsel %vm2244, %v1913, 0
      %v2261 = vsel %vm2244, %v1914, 0
      %v2264 = vsel %vm2244, %v1915, 0
      %v2267 = vsel %vm2244, %v1916, 0
      %v2270 = vsel %vm2244, %v1917, 0
      %v2273 = vsel %vm2244, %v1918, 0
      %v2276 = vsel %vm2244, %v1919, 0
      %v2279 = vsel %vm2244, %v1920, 0
      %v2282 = vsel %vm2244, %v1921, 0
      %v2285 = vsel %vm2244, %v1922, 0
      %v2288 = vsel %vm2244, %v1923, 0
      %v2291 = vsel %vm2244, %v1924, 0
      %2293 = vmatprep.subr.bf16.mxu0 %v1622
      %2294 = vmatpush1.bf16.msra.mxu0 %v1621
      %2295 = vmatprep.subr.bf16.mxu0 %v1638
      %2296 = vmatpush1.bf16.msra.mxu0 %v1637
      %2297 = vmatprep.subr.bf16.mxu0 %v1654
      %2298 = vmatpush1.bf16.msra.mxu0 %v1653
      %2299 = vmatprep.subr.bf16.mxu0 %v1670
      %2300 = vmatpush1.bf16.msra.mxu0 %v1669
      %2301 = vmatprep.subr.bf16.mxu0 %v1686
      %2302 = vmatpush1.bf16.msra.mxu0 %v1685
      %2303 = vmatprep.subr.bf16.mxu0 %v1702
      %2304 = vmatpush1.bf16.msra.mxu0 %v1701
      %2305 = vmatprep.subr.bf16.mxu0 %v1718
      %2306 = vmatpush1.bf16.msra.mxu0 %v1717
      %2307 = vmatprep.subr.bf16.mxu0 %v1734
      %2308 = vmatpush1.bf16.msra.mxu0 %v1733
      %2309 = vmatprep.subr.bf16.mxu0 %v1750
      %2310 = vmatpush1.bf16.msra.mxu0 %v1749
      %2311 = vmatprep.subr.bf16.mxu0 %v1766
      %2312 = vmatpush1.bf16.msra.mxu0 %v1765
      %2313 = vmatprep.subr.bf16.mxu0 %v1782
      %2314 = vmatpush1.bf16.msra.mxu0 %v1781
      %2315 = vmatprep.subr.bf16.mxu0 %v1798
      %2316 = vmatpush1.bf16.msra.mxu0 %v1797
      %2317 = vmatprep.subr.bf16.mxu0 %v1814
      %2318 = vmatpush1.bf16.msra.mxu0 %v1813
      %2319 = vmatprep.subr.bf16.mxu0 %v1830
      %2320 = vmatpush1.bf16.msra.mxu0 %v1829
      %2321 = vmatprep.subr.bf16.mxu0 %v1846
      %2322 = vmatpush1.bf16.msra.mxu0 %v1845
      %2323 = vmatprep.subr.bf16.mxu0 %v1862
      %2324 = vmatpush1.bf16.msra.mxu0 %v1861
      %2325 = vmatprep.mubr.bf16.mxu0 %v660
      %2326 = vmatmul.mubr.bf16.gmra.mrb[0].mxu0 %v659
      %v2327 = vpop.f32.mrb[0].mxu0
      %v2328 = vadd.f32 0.0, %v2327
      %v2329 = vpop.f32.mrb[0].mxu0
      %v2330 = vadd.f32 0.0, %v2329
      %v2331 = vpop.f32.mrb[0].mxu0
      %v2332 = vadd.f32 0.0, %v2331
      %v2333 = vpop.f32.mrb[0].mxu0
      %v2334 = vadd.f32 0.0, %v2333
      %2335 = vmatprep.mubr.bf16.mxu0 %v663
      %2336 = vmatmul.mubr.bf16.gmra.mrb[0].mxu0 %v662
      %v2337 = vpop.f32.mrb[0].mxu0
      %v2338 = vadd.f32 0.0, %v2337
      %v2339 = vpop.f32.mrb[0].mxu0
      %v2340 = vadd.f32 0.0, %v2339
      %v2341 = vpop.f32.mrb[0].mxu0
      %v2342 = vadd.f32 0.0, %v2341
      %v2343 = vpop.f32.mrb[0].mxu0
      %v2344 = vadd.f32 0.0, %v2343
      %2345 = vmatprep.mubr.bf16.mxu0 %v666
      %2346 = vmatmul.mubr.bf16.gmra.mrb[0].mxu0 %v665
      %v2347 = vpop.f32.mrb[0].mxu0
      %v2348 = vadd.f32 0.0, %v2347
      %v2349 = vpop.f32.mrb[0].mxu0
      %v2350 = vadd.f32 0.0, %v2349
      %v2351 = vpop.f32.mrb[0].mxu0
      %v2352 = vadd.f32 0.0, %v2351
      %v2353 = vpop.f32.mrb[0].mxu0
      %v2354 = vadd.f32 0.0, %v2353
      %2355 = vmatprep.mubr.bf16.mxu0 %v669
      %2356 = vmatmul.mubr.bf16.gmra.mrb[0].mxu0 %v668
      %v2357 = vpop.f32.mrb[0].mxu0
      %v2358 = vadd.f32 0.0, %v2357
      %v2359 = vpop.f32.mrb[0].mxu0
      %v2360 = vadd.f32 0.0, %v2359
      %v2361 = vpop.f32.mrb[0].mxu0
      %v2362 = vadd.f32 0.0, %v2361
      %v2363 = vpop.f32.mrb[0].mxu0
      %v2364 = vadd.f32 0.0, %v2363
      %2365 = vmatprep.mubr.bf16.mxu0 %v672
      %2366 = vmatmul.mubr.bf16.gmra.mrb[0].mxu0 %v671
      %v2367 = vpop.f32.mrb[0].mxu0
      %v2368 = vadd.f32 0.0, %v2367
      %v2369 = vpop.f32.mrb[0].mxu0
      %v2370 = vadd.f32 0.0, %v2369
      %v2371 = vpop.f32.mrb[0].mxu0
      %v2372 = vadd.f32 0.0, %v2371
      %v2373 = vpop.f32.mrb[0].mxu0
      %v2374 = vadd.f32 0.0, %v2373
      %2375 = vmatprep.mubr.bf16.mxu0 %v675
      %2376 = vmatmul.mubr.bf16.gmra.mrb[0].mxu0 %v674
      %v2377 = vpop.f32.mrb[0].mxu0
      %v2378 = vadd.f32 0.0, %v2377
      %v2379 = vpop.f32.mrb[0].mxu0
      %v2380 = vadd.f32 0.0, %v2379
      %v2381 = vpop.f32.mrb[0].mxu0
      %v2382 = vadd.f32 0.0, %v2381
      %v2383 = vpop.f32.mrb[0].mxu0
      %v2384 = vadd.f32 0.0, %v2383
      %2385 = vmatprep.mubr.bf16.mxu0 %v678
      %2386 = vmatmul.mubr.bf16.gmra.mrb[0].mxu0 %v677
      %v2387 = vpop.f32.mrb[0].mxu0
      %v2388 = vadd.f32 0.0, %v2387
      %v2389 = vpop.f32.mrb[0].mxu0
      %v2390 = vadd.f32 0.0, %v2389
      %v2391 = vpop.f32.mrb[0].mxu0
      %v2392 = vadd.f32 0.0, %v2391
      %v2393 = vpop.f32.mrb[0].mxu0
      %v2394 = vadd.f32 0.0, %v2393
      %2395 = vmatprep.mubr.bf16.mxu0 %v681
      %2396 = vmatmul.mubr.bf16.gmra.mrb[0].mxu0 %v680
      %v2397 = vpop.f32.mrb[0].mxu0
      %v2398 = vadd.f32 0.0, %v2397
      %v2399 = vpop.f32.mrb[0].mxu0
      %v2400 = vadd.f32 0.0, %v2399
      %v2401 = vpop.f32.mrb[0].mxu0
      %v2402 = vadd.f32 0.0, %v2401
      %v2403 = vpop.f32.mrb[0].mxu0
      %v2404 = vadd.f32 0.0, %v2403
      %2405 = vmatprep.mubr.bf16.mxu0 %v684
      %2406 = vmatmul.mubr.bf16.gmra.mrb[0].mxu0 %v683
      %v2407 = vpop.f32.mrb[0].mxu0
      %v2408 = vadd.f32 0.0, %v2407
      %v2409 = vpop.f32.mrb[0].mxu0
      %v2410 = vadd.f32 0.0, %v2409
      %v2411 = vpop.f32.mrb[0].mxu0
      %v2412 = vadd.f32 0.0, %v2411
      %v2413 = vpop.f32.mrb[0].mxu0
      %v2414 = vadd.f32 0.0, %v2413
      %2415 = vmatprep.mubr.bf16.mxu0 %v687
      %2416 = vmatmul.mubr.bf16.gmra.mrb[0].mxu0 %v686
      %v2417 = vpop.f32.mrb[0].mxu0
      %v2418 = vadd.f32 0.0, %v2417
      %v2419 = vpop.f32.mrb[0].mxu0
      %v2420 = vadd.f32 0.0, %v2419
      %v2421 = vpop.f32.mrb[0].mxu0
      %v2422 = vpop.f32.mrb[0].mxu0
      %2423 = vdwg.mxu0
      %2424 = vmatprep.subr.bf16.mxu0 %v1878
      %2425 = vmatpush1.bf16.msra.mxu0 %v1877
      %2426 = vmatprep.subr.bf16.mxu0 %v1894
      %2427 = vmatpush1.bf16.msra.mxu0 %v1893
      %2428 = vmatprep.subr.bf16.mxu0 %v2249
      %2429 = vmatpush1.bf16.msra.mxu0 %v2246
      %2430 = vmatprep.subr.bf16.mxu0 0
      %2431 = vmatpush1.bf16.msra.mxu0 0
      %2432 = vmatprep.subr.bf16.mxu0 0
      %2433 = vmatpush1.bf16.msra.mxu0 0
      %2434 = vmatprep.subr.bf16.mxu0 0
      %2435 = vmatpush1.bf16.msra.mxu0 0
      %2436 = vmatprep.subr.bf16.mxu0 0
      %2437 = vmatpush1.bf16.msra.mxu0 0
      %2438 = vmatprep.subr.bf16.mxu0 0
      %2439 = vmatpush1.bf16.msra.mxu0 0
      %2440 = vmatprep.subr.bf16.mxu0 0
      %2441 = vmatpush1.bf16.msra.mxu0 0
      %2442 = vmatprep.subr.bf16.mxu0 0
      %2443 = vmatpush1.bf16.msra.mxu0 0
      %2444 = vmatprep.subr.bf16.mxu0 0
      %2445 = vmatpush1.bf16.msra.mxu0 0
      %2446 = vmatprep.subr.bf16.mxu0 0
      %2447 = vmatpush1.bf16.msra.mxu0 0
      %2448 = vmatprep.subr.bf16.mxu0 0
      %2449 = vmatpush1.bf16.msra.mxu0 0
      %2450 = vmatprep.subr.bf16.mxu0 0
      %2451 = vmatpush1.bf16.msra.mxu0 0
      %2452 = vmatprep.subr.bf16.mxu0 0
      %2453 = vmatpush1.bf16.msra.mxu0 0
      %2454 = vmatprep.subr.bf16.mxu0 0
      %2455 = vmatpush1.bf16.msra.mxu0 0
      %2456 = vmatprep.mubr.bf16.mxu0 0
      %2457 = vmatmul.mubr.bf16.gmra.mrb[0].mxu0 %v2215
      %v2458 = vpop.f32.mrb[0].mxu0
      %v2459 = vadd.f32 %v2328, %v2458
      %v2460 = vpop.f32.mrb[0].mxu0
      %v2461 = vadd.f32 %v2330, %v2460
      %v2462 = vpop.f32.mrb[0].mxu0
      %v2463 = vadd.f32 %v2332, %v2462
      %v2464 = vpop.f32.mrb[0].mxu0
      %v2465 = vadd.f32 %v2334, %v2464
      %2466 = vmatprep.mubr.bf16.mxu0 0
      %2467 = vmatmul.mubr.bf16.gmra.mrb[0].mxu0 %v2218
      %v2468 = vpop.f32.mrb[0].mxu0
      %v2469 = vadd.f32 %v2338, %v2468
      %v2470 = vpop.f32.mrb[0].mxu0
      %v2471 = vadd.f32 %v2340, %v2470
      %v2472 = vpop.f32.mrb[0].mxu0
      %v2473 = vadd.f32 %v2342, %v2472
      %v2474 = vpop.f32.mrb[0].mxu0
      %v2475 = vadd.f32 %v2344, %v2474
      %2476 = vmatprep.mubr.bf16.mxu0 0
      %2477 = vmatmul.mubr.bf16.gmra.mrb[0].mxu0 %v2221
      %v2478 = vpop.f32.mrb[0].mxu0
      %v2479 = vadd.f32 %v2348, %v2478
      %v2480 = vpop.f32.mrb[0].mxu0
      %v2481 = vadd.f32 %v2350, %v2480
      %v2482 = vpop.f32.mrb[0].mxu0
      %v2483 = vadd.f32 %v2352, %v2482
      %v2484 = vpop.f32.mrb[0].mxu0
      %v2485 = vadd.f32 %v2354, %v2484
      %2486 = vmatprep.mubr.bf16.mxu0 0
      %2487 = vmatmul.mubr.bf16.gmra.mrb[0].mxu0 %v2224
      %v2488 = vpop.f32.mrb[0].mxu0
      %v2489 = vadd.f32 %v2358, %v2488
      %v2490 = vpop.f32.mrb[0].mxu0
      %v2491 = vadd.f32 %v2360, %v2490
      %v2492 = vpop.f32.mrb[0].mxu0
      %v2493 = vadd.f32 %v2362, %v2492
      %v2494 = vpop.f32.mrb[0].mxu0
      %v2495 = vadd.f32 %v2364, %v2494
      %2496 = vmatprep.mubr.bf16.mxu0 0
      %2497 = vmatmul.mubr.bf16.gmra.mrb[0].mxu0 %v2227
      %v2498 = vpop.f32.mrb[0].mxu0
      %v2499 = vadd.f32 %v2368, %v2498
      %v2500 = vpop.f32.mrb[0].mxu0
      %v2501 = vadd.f32 %v2370, %v2500
      %v2502 = vpop.f32.mrb[0].mxu0
      %v2503 = vadd.f32 %v2372, %v2502
      %v2504 = vpop.f32.mrb[0].mxu0
      %v2505 = vadd.f32 %v2374, %v2504
      %2506 = vmatprep.mubr.bf16.mxu0 0
      %2507 = vmatmul.mubr.bf16.gmra.mrb[0].mxu0 %v2230
      %v2508 = vpop.f32.mrb[0].mxu0
      %v2509 = vadd.f32 %v2378, %v2508
      %v2510 = vpop.f32.mrb[0].mxu0
      %v2511 = vadd.f32 %v2380, %v2510
      %v2512 = vpop.f32.mrb[0].mxu0
      %v2513 = vadd.f32 %v2382, %v2512
      %v2514 = vpop.f32.mrb[0].mxu0
      %v2515 = vadd.f32 %v2384, %v2514
      %2516 = vmatprep.mubr.bf16.mxu0 0
      %2517 = vmatmul.mubr.bf16.gmra.mrb[0].mxu0 %v2233
      %v2518 = vpop.f32.mrb[0].mxu0
      %v2519 = vadd.f32 %v2388, %v2518
      %v2520 = vpop.f32.mrb[0].mxu0
      %v2521 = vadd.f32 %v2390, %v2520
      %v2522 = vpop.f32.mrb[0].mxu0
      %v2523 = vadd.f32 %v2392, %v2522
      %v2524 = vpop.f32.mrb[0].mxu0
      %v2525 = vadd.f32 %v2394, %v2524
      %2526 = vmatprep.mubr.bf16.mxu0 0
      %2527 = vmatmul.mubr.bf16.gmra.mrb[0].mxu0 %v2236
      %v2528 = vpop.f32.mrb[0].mxu0
      %v2529 = vadd.f32 %v2398, %v2528
      %v2530 = vpop.f32.mrb[0].mxu0
      %v2531 = vadd.f32 %v2400, %v2530
      %v2532 = vpop.f32.mrb[0].mxu0
      %v2533 = vadd.f32 %v2402, %v2532
      %v2534 = vpop.f32.mrb[0].mxu0
      %v2535 = vadd.f32 %v2404, %v2534
      %2536 = vmatprep.mubr.bf16.mxu0 0
      %2537 = vmatmul.mubr.bf16.gmra.mrb[0].mxu0 %v2239
      %v2538 = vpop.f32.mrb[0].mxu0
      %v2539 = vadd.f32 %v2408, %v2538
      %v2540 = vpop.f32.mrb[0].mxu0
      %v2541 = vadd.f32 %v2410, %v2540
      %v2542 = vpop.f32.mrb[0].mxu0
      %v2543 = vadd.f32 %v2412, %v2542
      %v2544 = vpop.f32.mrb[0].mxu0
      %v2545 = vadd.f32 %v2414, %v2544
      %2546 = vmatprep.mubr.bf16.mxu0 0
      %2547 = vmatmul.mubr.bf16.gmra.mrb[0].mxu0 %v2242
      %v2548 = vpop.f32.mrb[0].mxu0
      %v2549 = vadd.f32 %v2418, %v2548
      %v2550 = vpop.f32.mrb[0].mxu0
      %v2551 = vadd.f32 %v2420, %v2550
      %v2552 = vpop.f32.mrb[0].mxu0
      %v2553 = vpop.f32.mrb[0].mxu0
      %2554 = vdwg.mxu0
      %2555 = vmatprep.subr.bf16.mxu0 %v1624
      %2556 = vmatpush1.bf16.msra.mxu0 %v1623
      %2557 = vmatprep.subr.bf16.mxu0 %v1640
      %2558 = vmatpush1.bf16.msra.mxu0 %v1639
      %2559 = vmatprep.subr.bf16.mxu0 %v1656
      %2560 = vmatpush1.bf16.msra.mxu0 %v1655
      %2561 = vmatprep.subr.bf16.mxu0 %v1672
      %2562 = vmatpush1.bf16.msra.mxu0 %v1671
      %2563 = vmatprep.subr.bf16.mxu0 %v1688
      %2564 = vmatpush1.bf16.msra.mxu0 %v1687
      %2565 = vmatprep.subr.bf16.mxu0 %v1704
      %2566 = vmatpush1.bf16.msra.mxu0 %v1703
      %2567 = vmatprep.subr.bf16.mxu0 %v1720
      %2568 = vmatpush1.bf16.msra.mxu0 %v1719
      %2569 = vmatprep.subr.bf16.mxu0 %v1736
      %2570 = vmatpush1.bf16.msra.mxu0 %v1735
      %2571 = vmatprep.subr.bf16.mxu0 %v1752
      %2572 = vmatpush1.bf16.msra.mxu0 %v1751
      %2573 = vmatprep.subr.bf16.mxu0 %v1768
      %2574 = vmatpush1.bf16.msra.mxu0 %v1767
      %2575 = vmatprep.subr.bf16.mxu0 %v1784
      %2576 = vmatpush1.bf16.msra.mxu0 %v1783
      %2577 = vmatprep.subr.bf16.mxu0 %v1800
      %2578 = vmatpush1.bf16.msra.mxu0 %v1799
      %2579 = vmatprep.subr.bf16.mxu0 %v1816
      %2580 = vmatpush1.bf16.msra.mxu0 %v1815
      %2581 = vmatprep.subr.bf16.mxu0 %v1832
      %2582 = vmatpush1.bf16.msra.mxu0 %v1831
      %2583 = vmatprep.subr.bf16.mxu0 %v1848
      %2584 = vmatpush1.bf16.msra.mxu0 %v1847
      %2585 = vmatprep.subr.bf16.mxu0 %v1864
      %2586 = vmatpush1.bf16.msra.mxu0 %v1863
      %2587 = vmatprep.mubr.bf16.mxu0 %v660
      %2588 = vmatmul.mubr.bf16.gmra.mrb[0].mxu0 %v659
      %v2589 = vpop.f32.mrb[0].mxu0
      %v2590 = vadd.f32 0.0, %v2589
      %v2591 = vpop.f32.mrb[0].mxu0
      %v2592 = vadd.f32 0.0, %v2591
      %v2593 = vpop.f32.mrb[0].mxu0
      %v2594 = vadd.f32 0.0, %v2593
      %v2595 = vpop.f32.mrb[0].mxu0
      %v2596 = vadd.f32 0.0, %v2595
      %2597 = vmatprep.mubr.bf16.mxu0 %v663
      %2598 = vmatmul.mubr.bf16.gmra.mrb[0].mxu0 %v662
      %v2599 = vpop.f32.mrb[0].mxu0
      %v2600 = vadd.f32 0.0, %v2599
      %v2601 = vpop.f32.mrb[0].mxu0
      %v2602 = vadd.f32 0.0, %v2601
      %v2603 = vpop.f32.mrb[0].mxu0
      %v2604 = vadd.f32 0.0, %v2603
      %v2605 = vpop.f32.mrb[0].mxu0
      %v2606 = vadd.f32 0.0, %v2605
      %2607 = vmatprep.mubr.bf16.mxu0 %v666
      %2608 = vmatmul.mubr.bf16.gmra.mrb[0].mxu0 %v665
      %v2609 = vpop.f32.mrb[0].mxu0
      %v2610 = vadd.f32 0.0, %v2609
      %v2611 = vpop.f32.mrb[0].mxu0
      %v2612 = vadd.f32 0.0, %v2611
      %v2613 = vpop.f32.mrb[0].mxu0
      %v2614 = vadd.f32 0.0, %v2613
      %v2615 = vpop.f32.mrb[0].mxu0
      %v2616 = vadd.f32 0.0, %v2615
      %2617 = vmatprep.mubr.bf16.mxu0 %v669
      %2618 = vmatmul.mubr.bf16.gmra.mrb[0].mxu0 %v668
      %v2619 = vpop.f32.mrb[0].mxu0
      %v2620 = vadd.f32 0.0, %v2619
      %v2621 = vpop.f32.mrb[0].mxu0
      %v2622 = vadd.f32 0.0, %v2621
      %v2623 = vpop.f32.mrb[0].mxu0
      %v2624 = vadd.f32 0.0, %v2623
      %v2625 = vpop.f32.mrb[0].mxu0
      %v2626 = vadd.f32 0.0, %v2625
      %2627 = vmatprep.mubr.bf16.mxu0 %v672
      %2628 = vmatmul.mubr.bf16.gmra.mrb[0].mxu0 %v671
      %v2629 = vpop.f32.mrb[0].mxu0
      %v2630 = vadd.f32 0.0, %v2629
      %v2631 = vpop.f32.mrb[0].mxu0
      %v2632 = vadd.f32 0.0, %v2631
      %v2633 = vpop.f32.mrb[0].mxu0
      %v2634 = vadd.f32 0.0, %v2633
      %v2635 = vpop.f32.mrb[0].mxu0
      %v2636 = vadd.f32 0.0, %v2635
      %2637 = vmatprep.mubr.bf16.mxu0 %v675
      %2638 = vmatmul.mubr.bf16.gmra.mrb[0].mxu0 %v674
      %v2639 = vpop.f32.mrb[0].mxu0
      %v2640 = vadd.f32 0.0, %v2639
      %v2641 = vpop.f32.mrb[0].mxu0
      %v2642 = vadd.f32 0.0, %v2641
      %v2643 = vpop.f32.mrb[0].mxu0
      %v2644 = vadd.f32 0.0, %v2643
      %v2645 = vpop.f32.mrb[0].mxu0
      %v2646 = vadd.f32 0.0, %v2645
      %2647 = vmatprep.mubr.bf16.mxu0 %v678
      %2648 = vmatmul.mubr.bf16.gmra.mrb[0].mxu0 %v677
      %v2649 = vpop.f32.mrb[0].mxu0
      %v2650 = vadd.f32 0.0, %v2649
      %v2651 = vpop.f32.mrb[0].mxu0
      %v2652 = vadd.f32 0.0, %v2651
      %v2653 = vpop.f32.mrb[0].mxu0
      %v2654 = vadd.f32 0.0, %v2653
      %v2655 = vpop.f32.mrb[0].mxu0
      %v2656 = vadd.f32 0.0, %v2655
      %2657 = vmatprep.mubr.bf16.mxu0 %v681
      %2658 = vmatmul.mubr.bf16.gmra.mrb[0].mxu0 %v680
      %v2659 = vpop.f32.mrb[0].mxu0
      %v2660 = vadd.f32 0.0, %v2659
      %v2661 = vpop.f32.mrb[0].mxu0
      %v2662 = vadd.f32 0.0, %v2661
      %v2663 = vpop.f32.mrb[0].mxu0
      %v2664 = vadd.f32 0.0, %v2663
      %v2665 = vpop.f32.mrb[0].mxu0
      %v2666 = vadd.f32 0.0, %v2665
      %2667 = vmatprep.mubr.bf16.mxu0 %v684
      %2668 = vmatmul.mubr.bf16.gmra.mrb[0].mxu0 %v683
      %v2669 = vpop.f32.mrb[0].mxu0
      %v2670 = vadd.f32 0.0, %v2669
      %v2671 = vpop.f32.mrb[0].mxu0
      %v2672 = vadd.f32 0.0, %v2671
      %v2673 = vpop.f32.mrb[0].mxu0
      %v2674 = vadd.f32 0.0, %v2673
      %v2675 = vpop.f32.mrb[0].mxu0
      %v2676 = vadd.f32 0.0, %v2675
      %2677 = vmatprep.mubr.bf16.mxu0 %v687
      %2678 = vmatmul.mubr.bf16.gmra.mrb[0].mxu0 %v686
      %v2679 = vpop.f32.mrb[0].mxu0
      %v2680 = vadd.f32 0.0, %v2679
      %v2681 = vpop.f32.mrb[0].mxu0
      %v2682 = vadd.f32 0.0, %v2681
      %v2683 = vpop.f32.mrb[0].mxu0
      %v2684 = vpop.f32.mrb[0].mxu0
      %2685 = vdwg.mxu0
      %2686 = vmatprep.subr.bf16.mxu0 %v1880
      %2687 = vmatpush1.bf16.msra.mxu0 %v1879
      %2688 = vmatprep.subr.bf16.mxu0 %v1896
      %2689 = vmatpush1.bf16.msra.mxu0 %v1895
      %2690 = vmatprep.subr.bf16.mxu0 %v2255
      %2691 = vmatpush1.bf16.msra.mxu0 %v2252
      %2692 = vmatprep.subr.bf16.mxu0 0
      %2693 = vmatpush1.bf16.msra.mxu0 0
      %2694 = vmatprep.subr.bf16.mxu0 0
      %2695 = vmatpush1.bf16.msra.mxu0 0
      %2696 = vmatprep.subr.bf16.mxu0 0
      %2697 = vmatpush1.bf16.msra.mxu0 0
      %2698 = vmatprep.subr.bf16.mxu0 0
      %2699 = vmatpush1.bf16.msra.mxu0 0
      %2700 = vmatprep.subr.bf16.mxu0 0
      %2701 = vmatpush1.bf16.msra.mxu0 0
      %2702 = vmatprep.subr.bf16.mxu0 0
      %2703 = vmatpush1.bf16.msra.mxu0 0
      %2704 = vmatprep.subr.bf16.mxu0 0
      %2705 = vmatpush1.bf16.msra.mxu0 0
      %2706 = vmatprep.subr.bf16.mxu0 0
      %2707 = vmatpush1.bf16.msra.mxu0 0
      %2708 = vmatprep.subr.bf16.mxu0 0
      %2709 = vmatpush1.bf16.msra.mxu0 0
      %2710 = vmatprep.subr.bf16.mxu0 0
      %2711 = vmatpush1.bf16.msra.mxu0 0
      %2712 = vmatprep.subr.bf16.mxu0 0
      %2713 = vmatpush1.bf16.msra.mxu0 0
      %2714 = vmatprep.subr.bf16.mxu0 0
      %2715 = vmatpush1.bf16.msra.mxu0 0
      %2716 = vmatprep.subr.bf16.mxu0 0
      %2717 = vmatpush1.bf16.msra.mxu0 0
      %2718 = vmatprep.mubr.bf16.mxu0 0
      %2719 = vmatmul.mubr.bf16.gmra.mrb[0].mxu0 %v2215
      %v2720 = vpop.f32.mrb[0].mxu0
      %v2721 = vadd.f32 %v2590, %v2720
      %v2722 = vpop.f32.mrb[0].mxu0
      %v2723 = vadd.f32 %v2592, %v2722
      %v2724 = vpop.f32.mrb[0].mxu0
      %v2725 = vadd.f32 %v2594, %v2724
      %v2726 = vpop.f32.mrb[0].mxu0
      %v2727 = vadd.f32 %v2596, %v2726
      %2728 = vmatprep.mubr.bf16.mxu0 0
      %2729 = vmatmul.mubr.bf16.gmra.mrb[0].mxu0 %v2218
      %v2730 = vpop.f32.mrb[0].mxu0
      %v2731 = vadd.f32 %v2600, %v2730
      %v2732 = vpop.f32.mrb[0].mxu0
      %v2733 = vadd.f32 %v2602, %v2732
      %v2734 = vpop.f32.mrb[0].mxu0
      %v2735 = vadd.f32 %v2604, %v2734
      %v2736 = vpop.f32.mrb[0].mxu0
      %v2737 = vadd.f32 %v2606, %v2736
      %2738 = vmatprep.mubr.bf16.mxu0 0
      %2739 = vmatmul.mubr.bf16.gmra.mrb[0].mxu0 %v2221
      %v2740 = vpop.f32.mrb[0].mxu0
      %v2741 = vadd.f32 %v2610, %v2740
      %v2742 = vpop.f32.mrb[0].mxu0
      %v2743 = vadd.f32 %v2612, %v2742
      %v2744 = vpop.f32.mrb[0].mxu0
      %v2745 = vadd.f32 %v2614, %v2744
      %v2746 = vpop.f32.mrb[0].mxu0
      %v2747 = vadd.f32 %v2616, %v2746
      %2748 = vmatprep.mubr.bf16.mxu0 0
      %2749 = vmatmul.mubr.bf16.gmra.mrb[0].mxu0 %v2224
      %v2750 = vpop.f32.mrb[0].mxu0
      %v2751 = vadd.f32 %v2620, %v2750
      %v2752 = vpop.f32.mrb[0].mxu0
      %v2753 = vadd.f32 %v2622, %v2752
      %v2754 = vpop.f32.mrb[0].mxu0
      %v2755 = vadd.f32 %v2624, %v2754
      %v2756 = vpop.f32.mrb[0].mxu0
      %v2757 = vadd.f32 %v2626, %v2756
      %2758 = vmatprep.mubr.bf16.mxu0 0
      %2759 = vmatmul.mubr.bf16.gmra.mrb[0].mxu0 %v2227
      %v2760 = vpop.f32.mrb[0].mxu0
      %v2761 = vadd.f32 %v2630, %v2760
      %v2762 = vpop.f32.mrb[0].mxu0
      %v2763 = vadd.f32 %v2632, %v2762
      %v2764 = vpop.f32.mrb[0].mxu0
      %v2765 = vadd.f32 %v2634, %v2764
      %v2766 = vpop.f32.mrb[0].mxu0
      %v2767 = vadd.f32 %v2636, %v2766
      %2768 = vmatprep.mubr.bf16.mxu0 0
      %2769 = vmatmul.mubr.bf16.gmra.mrb[0].mxu0 %v2230
      %v2770 = vpop.f32.mrb[0].mxu0
      %v2771 = vadd.f32 %v2640, %v2770
      %v2772 = vpop.f32.mrb[0].mxu0
      %v2773 = vadd.f32 %v2642, %v2772
      %v2774 = vpop.f32.mrb[0].mxu0
      %v2775 = vadd.f32 %v2644, %v2774
      %v2776 = vpop.f32.mrb[0].mxu0
      %v2777 = vadd.f32 %v2646, %v2776
      %2778 = vmatprep.mubr.bf16.mxu0 0
      %2779 = vmatmul.mubr.bf16.gmra.mrb[0].mxu0 %v2233
      %v2780 = vpop.f32.mrb[0].mxu0
      %v2781 = vadd.f32 %v2650, %v2780
      %v2782 = vpop.f32.mrb[0].mxu0
      %v2783 = vadd.f32 %v2652, %v2782
      %v2784 = vpop.f32.mrb[0].mxu0
      %v2785 = vadd.f32 %v2654, %v2784
      %v2786 = vpop.f32.mrb[0].mxu0
      %v2787 = vadd.f32 %v2656, %v2786
      %2788 = vmatprep.mubr.bf16.mxu0 0
      %2789 = vmatmul.mubr.bf16.gmra.mrb[0].mxu0 %v2236
      %v2790 = vpop.f32.mrb[0].mxu0
      %v2791 = vadd.f32 %v2660, %v2790
      %v2792 = vpop.f32.mrb[0].mxu0
      %v2793 = vadd.f32 %v2662, %v2792
      %v2794 = vpop.f32.mrb[0].mxu0
      %v2795 = vadd.f32 %v2664, %v2794
      %v2796 = vpop.f32.mrb[0].mxu0
      %v2797 = vadd.f32 %v2666, %v2796
      %2798 = vmatprep.mubr.bf16.mxu0 0
      %2799 = vmatmul.mubr.bf16.gmra.mrb[0].mxu0 %v2239
      %v2800 = vpop.f32.mrb[0].mxu0
      %v2801 = vadd.f32 %v2670, %v2800
      %v2802 = vpop.f32.mrb[0].mxu0
      %v2803 = vadd.f32 %v2672, %v2802
      %v2804 = vpop.f32.mrb[0].mxu0
      %v2805 = vadd.f32 %v2674, %v2804
      %v2806 = vpop.f32.mrb[0].mxu0
      %v2807 = vadd.f32 %v2676, %v2806
      %2808 = vmatprep.mubr.bf16.mxu0 0
      %2809 = vmatmul.mubr.bf16.gmra.mrb[0].mxu0 %v2242
      %v2810 = vpop.f32.mrb[0].mxu0
      %v2811 = vadd.f32 %v2680, %v2810
      %v2812 = vpop.f32.mrb[0].mxu0
      %v2813 = vadd.f32 %v2682, %v2812
      %v2814 = vpop.f32.mrb[0].mxu0
      %v2815 = vpop.f32.mrb[0].mxu0
      %2816 = vdwg.mxu0
      %2817 = vmatprep.subr.bf16.mxu0 %v1626
      %2818 = vmatpush1.bf16.msra.mxu0 %v1625
      %2819 = vmatprep.subr.bf16.mxu0 %v1642
      %2820 = vmatpush1.bf16.msra.mxu0 %v1641
      %2821 = vmatprep.subr.bf16.mxu0 %v1658
      %2822 = vmatpush1.bf16.msra.mxu0 %v1657
      %2823 = vmatprep.subr.bf16.mxu0 %v1674
      %2824 = vmatpush1.bf16.msra.mxu0 %v1673
      %2825 = vmatprep.subr.bf16.mxu0 %v1690
      %2826 = vmatpush1.bf16.msra.mxu0 %v1689
      %2827 = vmatprep.subr.bf16.mxu0 %v1706
      %2828 = vmatpush1.bf16.msra.mxu0 %v1705
      %2829 = vmatprep.subr.bf16.mxu0 %v1722
      %2830 = vmatpush1.bf16.msra.mxu0 %v1721
      %2831 = vmatprep.subr.bf16.mxu0 %v1738
      %2832 = vmatpush1.bf16.msra.mxu0 %v1737
      %2833 = vmatprep.subr.bf16.mxu0 %v1754
      %2834 = vmatpush1.bf16.msra.mxu0 %v1753
      %2835 = vmatprep.subr.bf16.mxu0 %v1770
      %2836 = vmatpush1.bf16.msra.mxu0 %v1769
      %2837 = vmatprep.subr.bf16.mxu0 %v1786
      %2838 = vmatpush1.bf16.msra.mxu0 %v1785
      %2839 = vmatprep.subr.bf16.mxu0 %v1802
      %2840 = vmatpush1.bf16.msra.mxu0 %v1801
      %2841 = vmatprep.subr.bf16.mxu0 %v1818
      %2842 = vmatpush1.bf16.msra.mxu0 %v1817
      %2843 = vmatprep.subr.bf16.mxu0 %v1834
      %2844 = vmatpush1.bf16.msra.mxu0 %v1833
      %2845 = vmatprep.subr.bf16.mxu0 %v1850
      %2846 = vmatpush1.bf16.msra.mxu0 %v1849
      %2847 = vmatprep.subr.bf16.mxu0 %v1866
      %2848 = vmatpush1.bf16.msra.mxu0 %v1865
      %2849 = vmatprep.mubr.bf16.mxu0 %v660
      %2850 = vmatmul.mubr.bf16.gmra.mrb[0].mxu0 %v659
      %v2851 = vpop.f32.mrb[0].mxu0
      %v2852 = vadd.f32 0.0, %v2851
      %v2853 = vpop.f32.mrb[0].mxu0
      %v2854 = vadd.f32 0.0, %v2853
      %v2855 = vpop.f32.mrb[0].mxu0
      %v2856 = vadd.f32 0.0, %v2855
      %v2857 = vpop.f32.mrb[0].mxu0
      %v2858 = vadd.f32 0.0, %v2857
      %2859 = vmatprep.mubr.bf16.mxu0 %v663
      %2860 = vmatmul.mubr.bf16.gmra.mrb[0].mxu0 %v662
      %v2861 = vpop.f32.mrb[0].mxu0
      %v2862 = vadd.f32 0.0, %v2861
      %v2863 = vpop.f32.mrb[0].mxu0
      %v2864 = vadd.f32 0.0, %v2863
      %v2865 = vpop.f32.mrb[0].mxu0
      %v2866 = vadd.f32 0.0, %v2865
      %v2867 = vpop.f32.mrb[0].mxu0
      %v2868 = vadd.f32 0.0, %v2867
      %2869 = vmatprep.mubr.bf16.mxu0 %v666
      %2870 = vmatmul.mubr.bf16.gmra.mrb[0].mxu0 %v665
      %v2871 = vpop.f32.mrb[0].mxu0
      %v2872 = vadd.f32 0.0, %v2871
      %v2873 = vpop.f32.mrb[0].mxu0
      %v2874 = vadd.f32 0.0, %v2873
      %v2875 = vpop.f32.mrb[0].mxu0
      %v2876 = vadd.f32 0.0, %v2875
      %v2877 = vpop.f32.mrb[0].mxu0
      %v2878 = vadd.f32 0.0, %v2877
      %2879 = vmatprep.mubr.bf16.mxu0 %v669
      %2880 = vmatmul.mubr.bf16.gmra.mrb[0].mxu0 %v668
      %v2881 = vpop.f32.mrb[0].mxu0
      %v2882 = vadd.f32 0.0, %v2881
      %v2883 = vpop.f32.mrb[0].mxu0
      %v2884 = vadd.f32 0.0, %v2883
      %v2885 = vpop.f32.mrb[0].mxu0
      %v2886 = vadd.f32 0.0, %v2885
      %v2887 = vpop.f32.mrb[0].mxu0
      %v2888 = vadd.f32 0.0, %v2887
      %2889 = vmatprep.mubr.bf16.mxu0 %v672
      %2890 = vmatmul.mubr.bf16.gmra.mrb[0].mxu0 %v671
      %v2891 = vpop.f32.mrb[0].mxu0
      %v2892 = vadd.f32 0.0, %v2891
      %v2893 = vpop.f32.mrb[0].mxu0
      %v2894 = vadd.f32 0.0, %v2893
      %v2895 = vpop.f32.mrb[0].mxu0
      %v2896 = vadd.f32 0.0, %v2895
      %v2897 = vpop.f32.mrb[0].mxu0
      %v2898 = vadd.f32 0.0, %v2897
      %2899 = vmatprep.mubr.bf16.mxu0 %v675
      %2900 = vmatmul.mubr.bf16.gmra.mrb[0].mxu0 %v674
      %v2901 = vpop.f32.mrb[0].mxu0
      %v2902 = vadd.f32 0.0, %v2901
      %v2903 = vpop.f32.mrb[0].mxu0
      %v2904 = vadd.f32 0.0, %v2903
      %v2905 = vpop.f32.mrb[0].mxu0
      %v2906 = vadd.f32 0.0, %v2905
      %v2907 = vpop.f32.mrb[0].mxu0
      %v2908 = vadd.f32 0.0, %v2907
      %2909 = vmatprep.mubr.bf16.mxu0 %v678
      %2910 = vmatmul.mubr.bf16.gmra.mrb[0].mxu0 %v677
      %v2911 = vpop.f32.mrb[0].mxu0
      %v2912 = vadd.f32 0.0, %v2911
      %v2913 = vpop.f32.mrb[0].mxu0
      %v2914 = vadd.f32 0.0, %v2913
      %v2915 = vpop.f32.mrb[0].mxu0
      %v2916 = vadd.f32 0.0, %v2915
      %v2917 = vpop.f32.mrb[0].mxu0
      %v2918 = vadd.f32 0.0, %v2917
      %2919 = vmatprep.mubr.bf16.mxu0 %v681
      %2920 = vmatmul.mubr.bf16.gmra.mrb[0].mxu0 %v680
      %v2921 = vpop.f32.mrb[0].mxu0
      %v2922 = vadd.f32 0.0, %v2921
      %v2923 = vpop.f32.mrb[0].mxu0
      %v2924 = vadd.f32 0.0, %v2923
      %v2925 = vpop.f32.mrb[0].mxu0
      %v2926 = vadd.f32 0.0, %v2925
      %v2927 = vpop.f32.mrb[0].mxu0
      %v2928 = vadd.f32 0.0, %v2927
      %2929 = vmatprep.mubr.bf16.mxu0 %v684
      %2930 = vmatmul.mubr.bf16.gmra.mrb[0].mxu0 %v683
      %v2931 = vpop.f32.mrb[0].mxu0
      %v2932 = vadd.f32 0.0, %v2931
      %v2933 = vpop.f32.mrb[0].mxu0
      %v2934 = vadd.f32 0.0, %v2933
      %v2935 = vpop.f32.mrb[0].mxu0
      %v2936 = vadd.f32 0.0, %v2935
      %v2937 = vpop.f32.mrb[0].mxu0
      %v2938 = vadd.f32 0.0, %v2937
      %2939 = vmatprep.mubr.bf16.mxu0 %v687
      %2940 = vmatmul.mubr.bf16.gmra.mrb[0].mxu0 %v686
      %v2941 = vpop.f32.mrb[0].mxu0
      %v2942 = vadd.f32 0.0, %v2941
      %v2943 = vpop.f32.mrb[0].mxu0
      %v2944 = vadd.f32 0.0, %v2943
      %v2945 = vpop.f32.mrb[0].mxu0
      %v2946 = vpop.f32.mrb[0].mxu0
      %2947 = vdwg.mxu0
      %2948 = vmatprep.subr.bf16.mxu0 %v1882
      %2949 = vmatpush1.bf16.msra.mxu0 %v1881
      %2950 = vmatprep.subr.bf16.mxu0 %v1898
      %2951 = vmatpush1.bf16.msra.mxu0 %v1897
      %2952 = vmatprep.subr.bf16.mxu0 %v2261
      %2953 = vmatpush1.bf16.msra.mxu0 %v2258
      %2954 = vmatprep.subr.bf16.mxu0 0
      %2955 = vmatpush1.bf16.msra.mxu0 0
      %2956 = vmatprep.subr.bf16.mxu0 0
      %2957 = vmatpush1.bf16.msra.mxu0 0
      %2958 = vmatprep.subr.bf16.mxu0 0
      %2959 = vmatpush1.bf16.msra.mxu0 0
      %2960 = vmatprep.subr.bf16.mxu0 0
      %2961 = vmatpush1.bf16.msra.mxu0 0
      %2962 = vmatprep.subr.bf16.mxu0 0
      %2963 = vmatpush1.bf16.msra.mxu0 0
      %2964 = vmatprep.subr.bf16.mxu0 0
      %2965 = vmatpush1.bf16.msra.mxu0 0
      %2966 = vmatprep.subr.bf16.mxu0 0
      %2967 = vmatpush1.bf16.msra.mxu0 0
      %2968 = vmatprep.subr.bf16.mxu0 0
      %2969 = vmatpush1.bf16.msra.mxu0 0
      %2970 = vmatprep.subr.bf16.mxu0 0
      %2971 = vmatpush1.bf16.msra.mxu0 0
      %2972 = vmatprep.subr.bf16.mxu0 0
      %2973 = vmatpush1.bf16.msra.mxu0 0
      %2974 = vmatprep.subr.bf16.mxu0 0
      %2975 = vmatpush1.bf16.msra.mxu0 0
      %2976 = vmatprep.subr.bf16.mxu0 0
      %2977 = vmatpush1.bf16.msra.mxu0 0
      %2978 = vmatprep.subr.bf16.mxu0 0
      %2979 = vmatpush1.bf16.msra.mxu0 0
      %2980 = vmatprep.mubr.bf16.mxu0 0
      %2981 = vmatmul.mubr.bf16.gmra.mrb[0].mxu0 %v2215
      %v2982 = vpop.f32.mrb[0].mxu0
      %v2983 = vadd.f32 %v2852, %v2982
      %v2984 = vpop.f32.mrb[0].mxu0
      %v2985 = vadd.f32 %v2854, %v2984
      %v2986 = vpop.f32.mrb[0].mxu0
      %v2987 = vadd.f32 %v2856, %v2986
      %v2988 = vpop.f32.mrb[0].mxu0
      %v2989 = vadd.f32 %v2858, %v2988
      %2990 = vmatprep.mubr.bf16.mxu0 0
      %2991 = vmatmul.mubr.bf16.gmra.mrb[0].mxu0 %v2218
      %v2992 = vpop.f32.mrb[0].mxu0
      %v2993 = vadd.f32 %v2862, %v2992
      %v2994 = vpop.f32.mrb[0].mxu0
      %v2995 = vadd.f32 %v2864, %v2994
      %v2996 = vpop.f32.mrb[0].mxu0
      %v2997 = vadd.f32 %v2866, %v2996
      %v2998 = vpop.f32.mrb[0].mxu0
      %v2999 = vadd.f32 %v2868, %v2998
      %3000 = vmatprep.mubr.bf16.mxu0 0
      %3001 = vmatmul.mubr.bf16.gmra.mrb[0].mxu0 %v2221
      %v3002 = vpop.f32.mrb[0].mxu0
      %v3003 = vadd.f32 %v2872, %v3002
      %v3004 = vpop.f32.mrb[0].mxu0
      %v3005 = vadd.f32 %v2874, %v3004
      %v3006 = vpop.f32.mrb[0].mxu0
      %v3007 = vadd.f32 %v2876, %v3006
      %v3008 = vpop.f32.mrb[0].mxu0
      %v3009 = vadd.f32 %v2878, %v3008
      %3010 = vmatprep.mubr.bf16.mxu0 0
      %3011 = vmatmul.mubr.bf16.gmra.mrb[0].mxu0 %v2224
      %v3012 = vpop.f32.mrb[0].mxu0
      %v3013 = vadd.f32 %v2882, %v3012
      %v3014 = vpop.f32.mrb[0].mxu0
      %v3015 = vadd.f32 %v2884, %v3014
      %v3016 = vpop.f32.mrb[0].mxu0
      %v3017 = vadd.f32 %v2886, %v3016
      %v3018 = vpop.f32.mrb[0].mxu0
      %v3019 = vadd.f32 %v2888, %v3018
      %3020 = vmatprep.mubr.bf16.mxu0 0
      %3021 = vmatmul.mubr.bf16.gmra.mrb[0].mxu0 %v2227
      %v3022 = vpop.f32.mrb[0].mxu0
      %v3023 = vadd.f32 %v2892, %v3022
      %v3024 = vpop.f32.mrb[0].mxu0
      %v3025 = vadd.f32 %v2894, %v3024
      %v3026 = vpop.f32.mrb[0].mxu0
      %v3027 = vadd.f32 %v2896, %v3026
      %v3028 = vpop.f32.mrb[0].mxu0
      %v3029 = vadd.f32 %v2898, %v3028
      %3030 = vmatprep.mubr.bf16.mxu0 0
      %3031 = vmatmul.mubr.bf16.gmra.mrb[0].mxu0 %v2230
      %v3032 = vpop.f32.mrb[0].mxu0
      %v3033 = vadd.f32 %v2902, %v3032
      %v3034 = vpop.f32.mrb[0].mxu0
      %v3035 = vadd.f32 %v2904, %v3034
      %v3036 = vpop.f32.mrb[0].mxu0
      %v3037 = vadd.f32 %v2906, %v3036
      %v3038 = vpop.f32.mrb[0].mxu0
      %v3039 = vadd.f32 %v2908, %v3038
      %3040 = vmatprep.mubr.bf16.mxu0 0
      %3041 = vmatmul.mubr.bf16.gmra.mrb[0].mxu0 %v2233
      %v3042 = vpop.f32.mrb[0].mxu0
      %v3043 = vadd.f32 %v2912, %v3042
      %v3044 = vpop.f32.mrb[0].mxu0
      %v3045 = vadd.f32 %v2914, %v3044
      %v3046 = vpop.f32.mrb[0].mxu0
      %v3047 = vadd.f32 %v2916, %v3046
      %v3048 = vpop.f32.mrb[0].mxu0
      %v3049 = vadd.f32 %v2918, %v3048
      %3050 = vmatprep.mubr.bf16.mxu0 0
      %3051 = vmatmul.mubr.bf16.gmra.mrb[0].mxu0 %v2236
      %v3052 = vpop.f32.mrb[0].mxu0
      %v3053 = vadd.f32 %v2922, %v3052
      %v3054 = vpop.f32.mrb[0].mxu0
      %v3055 = vadd.f32 %v2924, %v3054
      %v3056 = vpop.f32.mrb[0].mxu0
      %v3057 = vadd.f32 %v2926, %v3056
      %v3058 = vpop.f32.mrb[0].mxu0
      %v3059 = vadd.f32 %v2928, %v3058
      %3060 = vmatprep.mubr.bf16.mxu0 0
      %3061 = vmatmul.mubr.bf16.gmra.mrb[0].mxu0 %v2239
      %v3062 = vpop.f32.mrb[0].mxu0
      %v3063 = vadd.f32 %v2932, %v3062
      %v3064 = vpop.f32.mrb[0].mxu0
      %v3065 = vadd.f32 %v2934, %v3064
      %v3066 = vpop.f32.mrb[0].mxu0
      %v3067 = vadd.f32 %v2936, %v3066
      %v3068 = vpop.f32.mrb[0].mxu0
      %v3069 = vadd.f32 %v2938, %v3068
      %3070 = vmatprep.mubr.bf16.mxu0 0
      %3071 = vmatmul.mubr.bf16.gmra.mrb[0].mxu0 %v2242
      %v3072 = vpop.f32.mrb[0].mxu0
      %v3073 = vadd.f32 %v2942, %v3072
      %v3074 = vpop.f32.mrb[0].mxu0
      %v3075 = vadd.f32 %v2944, %v3074
      %v3076 = vpop.f32.mrb[0].mxu0
      %v3077 = vpop.f32.mrb[0].mxu0
      %3078 = vdwg.mxu0
      %3079 = vmatprep.subr.bf16.mxu0 %v1628
      %3080 = vmatpush1.bf16.msra.mxu0 %v1627
      %3081 = vmatprep.subr.bf16.mxu0 %v1644
      %3082 = vmatpush1.bf16.msra.mxu0 %v1643
      %3083 = vmatprep.subr.bf16.mxu0 %v1660
      %3084 = vmatpush1.bf16.msra.mxu0 %v1659
      %3085 = vmatprep.subr.bf16.mxu0 %v1676
      %3086 = vmatpush1.bf16.msra.mxu0 %v1675
      %3087 = vmatprep.subr.bf16.mxu0 %v1692
      %3088 = vmatpush1.bf16.msra.mxu0 %v1691
      %3089 = vmatprep.subr.bf16.mxu0 %v1708
      %3090 = vmatpush1.bf16.msra.mxu0 %v1707
      %3091 = vmatprep.subr.bf16.mxu0 %v1724
      %3092 = vmatpush1.bf16.msra.mxu0 %v1723
      %3093 = vmatprep.subr.bf16.mxu0 %v1740
      %3094 = vmatpush1.bf16.msra.mxu0 %v1739
      %3095 = vmatprep.subr.bf16.mxu0 %v1756
      %3096 = vmatpush1.bf16.msra.mxu0 %v1755
      %3097 = vmatprep.subr.bf16.mxu0 %v1772
      %3098 = vmatpush1.bf16.msra.mxu0 %v1771
      %3099 = vmatprep.subr.bf16.mxu0 %v1788
      %3100 = vmatpush1.bf16.msra.mxu0 %v1787
      %3101 = vmatprep.subr.bf16.mxu0 %v1804
      %3102 = vmatpush1.bf16.msra.mxu0 %v1803
      %3103 = vmatprep.subr.bf16.mxu0 %v1820
      %3104 = vmatpush1.bf16.msra.mxu0 %v1819
      %3105 = vmatprep.subr.bf16.mxu0 %v1836
      %3106 = vmatpush1.bf16.msra.mxu0 %v1835
      %3107 = vmatprep.subr.bf16.mxu0 %v1852
      %3108 = vmatpush1.bf16.msra.mxu0 %v1851
      %3109 = vmatprep.subr.bf16.mxu0 %v1868
      %3110 = vmatpush1.bf16.msra.mxu0 %v1867
      %3111 = vmatprep.mubr.bf16.mxu0 %v660
      %3112 = vmatmul.mubr.bf16.gmra.mrb[0].mxu0 %v659
      %v3113 = vpop.f32.mrb[0].mxu0
      %v3114 = vadd.f32 0.0, %v3113
      %v3115 = vpop.f32.mrb[0].mxu0
      %v3116 = vadd.f32 0.0, %v3115
      %v3117 = vpop.f32.mrb[0].mxu0
      %v3118 = vadd.f32 0.0, %v3117
      %v3119 = vpop.f32.mrb[0].mxu0
      %v3120 = vadd.f32 0.0, %v3119
      %3121 = vmatprep.mubr.bf16.mxu0 %v663
      %3122 = vmatmul.mubr.bf16.gmra.mrb[0].mxu0 %v662
      %v3123 = vpop.f32.mrb[0].mxu0
      %v3124 = vadd.f32 0.0, %v3123
      %v3125 = vpop.f32.mrb[0].mxu0
      %v3126 = vadd.f32 0.0, %v3125
      %v3127 = vpop.f32.mrb[0].mxu0
      %v3128 = vadd.f32 0.0, %v3127
      %v3129 = vpop.f32.mrb[0].mxu0
      %v3130 = vadd.f32 0.0, %v3129
      %3131 = vmatprep.mubr.bf16.mxu0 %v666
      %3132 = vmatmul.mubr.bf16.gmra.mrb[0].mxu0 %v665
      %v3133 = vpop.f32.mrb[0].mxu0
      %v3134 = vadd.f32 0.0, %v3133
      %v3135 = vpop.f32.mrb[0].mxu0
      %v3136 = vadd.f32 0.0, %v3135
      %v3137 = vpop.f32.mrb[0].mxu0
      %v3138 = vadd.f32 0.0, %v3137
      %v3139 = vpop.f32.mrb[0].mxu0
      %v3140 = vadd.f32 0.0, %v3139
      %3141 = vmatprep.mubr.bf16.mxu0 %v669
      %3142 = vmatmul.mubr.bf16.gmra.mrb[0].mxu0 %v668
      %v3143 = vpop.f32.mrb[0].mxu0
      %v3144 = vadd.f32 0.0, %v3143
      %v3145 = vpop.f32.mrb[0].mxu0
      %v3146 = vadd.f32 0.0, %v3145
      %v3147 = vpop.f32.mrb[0].mxu0
      %v3148 = vadd.f32 0.0, %v3147
      %v3149 = vpop.f32.mrb[0].mxu0
      %v3150 = vadd.f32 0.0, %v3149
      %3151 = vmatprep.mubr.bf16.mxu0 %v672
      %3152 = vmatmul.mubr.bf16.gmra.mrb[0].mxu0 %v671
      %v3153 = vpop.f32.mrb[0].mxu0
      %v3154 = vadd.f32 0.0, %v3153
      %v3155 = vpop.f32.mrb[0].mxu0
      %v3156 = vadd.f32 0.0, %v3155
      %v3157 = vpop.f32.mrb[0].mxu0
      %v3158 = vadd.f32 0.0, %v3157
      %v3159 = vpop.f32.mrb[0].mxu0
      %v3160 = vadd.f32 0.0, %v3159
      %3161 = vmatprep.mubr.bf16.mxu0 %v675
      %3162 = vmatmul.mubr.bf16.gmra.mrb[0].mxu0 %v674
      %v3163 = vpop.f32.mrb[0].mxu0
      %v3164 = vadd.f32 0.0, %v3163
      %v3165 = vpop.f32.mrb[0].mxu0
      %v3166 = vadd.f32 0.0, %v3165
      %v3167 = vpop.f32.mrb[0].mxu0
      %v3168 = vadd.f32 0.0, %v3167
      %v3169 = vpop.f32.mrb[0].mxu0
      %v3170 = vadd.f32 0.0, %v3169
      %3171 = vmatprep.mubr.bf16.mxu0 %v678
      %3172 = vmatmul.mubr.bf16.gmra.mrb[0].mxu0 %v677
      %v3173 = vpop.f32.mrb[0].mxu0
      %v3174 = vadd.f32 0.0, %v3173
      %v3175 = vpop.f32.mrb[0].mxu0
      %v3176 = vadd.f32 0.0, %v3175
      %v3177 = vpop.f32.mrb[0].mxu0
      %v3178 = vadd.f32 0.0, %v3177
      %v3179 = vpop.f32.mrb[0].mxu0
      %v3180 = vadd.f32 0.0, %v3179
      %3181 = vmatprep.mubr.bf16.mxu0 %v681
      %3182 = vmatmul.mubr.bf16.gmra.mrb[0].mxu0 %v680
      %v3183 = vpop.f32.mrb[0].mxu0
      %v3184 = vadd.f32 0.0, %v3183
      %v3185 = vpop.f32.mrb[0].mxu0
      %v3186 = vadd.f32 0.0, %v3185
      %v3187 = vpop.f32.mrb[0].mxu0
      %v3188 = vadd.f32 0.0, %v3187
      %v3189 = vpop.f32.mrb[0].mxu0
      %v3190 = vadd.f32 0.0, %v3189
      %3191 = vmatprep.mubr.bf16.mxu0 %v684
      %3192 = vmatmul.mubr.bf16.gmra.mrb[0].mxu0 %v683
      %v3193 = vpop.f32.mrb[0].mxu0
      %v3194 = vadd.f32 0.0, %v3193
      %v3195 = vpop.f32.mrb[0].mxu0
      %v3196 = vadd.f32 0.0, %v3195
      %v3197 = vpop.f32.mrb[0].mxu0
      %v3198 = vadd.f32 0.0, %v3197
      %v3199 = vpop.f32.mrb[0].mxu0
      %v3200 = vadd.f32 0.0, %v3199
      %3201 = vmatprep.mubr.bf16.mxu0 %v687
      %3202 = vmatmul.mubr.bf16.gmra.mrb[0].mxu0 %v686
      %v3203 = vpop.f32.mrb[0].mxu0
      %v3204 = vadd.f32 0.0, %v3203
      %v3205 = vpop.f32.mrb[0].mxu0
      %v3206 = vadd.f32 0.0, %v3205
      %v3207 = vpop.f32.mrb[0].mxu0
      %v3208 = vpop.f32.mrb[0].mxu0
      %3209 = vdwg.mxu0
      %3210 = vmatprep.subr.bf16.mxu0 %v1884
      %3211 = vmatpush1.bf16.msra.mxu0 %v1883
      %3212 = vmatprep.subr.bf16.mxu0 %v1900
      %3213 = vmatpush1.bf16.msra.mxu0 %v1899
      %3214 = vmatprep.subr.bf16.mxu0 %v2267
      %3215 = vmatpush1.bf16.msra.mxu0 %v2264
      %3216 = vmatprep.subr.bf16.mxu0 0
      %3217 = vmatpush1.bf16.msra.mxu0 0
      %3218 = vmatprep.subr.bf16.mxu0 0
      %3219 = vmatpush1.bf16.msra.mxu0 0
      %3220 = vmatprep.subr.bf16.mxu0 0
      %3221 = vmatpush1.bf16.msra.mxu0 0
      %3222 = vmatprep.subr.bf16.mxu0 0
      %3223 = vmatpush1.bf16.msra.mxu0 0
      %3224 = vmatprep.subr.bf16.mxu0 0
      %3225 = vmatpush1.bf16.msra.mxu0 0
      %3226 = vmatprep.subr.bf16.mxu0 0
      %3227 = vmatpush1.bf16.msra.mxu0 0
      %3228 = vmatprep.subr.bf16.mxu0 0
      %3229 = vmatpush1.bf16.msra.mxu0 0
      %3230 = vmatprep.subr.bf16.mxu0 0
      %3231 = vmatpush1.bf16.msra.mxu0 0
      %3232 = vmatprep.subr.bf16.mxu0 0
      %3233 = vmatpush1.bf16.msra.mxu0 0
      %3234 = vmatprep.subr.bf16.mxu0 0
      %3235 = vmatpush1.bf16.msra.mxu0 0
      %3236 = vmatprep.subr.bf16.mxu0 0
      %3237 = vmatpush1.bf16.msra.mxu0 0
      %3238 = vmatprep.subr.bf16.mxu0 0
      %3239 = vmatpush1.bf16.msra.mxu0 0
      %3240 = vmatprep.subr.bf16.mxu0 0
      %3241 = vmatpush1.bf16.msra.mxu0 0
      %3242 = vmatprep.mubr.bf16.mxu0 0
      %3243 = vmatmul.mubr.bf16.gmra.mrb[0].mxu0 %v2215
      %v3244 = vpop.f32.mrb[0].mxu0
      %v3245 = vadd.f32 %v3114, %v3244
      %v3246 = vpop.f32.mrb[0].mxu0
      %v3247 = vadd.f32 %v3116, %v3246
      %v3248 = vpop.f32.mrb[0].mxu0
      %v3249 = vadd.f32 %v3118, %v3248
      %v3250 = vpop.f32.mrb[0].mxu0
      %v3251 = vadd.f32 %v3120, %v3250
      %3252 = vmatprep.mubr.bf16.mxu0 0
      %3253 = vmatmul.mubr.bf16.gmra.mrb[0].mxu0 %v2218
      %v3254 = vpop.f32.mrb[0].mxu0
      %v3255 = vadd.f32 %v3124, %v3254
      %v3256 = vpop.f32.mrb[0].mxu0
      %v3257 = vadd.f32 %v3126, %v3256
      %v3258 = vpop.f32.mrb[0].mxu0
      %v3259 = vadd.f32 %v3128, %v3258
      %v3260 = vpop.f32.mrb[0].mxu0
      %v3261 = vadd.f32 %v3130, %v3260
      %3262 = vmatprep.mubr.bf16.mxu0 0
      %3263 = vmatmul.mubr.bf16.gmra.mrb[0].mxu0 %v2221
      %v3264 = vpop.f32.mrb[0].mxu0
      %v3265 = vadd.f32 %v3134, %v3264
      %v3266 = vpop.f32.mrb[0].mxu0
      %v3267 = vadd.f32 %v3136, %v3266
      %v3268 = vpop.f32.mrb[0].mxu0
      %v3269 = vadd.f32 %v3138, %v3268
      %v3270 = vpop.f32.mrb[0].mxu0
      %v3271 = vadd.f32 %v3140, %v3270
      %3272 = vmatprep.mubr.bf16.mxu0 0
      %3273 = vmatmul.mubr.bf16.gmra.mrb[0].mxu0 %v2224
      %v3274 = vpop.f32.mrb[0].mxu0
      %v3275 = vadd.f32 %v3144, %v3274
      %v3276 = vpop.f32.mrb[0].mxu0
      %v3277 = vadd.f32 %v3146, %v3276
      %v3278 = vpop.f32.mrb[0].mxu0
      %v3279 = vadd.f32 %v3148, %v3278
      %v3280 = vpop.f32.mrb[0].mxu0
      %v3281 = vadd.f32 %v3150, %v3280
      %3282 = vmatprep.mubr.bf16.mxu0 0
      %3283 = vmatmul.mubr.bf16.gmra.mrb[0].mxu0 %v2227
      %v3284 = vpop.f32.mrb[0].mxu0
      %v3285 = vadd.f32 %v3154, %v3284
      %v3286 = vpop.f32.mrb[0].mxu0
      %v3287 = vadd.f32 %v3156, %v3286
      %v3288 = vpop.f32.mrb[0].mxu0
      %v3289 = vadd.f32 %v3158, %v3288
      %v3290 = vpop.f32.mrb[0].mxu0
      %v3291 = vadd.f32 %v3160, %v3290
      %3292 = vmatprep.mubr.bf16.mxu0 0
      %3293 = vmatmul.mubr.bf16.gmra.mrb[0].mxu0 %v2230
      %v3294 = vpop.f32.mrb[0].mxu0
      %v3295 = vadd.f32 %v3164, %v3294
      %v3296 = vpop.f32.mrb[0].mxu0
      %v3297 = vadd.f32 %v3166, %v3296
      %v3298 = vpop.f32.mrb[0].mxu0
      %v3299 = vadd.f32 %v3168, %v3298
      %v3300 = vpop.f32.mrb[0].mxu0
      %v3301 = vadd.f32 %v3170, %v3300
      %3302 = vmatprep.mubr.bf16.mxu0 0
      %3303 = vmatmul.mubr.bf16.gmra.mrb[0].mxu0 %v2233
      %v3304 = vpop.f32.mrb[0].mxu0
      %v3305 = vadd.f32 %v3174, %v3304
      %v3306 = vpop.f32.mrb[0].mxu0
      %v3307 = vadd.f32 %v3176, %v3306
      %v3308 = vpop.f32.mrb[0].mxu0
      %v3309 = vadd.f32 %v3178, %v3308
      %v3310 = vpop.f32.mrb[0].mxu0
      %v3311 = vadd.f32 %v3180, %v3310
      %3312 = vmatprep.mubr.bf16.mxu0 0
      %3313 = vmatmul.mubr.bf16.gmra.mrb[0].mxu0 %v2236
      %v3314 = vpop.f32.mrb[0].mxu0
      %v3315 = vadd.f32 %v3184, %v3314
      %v3316 = vpop.f32.mrb[0].mxu0
      %v3317 = vadd.f32 %v3186, %v3316
      %v3318 = vpop.f32.mrb[0].mxu0
      %v3319 = vadd.f32 %v3188, %v3318
      %v3320 = vpop.f32.mrb[0].mxu0
      %v3321 = vadd.f32 %v3190, %v3320
      %3322 = vmatprep.mubr.bf16.mxu0 0
      %3323 = vmatmul.mubr.bf16.gmra.mrb[0].mxu0 %v2239
      %v3324 = vpop.f32.mrb[0].mxu0
      %v3325 = vadd.f32 %v3194, %v3324
      %v3326 = vpop.f32.mrb[0].mxu0
      %v3327 = vadd.f32 %v3196, %v3326
      %v3328 = vpop.f32.mrb[0].mxu0
      %v3329 = vadd.f32 %v3198, %v3328
      %v3330 = vpop.f32.mrb[0].mxu0
      %v3331 = vadd.f32 %v3200, %v3330
      %3332 = vmatprep.mubr.bf16.mxu0 0
      %3333 = vmatmul.mubr.bf16.gmra.mrb[0].mxu0 %v2242
      %v3334 = vpop.f32.mrb[0].mxu0
      %v3335 = vadd.f32 %v3204, %v3334
      %v3336 = vpop.f32.mrb[0].mxu0
      %v3337 = vadd.f32 %v3206, %v3336
      %v3338 = vpop.f32.mrb[0].mxu0
      %v3339 = vpop.f32.mrb[0].mxu0
      %3340 = vdwg.mxu0
      %3341 = vmatprep.subr.bf16.mxu0 %v1630
      %3342 = vmatpush1.bf16.msra.mxu0 %v1629
      %3343 = vmatprep.subr.bf16.mxu0 %v1646
      %3344 = vmatpush1.bf16.msra.mxu0 %v1645
      %3345 = vmatprep.subr.bf16.mxu0 %v1662
      %3346 = vmatpush1.bf16.msra.mxu0 %v1661
      %3347 = vmatprep.subr.bf16.mxu0 %v1678
      %3348 = vmatpush1.bf16.msra.mxu0 %v1677
      %3349 = vmatprep.subr.bf16.mxu0 %v1694
      %3350 = vmatpush1.bf16.msra.mxu0 %v1693
      %3351 = vmatprep.subr.bf16.mxu0 %v1710
      %3352 = vmatpush1.bf16.msra.mxu0 %v1709
      %3353 = vmatprep.subr.bf16.mxu0 %v1726
      %3354 = vmatpush1.bf16.msra.mxu0 %v1725
      %3355 = vmatprep.subr.bf16.mxu0 %v1742
      %3356 = vmatpush1.bf16.msra.mxu0 %v1741
      %3357 = vmatprep.subr.bf16.mxu0 %v1758
      %3358 = vmatpush1.bf16.msra.mxu0 %v1757
      %3359 = vmatprep.subr.bf16.mxu0 %v1774
      %3360 = vmatpush1.bf16.msra.mxu0 %v1773
      %3361 = vmatprep.subr.bf16.mxu0 %v1790
      %3362 = vmatpush1.bf16.msra.mxu0 %v1789
      %3363 = vmatprep.subr.bf16.mxu0 %v1806
      %3364 = vmatpush1.bf16.msra.mxu0 %v1805
      %3365 = vmatprep.subr.bf16.mxu0 %v1822
      %3366 = vmatpush1.bf16.msra.mxu0 %v1821
      %3367 = vmatprep.subr.bf16.mxu0 %v1838
      %3368 = vmatpush1.bf16.msra.mxu0 %v1837
      %3369 = vmatprep.subr.bf16.mxu0 %v1854
      %3370 = vmatpush1.bf16.msra.mxu0 %v1853
      %3371 = vmatprep.subr.bf16.mxu0 %v1870
      %3372 = vmatpush1.bf16.msra.mxu0 %v1869
      %3373 = vmatprep.mubr.bf16.mxu0 %v660
      %3374 = vmatmul.mubr.bf16.gmra.mrb[0].mxu0 %v659
      %v3375 = vpop.f32.mrb[0].mxu0
      %v3376 = vadd.f32 0.0, %v3375
      %v3377 = vpop.f32.mrb[0].mxu0
      %v3378 = vadd.f32 0.0, %v3377
      %v3379 = vpop.f32.mrb[0].mxu0
      %v3380 = vadd.f32 0.0, %v3379
      %v3381 = vpop.f32.mrb[0].mxu0
      %v3382 = vadd.f32 0.0, %v3381
      %3383 = vmatprep.mubr.bf16.mxu0 %v663
      %3384 = vmatmul.mubr.bf16.gmra.mrb[0].mxu0 %v662
      %v3385 = vpop.f32.mrb[0].mxu0
      %v3386 = vadd.f32 0.0, %v3385
      %v3387 = vpop.f32.mrb[0].mxu0
      %v3388 = vadd.f32 0.0, %v3387
      %v3389 = vpop.f32.mrb[0].mxu0
      %v3390 = vadd.f32 0.0, %v3389
      %v3391 = vpop.f32.mrb[0].mxu0
      %v3392 = vadd.f32 0.0, %v3391
      %3393 = vmatprep.mubr.bf16.mxu0 %v666
      %3394 = vmatmul.mubr.bf16.gmra.mrb[0].mxu0 %v665
      %v3395 = vpop.f32.mrb[0].mxu0
      %v3396 = vadd.f32 0.0, %v3395
      %v3397 = vpop.f32.mrb[0].mxu0
      %v3398 = vadd.f32 0.0, %v3397
      %v3399 = vpop.f32.mrb[0].mxu0
      %v3400 = vadd.f32 0.0, %v3399
      %v3401 = vpop.f32.mrb[0].mxu0
      %v3402 = vadd.f32 0.0, %v3401
      %3403 = vmatprep.mubr.bf16.mxu0 %v669
      %3404 = vmatmul.mubr.bf16.gmra.mrb[0].mxu0 %v668
      %v3405 = vpop.f32.mrb[0].mxu0
      %v3406 = vadd.f32 0.0, %v3405
      %v3407 = vpop.f32.mrb[0].mxu0
      %v3408 = vadd.f32 0.0, %v3407
      %v3409 = vpop.f32.mrb[0].mxu0
      %v3410 = vadd.f32 0.0, %v3409
      %v3411 = vpop.f32.mrb[0].mxu0
      %v3412 = vadd.f32 0.0, %v3411
      %3413 = vmatprep.mubr.bf16.mxu0 %v672
      %3414 = vmatmul.mubr.bf16.gmra.mrb[0].mxu0 %v671
      %v3415 = vpop.f32.mrb[0].mxu0
      %v3416 = vadd.f32 0.0, %v3415
      %v3417 = vpop.f32.mrb[0].mxu0
      %v3418 = vadd.f32 0.0, %v3417
      %v3419 = vpop.f32.mrb[0].mxu0
      %v3420 = vadd.f32 0.0, %v3419
      %v3421 = vpop.f32.mrb[0].mxu0
      %v3422 = vadd.f32 0.0, %v3421
      %3423 = vmatprep.mubr.bf16.mxu0 %v675
      %3424 = vmatmul.mubr.bf16.gmra.mrb[0].mxu0 %v674
      %v3425 = vpop.f32.mrb[0].mxu0
      %v3426 = vadd.f32 0.0, %v3425
      %v3427 = vpop.f32.mrb[0].mxu0
      %v3428 = vadd.f32 0.0, %v3427
      %v3429 = vpop.f32.mrb[0].mxu0
      %v3430 = vadd.f32 0.0, %v3429
      %v3431 = vpop.f32.mrb[0].mxu0
      %v3432 = vadd.f32 0.0, %v3431
      %3433 = vmatprep.mubr.bf16.mxu0 %v678
      %3434 = vmatmul.mubr.bf16.gmra.mrb[0].mxu0 %v677
      %v3435 = vpop.f32.mrb[0].mxu0
      %v3436 = vadd.f32 0.0, %v3435
      %v3437 = vpop.f32.mrb[0].mxu0
      %v3438 = vadd.f32 0.0, %v3437
      %v3439 = vpop.f32.mrb[0].mxu0
      %v3440 = vadd.f32 0.0, %v3439
      %v3441 = vpop.f32.mrb[0].mxu0
      %v3442 = vadd.f32 0.0, %v3441
      %3443 = vmatprep.mubr.bf16.mxu0 %v681
      %3444 = vmatmul.mubr.bf16.gmra.mrb[0].mxu0 %v680
      %v3445 = vpop.f32.mrb[0].mxu0
      %v3446 = vadd.f32 0.0, %v3445
      %v3447 = vpop.f32.mrb[0].mxu0
      %v3448 = vadd.f32 0.0, %v3447
      %v3449 = vpop.f32.mrb[0].mxu0
      %v3450 = vadd.f32 0.0, %v3449
      %v3451 = vpop.f32.mrb[0].mxu0
      %v3452 = vadd.f32 0.0, %v3451
      %3453 = vmatprep.mubr.bf16.mxu0 %v684
      %3454 = vmatmul.mubr.bf16.gmra.mrb[0].mxu0 %v683
      %v3455 = vpop.f32.mrb[0].mxu0
      %v3456 = vadd.f32 0.0, %v3455
      %v3457 = vpop.f32.mrb[0].mxu0
      %v3458 = vadd.f32 0.0, %v3457
      %v3459 = vpop.f32.mrb[0].mxu0
      %v3460 = vadd.f32 0.0, %v3459
      %v3461 = vpop.f32.mrb[0].mxu0
      %v3462 = vadd.f32 0.0, %v3461
      %3463 = vmatprep.mubr.bf16.mxu0 %v687
      %3464 = vmatmul.mubr.bf16.gmra.mrb[0].mxu0 %v686
      %v3465 = vpop.f32.mrb[0].mxu0
      %v3466 = vadd.f32 0.0, %v3465
      %v3467 = vpop.f32.mrb[0].mxu0
      %v3468 = vadd.f32 0.0, %v3467
      %v3469 = vpop.f32.mrb[0].mxu0
      %v3470 = vpop.f32.mrb[0].mxu0
      %3471 = vdwg.mxu0
      %3472 = vmatprep.subr.bf16.mxu0 %v1886
      %3473 = vmatpush1.bf16.msra.mxu0 %v1885
      %3474 = vmatprep.subr.bf16.mxu0 %v1902
      %3475 = vmatpush1.bf16.msra.mxu0 %v1901
      %3476 = vmatprep.subr.bf16.mxu0 %v2273
      %3477 = vmatpush1.bf16.msra.mxu0 %v2270
      %3478 = vmatprep.subr.bf16.mxu0 0
      %3479 = vmatpush1.bf16.msra.mxu0 0
      %3480 = vmatprep.subr.bf16.mxu0 0
      %3481 = vmatpush1.bf16.msra.mxu0 0
      %3482 = vmatprep.subr.bf16.mxu0 0
      %3483 = vmatpush1.bf16.msra.mxu0 0
      %3484 = vmatprep.subr.bf16.mxu0 0
      %3485 = vmatpush1.bf16.msra.mxu0 0
      %3486 = vmatprep.subr.bf16.mxu0 0
      %3487 = vmatpush1.bf16.msra.mxu0 0
      %3488 = vmatprep.subr.bf16.mxu0 0
      %3489 = vmatpush1.bf16.msra.mxu0 0
      %3490 = vmatprep.subr.bf16.mxu0 0
      %3491 = vmatpush1.bf16.msra.mxu0 0
      %3492 = vmatprep.subr.bf16.mxu0 0
      %3493 = vmatpush1.bf16.msra.mxu0 0
      %3494 = vmatprep.subr.bf16.mxu0 0
      %3495 = vmatpush1.bf16.msra.mxu0 0
      %3496 = vmatprep.subr.bf16.mxu0 0
      %3497 = vmatpush1.bf16.msra.mxu0 0
      %3498 = vmatprep.subr.bf16.mxu0 0
      %3499 = vmatpush1.bf16.msra.mxu0 0
      %3500 = vmatprep.subr.bf16.mxu0 0
      %3501 = vmatpush1.bf16.msra.mxu0 0
      %3502 = vmatprep.subr.bf16.mxu0 0
      %3503 = vmatpush1.bf16.msra.mxu0 0
      %3504 = vmatprep.mubr.bf16.mxu0 0
      %3505 = vmatmul.mubr.bf16.gmra.mrb[0].mxu0 %v2215
      %v3506 = vpop.f32.mrb[0].mxu0
      %v3507 = vadd.f32 %v3376, %v3506
      %v3508 = vpop.f32.mrb[0].mxu0
      %v3509 = vadd.f32 %v3378, %v3508
      %v3510 = vpop.f32.mrb[0].mxu0
      %v3511 = vadd.f32 %v3380, %v3510
      %v3512 = vpop.f32.mrb[0].mxu0
      %v3513 = vadd.f32 %v3382, %v3512
      %3514 = vmatprep.mubr.bf16.mxu0 0
      %3515 = vmatmul.mubr.bf16.gmra.mrb[0].mxu0 %v2218
      %v3516 = vpop.f32.mrb[0].mxu0
      %v3517 = vadd.f32 %v3386, %v3516
      %v3518 = vpop.f32.mrb[0].mxu0
      %v3519 = vadd.f32 %v3388, %v3518
      %v3520 = vpop.f32.mrb[0].mxu0
      %v3521 = vadd.f32 %v3390, %v3520
      %v3522 = vpop.f32.mrb[0].mxu0
      %v3523 = vadd.f32 %v3392, %v3522
      %3524 = vmatprep.mubr.bf16.mxu0 0
      %3525 = vmatmul.mubr.bf16.gmra.mrb[0].mxu0 %v2221
      %v3526 = vpop.f32.mrb[0].mxu0
      %v3527 = vadd.f32 %v3396, %v3526
      %v3528 = vpop.f32.mrb[0].mxu0
      %v3529 = vadd.f32 %v3398, %v3528
      %v3530 = vpop.f32.mrb[0].mxu0
      %v3531 = vadd.f32 %v3400, %v3530
      %v3532 = vpop.f32.mrb[0].mxu0
      %v3533 = vadd.f32 %v3402, %v3532
      %3534 = vmatprep.mubr.bf16.mxu0 0
      %3535 = vmatmul.mubr.bf16.gmra.mrb[0].mxu0 %v2224
      %v3536 = vpop.f32.mrb[0].mxu0
      %v3537 = vadd.f32 %v3406, %v3536
      %v3538 = vpop.f32.mrb[0].mxu0
      %v3539 = vadd.f32 %v3408, %v3538
      %v3540 = vpop.f32.mrb[0].mxu0
      %v3541 = vadd.f32 %v3410, %v3540
      %v3542 = vpop.f32.mrb[0].mxu0
      %v3543 = vadd.f32 %v3412, %v3542
      %3544 = vmatprep.mubr.bf16.mxu0 0
      %3545 = vmatmul.mubr.bf16.gmra.mrb[0].mxu0 %v2227
      %v3546 = vpop.f32.mrb[0].mxu0
      %v3547 = vadd.f32 %v3416, %v3546
      %v3548 = vpop.f32.mrb[0].mxu0
      %v3549 = vadd.f32 %v3418, %v3548
      %v3550 = vpop.f32.mrb[0].mxu0
      %v3551 = vadd.f32 %v3420, %v3550
      %v3552 = vpop.f32.mrb[0].mxu0
      %v3553 = vadd.f32 %v3422, %v3552
      %3554 = vmatprep.mubr.bf16.mxu0 0
      %3555 = vmatmul.mubr.bf16.gmra.mrb[0].mxu0 %v2230
      %v3556 = vpop.f32.mrb[0].mxu0
      %v3557 = vadd.f32 %v3426, %v3556
      %v3558 = vpop.f32.mrb[0].mxu0
      %v3559 = vadd.f32 %v3428, %v3558
      %v3560 = vpop.f32.mrb[0].mxu0
      %v3561 = vadd.f32 %v3430, %v3560
      %v3562 = vpop.f32.mrb[0].mxu0
      %v3563 = vadd.f32 %v3432, %v3562
      %3564 = vmatprep.mubr.bf16.mxu0 0
      %3565 = vmatmul.mubr.bf16.gmra.mrb[0].mxu0 %v2233
      %v3566 = vpop.f32.mrb[0].mxu0
      %v3567 = vadd.f32 %v3436, %v3566
      %v3568 = vpop.f32.mrb[0].mxu0
      %v3569 = vadd.f32 %v3438, %v3568
      %v3570 = vpop.f32.mrb[0].mxu0
      %v3571 = vadd.f32 %v3440, %v3570
      %v3572 = vpop.f32.mrb[0].mxu0
      %v3573 = vadd.f32 %v3442, %v3572
      %3574 = vmatprep.mubr.bf16.mxu0 0
      %3575 = vmatmul.mubr.bf16.gmra.mrb[0].mxu0 %v2236
      %v3576 = vpop.f32.mrb[0].mxu0
      %v3577 = vadd.f32 %v3446, %v3576
      %v3578 = vpop.f32.mrb[0].mxu0
      %v3579 = vadd.f32 %v3448, %v3578
      %v3580 = vpop.f32.mrb[0].mxu0
      %v3581 = vadd.f32 %v3450, %v3580
      %v3582 = vpop.f32.mrb[0].mxu0
      %v3583 = vadd.f32 %v3452, %v3582
      %3584 = vmatprep.mubr.bf16.mxu0 0
      %3585 = vmatmul.mubr.bf16.gmra.mrb[0].mxu0 %v2239
      %v3586 = vpop.f32.mrb[0].mxu0
      %v3587 = vadd.f32 %v3456, %v3586
      %v3588 = vpop.f32.mrb[0].mxu0
      %v3589 = vadd.f32 %v3458, %v3588
      %v3590 = vpop.f32.mrb[0].mxu0
      %v3591 = vadd.f32 %v3460, %v3590
      %v3592 = vpop.f32.mrb[0].mxu0
      %v3593 = vadd.f32 %v3462, %v3592
      %3594 = vmatprep.mubr.bf16.mxu0 0
      %3595 = vmatmul.mubr.bf16.gmra.mrb[0].mxu0 %v2242
      %v3596 = vpop.f32.mrb[0].mxu0
      %v3597 = vadd.f32 %v3466, %v3596
      %v3598 = vpop.f32.mrb[0].mxu0
      %v3599 = vadd.f32 %v3468, %v3598
      %v3600 = vpop.f32.mrb[0].mxu0
      %v3601 = vpop.f32.mrb[0].mxu0
      %3602 = vdwg.mxu0
      %3603 = vmatprep.subr.bf16.mxu0 %v1632
      %3604 = vmatpush1.bf16.msra.mxu0 %v1631
      %3605 = vmatprep.subr.bf16.mxu0 %v1648
      %3606 = vmatpush1.bf16.msra.mxu0 %v1647
      %3607 = vmatprep.subr.bf16.mxu0 %v1664
      %3608 = vmatpush1.bf16.msra.mxu0 %v1663
      %3609 = vmatprep.subr.bf16.mxu0 %v1680
      %3610 = vmatpush1.bf16.msra.mxu0 %v1679
      %3611 = vmatprep.subr.bf16.mxu0 %v1696
      %3612 = vmatpush1.bf16.msra.mxu0 %v1695
      %3613 = vmatprep.subr.bf16.mxu0 %v1712
      %3614 = vmatpush1.bf16.msra.mxu0 %v1711
      %3615 = vmatprep.subr.bf16.mxu0 %v1728
      %3616 = vmatpush1.bf16.msra.mxu0 %v1727
      %3617 = vmatprep.subr.bf16.mxu0 %v1744
      %3618 = vmatpush1.bf16.msra.mxu0 %v1743
      %3619 = vmatprep.subr.bf16.mxu0 %v1760
      %3620 = vmatpush1.bf16.msra.mxu0 %v1759
      %3621 = vmatprep.subr.bf16.mxu0 %v1776
      %3622 = vmatpush1.bf16.msra.mxu0 %v1775
      %3623 = vmatprep.subr.bf16.mxu0 %v1792
      %3624 = vmatpush1.bf16.msra.mxu0 %v1791
      %3625 = vmatprep.subr.bf16.mxu0 %v1808
      %3626 = vmatpush1.bf16.msra.mxu0 %v1807
      %3627 = vmatprep.subr.bf16.mxu0 %v1824
      %3628 = vmatpush1.bf16.msra.mxu0 %v1823
      %3629 = vmatprep.subr.bf16.mxu0 %v1840
      %3630 = vmatpush1.bf16.msra.mxu0 %v1839
      %3631 = vmatprep.subr.bf16.mxu0 %v1856
      %3632 = vmatpush1.bf16.msra.mxu0 %v1855
      %3633 = vmatprep.subr.bf16.mxu0 %v1872
      %3634 = vmatpush1.bf16.msra.mxu0 %v1871
      %3635 = vmatprep.mubr.bf16.mxu0 %v660
      %3636 = vmatmul.mubr.bf16.gmra.mrb[0].mxu0 %v659
      %v3637 = vpop.f32.mrb[0].mxu0
      %v3638 = vadd.f32 0.0, %v3637
      %v3639 = vpop.f32.mrb[0].mxu0
      %v3640 = vadd.f32 0.0, %v3639
      %v3641 = vpop.f32.mrb[0].mxu0
      %v3642 = vadd.f32 0.0, %v3641
      %v3643 = vpop.f32.mrb[0].mxu0
      %v3644 = vadd.f32 0.0, %v3643
      %3645 = vmatprep.mubr.bf16.mxu0 %v663
      %3646 = vmatmul.mubr.bf16.gmra.mrb[0].mxu0 %v662
      %v3647 = vpop.f32.mrb[0].mxu0
      %v3648 = vadd.f32 0.0, %v3647
      %v3649 = vpop.f32.mrb[0].mxu0
      %v3650 = vadd.f32 0.0, %v3649
      %v3651 = vpop.f32.mrb[0].mxu0
      %v3652 = vadd.f32 0.0, %v3651
      %v3653 = vpop.f32.mrb[0].mxu0
      %v3654 = vadd.f32 0.0, %v3653
      %3655 = vmatprep.mubr.bf16.mxu0 %v666
      %3656 = vmatmul.mubr.bf16.gmra.mrb[0].mxu0 %v665
      %v3657 = vpop.f32.mrb[0].mxu0
      %v3658 = vadd.f32 0.0, %v3657
      %v3659 = vpop.f32.mrb[0].mxu0
      %v3660 = vadd.f32 0.0, %v3659
      %v3661 = vpop.f32.mrb[0].mxu0
      %v3662 = vadd.f32 0.0, %v3661
      %v3663 = vpop.f32.mrb[0].mxu0
      %v3664 = vadd.f32 0.0, %v3663
      %3665 = vmatprep.mubr.bf16.mxu0 %v669
      %3666 = vmatmul.mubr.bf16.gmra.mrb[0].mxu0 %v668
      %v3667 = vpop.f32.mrb[0].mxu0
      %v3668 = vadd.f32 0.0, %v3667
      %v3669 = vpop.f32.mrb[0].mxu0
      %v3670 = vadd.f32 0.0, %v3669
      %v3671 = vpop.f32.mrb[0].mxu0
      %v3672 = vadd.f32 0.0, %v3671
      %v3673 = vpop.f32.mrb[0].mxu0
      %v3674 = vadd.f32 0.0, %v3673
      %3675 = vmatprep.mubr.bf16.mxu0 %v672
      %3676 = vmatmul.mubr.bf16.gmra.mrb[0].mxu0 %v671
      %v3677 = vpop.f32.mrb[0].mxu0
      %v3678 = vadd.f32 0.0, %v3677
      %v3679 = vpop.f32.mrb[0].mxu0
      %v3680 = vadd.f32 0.0, %v3679
      %v3681 = vpop.f32.mrb[0].mxu0
      %v3682 = vadd.f32 0.0, %v3681
      %v3683 = vpop.f32.mrb[0].mxu0
      %v3684 = vadd.f32 0.0, %v3683
      %3685 = vmatprep.mubr.bf16.mxu0 %v675
      %3686 = vmatmul.mubr.bf16.gmra.mrb[0].mxu0 %v674
      %v3687 = vpop.f32.mrb[0].mxu0
      %v3688 = vadd.f32 0.0, %v3687
      %v3689 = vpop.f32.mrb[0].mxu0
      %v3690 = vadd.f32 0.0, %v3689
      %v3691 = vpop.f32.mrb[0].mxu0
      %v3692 = vadd.f32 0.0, %v3691
      %v3693 = vpop.f32.mrb[0].mxu0
      %v3694 = vadd.f32 0.0, %v3693
      %3695 = vmatprep.mubr.bf16.mxu0 %v678
      %3696 = vmatmul.mubr.bf16.gmra.mrb[0].mxu0 %v677
      %v3697 = vpop.f32.mrb[0].mxu0
      %v3698 = vadd.f32 0.0, %v3697
      %v3699 = vpop.f32.mrb[0].mxu0
      %v3700 = vadd.f32 0.0, %v3699
      %v3701 = vpop.f32.mrb[0].mxu0
      %v3702 = vadd.f32 0.0, %v3701
      %v3703 = vpop.f32.mrb[0].mxu0
      %v3704 = vadd.f32 0.0, %v3703
      %3705 = vmatprep.mubr.bf16.mxu0 %v681
      %3706 = vmatmul.mubr.bf16.gmra.mrb[0].mxu0 %v680
      %v3707 = vpop.f32.mrb[0].mxu0
      %v3708 = vadd.f32 0.0, %v3707
      %v3709 = vpop.f32.mrb[0].mxu0
      %v3710 = vadd.f32 0.0, %v3709
      %v3711 = vpop.f32.mrb[0].mxu0
      %v3712 = vadd.f32 0.0, %v3711
      %v3713 = vpop.f32.mrb[0].mxu0
      %v3714 = vadd.f32 0.0, %v3713
      %3715 = vmatprep.mubr.bf16.mxu0 %v684
      %3716 = vmatmul.mubr.bf16.gmra.mrb[0].mxu0 %v683
      %v3717 = vpop.f32.mrb[0].mxu0
      %v3718 = vadd.f32 0.0, %v3717
      %v3719 = vpop.f32.mrb[0].mxu0
      %v3720 = vadd.f32 0.0, %v3719
      %v3721 = vpop.f32.mrb[0].mxu0
      %v3722 = vadd.f32 0.0, %v3721
      %v3723 = vpop.f32.mrb[0].mxu0
      %v3724 = vadd.f32 0.0, %v3723
      %3725 = vmatprep.mubr.bf16.mxu0 %v687
      %3726 = vmatmul.mubr.bf16.gmra.mrb[0].mxu0 %v686
      %v3727 = vpop.f32.mrb[0].mxu0
      %v3728 = vadd.f32 0.0, %v3727
      %v3729 = vpop.f32.mrb[0].mxu0
      %v3730 = vadd.f32 0.0, %v3729
      %v3731 = vpop.f32.mrb[0].mxu0
      %v3732 = vpop.f32.mrb[0].mxu0
      %3733 = vdwg.mxu0
      %3734 = vmatprep.subr.bf16.mxu0 %v1888
      %3735 = vmatpush1.bf16.msra.mxu0 %v1887
      %3736 = vmatprep.subr.bf16.mxu0 %v1904
      %3737 = vmatpush1.bf16.msra.mxu0 %v1903
      %3738 = vmatprep.subr.bf16.mxu0 %v2279
      %3739 = vmatpush1.bf16.msra.mxu0 %v2276
      %3740 = vmatprep.subr.bf16.mxu0 0
      %3741 = vmatpush1.bf16.msra.mxu0 0
      %3742 = vmatprep.subr.bf16.mxu0 0
      %3743 = vmatpush1.bf16.msra.mxu0 0
      %3744 = vmatprep.subr.bf16.mxu0 0
      %3745 = vmatpush1.bf16.msra.mxu0 0
      %3746 = vmatprep.subr.bf16.mxu0 0
      %3747 = vmatpush1.bf16.msra.mxu0 0
      %3748 = vmatprep.subr.bf16.mxu0 0
      %3749 = vmatpush1.bf16.msra.mxu0 0
      %3750 = vmatprep.subr.bf16.mxu0 0
      %3751 = vmatpush1.bf16.msra.mxu0 0
      %3752 = vmatprep.subr.bf16.mxu0 0
      %3753 = vmatpush1.bf16.msra.mxu0 0
      %3754 = vmatprep.subr.bf16.mxu0 0
      %3755 = vmatpush1.bf16.msra.mxu0 0
      %3756 = vmatprep.subr.bf16.mxu0 0
      %3757 = vmatpush1.bf16.msra.mxu0 0
      %3758 = vmatprep.subr.bf16.mxu0 0
      %3759 = vmatpush1.bf16.msra.mxu0 0
      %3760 = vmatprep.subr.bf16.mxu0 0
      %3761 = vmatpush1.bf16.msra.mxu0 0
      %3762 = vmatprep.subr.bf16.mxu0 0
      %3763 = vmatpush1.bf16.msra.mxu0 0
      %3764 = vmatprep.subr.bf16.mxu0 0
      %3765 = vmatpush1.bf16.msra.mxu0 0
      %3766 = vmatprep.mubr.bf16.mxu0 0
      %3767 = vmatmul.mubr.bf16.gmra.mrb[0].mxu0 %v2215
      %v3768 = vpop.f32.mrb[0].mxu0
      %v3769 = vadd.f32 %v3638, %v3768
      %v3770 = vpop.f32.mrb[0].mxu0
      %v3771 = vadd.f32 %v3640, %v3770
      %v3772 = vpop.f32.mrb[0].mxu0
      %v3773 = vadd.f32 %v3642, %v3772
      %v3774 = vpop.f32.mrb[0].mxu0
      %v3775 = vadd.f32 %v3644, %v3774
      %3776 = vmatprep.mubr.bf16.mxu0 0
      %3777 = vmatmul.mubr.bf16.gmra.mrb[0].mxu0 %v2218
      %v3778 = vpop.f32.mrb[0].mxu0
      %v3779 = vadd.f32 %v3648, %v3778
      %v3780 = vpop.f32.mrb[0].mxu0
      %v3781 = vadd.f32 %v3650, %v3780
      %v3782 = vpop.f32.mrb[0].mxu0
      %v3783 = vadd.f32 %v3652, %v3782
      %v3784 = vpop.f32.mrb[0].mxu0
      %v3785 = vadd.f32 %v3654, %v3784
      %3786 = vmatprep.mubr.bf16.mxu0 0
      %3787 = vmatmul.mubr.bf16.gmra.mrb[0].mxu0 %v2221
      %v3788 = vpop.f32.mrb[0].mxu0
      %v3789 = vadd.f32 %v3658, %v3788
      %v3790 = vpop.f32.mrb[0].mxu0
      %v3791 = vadd.f32 %v3660, %v3790
      %v3792 = vpop.f32.mrb[0].mxu0
      %v3793 = vadd.f32 %v3662, %v3792
      %v3794 = vpop.f32.mrb[0].mxu0
      %v3795 = vadd.f32 %v3664, %v3794
      %3796 = vmatprep.mubr.bf16.mxu0 0
      %3797 = vmatmul.mubr.bf16.gmra.mrb[0].mxu0 %v2224
      %v3798 = vpop.f32.mrb[0].mxu0
      %v3799 = vadd.f32 %v3668, %v3798
      %v3800 = vpop.f32.mrb[0].mxu0
      %v3801 = vadd.f32 %v3670, %v3800
      %v3802 = vpop.f32.mrb[0].mxu0
      %v3803 = vadd.f32 %v3672, %v3802
      %v3804 = vpop.f32.mrb[0].mxu0
      %v3805 = vadd.f32 %v3674, %v3804
      %3806 = vmatprep.mubr.bf16.mxu0 0
      %3807 = vmatmul.mubr.bf16.gmra.mrb[0].mxu0 %v2227
      %v3808 = vpop.f32.mrb[0].mxu0
      %v3809 = vadd.f32 %v3678, %v3808
      %v3810 = vpop.f32.mrb[0].mxu0
      %v3811 = vadd.f32 %v3680, %v3810
      %v3812 = vpop.f32.mrb[0].mxu0
      %v3813 = vadd.f32 %v3682, %v3812
      %v3814 = vpop.f32.mrb[0].mxu0
      %v3815 = vadd.f32 %v3684, %v3814
      %3816 = vmatprep.mubr.bf16.mxu0 0
      %3817 = vmatmul.mubr.bf16.gmra.mrb[0].mxu0 %v2230
      %v3818 = vpop.f32.mrb[0].mxu0
      %v3819 = vadd.f32 %v3688, %v3818
      %v3820 = vpop.f32.mrb[0].mxu0
      %v3821 = vadd.f32 %v3690, %v3820
      %v3822 = vpop.f32.mrb[0].mxu0
      %v3823 = vadd.f32 %v3692, %v3822
      %v3824 = vpop.f32.mrb[0].mxu0
      %v3825 = vadd.f32 %v3694, %v3824
      %3826 = vmatprep.mubr.bf16.mxu0 0
      %3827 = vmatmul.mubr.bf16.gmra.mrb[0].mxu0 %v2233
      %v3828 = vpop.f32.mrb[0].mxu0
      %v3829 = vadd.f32 %v3698, %v3828
      %v3830 = vpop.f32.mrb[0].mxu0
      %v3831 = vadd.f32 %v3700, %v3830
      %v3832 = vpop.f32.mrb[0].mxu0
      %v3833 = vadd.f32 %v3702, %v3832
      %v3834 = vpop.f32.mrb[0].mxu0
      %v3835 = vadd.f32 %v3704, %v3834
      %3836 = vmatprep.mubr.bf16.mxu0 0
      %3837 = vmatmul.mubr.bf16.gmra.mrb[0].mxu0 %v2236
      %v3838 = vpop.f32.mrb[0].mxu0
      %v3839 = vadd.f32 %v3708, %v3838
      %v3840 = vpop.f32.mrb[0].mxu0
      %v3841 = vadd.f32 %v3710, %v3840
      %v3842 = vpop.f32.mrb[0].mxu0
      %v3843 = vadd.f32 %v3712, %v3842
      %v3844 = vpop.f32.mrb[0].mxu0
      %v3845 = vadd.f32 %v3714, %v3844
      %3846 = vmatprep.mubr.bf16.mxu0 0
      %3847 = vmatmul.mubr.bf16.gmra.mrb[0].mxu0 %v2239
      %v3848 = vpop.f32.mrb[0].mxu0
      %v3849 = vadd.f32 %v3718, %v3848
      %v3850 = vpop.f32.mrb[0].mxu0
      %v3851 = vadd.f32 %v3720, %v3850
      %v3852 = vpop.f32.mrb[0].mxu0
      %v3853 = vadd.f32 %v3722, %v3852
      %v3854 = vpop.f32.mrb[0].mxu0
      %v3855 = vadd.f32 %v3724, %v3854
      %3856 = vmatprep.mubr.bf16.mxu0 0
      %3857 = vmatmul.mubr.bf16.gmra.mrb[0].mxu0 %v2242
      %v3858 = vpop.f32.mrb[0].mxu0
      %v3859 = vadd.f32 %v3728, %v3858
      %v3860 = vpop.f32.mrb[0].mxu0
      %v3861 = vadd.f32 %v3730, %v3860
      %v3862 = vpop.f32.mrb[0].mxu0
      %v3863 = vpop.f32.mrb[0].mxu0
      %3864 = vdwg.mxu0
      %3865 = vmatprep.subr.bf16.mxu0 %v1634
      %3866 = vmatpush1.bf16.msra.mxu0 %v1633
      %3867 = vmatprep.subr.bf16.mxu0 %v1650
      %3868 = vmatpush1.bf16.msra.mxu0 %v1649
      %3869 = vmatprep.subr.bf16.mxu0 %v1666
      %3870 = vmatpush1.bf16.msra.mxu0 %v1665
      %3871 = vmatprep.subr.bf16.mxu0 %v1682
      %3872 = vmatpush1.bf16.msra.mxu0 %v1681
      %3873 = vmatprep.subr.bf16.mxu0 %v1698
      %3874 = vmatpush1.bf16.msra.mxu0 %v1697
      %3875 = vmatprep.subr.bf16.mxu0 %v1714
      %3876 = vmatpush1.bf16.msra.mxu0 %v1713
      %3877 = vmatprep.subr.bf16.mxu0 %v1730
      %3878 = vmatpush1.bf16.msra.mxu0 %v1729
      %3879 = vmatprep.subr.bf16.mxu0 %v1746
      %3880 = vmatpush1.bf16.msra.mxu0 %v1745
      %3881 = vmatprep.subr.bf16.mxu0 %v1762
      %3882 = vmatpush1.bf16.msra.mxu0 %v1761
      %3883 = vmatprep.subr.bf16.mxu0 %v1778
      %3884 = vmatpush1.bf16.msra.mxu0 %v1777
      %3885 = vmatprep.subr.bf16.mxu0 %v1794
      %3886 = vmatpush1.bf16.msra.mxu0 %v1793
      %3887 = vmatprep.subr.bf16.mxu0 %v1810
      %3888 = vmatpush1.bf16.msra.mxu0 %v1809
      %3889 = vmatprep.subr.bf16.mxu0 %v1826
      %3890 = vmatpush1.bf16.msra.mxu0 %v1825
      %3891 = vmatprep.subr.bf16.mxu0 %v1842
      %3892 = vmatpush1.bf16.msra.mxu0 %v1841
      %3893 = vmatprep.subr.bf16.mxu0 %v1858
      %3894 = vmatpush1.bf16.msra.mxu0 %v1857
      %3895 = vmatprep.subr.bf16.mxu0 %v1874
      %3896 = vmatpush1.bf16.msra.mxu0 %v1873
      %3897 = vmatprep.mubr.bf16.mxu0 %v660
      %3898 = vmatmul.mubr.bf16.gmra.mrb[0].mxu0 %v659
      %v3899 = vpop.f32.mrb[0].mxu0
      %v3900 = vadd.f32 0.0, %v3899
      %v3901 = vpop.f32.mrb[0].mxu0
      %v3902 = vadd.f32 0.0, %v3901
      %v3903 = vpop.f32.mrb[0].mxu0
      %v3904 = vadd.f32 0.0, %v3903
      %v3905 = vpop.f32.mrb[0].mxu0
      %v3906 = vadd.f32 0.0, %v3905
      %3907 = vmatprep.mubr.bf16.mxu0 %v663
      %3908 = vmatmul.mubr.bf16.gmra.mrb[0].mxu0 %v662
      %v3909 = vpop.f32.mrb[0].mxu0
      %v3910 = vadd.f32 0.0, %v3909
      %v3911 = vpop.f32.mrb[0].mxu0
      %v3912 = vadd.f32 0.0, %v3911
      %v3913 = vpop.f32.mrb[0].mxu0
      %v3914 = vadd.f32 0.0, %v3913
      %v3915 = vpop.f32.mrb[0].mxu0
      %v3916 = vadd.f32 0.0, %v3915
      %3917 = vmatprep.mubr.bf16.mxu0 %v666
      %3918 = vmatmul.mubr.bf16.gmra.mrb[0].mxu0 %v665
      %v3919 = vpop.f32.mrb[0].mxu0
      %v3920 = vadd.f32 0.0, %v3919
      %v3921 = vpop.f32.mrb[0].mxu0
      %v3922 = vadd.f32 0.0, %v3921
      %v3923 = vpop.f32.mrb[0].mxu0
      %v3924 = vadd.f32 0.0, %v3923
      %v3925 = vpop.f32.mrb[0].mxu0
      %v3926 = vadd.f32 0.0, %v3925
      %3927 = vmatprep.mubr.bf16.mxu0 %v669
      %3928 = vmatmul.mubr.bf16.gmra.mrb[0].mxu0 %v668
      %v3929 = vpop.f32.mrb[0].mxu0
      %v3930 = vadd.f32 0.0, %v3929
      %v3931 = vpop.f32.mrb[0].mxu0
      %v3932 = vadd.f32 0.0, %v3931
      %v3933 = vpop.f32.mrb[0].mxu0
      %v3934 = vadd.f32 0.0, %v3933
      %v3935 = vpop.f32.mrb[0].mxu0
      %v3936 = vadd.f32 0.0, %v3935
      %3937 = vmatprep.mubr.bf16.mxu0 %v672
      %3938 = vmatmul.mubr.bf16.gmra.mrb[0].mxu0 %v671
      %v3939 = vpop.f32.mrb[0].mxu0
      %v3940 = vadd.f32 0.0, %v3939
      %v3941 = vpop.f32.mrb[0].mxu0
      %v3942 = vadd.f32 0.0, %v3941
      %v3943 = vpop.f32.mrb[0].mxu0
      %v3944 = vadd.f32 0.0, %v3943
      %v3945 = vpop.f32.mrb[0].mxu0
      %v3946 = vadd.f32 0.0, %v3945
      %3947 = vmatprep.mubr.bf16.mxu0 %v675
      %3948 = vmatmul.mubr.bf16.gmra.mrb[0].mxu0 %v674
      %v3949 = vpop.f32.mrb[0].mxu0
      %v3950 = vadd.f32 0.0, %v3949
      %v3951 = vpop.f32.mrb[0].mxu0
      %v3952 = vadd.f32 0.0, %v3951
      %v3953 = vpop.f32.mrb[0].mxu0
      %v3954 = vadd.f32 0.0, %v3953
      %v3955 = vpop.f32.mrb[0].mxu0
      %v3956 = vadd.f32 0.0, %v3955
      %3957 = vmatprep.mubr.bf16.mxu0 %v678
      %3958 = vmatmul.mubr.bf16.gmra.mrb[0].mxu0 %v677
      %v3959 = vpop.f32.mrb[0].mxu0
      %v3960 = vadd.f32 0.0, %v3959
      %v3961 = vpop.f32.mrb[0].mxu0
      %v3962 = vadd.f32 0.0, %v3961
      %v3963 = vpop.f32.mrb[0].mxu0
      %v3964 = vadd.f32 0.0, %v3963
      %v3965 = vpop.f32.mrb[0].mxu0
      %v3966 = vadd.f32 0.0, %v3965
      %3967 = vmatprep.mubr.bf16.mxu0 %v681
      %3968 = vmatmul.mubr.bf16.gmra.mrb[0].mxu0 %v680
      %v3969 = vpop.f32.mrb[0].mxu0
      %v3970 = vadd.f32 0.0, %v3969
      %v3971 = vpop.f32.mrb[0].mxu0
      %v3972 = vadd.f32 0.0, %v3971
      %v3973 = vpop.f32.mrb[0].mxu0
      %v3974 = vadd.f32 0.0, %v3973
      %v3975 = vpop.f32.mrb[0].mxu0
      %v3976 = vadd.f32 0.0, %v3975
      %3977 = vmatprep.mubr.bf16.mxu0 %v684
      %3978 = vmatmul.mubr.bf16.gmra.mrb[0].mxu0 %v683
      %v3979 = vpop.f32.mrb[0].mxu0
      %v3980 = vadd.f32 0.0, %v3979
      %v3981 = vpop.f32.mrb[0].mxu0
      %v3982 = vadd.f32 0.0, %v3981
      %v3983 = vpop.f32.mrb[0].mxu0
      %v3984 = vadd.f32 0.0, %v3983
      %v3985 = vpop.f32.mrb[0].mxu0
      %v3986 = vadd.f32 0.0, %v3985
      %3987 = vmatprep.mubr.bf16.mxu0 %v687
      %3988 = vmatmul.mubr.bf16.gmra.mrb[0].mxu0 %v686
      %v3989 = vpop.f32.mrb[0].mxu0
      %v3990 = vadd.f32 0.0, %v3989
      %v3991 = vpop.f32.mrb[0].mxu0
      %v3992 = vadd.f32 0.0, %v3991
      %v3993 = vpop.f32.mrb[0].mxu0
      %v3994 = vpop.f32.mrb[0].mxu0
      %3995 = vdwg.mxu0
      %3996 = vmatprep.subr.bf16.mxu0 %v1890
      %3997 = vmatpush1.bf16.msra.mxu0 %v1889
      %3998 = vmatprep.subr.bf16.mxu0 %v1906
      %3999 = vmatpush1.bf16.msra.mxu0 %v1905
      %4000 = vmatprep.subr.bf16.mxu0 %v2285
      %4001 = vmatpush1.bf16.msra.mxu0 %v2282
      %4002 = vmatprep.subr.bf16.mxu0 0
      %4003 = vmatpush1.bf16.msra.mxu0 0
      %4004 = vmatprep.subr.bf16.mxu0 0
      %4005 = vmatpush1.bf16.msra.mxu0 0
      %4006 = vmatprep.subr.bf16.mxu0 0
      %4007 = vmatpush1.bf16.msra.mxu0 0
      %4008 = vmatprep.subr.bf16.mxu0 0
      %4009 = vmatpush1.bf16.msra.mxu0 0
      %4010 = vmatprep.subr.bf16.mxu0 0
      %4011 = vmatpush1.bf16.msra.mxu0 0
      %4012 = vmatprep.subr.bf16.mxu0 0
      %4013 = vmatpush1.bf16.msra.mxu0 0
      %4014 = vmatprep.subr.bf16.mxu0 0
      %4015 = vmatpush1.bf16.msra.mxu0 0
      %4016 = vmatprep.subr.bf16.mxu0 0
      %4017 = vmatpush1.bf16.msra.mxu0 0
      %4018 = vmatprep.subr.bf16.mxu0 0
      %4019 = vmatpush1.bf16.msra.mxu0 0
      %4020 = vmatprep.subr.bf16.mxu0 0
      %4021 = vmatpush1.bf16.msra.mxu0 0
      %4022 = vmatprep.subr.bf16.mxu0 0
      %4023 = vmatpush1.bf16.msra.mxu0 0
      %4024 = vmatprep.subr.bf16.mxu0 0
      %4025 = vmatpush1.bf16.msra.mxu0 0
      %4026 = vmatprep.subr.bf16.mxu0 0
      %4027 = vmatpush1.bf16.msra.mxu0 0
      %4028 = vmatprep.mubr.bf16.mxu0 0
      %4029 = vmatmul.mubr.bf16.gmra.mrb[0].mxu0 %v2215
      %v4030 = vpop.f32.mrb[0].mxu0
      %v4031 = vadd.f32 %v3900, %v4030
      %v4032 = vpop.f32.mrb[0].mxu0
      %v4033 = vadd.f32 %v3902, %v4032
      %v4034 = vpop.f32.mrb[0].mxu0
      %v4035 = vadd.f32 %v3904, %v4034
      %v4036 = vpop.f32.mrb[0].mxu0
      %v4037 = vadd.f32 %v3906, %v4036
      %4038 = vmatprep.mubr.bf16.mxu0 0
      %4039 = vmatmul.mubr.bf16.gmra.mrb[0].mxu0 %v2218
      %v4040 = vpop.f32.mrb[0].mxu0
      %v4041 = vadd.f32 %v3910, %v4040
      %v4042 = vpop.f32.mrb[0].mxu0
      %v4043 = vadd.f32 %v3912, %v4042
      %v4044 = vpop.f32.mrb[0].mxu0
      %v4045 = vadd.f32 %v3914, %v4044
      %v4046 = vpop.f32.mrb[0].mxu0
      %v4047 = vadd.f32 %v3916, %v4046
      %4048 = vmatprep.mubr.bf16.mxu0 0
      %4049 = vmatmul.mubr.bf16.gmra.mrb[0].mxu0 %v2221
      %v4050 = vpop.f32.mrb[0].mxu0
      %v4051 = vadd.f32 %v3920, %v4050
      %v4052 = vpop.f32.mrb[0].mxu0
      %v4053 = vadd.f32 %v3922, %v4052
      %v4054 = vpop.f32.mrb[0].mxu0
      %v4055 = vadd.f32 %v3924, %v4054
      %v4056 = vpop.f32.mrb[0].mxu0
      %v4057 = vadd.f32 %v3926, %v4056
      %4058 = vmatprep.mubr.bf16.mxu0 0
      %4059 = vmatmul.mubr.bf16.gmra.mrb[0].mxu0 %v2224
      %v4060 = vpop.f32.mrb[0].mxu0
      %v4061 = vadd.f32 %v3930, %v4060
      %v4062 = vpop.f32.mrb[0].mxu0
      %v4063 = vadd.f32 %v3932, %v4062
      %v4064 = vpop.f32.mrb[0].mxu0
      %v4065 = vadd.f32 %v3934, %v4064
      %v4066 = vpop.f32.mrb[0].mxu0
      %v4067 = vadd.f32 %v3936, %v4066
      %4068 = vmatprep.mubr.bf16.mxu0 0
      %4069 = vmatmul.mubr.bf16.gmra.mrb[0].mxu0 %v2227
      %v4070 = vpop.f32.mrb[0].mxu0
      %v4071 = vadd.f32 %v3940, %v4070
      %v4072 = vpop.f32.mrb[0].mxu0
      %v4073 = vadd.f32 %v3942, %v4072
      %v4074 = vpop.f32.mrb[0].mxu0
      %v4075 = vadd.f32 %v3944, %v4074
      %v4076 = vpop.f32.mrb[0].mxu0
      %v4077 = vadd.f32 %v3946, %v4076
      %4078 = vmatprep.mubr.bf16.mxu0 0
      %4079 = vmatmul.mubr.bf16.gmra.mrb[0].mxu0 %v2230
      %v4080 = vpop.f32.mrb[0].mxu0
      %v4081 = vadd.f32 %v3950, %v4080
      %v4082 = vpop.f32.mrb[0].mxu0
      %v4083 = vadd.f32 %v3952, %v4082
      %v4084 = vpop.f32.mrb[0].mxu0
      %v4085 = vadd.f32 %v3954, %v4084
      %v4086 = vpop.f32.mrb[0].mxu0
      %v4087 = vadd.f32 %v3956, %v4086
      %4088 = vmatprep.mubr.bf16.mxu0 0
      %4089 = vmatmul.mubr.bf16.gmra.mrb[0].mxu0 %v2233
      %v4090 = vpop.f32.mrb[0].mxu0
      %v4091 = vadd.f32 %v3960, %v4090
      %v4092 = vpop.f32.mrb[0].mxu0
      %v4093 = vadd.f32 %v3962, %v4092
      %v4094 = vpop.f32.mrb[0].mxu0
      %v4095 = vadd.f32 %v3964, %v4094
      %v4096 = vpop.f32.mrb[0].mxu0
      %v4097 = vadd.f32 %v3966, %v4096
      %4098 = vmatprep.mubr.bf16.mxu0 0
      %4099 = vmatmul.mubr.bf16.gmra.mrb[0].mxu0 %v2236
      %v4100 = vpop.f32.mrb[0].mxu0
      %v4101 = vadd.f32 %v3970, %v4100
      %v4102 = vpop.f32.mrb[0].mxu0
      %v4103 = vadd.f32 %v3972, %v4102
      %v4104 = vpop.f32.mrb[0].mxu0
      %v4105 = vadd.f32 %v3974, %v4104
      %v4106 = vpop.f32.mrb[0].mxu0
      %v4107 = vadd.f32 %v3976, %v4106
      %4108 = vmatprep.mubr.bf16.mxu0 0
      %4109 = vmatmul.mubr.bf16.gmra.mrb[0].mxu0 %v2239
      %v4110 = vpop.f32.mrb[0].mxu0
      %v4111 = vadd.f32 %v3980, %v4110
      %v4112 = vpop.f32.mrb[0].mxu0
      %v4113 = vadd.f32 %v3982, %v4112
      %v4114 = vpop.f32.mrb[0].mxu0
      %v4115 = vadd.f32 %v3984, %v4114
      %v4116 = vpop.f32.mrb[0].mxu0
      %v4117 = vadd.f32 %v3986, %v4116
      %4118 = vmatprep.mubr.bf16.mxu0 0
      %4119 = vmatmul.mubr.bf16.gmra.mrb[0].mxu0 %v2242
      %v4120 = vpop.f32.mrb[0].mxu0
      %v4121 = vadd.f32 %v3990, %v4120
      %v4122 = vpop.f32.mrb[0].mxu0
      %v4123 = vadd.f32 %v3992, %v4122
      %v4124 = vpop.f32.mrb[0].mxu0
      %v4125 = vpop.f32.mrb[0].mxu0
      %4126 = vdwg.mxu0
      %4127 = vmatprep.subr.bf16.mxu0 %v1636
      %4128 = vmatpush1.bf16.msra.mxu0 %v1635
      %4129 = vmatprep.subr.bf16.mxu0 %v1652
      %4130 = vmatpush1.bf16.msra.mxu0 %v1651
      %4131 = vmatprep.subr.bf16.mxu0 %v1668
      %4132 = vmatpush1.bf16.msra.mxu0 %v1667
      %4133 = vmatprep.subr.bf16.mxu0 %v1684
      %4134 = vmatpush1.bf16.msra.mxu0 %v1683
      %4135 = vmatprep.subr.bf16.mxu0 %v1700
      %4136 = vmatpush1.bf16.msra.mxu0 %v1699
      %4137 = vmatprep.subr.bf16.mxu0 %v1716
      %4138 = vmatpush1.bf16.msra.mxu0 %v1715
      %4139 = vmatprep.subr.bf16.mxu0 %v1732
      %4140 = vmatpush1.bf16.msra.mxu0 %v1731
      %4141 = vmatprep.subr.bf16.mxu0 %v1748
      %4142 = vmatpush1.bf16.msra.mxu0 %v1747
      %4143 = vmatprep.subr.bf16.mxu0 %v1764
      %4144 = vmatpush1.bf16.msra.mxu0 %v1763
      %4145 = vmatprep.subr.bf16.mxu0 %v1780
      %4146 = vmatpush1.bf16.msra.mxu0 %v1779
      %4147 = vmatprep.subr.bf16.mxu0 %v1796
      %4148 = vmatpush1.bf16.msra.mxu0 %v1795
      %4149 = vmatprep.subr.bf16.mxu0 %v1812
      %4150 = vmatpush1.bf16.msra.mxu0 %v1811
      %4151 = vmatprep.subr.bf16.mxu0 %v1828
      %4152 = vmatpush1.bf16.msra.mxu0 %v1827
      %4153 = vmatprep.subr.bf16.mxu0 %v1844
      %4154 = vmatpush1.bf16.msra.mxu0 %v1843
      %4155 = vmatprep.subr.bf16.mxu0 %v1860
      %4156 = vmatpush1.bf16.msra.mxu0 %v1859
      %4157 = vmatprep.subr.bf16.mxu0 %v1876
      %4158 = vmatpush1.bf16.msra.mxu0 %v1875
      %4159 = vmatprep.mubr.bf16.mxu0 %v660
      %4160 = vmatmul.mubr.bf16.gmra.mrb[0].mxu0 %v659
      %v4161 = vpop.f32.mrb[0].mxu0
      %v4162 = vadd.f32 0.0, %v4161
      %v4163 = vpop.f32.mrb[0].mxu0
      %v4164 = vadd.f32 0.0, %v4163
      %v4165 = vpop.f32.mrb[0].mxu0
      %v4166 = vadd.f32 0.0, %v4165
      %v4167 = vpop.f32.mrb[0].mxu0
      %v4168 = vadd.f32 0.0, %v4167
      %4169 = vmatprep.mubr.bf16.mxu0 %v663
      %4170 = vmatmul.mubr.bf16.gmra.mrb[0].mxu0 %v662
      %v4171 = vpop.f32.mrb[0].mxu0
      %v4172 = vadd.f32 0.0, %v4171
      %v4173 = vpop.f32.mrb[0].mxu0
      %v4174 = vadd.f32 0.0, %v4173
      %v4175 = vpop.f32.mrb[0].mxu0
      %v4176 = vadd.f32 0.0, %v4175
      %v4177 = vpop.f32.mrb[0].mxu0
      %v4178 = vadd.f32 0.0, %v4177
      %4179 = vmatprep.mubr.bf16.mxu0 %v666
      %4180 = vmatmul.mubr.bf16.gmra.mrb[0].mxu0 %v665
      %v4181 = vpop.f32.mrb[0].mxu0
      %v4182 = vadd.f32 0.0, %v4181
      %v4183 = vpop.f32.mrb[0].mxu0
      %v4184 = vadd.f32 0.0, %v4183
      %v4185 = vpop.f32.mrb[0].mxu0
      %v4186 = vadd.f32 0.0, %v4185
      %v4187 = vpop.f32.mrb[0].mxu0
      %v4188 = vadd.f32 0.0, %v4187
      %4189 = vmatprep.mubr.bf16.mxu0 %v669
      %4190 = vmatmul.mubr.bf16.gmra.mrb[0].mxu0 %v668
      %v4191 = vpop.f32.mrb[0].mxu0
      %v4192 = vadd.f32 0.0, %v4191
      %v4193 = vpop.f32.mrb[0].mxu0
      %v4194 = vadd.f32 0.0, %v4193
      %v4195 = vpop.f32.mrb[0].mxu0
      %v4196 = vadd.f32 0.0, %v4195
      %v4197 = vpop.f32.mrb[0].mxu0
      %v4198 = vadd.f32 0.0, %v4197
      %4199 = vmatprep.mubr.bf16.mxu0 %v672
      %4200 = vmatmul.mubr.bf16.gmra.mrb[0].mxu0 %v671
      %v4201 = vpop.f32.mrb[0].mxu0
      %v4202 = vadd.f32 0.0, %v4201
      %v4203 = vpop.f32.mrb[0].mxu0
      %v4204 = vadd.f32 0.0, %v4203
      %v4205 = vpop.f32.mrb[0].mxu0
      %v4206 = vadd.f32 0.0, %v4205
      %v4207 = vpop.f32.mrb[0].mxu0
      %v4208 = vadd.f32 0.0, %v4207
      %4209 = vmatprep.mubr.bf16.mxu0 %v675
      %4210 = vmatmul.mubr.bf16.gmra.mrb[0].mxu0 %v674
      %v4211 = vpop.f32.mrb[0].mxu0
      %v4212 = vadd.f32 0.0, %v4211
      %v4213 = vpop.f32.mrb[0].mxu0
      %v4214 = vadd.f32 0.0, %v4213
      %v4215 = vpop.f32.mrb[0].mxu0
      %v4216 = vadd.f32 0.0, %v4215
      %v4217 = vpop.f32.mrb[0].mxu0
      %v4218 = vadd.f32 0.0, %v4217
      %4219 = vmatprep.mubr.bf16.mxu0 %v678
      %4220 = vmatmul.mubr.bf16.gmra.mrb[0].mxu0 %v677
      %v4221 = vpop.f32.mrb[0].mxu0
      %v4222 = vadd.f32 0.0, %v4221
      %v4223 = vpop.f32.mrb[0].mxu0
      %v4224 = vadd.f32 0.0, %v4223
      %v4225 = vpop.f32.mrb[0].mxu0
      %v4226 = vadd.f32 0.0, %v4225
      %v4227 = vpop.f32.mrb[0].mxu0
      %v4228 = vadd.f32 0.0, %v4227
      %4229 = vmatprep.mubr.bf16.mxu0 %v681
      %4230 = vmatmul.mubr.bf16.gmra.mrb[0].mxu0 %v680
      %v4231 = vpop.f32.mrb[0].mxu0
      %v4232 = vadd.f32 0.0, %v4231
      %v4233 = vpop.f32.mrb[0].mxu0
      %v4234 = vadd.f32 0.0, %v4233
      %v4235 = vpop.f32.mrb[0].mxu0
      %v4236 = vadd.f32 0.0, %v4235
      %v4237 = vpop.f32.mrb[0].mxu0
      %v4238 = vadd.f32 0.0, %v4237
      %4239 = vmatprep.mubr.bf16.mxu0 %v684
      %4240 = vmatmul.mubr.bf16.gmra.mrb[0].mxu0 %v683
      %v4241 = vpop.f32.mrb[0].mxu0
      %v4242 = vadd.f32 0.0, %v4241
      %v4243 = vpop.f32.mrb[0].mxu0
      %v4244 = vadd.f32 0.0, %v4243
      %v4245 = vpop.f32.mrb[0].mxu0
      %v4246 = vadd.f32 0.0, %v4245
      %v4247 = vpop.f32.mrb[0].mxu0
      %v4248 = vadd.f32 0.0, %v4247
      %4249 = vmatprep.mubr.bf16.mxu0 %v687
      %4250 = vmatmul.mubr.bf16.gmra.mrb[0].mxu0 %v686
      %v4251 = vpop.f32.mrb[0].mxu0
      %v4252 = vadd.f32 0.0, %v4251
      %v4253 = vpop.f32.mrb[0].mxu0
      %v4254 = vadd.f32 0.0, %v4253
      %v4255 = vpop.f32.mrb[0].mxu0
      %v4256 = vpop.f32.mrb[0].mxu0
      %4257 = vdwg.mxu0
      %4258 = vmatprep.subr.bf16.mxu0 %v1892
      %4259 = vmatpush1.bf16.msra.mxu0 %v1891
      %4260 = vmatprep.subr.bf16.mxu0 %v1908
      %4261 = vmatpush1.bf16.msra.mxu0 %v1907
      %4262 = vmatprep.subr.bf16.mxu0 %v2291
      %4263 = vmatpush1.bf16.msra.mxu0 %v2288
      %4264 = vmatprep.subr.bf16.mxu0 0
      %4265 = vmatpush1.bf16.msra.mxu0 0
      %4266 = vmatprep.subr.bf16.mxu0 0
      %4267 = vmatpush1.bf16.msra.mxu0 0
      %4268 = vmatprep.subr.bf16.mxu0 0
      %4269 = vmatpush1.bf16.msra.mxu0 0
      %4270 = vmatprep.subr.bf16.mxu0 0
      %4271 = vmatpush1.bf16.msra.mxu0 0
      %4272 = vmatprep.subr.bf16.mxu0 0
      %4273 = vmatpush1.bf16.msra.mxu0 0
      %4274 = vmatprep.subr.bf16.mxu0 0
      %4275 = vmatpush1.bf16.msra.mxu0 0
      %4276 = vmatprep.subr.bf16.mxu0 0
      %4277 = vmatpush1.bf16.msra.mxu0 0
      %4278 = vmatprep.subr.bf16.mxu0 0
      %4279 = vmatpush1.bf16.msra.mxu0 0
      %4280 = vmatprep.subr.bf16.mxu0 0
      %4281 = vmatpush1.bf16.msra.mxu0 0
      %4282 = vmatprep.subr.bf16.mxu0 0
      %4283 = vmatpush1.bf16.msra.mxu0 0
      %4284 = vmatprep.subr.bf16.mxu0 0
      %4285 = vmatpush1.bf16.msra.mxu0 0
      %4286 = vmatprep.subr.bf16.mxu0 0
      %4287 = vmatpush1.bf16.msra.mxu0 0
      %4288 = vmatprep.subr.bf16.mxu0 0
      %4289 = vmatpush1.bf16.msra.mxu0 0
      %4290 = vmatprep.mubr.bf16.mxu0 0
      %4291 = vmatmul.mubr.bf16.gmra.mrb[0].mxu0 %v2215
      %v4292 = vpop.f32.mrb[0].mxu0
      %v4293 = vadd.f32 %v4162, %v4292
      %v4294 = vpop.f32.mrb[0].mxu0
      %v4295 = vadd.f32 %v4164, %v4294
      %v4296 = vpop.f32.mrb[0].mxu0
      %v4297 = vadd.f32 %v4166, %v4296
      %v4298 = vpop.f32.mrb[0].mxu0
      %v4299 = vadd.f32 %v4168, %v4298
      %4300 = vmatprep.mubr.bf16.mxu0 0
      %4301 = vmatmul.mubr.bf16.gmra.mrb[0].mxu0 %v2218
      %v4302 = vpop.f32.mrb[0].mxu0
      %v4303 = vadd.f32 %v4172, %v4302
      %v4304 = vpop.f32.mrb[0].mxu0
      %v4305 = vadd.f32 %v4174, %v4304
      %v4306 = vpop.f32.mrb[0].mxu0
      %v4307 = vadd.f32 %v4176, %v4306
      %v4308 = vpop.f32.mrb[0].mxu0
      %v4309 = vadd.f32 %v4178, %v4308
      %4310 = vmatprep.mubr.bf16.mxu0 0
      %4311 = vmatmul.mubr.bf16.gmra.mrb[0].mxu0 %v2221
      %v4312 = vpop.f32.mrb[0].mxu0
      %v4313 = vadd.f32 %v4182, %v4312
      %v4314 = vpop.f32.mrb[0].mxu0
      %v4315 = vadd.f32 %v4184, %v4314
      %v4316 = vpop.f32.mrb[0].mxu0
      %v4317 = vadd.f32 %v4186, %v4316
      %v4318 = vpop.f32.mrb[0].mxu0
      %v4319 = vadd.f32 %v4188, %v4318
      %4320 = vmatprep.mubr.bf16.mxu0 0
      %4321 = vmatmul.mubr.bf16.gmra.mrb[0].mxu0 %v2224
      %v4322 = vpop.f32.mrb[0].mxu0
      %v4323 = vadd.f32 %v4192, %v4322
      %v4324 = vpop.f32.mrb[0].mxu0
      %v4325 = vadd.f32 %v4194, %v4324
      %v4326 = vpop.f32.mrb[0].mxu0
      %v4327 = vadd.f32 %v4196, %v4326
      %v4328 = vpop.f32.mrb[0].mxu0
      %v4329 = vadd.f32 %v4198, %v4328
      %4330 = vmatprep.mubr.bf16.mxu0 0
      %4331 = vmatmul.mubr.bf16.gmra.mrb[0].mxu0 %v2227
      %v4332 = vpop.f32.mrb[0].mxu0
      %v4333 = vadd.f32 %v4202, %v4332
      %v4334 = vpop.f32.mrb[0].mxu0
      %v4335 = vadd.f32 %v4204, %v4334
      %v4336 = vpop.f32.mrb[0].mxu0
      %v4337 = vadd.f32 %v4206, %v4336
      %v4338 = vpop.f32.mrb[0].mxu0
      %v4339 = vadd.f32 %v4208, %v4338
      %4340 = vmatprep.mubr.bf16.mxu0 0
      %4341 = vmatmul.mubr.bf16.gmra.mrb[0].mxu0 %v2230
      %v4342 = vpop.f32.mrb[0].mxu0
      %v4343 = vadd.f32 %v4212, %v4342
      %v4344 = vpop.f32.mrb[0].mxu0
      %v4345 = vadd.f32 %v4214, %v4344
      %v4346 = vpop.f32.mrb[0].mxu0
      %v4347 = vadd.f32 %v4216, %v4346
      %v4348 = vpop.f32.mrb[0].mxu0
      %v4349 = vadd.f32 %v4218, %v4348
      %4350 = vmatprep.mubr.bf16.mxu0 0
      %4351 = vmatmul.mubr.bf16.gmra.mrb[0].mxu0 %v2233
      %v4352 = vpop.f32.mrb[0].mxu0
      %v4353 = vadd.f32 %v4222, %v4352
      %v4354 = vpop.f32.mrb[0].mxu0
      %v4355 = vadd.f32 %v4224, %v4354
      %v4356 = vpop.f32.mrb[0].mxu0
      %v4357 = vadd.f32 %v4226, %v4356
      %v4358 = vpop.f32.mrb[0].mxu0
      %v4359 = vadd.f32 %v4228, %v4358
      %4360 = vmatprep.mubr.bf16.mxu0 0
      %4361 = vmatmul.mubr.bf16.gmra.mrb[0].mxu0 %v2236
      %v4362 = vpop.f32.mrb[0].mxu0
      %v4363 = vadd.f32 %v4232, %v4362
      %v4364 = vpop.f32.mrb[0].mxu0
      %v4365 = vadd.f32 %v4234, %v4364
      %v4366 = vpop.f32.mrb[0].mxu0
      %v4367 = vadd.f32 %v4236, %v4366
      %v4368 = vpop.f32.mrb[0].mxu0
      %v4369 = vadd.f32 %v4238, %v4368
      %4370 = vmatprep.mubr.bf16.mxu0 0
      %4371 = vmatmul.mubr.bf16.gmra.mrb[0].mxu0 %v2239
      %v4372 = vpop.f32.mrb[0].mxu0
      %v4373 = vadd.f32 %v4242, %v4372
      %v4374 = vpop.f32.mrb[0].mxu0
      %v4375 = vadd.f32 %v4244, %v4374
      %v4376 = vpop.f32.mrb[0].mxu0
      %v4377 = vadd.f32 %v4246, %v4376
      %v4378 = vpop.f32.mrb[0].mxu0
      %v4379 = vadd.f32 %v4248, %v4378
      %4380 = vmatprep.mubr.bf16.mxu0 0
      %4381 = vmatmul.mubr.bf16.gmra.mrb[0].mxu0 %v2242
      %v4382 = vpop.f32.mrb[0].mxu0
      %v4383 = vadd.f32 %v4252, %v4382
      %v4384 = vpop.f32.mrb[0].mxu0
      %v4385 = vadd.f32 %v4254, %v4384
      %v4386 = vpop.f32.mrb[0].mxu0
      %v4387 = vpop.f32.mrb[0].mxu0
      %4388 = vdwg.mxu0
      %v4389 = vmax.f32 %v2459, %v2463
      %v4390 = vmax.f32 %v4389, %v2469
      %vm4391 = vcmask 1040384
      %v4392 = vsel %vm4391, %v2473, -inf
      %v4393 = vmax.f32 %v4390, %v4392
      %v4394 = vrot.slane %v4393, 4
      %v4395 = vmax.f32 %v4393, %v4394
      %v4396 = vrot.slane %v4395, 2
      %v4397 = vmax.f32 %v4395, %v4396
      %v4398 = vrot.slane %v4397, 1
      %v4399 = vmax.f32 %v4397, %v4398
      %v4400 = vmax.f32 %v2461, %v2465
      %v4401 = vmax.f32 %v4400, %v2471
      %v4402 = vsel %vm4391, %v2475, -inf
      %v4403 = vmax.f32 %v4401, %v4402
      %v4404 = vrot.slane %v4403, 4
      %v4405 = vmax.f32 %v4403, %v4404
      %v4406 = vrot.slane %v4405, 2
      %v4407 = vmax.f32 %v4405, %v4406
      %v4408 = vrot.slane %v4407, 1
      %v4409 = vmax.f32 %v4407, %v4408
      %v4410 = vmax.f32 %v2721, %v2725
      %v4411 = vmax.f32 %v4410, %v2731
      %v4412 = vsel %vm4391, %v2735, -inf
      %v4413 = vmax.f32 %v4411, %v4412
      %v4414 = vrot.slane %v4413, 4
      %v4415 = vmax.f32 %v4413, %v4414
      %v4416 = vrot.slane %v4415, 2
      %v4417 = vmax.f32 %v4415, %v4416
      %v4418 = vrot.slane %v4417, 1
      %v4419 = vmax.f32 %v4417, %v4418
      %v4420 = vmax.f32 %v2723, %v2727
      %v4421 = vmax.f32 %v4420, %v2733
      %v4422 = vsel %vm4391, %v2737, -inf
      %v4423 = vmax.f32 %v4421, %v4422
      %v4424 = vrot.slane %v4423, 4
      %v4425 = vmax.f32 %v4423, %v4424
      %v4426 = vrot.slane %v4425, 2
      %v4427 = vmax.f32 %v4425, %v4426
      %v4428 = vrot.slane %v4427, 1
      %v4429 = vmax.f32 %v4427, %v4428
      %v4430 = vmax.f32 %v2983, %v2987
      %v4431 = vmax.f32 %v4430, %v2993
      %v4432 = vsel %vm4391, %v2997, -inf
      %v4433 = vmax.f32 %v4431, %v4432
      %v4434 = vrot.slane %v4433, 4
      %v4435 = vmax.f32 %v4433, %v4434
      %v4436 = vrot.slane %v4435, 2
      %v4437 = vmax.f32 %v4435, %v4436
      %v4438 = vrot.slane %v4437, 1
      %v4439 = vmax.f32 %v4437, %v4438
      %v4440 = vmax.f32 %v2985, %v2989
      %v4441 = vmax.f32 %v4440, %v2995
      %v4442 = vsel %vm4391, %v2999, -inf
      %v4443 = vmax.f32 %v4441, %v4442
      %v4444 = vrot.slane %v4443, 4
      %v4445 = vmax.f32 %v4443, %v4444
      %v4446 = vrot.slane %v4445, 2
      %v4447 = vmax.f32 %v4445, %v4446
      %v4448 = vrot.slane %v4447, 1
      %v4449 = vmax.f32 %v4447, %v4448
      %v4450 = vmax.f32 %v3245, %v3249
      %v4451 = vmax.f32 %v4450, %v3255
      %v4452 = vsel %vm4391, %v3259, -inf
      %v4453 = vmax.f32 %v4451, %v4452
      %v4454 = vrot.slane %v4453, 4
      %v4455 = vmax.f32 %v4453, %v4454
      %v4456 = vrot.slane %v4455, 2
      %v4457 = vmax.f32 %v4455, %v4456
      %v4458 = vrot.slane %v4457, 1
      %v4459 = vmax.f32 %v4457, %v4458
      %v4460 = vmax.f32 %v3247, %v3251
      %v4461 = vmax.f32 %v4460, %v3257
      %v4462 = vsel %vm4391, %v3261, -inf
      %v4463 = vmax.f32 %v4461, %v4462
      %v4464 = vrot.slane %v4463, 4
      %v4465 = vmax.f32 %v4463, %v4464
      %v4466 = vrot.slane %v4465, 2
      %v4467 = vmax.f32 %v4465, %v4466
      %v4468 = vrot.slane %v4467, 1
      %v4469 = vmax.f32 %v4467, %v4468
      %v4470 = vmax.f32 %v3507, %v3511
      %v4471 = vmax.f32 %v4470, %v3517
      %v4472 = vsel %vm4391, %v3521, -inf
      %v4473 = vmax.f32 %v4471, %v4472
      %v4474 = vrot.slane %v4473, 4
      %v4475 = vmax.f32 %v4473, %v4474
      %v4476 = vrot.slane %v4475, 2
      %v4477 = vmax.f32 %v4475, %v4476
      %v4478 = vrot.slane %v4477, 1
      %v4479 = vmax.f32 %v4477, %v4478
      %v4480 = vmax.f32 %v3509, %v3513
      %v4481 = vmax.f32 %v4480, %v3519
      %v4482 = vsel %vm4391, %v3523, -inf
      %v4483 = vmax.f32 %v4481, %v4482
      %v4484 = vrot.slane %v4483, 4
      %v4485 = vmax.f32 %v4483, %v4484
      %v4486 = vrot.slane %v4485, 2
      %v4487 = vmax.f32 %v4485, %v4486
      %v4488 = vrot.slane %v4487, 1
      %v4489 = vmax.f32 %v4487, %v4488
      %v4490 = vmax.f32 %v3769, %v3773
      %v4491 = vmax.f32 %v4490, %v3779
      %v4492 = vsel %vm4391, %v3783, -inf
      %v4493 = vmax.f32 %v4491, %v4492
      %v4494 = vrot.slane %v4493, 4
      %v4495 = vmax.f32 %v4493, %v4494
      %v4496 = vrot.slane %v4495, 2
      %v4497 = vmax.f32 %v4495, %v4496
      %v4498 = vrot.slane %v4497, 1
      %v4499 = vmax.f32 %v4497, %v4498
      %v4500 = vmax.f32 %v3771, %v3775
      %v4501 = vmax.f32 %v4500, %v3781
      %v4502 = vsel %vm4391, %v3785, -inf
      %v4503 = vmax.f32 %v4501, %v4502
      %v4504 = vrot.slane %v4503, 4
      %v4505 = vmax.f32 %v4503, %v4504
      %v4506 = vrot.slane %v4505, 2
      %v4507 = vmax.f32 %v4505, %v4506
      %v4508 = vrot.slane %v4507, 1
      %v4509 = vmax.f32 %v4507, %v4508
      %v4510 = vmax.f32 %v4031, %v4035
      %v4511 = vmax.f32 %v4510, %v4041
      %v4512 = vsel %vm4391, %v4045, -inf
      %v4513 = vmax.f32 %v4511, %v4512
      %v4514 = vrot.slane %v4513, 4
      %v4515 = vmax.f32 %v4513, %v4514
      %v4516 = vrot.slane %v4515, 2
      %v4517 = vmax.f32 %v4515, %v4516
      %v4518 = vrot.slane %v4517, 1
      %v4519 = vmax.f32 %v4517, %v4518
      %v4520 = vmax.f32 %v4033, %v4037
      %v4521 = vmax.f32 %v4520, %v4043
      %v4522 = vsel %vm4391, %v4047, -inf
      %v4523 = vmax.f32 %v4521, %v4522
      %v4524 = vrot.slane %v4523, 4
      %v4525 = vmax.f32 %v4523, %v4524
      %v4526 = vrot.slane %v4525, 2
      %v4527 = vmax.f32 %v4525, %v4526
      %v4528 = vrot.slane %v4527, 1
      %v4529 = vmax.f32 %v4527, %v4528
      %v4530 = vmax.f32 %v4293, %v4297
      %v4531 = vmax.f32 %v4530, %v4303
      %v4532 = vsel %vm4391, %v4307, -inf
      %v4533 = vmax.f32 %v4531, %v4532
      %v4534 = vrot.slane %v4533, 4
      %v4535 = vmax.f32 %v4533, %v4534
      %v4536 = vrot.slane %v4535, 2
      %v4537 = vmax.f32 %v4535, %v4536
      %v4538 = vrot.slane %v4537, 1
      %v4539 = vmax.f32 %v4537, %v4538
      %v4540 = vmax.f32 %v4295, %v4299
      %v4541 = vmax.f32 %v4540, %v4305
      %v4542 = vsel %vm4391, %v4309, -inf
      %v4543 = vmax.f32 %v4541, %v4542
      %v4544 = vrot.slane %v4543, 4
      %v4545 = vmax.f32 %v4543, %v4544
      %v4546 = vrot.slane %v4545, 2
      %v4547 = vmax.f32 %v4545, %v4546
      %v4548 = vrot.slane %v4547, 1
      %v4549 = vmax.f32 %v4547, %v4548
      %v4550 = vld [vmem:[%s2] sm:$0x1]
      %4552 = vset.pattern.permute.xlu0 0
      %4553 = vperm.xlu0 %4552, %v4550
      %v4554 = vpop.permute.xlu0 %4553
      %v4556 = vadd.f32 %v4399, %v4554
      %v4557 = vadd.f32 %v4409, %v4554
      %v4558 = vadd.f32 %v4419, %v4554
      %v4559 = vadd.f32 %v4429, %v4554
      %v4560 = vadd.f32 %v4439, %v4554
      %v4561 = vadd.f32 %v4449, %v4554
      %v4562 = vadd.f32 %v4459, %v4554
      %v4563 = vadd.f32 %v4469, %v4554
      %v4564 = vadd.f32 %v4479, %v4554
      %v4565 = vadd.f32 %v4489, %v4554
      %v4566 = vadd.f32 %v4499, %v4554
      %v4567 = vadd.f32 %v4509, %v4554
      %v4568 = vadd.f32 %v4519, %v4554
      %v4569 = vadd.f32 %v4529, %v4554
      %v4570 = vadd.f32 %v4539, %v4554
      %v4571 = vadd.f32 %v4549, %v4554
      %v4572 = vmax.f32 %v4556, 0.0
      %v4573 = vmax.f32 %v4557, 0.0
      %v4574 = vmax.f32 %v4558, 0.0
      %v4575 = vmax.f32 %v4559, 0.0
      %v4576 = vmax.f32 %v4560, 0.0
      %v4577 = vmax.f32 %v4561, 0.0
      %v4578 = vmax.f32 %v4562, 0.0
      %v4579 = vmax.f32 %v4563, 0.0
      %v4580 = vmax.f32 %v4564, 0.0
      %v4581 = vmax.f32 %v4565, 0.0
      %v4582 = vmax.f32 %v4566, 0.0
      %v4583 = vmax.f32 %v4567, 0.0
      %v4584 = vmax.f32 %v4568, 0.0
      %v4585 = vmax.f32 %v4569, 0.0
      %v4586 = vmax.f32 %v4570, 0.0
      %v4587 = vmax.f32 %v4571, 0.0
      %v4604 = vcombine.low %v4572, %v4573
      %v4605 = vcombine.low %v4574, %v4575
      %v4606 = vcombine.low %v4576, %v4577
      %v4607 = vcombine.low %v4578, %v4579
      %v4609 = vunpack.c.l.s4 1966171168
      %v4610 = vunpack.c.0.s8 %v4609
      %v4611 = vlaneseq
      %v4612 = vshrl.u32 %v4611, 7
      %v4613 = vsub.s32 %v4610, %v4612
      %v4614 = vrot.slane %v4604, %v4613
      %v4616 = vunpack.c.l.s4 1966171168
      %v4617 = vunpack.c.0.s8 %v4616
      %v4618 = vlaneseq
      %v4619 = vshrl.u32 %v4618, 7
      %v4620 = vsub.s32 %v4617, %v4619
      %v4621 = vrot.slane %v4605, %v4620
      %v4623 = vunpack.c.l.s4 1966171168
      %v4624 = vunpack.c.0.s8 %v4623
      %v4625 = vlaneseq
      %v4626 = vshrl.u32 %v4625, 7
      %v4627 = vsub.s32 %v4624, %v4626
      %v4628 = vrot.slane %v4606, %v4627
      %v4630 = vunpack.c.l.s4 1966171168
      %v4631 = vunpack.c.0.s8 %v4630
      %v4632 = vlaneseq
      %v4633 = vshrl.u32 %v4632, 7
      %v4634 = vsub.s32 %v4631, %v4633
      %v4635 = vrot.slane %v4607, %v4634
      %v4636 = vcombine.low %v4614, %v4621
      %v4637 = vcombine.low %v4628, %v4635
      %v4639 = vunpack.c.l.s4 1966171168
      %v4640 = vunpack.c.0.s8 %v4639
      %v4641 = vlaneseq
      %v4642 = vshrl.u32 %v4641, 7
      %v4643 = vsub.s32 %v4640, %v4642
      %v4644 = vrot.slane %v4636, %v4643
      %v4646 = vunpack.c.l.s4 1966171168
      %v4647 = vunpack.c.0.s8 %v4646
      %v4648 = vlaneseq
      %v4649 = vshrl.u32 %v4648, 7
      %v4650 = vsub.s32 %v4647, %v4649
      %v4651 = vrot.slane %v4637, %v4650
      %v4652 = vcombine.low %v4644, %v4651
      %v4653 = vcombine.low %v4580, %v4581
      %v4654 = vcombine.low %v4582, %v4583
      %v4655 = vcombine.low %v4584, %v4585
      %v4656 = vcombine.low %v4586, %v4587
      %v4658 = vunpack.c.l.s4 1966171168
      %v4659 = vunpack.c.0.s8 %v4658
      %v4660 = vlaneseq
      %v4661 = vshrl.u32 %v4660, 7
      %v4662 = vsub.s32 %v4659, %v4661
      %v4663 = vrot.slane %v4653, %v4662
      %v4665 = vunpack.c.l.s4 1966171168
      %v4666 = vunpack.c.0.s8 %v4665
      %v4667 = vlaneseq
      %v4668 = vshrl.u32 %v4667, 7
      %v4669 = vsub.s32 %v4666, %v4668
      %v4670 = vrot.slane %v4654, %v4669
      %v4672 = vunpack.c.l.s4 1966171168
      %v4673 = vunpack.c.0.s8 %v4672
      %v4674 = vlaneseq
      %v4675 = vshrl.u32 %v4674, 7
      %v4676 = vsub.s32 %v4673, %v4675
      %v4677 = vrot.slane %v4655, %v4676
      %v4679 = vunpack.c.l.s4 1966171168
      %v4680 = vunpack.c.0.s8 %v4679
      %v4681 = vlaneseq
      %v4682 = vshrl.u32 %v4681, 7
      %v4683 = vsub.s32 %v4680, %v4682
      %v4684 = vrot.slane %v4656, %v4683
      %v4685 = vcombine.low %v4663, %v4670
      %v4686 = vcombine.low %v4677, %v4684
      %v4688 = vunpack.c.l.s4 1966171168
      %v4689 = vunpack.c.0.s8 %v4688
      %v4690 = vlaneseq
      %v4691 = vshrl.u32 %v4690, 7
      %v4692 = vsub.s32 %v4689, %v4691
      %v4693 = vrot.slane %v4685, %v4692
      %v4695 = vunpack.c.l.s4 1966171168
      %v4696 = vunpack.c.0.s8 %v4695
      %v4697 = vlaneseq
      %v4698 = vshrl.u32 %v4697, 7
      %v4699 = vsub.s32 %v4696, %v4698
      %v4700 = vrot.slane %v4686, %v4699
      %v4701 = vcombine.low %v4693, %v4700
      %4704 = vst [vmem:[#allocation2] ss:$8 sm:$0xf] %v4652
      %4705 = vst [vmem:[#allocation2] ss:$8 sm:$0xf0] %v4652
      %s4706 = scalar_lea.vmem [#allocation2], 64
      %4707 = vst [vmem:[%s4706] ss:$8 sm:$0xf] %v4701
      %4708 = vst [vmem:[%s4706] ss:$8 sm:$0xf0] %v4701
      %vm4709 = vcmask 1047553
      %v4710 = vsel %vm4709, %v2473, -inf
      %v4711 = vmax.f32 %v4710, %v2479
      %v4712 = vmax.f32 %v4711, %v2483
      %vm4713 = vcmask 1041408
      %v4714 = vsel %vm4713, %v2489, -inf
      %v4715 = vmax.f32 %v4712, %v4714
      %v4716 = vrot.slane %v4715, 4
      %v4717 = vmax.f32 %v4715, %v4716
      %v4718 = vrot.slane %v4717, 2
      %v4719 = vmax.f32 %v4717, %v4718
      %v4720 = vrot.slane %v4719, 1
      %v4721 = vmax.f32 %v4719, %v4720
      %v4722 = vsel %vm4709, %v2475, -inf
      %v4723 = vmax.f32 %v4722, %v2481
      %v4724 = vmax.f32 %v4723, %v2485
      %v4725 = vsel %vm4713, %v2491, -inf
      %v4726 = vmax.f32 %v4724, %v4725
      %v4727 = vrot.slane %v4726, 4
      %v4728 = vmax.f32 %v4726, %v4727
      %v4729 = vrot.slane %v4728, 2
      %v4730 = vmax.f32 %v4728, %v4729
      %v4731 = vrot.slane %v4730, 1
      %v4732 = vmax.f32 %v4730, %v4731
      %v4733 = vsel %vm4709, %v2735, -inf
      %v4734 = vmax.f32 %v4733, %v2741
      %v4735 = vmax.f32 %v4734, %v2745
      %v4736 = vsel %vm4713, %v2751, -inf
      %v4737 = vmax.f32 %v4735, %v4736
      %v4738 = vrot.slane %v4737, 4
      %v4739 = vmax.f32 %v4737, %v4738
      %v4740 = vrot.slane %v4739, 2
      %v4741 = vmax.f32 %v4739, %v4740
      %v4742 = vrot.slane %v4741, 1
      %v4743 = vmax.f32 %v4741, %v4742
      %v4744 = vsel %vm4709, %v2737, -inf
      %v4745 = vmax.f32 %v4744, %v2743
      %v4746 = vmax.f32 %v4745, %v2747
      %v4747 = vsel %vm4713, %v2753, -inf
      %v4748 = vmax.f32 %v4746, %v4747
      %v4749 = vrot.slane %v4748, 4
      %v4750 = vmax.f32 %v4748, %v4749
      %v4751 = vrot.slane %v4750, 2
      %v4752 = vmax.f32 %v4750, %v4751
      %v4753 = vrot.slane %v4752, 1
      %v4754 = vmax.f32 %v4752, %v4753
      %v4755 = vsel %vm4709, %v2997, -inf
      %v4756 = vmax.f32 %v4755, %v3003
      %v4757 = vmax.f32 %v4756, %v3007
      %v4758 = vsel %vm4713, %v3013, -inf
      %v4759 = vmax.f32 %v4757, %v4758
      %v4760 = vrot.slane %v4759, 4
      %v4761 = vmax.f32 %v4759, %v4760
      %v4762 = vrot.slane %v4761, 2
      %v4763 = vmax.f32 %v4761, %v4762
      %v4764 = vrot.slane %v4763, 1
      %v4765 = vmax.f32 %v4763, %v4764
      %v4766 = vsel %vm4709, %v2999, -inf
      %v4767 = vmax.f32 %v4766, %v3005
      %v4768 = vmax.f32 %v4767, %v3009
      %v4769 = vsel %vm4713, %v3015, -inf
      %v4770 = vmax.f32 %v4768, %v4769
      %v4771 = vrot.slane %v4770, 4
      %v4772 = vmax.f32 %v4770, %v4771
      %v4773 = vrot.slane %v4772, 2
      %v4774 = vmax.f32 %v4772, %v4773
      %v4775 = vrot.slane %v4774, 1
      %v4776 = vmax.f32 %v4774, %v4775
      %v4777 = vsel %vm4709, %v3259, -inf
      %v4778 = vmax.f32 %v4777, %v3265
      %v4779 = vmax.f32 %v4778, %v3269
      %v4780 = vsel %vm4713, %v3275, -inf
      %v4781 = vmax.f32 %v4779, %v4780
      %v4782 = vrot.slane %v4781, 4
      %v4783 = vmax.f32 %v4781, %v4782
      %v4784 = vrot.slane %v4783, 2
      %v4785 = vmax.f32 %v4783, %v4784
      %v4786 = vrot.slane %v4785, 1
      %v4787 = vmax.f32 %v4785, %v4786
      %v4788 = vsel %vm4709, %v3261, -inf
      %v4789 = vmax.f32 %v4788, %v3267
      %v4790 = vmax.f32 %v4789, %v3271
      %v4791 = vsel %vm4713, %v3277, -inf
      %v4792 = vmax.f32 %v4790, %v4791
      %v4793 = vrot.slane %v4792, 4
      %v4794 = vmax.f32 %v4792, %v4793
      %v4795 = vrot.slane %v4794, 2
      %v4796 = vmax.f32 %v4794, %v4795
      %v4797 = vrot.slane %v4796, 1
      %v4798 = vmax.f32 %v4796, %v4797
      %v4799 = vsel %vm4709, %v3521, -inf
      %v4800 = vmax.f32 %v4799, %v3527
      %v4801 = vmax.f32 %v4800, %v3531
      %v4802 = vsel %vm4713, %v3537, -inf
      %v4803 = vmax.f32 %v4801, %v4802
      %v4804 = vrot.slane %v4803, 4
      %v4805 = vmax.f32 %v4803, %v4804
      %v4806 = vrot.slane %v4805, 2
      %v4807 = vmax.f32 %v4805, %v4806
      %v4808 = vrot.slane %v4807, 1
      %v4809 = vmax.f32 %v4807, %v4808
      %v4810 = vsel %vm4709, %v3523, -inf
      %v4811 = vmax.f32 %v4810, %v3529
      %v4812 = vmax.f32 %v4811, %v3533
      %v4813 = vsel %vm4713, %v3539, -inf
      %v4814 = vmax.f32 %v4812, %v4813
      %v4815 = vrot.slane %v4814, 4
      %v4816 = vmax.f32 %v4814, %v4815
      %v4817 = vrot.slane %v4816, 2
      %v4818 = vmax.f32 %v4816, %v4817
      %v4819 = vrot.slane %v4818, 1
      %v4820 = vmax.f32 %v4818, %v4819
      %v4821 = vsel %vm4709, %v3783, -inf
      %v4822 = vmax.f32 %v4821, %v3789
      %v4823 = vmax.f32 %v4822, %v3793
      %v4824 = vsel %vm4713, %v3799, -inf
      %v4825 = vmax.f32 %v4823, %v4824
      %v4826 = vrot.slane %v4825, 4
      %v4827 = vmax.f32 %v4825, %v4826
      %v4828 = vrot.slane %v4827, 2
      %v4829 = vmax.f32 %v4827, %v4828
      %v4830 = vrot.slane %v4829, 1
      %v4831 = vmax.f32 %v4829, %v4830
      %v4832 = vsel %vm4709, %v3785, -inf
      %v4833 = vmax.f32 %v4832, %v3791
      %v4834 = vmax.f32 %v4833, %v3795
      %v4835 = vsel %vm4713, %v3801, -inf
      %v4836 = vmax.f32 %v4834, %v4835
      %v4837 = vrot.slane %v4836, 4
      %v4838 = vmax.f32 %v4836, %v4837
      %v4839 = vrot.slane %v4838, 2
      %v4840 = vmax.f32 %v4838, %v4839
      %v4841 = vrot.slane %v4840, 1
      %v4842 = vmax.f32 %v4840, %v4841
      %v4843 = vsel %vm4709, %v4045, -inf
      %v4844 = vmax.f32 %v4843, %v4051
      %v4845 = vmax.f32 %v4844, %v4055
      %v4846 = vsel %vm4713, %v4061, -inf
      %v4847 = vmax.f32 %v4845, %v4846
      %v4848 = vrot.slane %v4847, 4
      %v4849 = vmax.f32 %v4847, %v4848
      %v4850 = vrot.slane %v4849, 2
      %v4851 = vmax.f32 %v4849, %v4850
      %v4852 = vrot.slane %v4851, 1
      %v4853 = vmax.f32 %v4851, %v4852
      %v4854 = vsel %vm4709, %v4047, -inf
      %v4855 = vmax.f32 %v4854, %v4053
      %v4856 = vmax.f32 %v4855, %v4057
      %v4857 = vsel %vm4713, %v4063, -inf
      %v4858 = vmax.f32 %v4856, %v4857
      %v4859 = vrot.slane %v4858, 4
      %v4860 = vmax.f32 %v4858, %v4859
      %v4861 = vrot.slane %v4860, 2
      %v4862 = vmax.f32 %v4860, %v4861
      %v4863 = vrot.slane %v4862, 1
      %v4864 = vmax.f32 %v4862, %v4863
      %v4865 = vsel %vm4709, %v4307, -inf
      %v4866 = vmax.f32 %v4865, %v4313
      %v4867 = vmax.f32 %v4866, %v4317
      %v4868 = vsel %vm4713, %v4323, -inf
      %v4869 = vmax.f32 %v4867, %v4868
      %v4870 = vrot.slane %v4869, 4
      %v4871 = vmax.f32 %v4869, %v4870
      %v4872 = vrot.slane %v4871, 2
      %v4873 = vmax.f32 %v4871, %v4872
      %v4874 = vrot.slane %v4873, 1
      %v4875 = vmax.f32 %v4873, %v4874
      %v4876 = vsel %vm4709, %v4309, -inf
      %v4877 = vmax.f32 %v4876, %v4315
      %v4878 = vmax.f32 %v4877, %v4319
      %v4879 = vsel %vm4713, %v4325, -inf
      %v4880 = vmax.f32 %v4878, %v4879
      %v4881 = vrot.slane %v4880, 4
      %v4882 = vmax.f32 %v4880, %v4881
      %v4883 = vrot.slane %v4882, 2
      %v4884 = vmax.f32 %v4882, %v4883
      %v4885 = vrot.slane %v4884, 1
      %v4886 = vmax.f32 %v4884, %v4885
      %v4887 = vld [vmem:[%s2 + $0x1] sm:$0x1]
      %4889 = vset.pattern.permute.xlu0 0
      %4890 = vperm.xlu0 %4889, %v4887
      %v4891 = vpop.permute.xlu0 %4890
      %v4893 = vadd.f32 %v4721, %v4891
      %v4894 = vadd.f32 %v4732, %v4891
      %v4895 = vadd.f32 %v4743, %v4891
      %v4896 = vadd.f32 %v4754, %v4891
      %v4897 = vadd.f32 %v4765, %v4891
      %v4898 = vadd.f32 %v4776, %v4891
      %v4899 = vadd.f32 %v4787, %v4891
      %v4900 = vadd.f32 %v4798, %v4891
      %v4901 = vadd.f32 %v4809, %v4891
      %v4902 = vadd.f32 %v4820, %v4891
      %v4903 = vadd.f32 %v4831, %v4891
      %v4904 = vadd.f32 %v4842, %v4891
      %v4905 = vadd.f32 %v4853, %v4891
      %v4906 = vadd.f32 %v4864, %v4891
      %v4907 = vadd.f32 %v4875, %v4891
      %v4908 = vadd.f32 %v4886, %v4891
      %v4909 = vmax.f32 %v4893, 0.0
      %v4910 = vmax.f32 %v4894, 0.0
      %v4911 = vmax.f32 %v4895, 0.0
      %v4912 = vmax.f32 %v4896, 0.0
      %v4913 = vmax.f32 %v4897, 0.0
      %v4914 = vmax.f32 %v4898, 0.0
      %v4915 = vmax.f32 %v4899, 0.0
      %v4916 = vmax.f32 %v4900, 0.0
      %v4917 = vmax.f32 %v4901, 0.0
      %v4918 = vmax.f32 %v4902, 0.0
      %v4919 = vmax.f32 %v4903, 0.0
      %v4920 = vmax.f32 %v4904, 0.0
      %v4921 = vmax.f32 %v4905, 0.0
      %v4922 = vmax.f32 %v4906, 0.0
      %v4923 = vmax.f32 %v4907, 0.0
      %v4924 = vmax.f32 %v4908, 0.0
      %v4941 = vcombine.low %v4909, %v4910
      %v4942 = vcombine.low %v4911, %v4912
      %v4943 = vcombine.low %v4913, %v4914
      %v4944 = vcombine.low %v4915, %v4916
      %v4946 = vunpack.c.l.s4 1966171168
      %v4947 = vunpack.c.0.s8 %v4946
      %v4948 = vlaneseq
      %v4949 = vshrl.u32 %v4948, 7
      %v4950 = vsub.s32 %v4947, %v4949
      %v4951 = vrot.slane %v4941, %v4950
      %v4953 = vunpack.c.l.s4 1966171168
      %v4954 = vunpack.c.0.s8 %v4953
      %v4955 = vlaneseq
      %v4956 = vshrl.u32 %v4955, 7
      %v4957 = vsub.s32 %v4954, %v4956
      %v4958 = vrot.slane %v4942, %v4957
      %v4960 = vunpack.c.l.s4 1966171168
      %v4961 = vunpack.c.0.s8 %v4960
      %v4962 = vlaneseq
      %v4963 = vshrl.u32 %v4962, 7
      %v4964 = vsub.s32 %v4961, %v4963
      %v4965 = vrot.slane %v4943, %v4964
      %v4967 = vunpack.c.l.s4 1966171168
      %v4968 = vunpack.c.0.s8 %v4967
      %v4969 = vlaneseq
      %v4970 = vshrl.u32 %v4969, 7
      %v4971 = vsub.s32 %v4968, %v4970
      %v4972 = vrot.slane %v4944, %v4971
      %v4973 = vcombine.low %v4951, %v4958
      %v4974 = vcombine.low %v4965, %v4972
      %v4976 = vunpack.c.l.s4 1966171168
      %v4977 = vunpack.c.0.s8 %v4976
      %v4978 = vlaneseq
      %v4979 = vshrl.u32 %v4978, 7
      %v4980 = vsub.s32 %v4977, %v4979
      %v4981 = vrot.slane %v4973, %v4980
      %v4983 = vunpack.c.l.s4 1966171168
      %v4984 = vunpack.c.0.s8 %v4983
      %v4985 = vlaneseq
      %v4986 = vshrl.u32 %v4985, 7
      %v4987 = vsub.s32 %v4984, %v4986
      %v4988 = vrot.slane %v4974, %v4987
      %v4989 = vcombine.low %v4981, %v4988
      %v4990 = vcombine.low %v4917, %v4918
      %v4991 = vcombine.low %v4919, %v4920
      %v4992 = vcombine.low %v4921, %v4922
      %v4993 = vcombine.low %v4923, %v4924
      %v4995 = vunpack.c.l.s4 1966171168
      %v4996 = vunpack.c.0.s8 %v4995
      %v4997 = vlaneseq
      %v4998 = vshrl.u32 %v4997, 7
      %v4999 = vsub.s32 %v4996, %v4998
      %v5000 = vrot.slane %v4990, %v4999
      %v5002 = vunpack.c.l.s4 1966171168
      %v5003 = vunpack.c.0.s8 %v5002
      %v5004 = vlaneseq
      %v5005 = vshrl.u32 %v5004, 7
      %v5006 = vsub.s32 %v5003, %v5005
      %v5007 = vrot.slane %v4991, %v5006
      %v5009 = vunpack.c.l.s4 1966171168
      %v5010 = vunpack.c.0.s8 %v5009
      %v5011 = vlaneseq
      %v5012 = vshrl.u32 %v5011, 7
      %v5013 = vsub.s32 %v5010, %v5012
      %v5014 = vrot.slane %v4992, %v5013
      %v5016 = vunpack.c.l.s4 1966171168
      %v5017 = vunpack.c.0.s8 %v5016
      %v5018 = vlaneseq
      %v5019 = vshrl.u32 %v5018, 7
      %v5020 = vsub.s32 %v5017, %v5019
      %v5021 = vrot.slane %v4993, %v5020
      %v5022 = vcombine.low %v5000, %v5007
      %v5023 = vcombine.low %v5014, %v5021
      %v5025 = vunpack.c.l.s4 1966171168
      %v5026 = vunpack.c.0.s8 %v5025
      %v5027 = vlaneseq
      %v5028 = vshrl.u32 %v5027, 7
      %v5029 = vsub.s32 %v5026, %v5028
      %v5030 = vrot.slane %v5022, %v5029
      %v5032 = vunpack.c.l.s4 1966171168
      %v5033 = vunpack.c.0.s8 %v5032
      %v5034 = vlaneseq
      %v5035 = vshrl.u32 %v5034, 7
      %v5036 = vsub.s32 %v5033, %v5035
      %v5037 = vrot.slane %v5023, %v5036
      %v5038 = vcombine.low %v5030, %v5037
      %s5041 = scalar_lea.vmem [#allocation2], 1
      %5042 = vst [vmem:[%s5041] ss:$8 sm:$0xf] %v4989
      %5043 = vst [vmem:[%s5041] ss:$8 sm:$0xf0] %v4989
      %s5044 = scalar_lea.vmem [#allocation2], 65
      %5045 = vst [vmem:[%s5044] ss:$8 sm:$0xf] %v5038
      %5046 = vst [vmem:[%s5044] ss:$8 sm:$0xf0] %v5038
      %vm5047 = vcmask 1047554
      %v5048 = vsel %vm5047, %v2489, -inf
      %v5049 = vmax.f32 %v5048, %v2493
      %v5050 = vmax.f32 %v5049, %v2499
      %vm5051 = vcmask 1042432
      %v5052 = vsel %vm5051, %v2503, -inf
      %v5053 = vmax.f32 %v5050, %v5052
      %v5054 = vrot.slane %v5053, 4
      %v5055 = vmax.f32 %v5053, %v5054
      %v5056 = vrot.slane %v5055, 2
      %v5057 = vmax.f32 %v5055, %v5056
      %v5058 = vrot.slane %v5057, 1
      %v5059 = vmax.f32 %v5057, %v5058
      %v5060 = vsel %vm5047, %v2491, -inf
      %v5061 = vmax.f32 %v5060, %v2495
      %v5062 = vmax.f32 %v5061, %v2501
      %v5063 = vsel %vm5051, %v2505, -inf
      %v5064 = vmax.f32 %v5062, %v5063
      %v5065 = vrot.slane %v5064, 4
      %v5066 = vmax.f32 %v5064, %v5065
      %v5067 = vrot.slane %v5066, 2
      %v5068 = vmax.f32 %v5066, %v5067
      %v5069 = vrot.slane %v5068, 1
      %v5070 = vmax.f32 %v5068, %v5069
      %v5071 = vsel %vm5047, %v2751, -inf
      %v5072 = vmax.f32 %v5071, %v2755
      %v5073 = vmax.f32 %v5072, %v2761
      %v5074 = vsel %vm5051, %v2765, -inf
      %v5075 = vmax.f32 %v5073, %v5074
      %v5076 = vrot.slane %v5075, 4
      %v5077 = vmax.f32 %v5075, %v5076
      %v5078 = vrot.slane %v5077, 2
      %v5079 = vmax.f32 %v5077, %v5078
      %v5080 = vrot.slane %v5079, 1
      %v5081 = vmax.f32 %v5079, %v5080
      %v5082 = vsel %vm5047, %v2753, -inf
      %v5083 = vmax.f32 %v5082, %v2757
      %v5084 = vmax.f32 %v5083, %v2763
      %v5085 = vsel %vm5051, %v2767, -inf
      %v5086 = vmax.f32 %v5084, %v5085
      %v5087 = vrot.slane %v5086, 4
      %v5088 = vmax.f32 %v5086, %v5087
      %v5089 = vrot.slane %v5088, 2
      %v5090 = vmax.f32 %v5088, %v5089
      %v5091 = vrot.slane %v5090, 1
      %v5092 = vmax.f32 %v5090, %v5091
      %v5093 = vsel %vm5047, %v3013, -inf
      %v5094 = vmax.f32 %v5093, %v3017
      %v5095 = vmax.f32 %v5094, %v3023
      %v5096 = vsel %vm5051, %v3027, -inf
      %v5097 = vmax.f32 %v5095, %v5096
      %v5098 = vrot.slane %v5097, 4
      %v5099 = vmax.f32 %v5097, %v5098
      %v5100 = vrot.slane %v5099, 2
      %v5101 = vmax.f32 %v5099, %v5100
      %v5102 = vrot.slane %v5101, 1
      %v5103 = vmax.f32 %v5101, %v5102
      %v5104 = vsel %vm5047, %v3015, -inf
      %v5105 = vmax.f32 %v5104, %v3019
      %v5106 = vmax.f32 %v5105, %v3025
      %v5107 = vsel %vm5051, %v3029, -inf
      %v5108 = vmax.f32 %v5106, %v5107
      %v5109 = vrot.slane %v5108, 4
      %v5110 = vmax.f32 %v5108, %v5109
      %v5111 = vrot.slane %v5110, 2
      %v5112 = vmax.f32 %v5110, %v5111
      %v5113 = vrot.slane %v5112, 1
      %v5114 = vmax.f32 %v5112, %v5113
      %v5115 = vsel %vm5047, %v3275, -inf
      %v5116 = vmax.f32 %v5115, %v3279
      %v5117 = vmax.f32 %v5116, %v3285
      %v5118 = vsel %vm5051, %v3289, -inf
      %v5119 = vmax.f32 %v5117, %v5118
      %v5120 = vrot.slane %v5119, 4
      %v5121 = vmax.f32 %v5119, %v5120
      %v5122 = vrot.slane %v5121, 2
      %v5123 = vmax.f32 %v5121, %v5122
      %v5124 = vrot.slane %v5123, 1
      %v5125 = vmax.f32 %v5123, %v5124
      %v5126 = vsel %vm5047, %v3277, -inf
      %v5127 = vmax.f32 %v5126, %v3281
      %v5128 = vmax.f32 %v5127, %v3287
      %v5129 = vsel %vm5051, %v3291, -inf
      %v5130 = vmax.f32 %v5128, %v5129
      %v5131 = vrot.slane %v5130, 4
      %v5132 = vmax.f32 %v5130, %v5131
      %v5133 = vrot.slane %v5132, 2
      %v5134 = vmax.f32 %v5132, %v5133
      %v5135 = vrot.slane %v5134, 1
      %v5136 = vmax.f32 %v5134, %v5135
      %v5137 = vsel %vm5047, %v3537, -inf
      %v5138 = vmax.f32 %v5137, %v3541
      %v5139 = vmax.f32 %v5138, %v3547
      %v5140 = vsel %vm5051, %v3551, -inf
      %v5141 = vmax.f32 %v5139, %v5140
      %v5142 = vrot.slane %v5141, 4
      %v5143 = vmax.f32 %v5141, %v5142
      %v5144 = vrot.slane %v5143, 2
      %v5145 = vmax.f32 %v5143, %v5144
      %v5146 = vrot.slane %v5145, 1
      %v5147 = vmax.f32 %v5145, %v5146
      %v5148 = vsel %vm5047, %v3539, -inf
      %v5149 = vmax.f32 %v5148, %v3543
      %v5150 = vmax.f32 %v5149, %v3549
      %v5151 = vsel %vm5051, %v3553, -inf
      %v5152 = vmax.f32 %v5150, %v5151
      %v5153 = vrot.slane %v5152, 4
      %v5154 = vmax.f32 %v5152, %v5153
      %v5155 = vrot.slane %v5154, 2
      %v5156 = vmax.f32 %v5154, %v5155
      %v5157 = vrot.slane %v5156, 1
      %v5158 = vmax.f32 %v5156, %v5157
      %v5159 = vsel %vm5047, %v3799, -inf
      %v5160 = vmax.f32 %v5159, %v3803
      %v5161 = vmax.f32 %v5160, %v3809
      %v5162 = vsel %vm5051, %v3813, -inf
      %v5163 = vmax.f32 %v5161, %v5162
      %v5164 = vrot.slane %v5163, 4
      %v5165 = vmax.f32 %v5163, %v5164
      %v5166 = vrot.slane %v5165, 2
      %v5167 = vmax.f32 %v5165, %v5166
      %v5168 = vrot.slane %v5167, 1
      %v5169 = vmax.f32 %v5167, %v5168
      %v5170 = vsel %vm5047, %v3801, -inf
      %v5171 = vmax.f32 %v5170, %v3805
      %v5172 = vmax.f32 %v5171, %v3811
      %v5173 = vsel %vm5051, %v3815, -inf
      %v5174 = vmax.f32 %v5172, %v5173
      %v5175 = vrot.slane %v5174, 4
      %v5176 = vmax.f32 %v5174, %v5175
      %v5177 = vrot.slane %v5176, 2
      %v5178 = vmax.f32 %v5176, %v5177
      %v5179 = vrot.slane %v5178, 1
      %v5180 = vmax.f32 %v5178, %v5179
      %v5181 = vsel %vm5047, %v4061, -inf
      %v5182 = vmax.f32 %v5181, %v4065
      %v5183 = vmax.f32 %v5182, %v4071
      %v5184 = vsel %vm5051, %v4075, -inf
      %v5185 = vmax.f32 %v5183, %v5184
      %v5186 = vrot.slane %v5185, 4
      %v5187 = vmax.f32 %v5185, %v5186
      %v5188 = vrot.slane %v5187, 2
      %v5189 = vmax.f32 %v5187, %v5188
      %v5190 = vrot.slane %v5189, 1
      %v5191 = vmax.f32 %v5189, %v5190
      %v5192 = vsel %vm5047, %v4063, -inf
      %v5193 = vmax.f32 %v5192, %v4067
      %v5194 = vmax.f32 %v5193, %v4073
      %v5195 = vsel %vm5051, %v4077, -inf
      %v5196 = vmax.f32 %v5194, %v5195
      %v5197 = vrot.slane %v5196, 4
      %v5198 = vmax.f32 %v5196, %v5197
      %v5199 = vrot.slane %v5198, 2
      %v5200 = vmax.f32 %v5198, %v5199
      %v5201 = vrot.slane %v5200, 1
      %v5202 = vmax.f32 %v5200, %v5201
      %v5203 = vsel %vm5047, %v4323, -inf
      %v5204 = vmax.f32 %v5203, %v4327
      %v5205 = vmax.f32 %v5204, %v4333
      %v5206 = vsel %vm5051, %v4337, -inf
      %v5207 = vmax.f32 %v5205, %v5206
      %v5208 = vrot.slane %v5207, 4
      %v5209 = vmax.f32 %v5207, %v5208
      %v5210 = vrot.slane %v5209, 2
      %v5211 = vmax.f32 %v5209, %v5210
      %v5212 = vrot.slane %v5211, 1
      %v5213 = vmax.f32 %v5211, %v5212
      %v5214 = vsel %vm5047, %v4325, -inf
      %v5215 = vmax.f32 %v5214, %v4329
      %v5216 = vmax.f32 %v5215, %v4335
      %v5217 = vsel %vm5051, %v4339, -inf
      %v5218 = vmax.f32 %v5216, %v5217
      %v5219 = vrot.slane %v5218, 4
      %v5220 = vmax.f32 %v5218, %v5219
      %v5221 = vrot.slane %v5220, 2
      %v5222 = vmax.f32 %v5220, %v5221
      %v5223 = vrot.slane %v5222, 1
      %v5224 = vmax.f32 %v5222, %v5223
      %v5225 = vld [vmem:[%s2 + $0x2] sm:$0x1]
      %5227 = vset.pattern.permute.xlu0 0
      %5228 = vperm.xlu0 %5227, %v5225
      %v5229 = vpop.permute.xlu0 %5228
      %v5231 = vadd.f32 %v5059, %v5229
      %v5232 = vadd.f32 %v5070, %v5229
      %v5233 = vadd.f32 %v5081, %v5229
      %v5234 = vadd.f32 %v5092, %v5229
      %v5235 = vadd.f32 %v5103, %v5229
      %v5236 = vadd.f32 %v5114, %v5229
      %v5237 = vadd.f32 %v5125, %v5229
      %v5238 = vadd.f32 %v5136, %v5229
      %v5239 = vadd.f32 %v5147, %v5229
      %v5240 = vadd.f32 %v5158, %v5229
      %v5241 = vadd.f32 %v5169, %v5229
      %v5242 = vadd.f32 %v5180, %v5229
      %v5243 = vadd.f32 %v5191, %v5229
      %v5244 = vadd.f32 %v5202, %v5229
      %v5245 = vadd.f32 %v5213, %v5229
      %v5246 = vadd.f32 %v5224, %v5229
      %v5247 = vmax.f32 %v5231, 0.0
      %v5248 = vmax.f32 %v5232, 0.0
      %v5249 = vmax.f32 %v5233, 0.0
      %v5250 = vmax.f32 %v5234, 0.0
      %v5251 = vmax.f32 %v5235, 0.0
      %v5252 = vmax.f32 %v5236, 0.0
      %v5253 = vmax.f32 %v5237, 0.0
      %v5254 = vmax.f32 %v5238, 0.0
      %v5255 = vmax.f32 %v5239, 0.0
      %v5256 = vmax.f32 %v5240, 0.0
      %v5257 = vmax.f32 %v5241, 0.0
      %v5258 = vmax.f32 %v5242, 0.0
      %v5259 = vmax.f32 %v5243, 0.0
      %v5260 = vmax.f32 %v5244, 0.0
      %v5261 = vmax.f32 %v5245, 0.0
      %v5262 = vmax.f32 %v5246, 0.0
      %v5279 = vcombine.low %v5247, %v5248
      %v5280 = vcombine.low %v5249, %v5250
      %v5281 = vcombine.low %v5251, %v5252
      %v5282 = vcombine.low %v5253, %v5254
      %v5284 = vunpack.c.l.s4 1966171168
      %v5285 = vunpack.c.0.s8 %v5284
      %v5286 = vlaneseq
      %v5287 = vshrl.u32 %v5286, 7
      %v5288 = vsub.s32 %v5285, %v5287
      %v5289 = vrot.slane %v5279, %v5288
      %v5291 = vunpack.c.l.s4 1966171168
      %v5292 = vunpack.c.0.s8 %v5291
      %v5293 = vlaneseq
      %v5294 = vshrl.u32 %v5293, 7
      %v5295 = vsub.s32 %v5292, %v5294
      %v5296 = vrot.slane %v5280, %v5295
      %v5298 = vunpack.c.l.s4 1966171168
      %v5299 = vunpack.c.0.s8 %v5298
      %v5300 = vlaneseq
      %v5301 = vshrl.u32 %v5300, 7
      %v5302 = vsub.s32 %v5299, %v5301
      %v5303 = vrot.slane %v5281, %v5302
      %v5305 = vunpack.c.l.s4 1966171168
      %v5306 = vunpack.c.0.s8 %v5305
      %v5307 = vlaneseq
      %v5308 = vshrl.u32 %v5307, 7
      %v5309 = vsub.s32 %v5306, %v5308
      %v5310 = vrot.slane %v5282, %v5309
      %v5311 = vcombine.low %v5289, %v5296
      %v5312 = vcombine.low %v5303, %v5310
      %v5314 = vunpack.c.l.s4 1966171168
      %v5315 = vunpack.c.0.s8 %v5314
      %v5316 = vlaneseq
      %v5317 = vshrl.u32 %v5316, 7
      %v5318 = vsub.s32 %v5315, %v5317
      %v5319 = vrot.slane %v5311, %v5318
      %v5321 = vunpack.c.l.s4 1966171168
      %v5322 = vunpack.c.0.s8 %v5321
      %v5323 = vlaneseq
      %v5324 = vshrl.u32 %v5323, 7
      %v5325 = vsub.s32 %v5322, %v5324
      %v5326 = vrot.slane %v5312, %v5325
      %v5327 = vcombine.low %v5319, %v5326
      %v5328 = vcombine.low %v5255, %v5256
      %v5329 = vcombine.low %v5257, %v5258
      %v5330 = vcombine.low %v5259, %v5260
      %v5331 = vcombine.low %v5261, %v5262
      %v5333 = vunpack.c.l.s4 1966171168
      %v5334 = vunpack.c.0.s8 %v5333
      %v5335 = vlaneseq
      %v5336 = vshrl.u32 %v5335, 7
      %v5337 = vsub.s32 %v5334, %v5336
      %v5338 = vrot.slane %v5328, %v5337
      %v5340 = vunpack.c.l.s4 1966171168
      %v5341 = vunpack.c.0.s8 %v5340
      %v5342 = vlaneseq
      %v5343 = vshrl.u32 %v5342, 7
      %v5344 = vsub.s32 %v5341, %v5343
      %v5345 = vrot.slane %v5329, %v5344
      %v5347 = vunpack.c.l.s4 1966171168
      %v5348 = vunpack.c.0.s8 %v5347
      %v5349 = vlaneseq
      %v5350 = vshrl.u32 %v5349, 7
      %v5351 = vsub.s32 %v5348, %v5350
      %v5352 = vrot.slane %v5330, %v5351
      %v5354 = vunpack.c.l.s4 1966171168
      %v5355 = vunpack.c.0.s8 %v5354
      %v5356 = vlaneseq
      %v5357 = vshrl.u32 %v5356, 7
      %v5358 = vsub.s32 %v5355, %v5357
      %v5359 = vrot.slane %v5331, %v5358
      %v5360 = vcombine.low %v5338, %v5345
      %v5361 = vcombine.low %v5352, %v5359
      %v5363 = vunpack.c.l.s4 1966171168
      %v5364 = vunpack.c.0.s8 %v5363
      %v5365 = vlaneseq
      %v5366 = vshrl.u32 %v5365, 7
      %v5367 = vsub.s32 %v5364, %v5366
      %v5368 = vrot.slane %v5360, %v5367
      %v5370 = vunpack.c.l.s4 1966171168
      %v5371 = vunpack.c.0.s8 %v5370
      %v5372 = vlaneseq
      %v5373 = vshrl.u32 %v5372, 7
      %v5374 = vsub.s32 %v5371, %v5373
      %v5375 = vrot.slane %v5361, %v5374
      %v5376 = vcombine.low %v5368, %v5375
      %s5379 = scalar_lea.vmem [#allocation2], 2
      %5380 = vst [vmem:[%s5379] ss:$8 sm:$0xf] %v5327
      %5381 = vst [vmem:[%s5379] ss:$8 sm:$0xf0] %v5327
      %s5382 = scalar_lea.vmem [#allocation2], 66
      %5383 = vst [vmem:[%s5382] ss:$8 sm:$0xf] %v5376
      %5384 = vst [vmem:[%s5382] ss:$8 sm:$0xf0] %v5376
      %vm5385 = vcmask 1047555
      %v5386 = vsel %vm5385, %v2503, -inf
      %v5387 = vmax.f32 %v5386, %v2509
      %v5388 = vmax.f32 %v5387, %v2513
      %vm5389 = vcmask 1043456
      %v5390 = vsel %vm5389, %v2519, -inf
      %v5391 = vmax.f32 %v5388, %v5390
      %v5392 = vrot.slane %v5391, 4
      %v5393 = vmax.f32 %v5391, %v5392
      %v5394 = vrot.slane %v5393, 2
      %v5395 = vmax.f32 %v5393, %v5394
      %v5396 = vrot.slane %v5395, 1
      %v5397 = vmax.f32 %v5395, %v5396
      %v5398 = vsel %vm5385, %v2505, -inf
      %v5399 = vmax.f32 %v5398, %v2511
      %v5400 = vmax.f32 %v5399, %v2515
      %v5401 = vsel %vm5389, %v2521, -inf
      %v5402 = vmax.f32 %v5400, %v5401
      %v5403 = vrot.slane %v5402, 4
      %v5404 = vmax.f32 %v5402, %v5403
      %v5405 = vrot.slane %v5404, 2
      %v5406 = vmax.f32 %v5404, %v5405
      %v5407 = vrot.slane %v5406, 1
      %v5408 = vmax.f32 %v5406, %v5407
      %v5409 = vsel %vm5385, %v2765, -inf
      %v5410 = vmax.f32 %v5409, %v2771
      %v5411 = vmax.f32 %v5410, %v2775
      %v5412 = vsel %vm5389, %v2781, -inf
      %v5413 = vmax.f32 %v5411, %v5412
      %v5414 = vrot.slane %v5413, 4
      %v5415 = vmax.f32 %v5413, %v5414
      %v5416 = vrot.slane %v5415, 2
      %v5417 = vmax.f32 %v5415, %v5416
      %v5418 = vrot.slane %v5417, 1
      %v5419 = vmax.f32 %v5417, %v5418
      %v5420 = vsel %vm5385, %v2767, -inf
      %v5421 = vmax.f32 %v5420, %v2773
      %v5422 = vmax.f32 %v5421, %v2777
      %v5423 = vsel %vm5389, %v2783, -inf
      %v5424 = vmax.f32 %v5422, %v5423
      %v5425 = vrot.slane %v5424, 4
      %v5426 = vmax.f32 %v5424, %v5425
      %v5427 = vrot.slane %v5426, 2
      %v5428 = vmax.f32 %v5426, %v5427
      %v5429 = vrot.slane %v5428, 1
      %v5430 = vmax.f32 %v5428, %v5429
      %v5431 = vsel %vm5385, %v3027, -inf
      %v5432 = vmax.f32 %v5431, %v3033
      %v5433 = vmax.f32 %v5432, %v3037
      %v5434 = vsel %vm5389, %v3043, -inf
      %v5435 = vmax.f32 %v5433, %v5434
      %v5436 = vrot.slane %v5435, 4
      %v5437 = vmax.f32 %v5435, %v5436
      %v5438 = vrot.slane %v5437, 2
      %v5439 = vmax.f32 %v5437, %v5438
      %v5440 = vrot.slane %v5439, 1
      %v5441 = vmax.f32 %v5439, %v5440
      %v5442 = vsel %vm5385, %v3029, -inf
      %v5443 = vmax.f32 %v5442, %v3035
      %v5444 = vmax.f32 %v5443, %v3039
      %v5445 = vsel %vm5389, %v3045, -inf
      %v5446 = vmax.f32 %v5444, %v5445
      %v5447 = vrot.slane %v5446, 4
      %v5448 = vmax.f32 %v5446, %v5447
      %v5449 = vrot.slane %v5448, 2
      %v5450 = vmax.f32 %v5448, %v5449
      %v5451 = vrot.slane %v5450, 1
      %v5452 = vmax.f32 %v5450, %v5451
      %v5453 = vsel %vm5385, %v3289, -inf
      %v5454 = vmax.f32 %v5453, %v3295
      %v5455 = vmax.f32 %v5454, %v3299
      %v5456 = vsel %vm5389, %v3305, -inf
      %v5457 = vmax.f32 %v5455, %v5456
      %v5458 = vrot.slane %v5457, 4
      %v5459 = vmax.f32 %v5457, %v5458
      %v5460 = vrot.slane %v5459, 2
      %v5461 = vmax.f32 %v5459, %v5460
      %v5462 = vrot.slane %v5461, 1
      %v5463 = vmax.f32 %v5461, %v5462
      %v5464 = vsel %vm5385, %v3291, -inf
      %v5465 = vmax.f32 %v5464, %v3297
      %v5466 = vmax.f32 %v5465, %v3301
      %v5467 = vsel %vm5389, %v3307, -inf
      %v5468 = vmax.f32 %v5466, %v5467
      %v5469 = vrot.slane %v5468, 4
      %v5470 = vmax.f32 %v5468, %v5469
      %v5471 = vrot.slane %v5470, 2
      %v5472 = vmax.f32 %v5470, %v5471
      %v5473 = vrot.slane %v5472, 1
      %v5474 = vmax.f32 %v5472, %v5473
      %v5475 = vsel %vm5385, %v3551, -inf
      %v5476 = vmax.f32 %v5475, %v3557
      %v5477 = vmax.f32 %v5476, %v3561
      %v5478 = vsel %vm5389, %v3567, -inf
      %v5479 = vmax.f32 %v5477, %v5478
      %v5480 = vrot.slane %v5479, 4
      %v5481 = vmax.f32 %v5479, %v5480
      %v5482 = vrot.slane %v5481, 2
      %v5483 = vmax.f32 %v5481, %v5482
      %v5484 = vrot.slane %v5483, 1
      %v5485 = vmax.f32 %v5483, %v5484
      %v5486 = vsel %vm5385, %v3553, -inf
      %v5487 = vmax.f32 %v5486, %v3559
      %v5488 = vmax.f32 %v5487, %v3563
      %v5489 = vsel %vm5389, %v3569, -inf
      %v5490 = vmax.f32 %v5488, %v5489
      %v5491 = vrot.slane %v5490, 4
      %v5492 = vmax.f32 %v5490, %v5491
      %v5493 = vrot.slane %v5492, 2
      %v5494 = vmax.f32 %v5492, %v5493
      %v5495 = vrot.slane %v5494, 1
      %v5496 = vmax.f32 %v5494, %v5495
      %v5497 = vsel %vm5385, %v3813, -inf
      %v5498 = vmax.f32 %v5497, %v3819
      %v5499 = vmax.f32 %v5498, %v3823
      %v5500 = vsel %vm5389, %v3829, -inf
      %v5501 = vmax.f32 %v5499, %v5500
      %v5502 = vrot.slane %v5501, 4
      %v5503 = vmax.f32 %v5501, %v5502
      %v5504 = vrot.slane %v5503, 2
      %v5505 = vmax.f32 %v5503, %v5504
      %v5506 = vrot.slane %v5505, 1
      %v5507 = vmax.f32 %v5505, %v5506
      %v5508 = vsel %vm5385, %v3815, -inf
      %v5509 = vmax.f32 %v5508, %v3821
      %v5510 = vmax.f32 %v5509, %v3825
      %v5511 = vsel %vm5389, %v3831, -inf
      %v5512 = vmax.f32 %v5510, %v5511
      %v5513 = vrot.slane %v5512, 4
      %v5514 = vmax.f32 %v5512, %v5513
      %v5515 = vrot.slane %v5514, 2
      %v5516 = vmax.f32 %v5514, %v5515
      %v5517 = vrot.slane %v5516, 1
      %v5518 = vmax.f32 %v5516, %v5517
      %v5519 = vsel %vm5385, %v4075, -inf
      %v5520 = vmax.f32 %v5519, %v4081
      %v5521 = vmax.f32 %v5520, %v4085
      %v5522 = vsel %vm5389, %v4091, -inf
      %v5523 = vmax.f32 %v5521, %v5522
      %v5524 = vrot.slane %v5523, 4
      %v5525 = vmax.f32 %v5523, %v5524
      %v5526 = vrot.slane %v5525, 2
      %v5527 = vmax.f32 %v5525, %v5526
      %v5528 = vrot.slane %v5527, 1
      %v5529 = vmax.f32 %v5527, %v5528
      %v5530 = vsel %vm5385, %v4077, -inf
      %v5531 = vmax.f32 %v5530, %v4083
      %v5532 = vmax.f32 %v5531, %v4087
      %v5533 = vsel %vm5389, %v4093, -inf
      %v5534 = vmax.f32 %v5532, %v5533
      %v5535 = vrot.slane %v5534, 4
      %v5536 = vmax.f32 %v5534, %v5535
      %v5537 = vrot.slane %v5536, 2
      %v5538 = vmax.f32 %v5536, %v5537
      %v5539 = vrot.slane %v5538, 1
      %v5540 = vmax.f32 %v5538, %v5539
      %v5541 = vsel %vm5385, %v4337, -inf
      %v5542 = vmax.f32 %v5541, %v4343
      %v5543 = vmax.f32 %v5542, %v4347
      %v5544 = vsel %vm5389, %v4353, -inf
      %v5545 = vmax.f32 %v5543, %v5544
      %v5546 = vrot.slane %v5545, 4
      %v5547 = vmax.f32 %v5545, %v5546
      %v5548 = vrot.slane %v5547, 2
      %v5549 = vmax.f32 %v5547, %v5548
      %v5550 = vrot.slane %v5549, 1
      %v5551 = vmax.f32 %v5549, %v5550
      %v5552 = vsel %vm5385, %v4339, -inf
      %v5553 = vmax.f32 %v5552, %v4345
      %v5554 = vmax.f32 %v5553, %v4349
      %v5555 = vsel %vm5389, %v4355, -inf
      %v5556 = vmax.f32 %v5554, %v5555
      %v5557 = vrot.slane %v5556, 4
      %v5558 = vmax.f32 %v5556, %v5557
      %v5559 = vrot.slane %v5558, 2
      %v5560 = vmax.f32 %v5558, %v5559
      %v5561 = vrot.slane %v5560, 1
      %v5562 = vmax.f32 %v5560, %v5561
      %v5563 = vld [vmem:[%s2 + $0x3] sm:$0x1]
      %5565 = vset.pattern.permute.xlu0 0
      %5566 = vperm.xlu0 %5565, %v5563
      %v5567 = vpop.permute.xlu0 %5566
      %v5569 = vadd.f32 %v5397, %v5567
      %v5570 = vadd.f32 %v5408, %v5567
      %v5571 = vadd.f32 %v5419, %v5567
      %v5572 = vadd.f32 %v5430, %v5567
      %v5573 = vadd.f32 %v5441, %v5567
      %v5574 = vadd.f32 %v5452, %v5567
      %v5575 = vadd.f32 %v5463, %v5567
      %v5576 = vadd.f32 %v5474, %v5567
      %v5577 = vadd.f32 %v5485, %v5567
      %v5578 = vadd.f32 %v5496, %v5567
      %v5579 = vadd.f32 %v5507, %v5567
      %v5580 = vadd.f32 %v5518, %v5567
      %v5581 = vadd.f32 %v5529, %v5567
      %v5582 = vadd.f32 %v5540, %v5567
      %v5583 = vadd.f32 %v5551, %v5567
      %v5584 = vadd.f32 %v5562, %v5567
      %v5585 = vmax.f32 %v5569, 0.0
      %v5586 = vmax.f32 %v5570, 0.0
      %v5587 = vmax.f32 %v5571, 0.0
      %v5588 = vmax.f32 %v5572, 0.0
      %v5589 = vmax.f32 %v5573, 0.0
      %v5590 = vmax.f32 %v5574, 0.0
      %v5591 = vmax.f32 %v5575, 0.0
      %v5592 = vmax.f32 %v5576, 0.0
      %v5593 = vmax.f32 %v5577, 0.0
      %v5594 = vmax.f32 %v5578, 0.0
      %v5595 = vmax.f32 %v5579, 0.0
      %v5596 = vmax.f32 %v5580, 0.0
      %v5597 = vmax.f32 %v5581, 0.0
      %v5598 = vmax.f32 %v5582, 0.0
      %v5599 = vmax.f32 %v5583, 0.0
      %v5600 = vmax.f32 %v5584, 0.0
      %v5617 = vcombine.low %v5585, %v5586
      %v5618 = vcombine.low %v5587, %v5588
      %v5619 = vcombine.low %v5589, %v5590
      %v5620 = vcombine.low %v5591, %v5592
      %v5622 = vunpack.c.l.s4 1966171168
      %v5623 = vunpack.c.0.s8 %v5622
      %v5624 = vlaneseq
      %v5625 = vshrl.u32 %v5624, 7
      %v5626 = vsub.s32 %v5623, %v5625
      %v5627 = vrot.slane %v5617, %v5626
      %v5629 = vunpack.c.l.s4 1966171168
      %v5630 = vunpack.c.0.s8 %v5629
      %v5631 = vlaneseq
      %v5632 = vshrl.u32 %v5631, 7
      %v5633 = vsub.s32 %v5630, %v5632
      %v5634 = vrot.slane %v5618, %v5633
      %v5636 = vunpack.c.l.s4 1966171168
      %v5637 = vunpack.c.0.s8 %v5636
      %v5638 = vlaneseq
      %v5639 = vshrl.u32 %v5638, 7
      %v5640 = vsub.s32 %v5637, %v5639
      %v5641 = vrot.slane %v5619, %v5640
      %v5643 = vunpack.c.l.s4 1966171168
      %v5644 = vunpack.c.0.s8 %v5643
      %v5645 = vlaneseq
      %v5646 = vshrl.u32 %v5645, 7
      %v5647 = vsub.s32 %v5644, %v5646
      %v5648 = vrot.slane %v5620, %v5647
      %v5649 = vcombine.low %v5627, %v5634
      %v5650 = vcombine.low %v5641, %v5648
      %v5652 = vunpack.c.l.s4 1966171168
      %v5653 = vunpack.c.0.s8 %v5652
      %v5654 = vlaneseq
      %v5655 = vshrl.u32 %v5654, 7
      %v5656 = vsub.s32 %v5653, %v5655
      %v5657 = vrot.slane %v5649, %v5656
      %v5659 = vunpack.c.l.s4 1966171168
      %v5660 = vunpack.c.0.s8 %v5659
      %v5661 = vlaneseq
      %v5662 = vshrl.u32 %v5661, 7
      %v5663 = vsub.s32 %v5660, %v5662
      %v5664 = vrot.slane %v5650, %v5663
      %v5665 = vcombine.low %v5657, %v5664
      %v5666 = vcombine.low %v5593, %v5594
      %v5667 = vcombine.low %v5595, %v5596
      %v5668 = vcombine.low %v5597, %v5598
      %v5669 = vcombine.low %v5599, %v5600
      %v5671 = vunpack.c.l.s4 1966171168
      %v5672 = vunpack.c.0.s8 %v5671
      %v5673 = vlaneseq
      %v5674 = vshrl.u32 %v5673, 7
      %v5675 = vsub.s32 %v5672, %v5674
      %v5676 = vrot.slane %v5666, %v5675
      %v5678 = vunpack.c.l.s4 1966171168
      %v5679 = vunpack.c.0.s8 %v5678
      %v5680 = vlaneseq
      %v5681 = vshrl.u32 %v5680, 7
      %v5682 = vsub.s32 %v5679, %v5681
      %v5683 = vrot.slane %v5667, %v5682
      %v5685 = vunpack.c.l.s4 1966171168
      %v5686 = vunpack.c.0.s8 %v5685
      %v5687 = vlaneseq
      %v5688 = vshrl.u32 %v5687, 7
      %v5689 = vsub.s32 %v5686, %v5688
      %v5690 = vrot.slane %v5668, %v5689
      %v5692 = vunpack.c.l.s4 1966171168
      %v5693 = vunpack.c.0.s8 %v5692
      %v5694 = vlaneseq
      %v5695 = vshrl.u32 %v5694, 7
      %v5696 = vsub.s32 %v5693, %v5695
      %v5697 = vrot.slane %v5669, %v5696
      %v5698 = vcombine.low %v5676, %v5683
      %v5699 = vcombine.low %v5690, %v5697
      %v5701 = vunpack.c.l.s4 1966171168
      %v5702 = vunpack.c.0.s8 %v5701
      %v5703 = vlaneseq
      %v5704 = vshrl.u32 %v5703, 7
      %v5705 = vsub.s32 %v5702, %v5704
      %v5706 = vrot.slane %v5698, %v5705
      %v5708 = vunpack.c.l.s4 1966171168
      %v5709 = vunpack.c.0.s8 %v5708
      %v5710 = vlaneseq
      %v5711 = vshrl.u32 %v5710, 7
      %v5712 = vsub.s32 %v5709, %v5711
      %v5713 = vrot.slane %v5699, %v5712
      %v5714 = vcombine.low %v5706, %v5713
      %s5717 = scalar_lea.vmem [#allocation2], 3
      %5718 = vst [vmem:[%s5717] ss:$8 sm:$0xf] %v5665
      %5719 = vst [vmem:[%s5717] ss:$8 sm:$0xf0] %v5665
      %s5720 = scalar_lea.vmem [#allocation2], 67
      %5721 = vst [vmem:[%s5720] ss:$8 sm:$0xf] %v5714
      %5722 = vst [vmem:[%s5720] ss:$8 sm:$0xf0] %v5714
      %vm5723 = vcmask 1047556
      %v5724 = vsel %vm5723, %v2519, -inf
      %v5725 = vmax.f32 %v5724, %v2523
      %v5726 = vmax.f32 %v5725, %v2529
      %vm5727 = vcmask 1044480
      %v5728 = vsel %vm5727, %v2533, -inf
      %v5729 = vmax.f32 %v5726, %v5728
      %v5730 = vrot.slane %v5729, 4
      %v5731 = vmax.f32 %v5729, %v5730
      %v5732 = vrot.slane %v5731, 2
      %v5733 = vmax.f32 %v5731, %v5732
      %v5734 = vrot.slane %v5733, 1
      %v5735 = vmax.f32 %v5733, %v5734
      %v5736 = vsel %vm5723, %v2521, -inf
      %v5737 = vmax.f32 %v5736, %v2525
      %v5738 = vmax.f32 %v5737, %v2531
      %v5739 = vsel %vm5727, %v2535, -inf
      %v5740 = vmax.f32 %v5738, %v5739
      %v5741 = vrot.slane %v5740, 4
      %v5742 = vmax.f32 %v5740, %v5741
      %v5743 = vrot.slane %v5742, 2
      %v5744 = vmax.f32 %v5742, %v5743
      %v5745 = vrot.slane %v5744, 1
      %v5746 = vmax.f32 %v5744, %v5745
      %v5747 = vsel %vm5723, %v2781, -inf
      %v5748 = vmax.f32 %v5747, %v2785
      %v5749 = vmax.f32 %v5748, %v2791
      %v5750 = vsel %vm5727, %v2795, -inf
      %v5751 = vmax.f32 %v5749, %v5750
      %v5752 = vrot.slane %v5751, 4
      %v5753 = vmax.f32 %v5751, %v5752
      %v5754 = vrot.slane %v5753, 2
      %v5755 = vmax.f32 %v5753, %v5754
      %v5756 = vrot.slane %v5755, 1
      %v5757 = vmax.f32 %v5755, %v5756
      %v5758 = vsel %vm5723, %v2783, -inf
      %v5759 = vmax.f32 %v5758, %v2787
      %v5760 = vmax.f32 %v5759, %v2793
      %v5761 = vsel %vm5727, %v2797, -inf
      %v5762 = vmax.f32 %v5760, %v5761
      %v5763 = vrot.slane %v5762, 4
      %v5764 = vmax.f32 %v5762, %v5763
      %v5765 = vrot.slane %v5764, 2
      %v5766 = vmax.f32 %v5764, %v5765
      %v5767 = vrot.slane %v5766, 1
      %v5768 = vmax.f32 %v5766, %v5767
      %v5769 = vsel %vm5723, %v3043, -inf
      %v5770 = vmax.f32 %v5769, %v3047
      %v5771 = vmax.f32 %v5770, %v3053
      %v5772 = vsel %vm5727, %v3057, -inf
      %v5773 = vmax.f32 %v5771, %v5772
      %v5774 = vrot.slane %v5773, 4
      %v5775 = vmax.f32 %v5773, %v5774
      %v5776 = vrot.slane %v5775, 2
      %v5777 = vmax.f32 %v5775, %v5776
      %v5778 = vrot.slane %v5777, 1
      %v5779 = vmax.f32 %v5777, %v5778
      %v5780 = vsel %vm5723, %v3045, -inf
      %v5781 = vmax.f32 %v5780, %v3049
      %v5782 = vmax.f32 %v5781, %v3055
      %v5783 = vsel %vm5727, %v3059, -inf
      %v5784 = vmax.f32 %v5782, %v5783
      %v5785 = vrot.slane %v5784, 4
      %v5786 = vmax.f32 %v5784, %v5785
      %v5787 = vrot.slane %v5786, 2
      %v5788 = vmax.f32 %v5786, %v5787
      %v5789 = vrot.slane %v5788, 1
      %v5790 = vmax.f32 %v5788, %v5789
      %v5791 = vsel %vm5723, %v3305, -inf
      %v5792 = vmax.f32 %v5791, %v3309
      %v5793 = vmax.f32 %v5792, %v3315
      %v5794 = vsel %vm5727, %v3319, -inf
      %v5795 = vmax.f32 %v5793, %v5794
      %v5796 = vrot.slane %v5795, 4
      %v5797 = vmax.f32 %v5795, %v5796
      %v5798 = vrot.slane %v5797, 2
      %v5799 = vmax.f32 %v5797, %v5798
      %v5800 = vrot.slane %v5799, 1
      %v5801 = vmax.f32 %v5799, %v5800
      %v5802 = vsel %vm5723, %v3307, -inf
      %v5803 = vmax.f32 %v5802, %v3311
      %v5804 = vmax.f32 %v5803, %v3317
      %v5805 = vsel %vm5727, %v3321, -inf
      %v5806 = vmax.f32 %v5804, %v5805
      %v5807 = vrot.slane %v5806, 4
      %v5808 = vmax.f32 %v5806, %v5807
      %v5809 = vrot.slane %v5808, 2
      %v5810 = vmax.f32 %v5808, %v5809
      %v5811 = vrot.slane %v5810, 1
      %v5812 = vmax.f32 %v5810, %v5811
      %v5813 = vsel %vm5723, %v3567, -inf
      %v5814 = vmax.f32 %v5813, %v3571
      %v5815 = vmax.f32 %v5814, %v3577
      %v5816 = vsel %vm5727, %v3581, -inf
      %v5817 = vmax.f32 %v5815, %v5816
      %v5818 = vrot.slane %v5817, 4
      %v5819 = vmax.f32 %v5817, %v5818
      %v5820 = vrot.slane %v5819, 2
      %v5821 = vmax.f32 %v5819, %v5820
      %v5822 = vrot.slane %v5821, 1
      %v5823 = vmax.f32 %v5821, %v5822
      %v5824 = vsel %vm5723, %v3569, -inf
      %v5825 = vmax.f32 %v5824, %v3573
      %v5826 = vmax.f32 %v5825, %v3579
      %v5827 = vsel %vm5727, %v3583, -inf
      %v5828 = vmax.f32 %v5826, %v5827
      %v5829 = vrot.slane %v5828, 4
      %v5830 = vmax.f32 %v5828, %v5829
      %v5831 = vrot.slane %v5830, 2
      %v5832 = vmax.f32 %v5830, %v5831
      %v5833 = vrot.slane %v5832, 1
      %v5834 = vmax.f32 %v5832, %v5833
      %v5835 = vsel %vm5723, %v3829, -inf
      %v5836 = vmax.f32 %v5835, %v3833
      %v5837 = vmax.f32 %v5836, %v3839
      %v5838 = vsel %vm5727, %v3843, -inf
      %v5839 = vmax.f32 %v5837, %v5838
      %v5840 = vrot.slane %v5839, 4
      %v5841 = vmax.f32 %v5839, %v5840
      %v5842 = vrot.slane %v5841, 2
      %v5843 = vmax.f32 %v5841, %v5842
      %v5844 = vrot.slane %v5843, 1
      %v5845 = vmax.f32 %v5843, %v5844
      %v5846 = vsel %vm5723, %v3831, -inf
      %v5847 = vmax.f32 %v5846, %v3835
      %v5848 = vmax.f32 %v5847, %v3841
      %v5849 = vsel %vm5727, %v3845, -inf
      %v5850 = vmax.f32 %v5848, %v5849
      %v5851 = vrot.slane %v5850, 4
      %v5852 = vmax.f32 %v5850, %v5851
      %v5853 = vrot.slane %v5852, 2
      %v5854 = vmax.f32 %v5852, %v5853
      %v5855 = vrot.slane %v5854, 1
      %v5856 = vmax.f32 %v5854, %v5855
      %v5857 = vsel %vm5723, %v4091, -inf
      %v5858 = vmax.f32 %v5857, %v4095
      %v5859 = vmax.f32 %v5858, %v4101
      %v5860 = vsel %vm5727, %v4105, -inf
      %v5861 = vmax.f32 %v5859, %v5860
      %v5862 = vrot.slane %v5861, 4
      %v5863 = vmax.f32 %v5861, %v5862
      %v5864 = vrot.slane %v5863, 2
      %v5865 = vmax.f32 %v5863, %v5864
      %v5866 = vrot.slane %v5865, 1
      %v5867 = vmax.f32 %v5865, %v5866
      %v5868 = vsel %vm5723, %v4093, -inf
      %v5869 = vmax.f32 %v5868, %v4097
      %v5870 = vmax.f32 %v5869, %v4103
      %v5871 = vsel %vm5727, %v4107, -inf
      %v5872 = vmax.f32 %v5870, %v5871
      %v5873 = vrot.slane %v5872, 4
      %v5874 = vmax.f32 %v5872, %v5873
      %v5875 = vrot.slane %v5874, 2
      %v5876 = vmax.f32 %v5874, %v5875
      %v5877 = vrot.slane %v5876, 1
      %v5878 = vmax.f32 %v5876, %v5877
      %v5879 = vsel %vm5723, %v4353, -inf
      %v5880 = vmax.f32 %v5879, %v4357
      %v5881 = vmax.f32 %v5880, %v4363
      %v5882 = vsel %vm5727, %v4367, -inf
      %v5883 = vmax.f32 %v5881, %v5882
      %v5884 = vrot.slane %v5883, 4
      %v5885 = vmax.f32 %v5883, %v5884
      %v5886 = vrot.slane %v5885, 2
      %v5887 = vmax.f32 %v5885, %v5886
      %v5888 = vrot.slane %v5887, 1
      %v5889 = vmax.f32 %v5887, %v5888
      %v5890 = vsel %vm5723, %v4355, -inf
      %v5891 = vmax.f32 %v5890, %v4359
      %v5892 = vmax.f32 %v5891, %v4365
      %v5893 = vsel %vm5727, %v4369, -inf
      %v5894 = vmax.f32 %v5892, %v5893
      %v5895 = vrot.slane %v5894, 4
      %v5896 = vmax.f32 %v5894, %v5895
      %v5897 = vrot.slane %v5896, 2
      %v5898 = vmax.f32 %v5896, %v5897
      %v5899 = vrot.slane %v5898, 1
      %v5900 = vmax.f32 %v5898, %v5899
      %v5901 = vld [vmem:[%s2 + $0x4] sm:$0x1]
      %5903 = vset.pattern.permute.xlu0 0
      %5904 = vperm.xlu0 %5903, %v5901
      %v5905 = vpop.permute.xlu0 %5904
      %v5907 = vadd.f32 %v5735, %v5905
      %v5908 = vadd.f32 %v5746, %v5905
      %v5909 = vadd.f32 %v5757, %v5905
      %v5910 = vadd.f32 %v5768, %v5905
      %v5911 = vadd.f32 %v5779, %v5905
      %v5912 = vadd.f32 %v5790, %v5905
      %v5913 = vadd.f32 %v5801, %v5905
      %v5914 = vadd.f32 %v5812, %v5905
      %v5915 = vadd.f32 %v5823, %v5905
      %v5916 = vadd.f32 %v5834, %v5905
      %v5917 = vadd.f32 %v5845, %v5905
      %v5918 = vadd.f32 %v5856, %v5905
      %v5919 = vadd.f32 %v5867, %v5905
      %v5920 = vadd.f32 %v5878, %v5905
      %v5921 = vadd.f32 %v5889, %v5905
      %v5922 = vadd.f32 %v5900, %v5905
      %v5923 = vmax.f32 %v5907, 0.0
      %v5924 = vmax.f32 %v5908, 0.0
      %v5925 = vmax.f32 %v5909, 0.0
      %v5926 = vmax.f32 %v5910, 0.0
      %v5927 = vmax.f32 %v5911, 0.0
      %v5928 = vmax.f32 %v5912, 0.0
      %v5929 = vmax.f32 %v5913, 0.0
      %v5930 = vmax.f32 %v5914, 0.0
      %v5931 = vmax.f32 %v5915, 0.0
      %v5932 = vmax.f32 %v5916, 0.0
      %v5933 = vmax.f32 %v5917, 0.0
      %v5934 = vmax.f32 %v5918, 0.0
      %v5935 = vmax.f32 %v5919, 0.0
      %v5936 = vmax.f32 %v5920, 0.0
      %v5937 = vmax.f32 %v5921, 0.0
      %v5938 = vmax.f32 %v5922, 0.0
      %v5955 = vcombine.low %v5923, %v5924
      %v5956 = vcombine.low %v5925, %v5926
      %v5957 = vcombine.low %v5927, %v5928
      %v5958 = vcombine.low %v5929, %v5930
      %v5960 = vunpack.c.l.s4 1966171168
      %v5961 = vunpack.c.0.s8 %v5960
      %v5962 = vlaneseq
      %v5963 = vshrl.u32 %v5962, 7
      %v5964 = vsub.s32 %v5961, %v5963
      %v5965 = vrot.slane %v5955, %v5964
      %v5967 = vunpack.c.l.s4 1966171168
      %v5968 = vunpack.c.0.s8 %v5967
      %v5969 = vlaneseq
      %v5970 = vshrl.u32 %v5969, 7
      %v5971 = vsub.s32 %v5968, %v5970
      %v5972 = vrot.slane %v5956, %v5971
      %v5974 = vunpack.c.l.s4 1966171168
      %v5975 = vunpack.c.0.s8 %v5974
      %v5976 = vlaneseq
      %v5977 = vshrl.u32 %v5976, 7
      %v5978 = vsub.s32 %v5975, %v5977
      %v5979 = vrot.slane %v5957, %v5978
      %v5981 = vunpack.c.l.s4 1966171168
      %v5982 = vunpack.c.0.s8 %v5981
      %v5983 = vlaneseq
      %v5984 = vshrl.u32 %v5983, 7
      %v5985 = vsub.s32 %v5982, %v5984
      %v5986 = vrot.slane %v5958, %v5985
      %v5987 = vcombine.low %v5965, %v5972
      %v5988 = vcombine.low %v5979, %v5986
      %v5990 = vunpack.c.l.s4 1966171168
      %v5991 = vunpack.c.0.s8 %v5990
      %v5992 = vlaneseq
      %v5993 = vshrl.u32 %v5992, 7
      %v5994 = vsub.s32 %v5991, %v5993
      %v5995 = vrot.slane %v5987, %v5994
      %v5997 = vunpack.c.l.s4 1966171168
      %v5998 = vunpack.c.0.s8 %v5997
      %v5999 = vlaneseq
      %v6000 = vshrl.u32 %v5999, 7
      %v6001 = vsub.s32 %v5998, %v6000
      %v6002 = vrot.slane %v5988, %v6001
      %v6003 = vcombine.low %v5995, %v6002
      %v6004 = vcombine.low %v5931, %v5932
      %v6005 = vcombine.low %v5933, %v5934
      %v6006 = vcombine.low %v5935, %v5936
      %v6007 = vcombine.low %v5937, %v5938
      %v6009 = vunpack.c.l.s4 1966171168
      %v6010 = vunpack.c.0.s8 %v6009
      %v6011 = vlaneseq
      %v6012 = vshrl.u32 %v6011, 7
      %v6013 = vsub.s32 %v6010, %v6012
      %v6014 = vrot.slane %v6004, %v6013
      %v6016 = vunpack.c.l.s4 1966171168
      %v6017 = vunpack.c.0.s8 %v6016
      %v6018 = vlaneseq
      %v6019 = vshrl.u32 %v6018, 7
      %v6020 = vsub.s32 %v6017, %v6019
      %v6021 = vrot.slane %v6005, %v6020
      %v6023 = vunpack.c.l.s4 1966171168
      %v6024 = vunpack.c.0.s8 %v6023
      %v6025 = vlaneseq
      %v6026 = vshrl.u32 %v6025, 7
      %v6027 = vsub.s32 %v6024, %v6026
      %v6028 = vrot.slane %v6006, %v6027
      %v6030 = vunpack.c.l.s4 1966171168
      %v6031 = vunpack.c.0.s8 %v6030
      %v6032 = vlaneseq
      %v6033 = vshrl.u32 %v6032, 7
      %v6034 = vsub.s32 %v6031, %v6033
      %v6035 = vrot.slane %v6007, %v6034
      %v6036 = vcombine.low %v6014, %v6021
      %v6037 = vcombine.low %v6028, %v6035
      %v6039 = vunpack.c.l.s4 1966171168
      %v6040 = vunpack.c.0.s8 %v6039
      %v6041 = vlaneseq
      %v6042 = vshrl.u32 %v6041, 7
      %v6043 = vsub.s32 %v6040, %v6042
      %v6044 = vrot.slane %v6036, %v6043
      %v6046 = vunpack.c.l.s4 1966171168
      %v6047 = vunpack.c.0.s8 %v6046
      %v6048 = vlaneseq
      %v6049 = vshrl.u32 %v6048, 7
      %v6050 = vsub.s32 %v6047, %v6049
      %v6051 = vrot.slane %v6037, %v6050
      %v6052 = vcombine.low %v6044, %v6051
      %s6055 = scalar_lea.vmem [#allocation2], 4
      %6056 = vst [vmem:[%s6055] ss:$8 sm:$0xf] %v6003
      %6057 = vst [vmem:[%s6055] ss:$8 sm:$0xf0] %v6003
      %s6058 = scalar_lea.vmem [#allocation2], 68
      %6059 = vst [vmem:[%s6058] ss:$8 sm:$0xf] %v6052
      %6060 = vst [vmem:[%s6058] ss:$8 sm:$0xf0] %v6052
      %vm6061 = vcmask 1047557
      %v6062 = vsel %vm6061, %v2533, -inf
      %v6063 = vmax.f32 %v6062, %v2539
      %v6064 = vmax.f32 %v6063, %v2543
      %v6065 = vsel %vm2244, %v2549, -inf
      %v6066 = vmax.f32 %v6064, %v6065
      %v6067 = vrot.slane %v6066, 4
      %v6068 = vmax.f32 %v6066, %v6067
      %v6069 = vrot.slane %v6068, 2
      %v6070 = vmax.f32 %v6068, %v6069
      %v6071 = vrot.slane %v6070, 1
      %v6072 = vmax.f32 %v6070, %v6071
      %v6073 = vsel %vm6061, %v2535, -inf
      %v6074 = vmax.f32 %v6073, %v2541
      %v6075 = vmax.f32 %v6074, %v2545
      %v6076 = vsel %vm2244, %v2551, -inf
      %v6077 = vmax.f32 %v6075, %v6076
      %v6078 = vrot.slane %v6077, 4
      %v6079 = vmax.f32 %v6077, %v6078
      %v6080 = vrot.slane %v6079, 2
      %v6081 = vmax.f32 %v6079, %v6080
      %v6082 = vrot.slane %v6081, 1
      %v6083 = vmax.f32 %v6081, %v6082
      %v6084 = vsel %vm6061, %v2795, -inf
      %v6085 = vmax.f32 %v6084, %v2801
      %v6086 = vmax.f32 %v6085, %v2805
      %v6087 = vsel %vm2244, %v2811, -inf
      %v6088 = vmax.f32 %v6086, %v6087
      %v6089 = vrot.slane %v6088, 4
      %v6090 = vmax.f32 %v6088, %v6089
      %v6091 = vrot.slane %v6090, 2
      %v6092 = vmax.f32 %v6090, %v6091
      %v6093 = vrot.slane %v6092, 1
      %v6094 = vmax.f32 %v6092, %v6093
      %v6095 = vsel %vm6061, %v2797, -inf
      %v6096 = vmax.f32 %v6095, %v2803
      %v6097 = vmax.f32 %v6096, %v2807
      %v6098 = vsel %vm2244, %v2813, -inf
      %v6099 = vmax.f32 %v6097, %v6098
      %v6100 = vrot.slane %v6099, 4
      %v6101 = vmax.f32 %v6099, %v6100
      %v6102 = vrot.slane %v6101, 2
      %v6103 = vmax.f32 %v6101, %v6102
      %v6104 = vrot.slane %v6103, 1
      %v6105 = vmax.f32 %v6103, %v6104
      %v6106 = vsel %vm6061, %v3057, -inf
      %v6107 = vmax.f32 %v6106, %v3063
      %v6108 = vmax.f32 %v6107, %v3067
      %v6109 = vsel %vm2244, %v3073, -inf
      %v6110 = vmax.f32 %v6108, %v6109
      %v6111 = vrot.slane %v6110, 4
      %v6112 = vmax.f32 %v6110, %v6111
      %v6113 = vrot.slane %v6112, 2
      %v6114 = vmax.f32 %v6112, %v6113
      %v6115 = vrot.slane %v6114, 1
      %v6116 = vmax.f32 %v6114, %v6115
      %v6117 = vsel %vm6061, %v3059, -inf
      %v6118 = vmax.f32 %v6117, %v3065
      %v6119 = vmax.f32 %v6118, %v3069
      %v6120 = vsel %vm2244, %v3075, -inf
      %v6121 = vmax.f32 %v6119, %v6120
      %v6122 = vrot.slane %v6121, 4
      %v6123 = vmax.f32 %v6121, %v6122
      %v6124 = vrot.slane %v6123, 2
      %v6125 = vmax.f32 %v6123, %v6124
      %v6126 = vrot.slane %v6125, 1
      %v6127 = vmax.f32 %v6125, %v6126
      %v6128 = vsel %vm6061, %v3319, -inf
      %v6129 = vmax.f32 %v6128, %v3325
      %v6130 = vmax.f32 %v6129, %v3329
      %v6131 = vsel %vm2244, %v3335, -inf
      %v6132 = vmax.f32 %v6130, %v6131
      %v6133 = vrot.slane %v6132, 4
      %v6134 = vmax.f32 %v6132, %v6133
      %v6135 = vrot.slane %v6134, 2
      %v6136 = vmax.f32 %v6134, %v6135
      %v6137 = vrot.slane %v6136, 1
      %v6138 = vmax.f32 %v6136, %v6137
      %v6139 = vsel %vm6061, %v3321, -inf
      %v6140 = vmax.f32 %v6139, %v3327
      %v6141 = vmax.f32 %v6140, %v3331
      %v6142 = vsel %vm2244, %v3337, -inf
      %v6143 = vmax.f32 %v6141, %v6142
      %v6144 = vrot.slane %v6143, 4
      %v6145 = vmax.f32 %v6143, %v6144
      %v6146 = vrot.slane %v6145, 2
      %v6147 = vmax.f32 %v6145, %v6146
      %v6148 = vrot.slane %v6147, 1
      %v6149 = vmax.f32 %v6147, %v6148
      %v6150 = vsel %vm6061, %v3581, -inf
      %v6151 = vmax.f32 %v6150, %v3587
      %v6152 = vmax.f32 %v6151, %v3591
      %v6153 = vsel %vm2244, %v3597, -inf
      %v6154 = vmax.f32 %v6152, %v6153
      %v6155 = vrot.slane %v6154, 4
      %v6156 = vmax.f32 %v6154, %v6155
      %v6157 = vrot.slane %v6156, 2
      %v6158 = vmax.f32 %v6156, %v6157
      %v6159 = vrot.slane %v6158, 1
      %v6160 = vmax.f32 %v6158, %v6159
      %v6161 = vsel %vm6061, %v3583, -inf
      %v6162 = vmax.f32 %v6161, %v3589
      %v6163 = vmax.f32 %v6162, %v3593
      %v6164 = vsel %vm2244, %v3599, -inf
      %v6165 = vmax.f32 %v6163, %v6164
      %v6166 = vrot.slane %v6165, 4
      %v6167 = vmax.f32 %v6165, %v6166
      %v6168 = vrot.slane %v6167, 2
      %v6169 = vmax.f32 %v6167, %v6168
      %v6170 = vrot.slane %v6169, 1
      %v6171 = vmax.f32 %v6169, %v6170
      %v6172 = vsel %vm6061, %v3843, -inf
      %v6173 = vmax.f32 %v6172, %v3849
      %v6174 = vmax.f32 %v6173, %v3853
      %v6175 = vsel %vm2244, %v3859, -inf
      %v6176 = vmax.f32 %v6174, %v6175
      %v6177 = vrot.slane %v6176, 4
      %v6178 = vmax.f32 %v6176, %v6177
      %v6179 = vrot.slane %v6178, 2
      %v6180 = vmax.f32 %v6178, %v6179
      %v6181 = vrot.slane %v6180, 1
      %v6182 = vmax.f32 %v6180, %v6181
      %v6183 = vsel %vm6061, %v3845, -inf
      %v6184 = vmax.f32 %v6183, %v3851
      %v6185 = vmax.f32 %v6184, %v3855
      %v6186 = vsel %vm2244, %v3861, -inf
      %v6187 = vmax.f32 %v6185, %v6186
      %v6188 = vrot.slane %v6187, 4
      %v6189 = vmax.f32 %v6187, %v6188
      %v6190 = vrot.slane %v6189, 2
      %v6191 = vmax.f32 %v6189, %v6190
      %v6192 = vrot.slane %v6191, 1
      %v6193 = vmax.f32 %v6191, %v6192
      %v6194 = vsel %vm6061, %v4105, -inf
      %v6195 = vmax.f32 %v6194, %v4111
      %v6196 = vmax.f32 %v6195, %v4115
      %v6197 = vsel %vm2244, %v4121, -inf
      %v6198 = vmax.f32 %v6196, %v6197
      %v6199 = vrot.slane %v6198, 4
      %v6200 = vmax.f32 %v6198, %v6199
      %v6201 = vrot.slane %v6200, 2
      %v6202 = vmax.f32 %v6200, %v6201
      %v6203 = vrot.slane %v6202, 1
      %v6204 = vmax.f32 %v6202, %v6203
      %v6205 = vsel %vm6061, %v4107, -inf
      %v6206 = vmax.f32 %v6205, %v4113
      %v6207 = vmax.f32 %v6206, %v4117
      %v6208 = vsel %vm2244, %v4123, -inf
      %v6209 = vmax.f32 %v6207, %v6208
      %v6210 = vrot.slane %v6209, 4
      %v6211 = vmax.f32 %v6209, %v6210
      %v6212 = vrot.slane %v6211, 2
      %v6213 = vmax.f32 %v6211, %v6212
      %v6214 = vrot.slane %v6213, 1
      %v6215 = vmax.f32 %v6213, %v6214
      %v6216 = vsel %vm6061, %v4367, -inf
      %v6217 = vmax.f32 %v6216, %v4373
      %v6218 = vmax.f32 %v6217, %v4377
      %v6219 = vsel %vm2244, %v4383, -inf
      %v6220 = vmax.f32 %v6218, %v6219
      %v6221 = vrot.slane %v6220, 4
      %v6222 = vmax.f32 %v6220, %v6221
      %v6223 = vrot.slane %v6222, 2
      %v6224 = vmax.f32 %v6222, %v6223
      %v6225 = vrot.slane %v6224, 1
      %v6226 = vmax.f32 %v6224, %v6225
      %v6227 = vsel %vm6061, %v4369, -inf
      %v6228 = vmax.f32 %v6227, %v4375
      %v6229 = vmax.f32 %v6228, %v4379
      %v6230 = vsel %vm2244, %v4385, -inf
      %v6231 = vmax.f32 %v6229, %v6230
      %v6232 = vrot.slane %v6231, 4
      %v6233 = vmax.f32 %v6231, %v6232
      %v6234 = vrot.slane %v6233, 2
      %v6235 = vmax.f32 %v6233, %v6234
      %v6236 = vrot.slane %v6235, 1
      %v6237 = vmax.f32 %v6235, %v6236
      %v6238 = vld [vmem:[%s2 + $0x5] sm:$0x1]
      %6240 = vset.pattern.permute.xlu0 0
      %6241 = vperm.xlu0 %6240, %v6238
      %v6242 = vpop.permute.xlu0 %6241
      %v6244 = vadd.f32 %v6072, %v6242
      %v6245 = vadd.f32 %v6083, %v6242
      %v6246 = vadd.f32 %v6094, %v6242
      %v6247 = vadd.f32 %v6105, %v6242
      %v6248 = vadd.f32 %v6116, %v6242
      %v6249 = vadd.f32 %v6127, %v6242
      %v6250 = vadd.f32 %v6138, %v6242
      %v6251 = vadd.f32 %v6149, %v6242
      %v6252 = vadd.f32 %v6160, %v6242
      %v6253 = vadd.f32 %v6171, %v6242
      %v6254 = vadd.f32 %v6182, %v6242
      %v6255 = vadd.f32 %v6193, %v6242
      %v6256 = vadd.f32 %v6204, %v6242
      %v6257 = vadd.f32 %v6215, %v6242
      %v6258 = vadd.f32 %v6226, %v6242
      %v6259 = vadd.f32 %v6237, %v6242
      %v6260 = vmax.f32 %v6244, 0.0
      %v6261 = vmax.f32 %v6245, 0.0
      %v6262 = vmax.f32 %v6246, 0.0
      %v6263 = vmax.f32 %v6247, 0.0
      %v6264 = vmax.f32 %v6248, 0.0
      %v6265 = vmax.f32 %v6249, 0.0
      %v6266 = vmax.f32 %v6250, 0.0
      %v6267 = vmax.f32 %v6251, 0.0
      %v6268 = vmax.f32 %v6252, 0.0
      %v6269 = vmax.f32 %v6253, 0.0
      %v6270 = vmax.f32 %v6254, 0.0
      %v6271 = vmax.f32 %v6255, 0.0
      %v6272 = vmax.f32 %v6256, 0.0
      %v6273 = vmax.f32 %v6257, 0.0
      %v6274 = vmax.f32 %v6258, 0.0
      %v6275 = vmax.f32 %v6259, 0.0
      %v6292 = vcombine.low %v6260, %v6261
      %v6293 = vcombine.low %v6262, %v6263
      %v6294 = vcombine.low %v6264, %v6265
      %v6295 = vcombine.low %v6266, %v6267
      %v6297 = vunpack.c.l.s4 1966171168
      %v6298 = vunpack.c.0.s8 %v6297
      %v6299 = vlaneseq
      %v6300 = vshrl.u32 %v6299, 7
      %v6301 = vsub.s32 %v6298, %v6300
      %v6302 = vrot.slane %v6292, %v6301
      %v6304 = vunpack.c.l.s4 1966171168
      %v6305 = vunpack.c.0.s8 %v6304
      %v6306 = vlaneseq
      %v6307 = vshrl.u32 %v6306, 7
      %v6308 = vsub.s32 %v6305, %v6307
      %v6309 = vrot.slane %v6293, %v6308
      %v6311 = vunpack.c.l.s4 1966171168
      %v6312 = vunpack.c.0.s8 %v6311
      %v6313 = vlaneseq
      %v6314 = vshrl.u32 %v6313, 7
      %v6315 = vsub.s32 %v6312, %v6314
      %v6316 = vrot.slane %v6294, %v6315
      %v6318 = vunpack.c.l.s4 1966171168
      %v6319 = vunpack.c.0.s8 %v6318
      %v6320 = vlaneseq
      %v6321 = vshrl.u32 %v6320, 7
      %v6322 = vsub.s32 %v6319, %v6321
      %v6323 = vrot.slane %v6295, %v6322
      %v6324 = vcombine.low %v6302, %v6309
      %v6325 = vcombine.low %v6316, %v6323
      %v6327 = vunpack.c.l.s4 1966171168
      %v6328 = vunpack.c.0.s8 %v6327
      %v6329 = vlaneseq
      %v6330 = vshrl.u32 %v6329, 7
      %v6331 = vsub.s32 %v6328, %v6330
      %v6332 = vrot.slane %v6324, %v6331
      %v6334 = vunpack.c.l.s4 1966171168
      %v6335 = vunpack.c.0.s8 %v6334
      %v6336 = vlaneseq
      %v6337 = vshrl.u32 %v6336, 7
      %v6338 = vsub.s32 %v6335, %v6337
      %v6339 = vrot.slane %v6325, %v6338
      %v6340 = vcombine.low %v6332, %v6339
      %v6341 = vcombine.low %v6268, %v6269
      %v6342 = vcombine.low %v6270, %v6271
      %v6343 = vcombine.low %v6272, %v6273
      %v6344 = vcombine.low %v6274, %v6275
      %v6346 = vunpack.c.l.s4 1966171168
      %v6347 = vunpack.c.0.s8 %v6346
      %v6348 = vlaneseq
      %v6349 = vshrl.u32 %v6348, 7
      %v6350 = vsub.s32 %v6347, %v6349
      %v6351 = vrot.slane %v6341, %v6350
      %v6353 = vunpack.c.l.s4 1966171168
      %v6354 = vunpack.c.0.s8 %v6353
      %v6355 = vlaneseq
      %v6356 = vshrl.u32 %v6355, 7
      %v6357 = vsub.s32 %v6354, %v6356
      %v6358 = vrot.slane %v6342, %v6357
      %v6360 = vunpack.c.l.s4 1966171168
      %v6361 = vunpack.c.0.s8 %v6360
      %v6362 = vlaneseq
      %v6363 = vshrl.u32 %v6362, 7
      %v6364 = vsub.s32 %v6361, %v6363
      %v6365 = vrot.slane %v6343, %v6364
      %v6367 = vunpack.c.l.s4 1966171168
      %v6368 = vunpack.c.0.s8 %v6367
      %v6369 = vlaneseq
      %v6370 = vshrl.u32 %v6369, 7
      %v6371 = vsub.s32 %v6368, %v6370
      %v6372 = vrot.slane %v6344, %v6371
      %v6373 = vcombine.low %v6351, %v6358
      %v6374 = vcombine.low %v6365, %v6372
      %v6376 = vunpack.c.l.s4 1966171168
      %v6377 = vunpack.c.0.s8 %v6376
      %v6378 = vlaneseq
      %v6379 = vshrl.u32 %v6378, 7
      %v6380 = vsub.s32 %v6377, %v6379
      %v6381 = vrot.slane %v6373, %v6380
      %v6383 = vunpack.c.l.s4 1966171168
      %v6384 = vunpack.c.0.s8 %v6383
      %v6385 = vlaneseq
      %v6386 = vshrl.u32 %v6385, 7
      %v6387 = vsub.s32 %v6384, %v6386
      %v6388 = vrot.slane %v6374, %v6387
      %v6389 = vcombine.low %v6381, %v6388
      %s6392 = scalar_lea.vmem [#allocation2], 5
      %6393 = vst [vmem:[%s6392] ss:$8 sm:$0xf] %v6340
      %6394 = vst [vmem:[%s6392] ss:$8 sm:$0xf0] %v6340
      %s6395 = scalar_lea.vmem [#allocation2], 69
      %6396 = vst [vmem:[%s6395] ss:$8 sm:$0xf] %v6389
      %6397 = vst [vmem:[%s6395] ss:$8 sm:$0xf0] %v6389
      %v6398 = vld [vmem:[#allocation2] sm:$0x3f]
      %v6399 = vld [vmem:[#allocation2 + $0x8] sm:$0x3f]
      %v6400 = vld [vmem:[#allocation2 + $0x10] sm:$0x3f]
      %v6401 = vld [vmem:[#allocation2 + $0x18] sm:$0x3f]
      %v6402 = vld [vmem:[#allocation2 + $0x20] sm:$0x3f]
      %v6403 = vld [vmem:[#allocation2 + $0x28] sm:$0x3f]
      %v6404 = vld [vmem:[#allocation2 + $0x30] sm:$0x3f]
      %v6405 = vld [vmem:[#allocation2 + $0x38] sm:$0x3f]
      %v6406 = vld [vmem:[#allocation2 + $0x40] sm:$0x3f]
      %v6407 = vld [vmem:[#allocation2 + $0x48] sm:$0x3f]
      %v6408 = vld [vmem:[#allocation2 + $0x50] sm:$0x3f]
      %v6409 = vld [vmem:[#allocation2 + $0x58] sm:$0x3f]
      %v6410 = vld [vmem:[#allocation2 + $0x60] sm:$0x3f]
      %v6411 = vld [vmem:[#allocation2 + $0x68] sm:$0x3f]
      %v6412 = vld [vmem:[#allocation2 + $0x70] sm:$0x3f]
      %v6413 = vld [vmem:[#allocation2 + $0x78] sm:$0x3f]
      %v6414 = vld [vmem:[%s3] sm:$0xff]
      %v6415 = vld [vmem:[%s3 + $0x8] sm:$0xff]
      %v6416 = vld [vmem:[%s3 + $0x10] sm:$0xff]
      %v6417 = vld [vmem:[%s3 + $0x18] sm:$0xff]
      %v6418 = vld [vmem:[%s3 + $0x20] sm:$0xff]
      %v6419 = vld [vmem:[%s3 + $0x28] sm:$0xff]
      %v6420 = vld [vmem:[%s3 + $0x30] sm:$0xff]
      %v6421 = vld [vmem:[%s3 + $0x38] sm:$0xff]
      %v6422 = vld [vmem:[%s3 + $0x40] sm:$0xff]
      %v6423 = vld [vmem:[%s3 + $0x48] sm:$0xff]
      %v6424 = vld [vmem:[%s3 + $0x50] sm:$0xff]
      %v6425 = vld [vmem:[%s3 + $0x58] sm:$0xff]
      %v6426 = vld [vmem:[%s3 + $0x60] sm:$0xff]
      %v6427 = vld [vmem:[%s3 + $0x68] sm:$0xff]
      %v6428 = vld [vmem:[%s3 + $0x70] sm:$0xff]
      %v6429 = vld [vmem:[%s3 + $0x78] sm:$0xff]
      %v6430 = vld [vmem:[%s3 + $0x80] sm:$0xff]
      %v6431 = vld [vmem:[%s3 + $0x88] sm:$0xff]
      %v6432 = vld [vmem:[%s3 + $0x90] sm:$0xff]
      %v6433 = vld [vmem:[%s3 + $0x98] sm:$0xff]
      %v6434 = vld [vmem:[%s3 + $0xa0] sm:$0xff]
      %v6435 = vld [vmem:[%s3 + $0xa8] sm:$0xff]
      %v6436 = vld [vmem:[%s3 + $0xb0] sm:$0xff]
      %v6437 = vld [vmem:[%s3 + $0xb8] sm:$0xff]
      %v6438 = vld [vmem:[%s3 + $0xc0] sm:$0xff]
      %v6439 = vld [vmem:[%s3 + $0xc8] sm:$0xff]
      %v6440 = vld [vmem:[%s3 + $0xd0] sm:$0xff]
      %v6441 = vld [vmem:[%s3 + $0xd8] sm:$0xff]
      %v6442 = vld [vmem:[%s3 + $0xe0] sm:$0xff]
      %v6443 = vld [vmem:[%s3 + $0xe8] sm:$0xff]
      %v6444 = vld [vmem:[%s3 + $0xf0] sm:$0xff]
      %v6445 = vld [vmem:[%s3 + $0xf8] sm:$0xff]
      %v6446 = vld [vmem:[%s3 + $0x100] sm:$0xff]
      %v6447 = vld [vmem:[%s3 + $0x108] sm:$0xff]
      %v6448 = vld [vmem:[%s3 + $0x110] sm:$0xff]
      %v6449 = vld [vmem:[%s3 + $0x118] sm:$0xff]
      %v6450 = vld [vmem:[%s3 + $0x120] sm:$0xff]
      %v6451 = vld [vmem:[%s3 + $0x128] sm:$0xff]
      %v6452 = vld [vmem:[%s3 + $0x130] sm:$0xff]
      %v6453 = vld [vmem:[%s3 + $0x138] sm:$0xff]
      %v6454 = vld [vmem:[%s3 + $0x140] sm:$0xff]
      %v6455 = vld [vmem:[%s3 + $0x148] sm:$0xff]
      %v6456 = vld [vmem:[%s3 + $0x150] sm:$0xff]
      %v6457 = vld [vmem:[%s3 + $0x158] sm:$0xff]
      %v6458 = vld [vmem:[%s3 + $0x160] sm:$0xff]
      %v6459 = vld [vmem:[%s3 + $0x168] sm:$0xff]
      %v6460 = vld [vmem:[%s3 + $0x170] sm:$0xff]
      %v6461 = vld [vmem:[%s3 + $0x178] sm:$0xff]
      %v6462 = vld [vmem:[%s3 + $0x180] sm:$0xff]
      %v6463 = vld [vmem:[%s3 + $0x188] sm:$0xff]
      %v6464 = vld [vmem:[%s3 + $0x190] sm:$0xff]
      %v6465 = vld [vmem:[%s3 + $0x198] sm:$0xff]
      %v6466 = vld [vmem:[%s3 + $0x1a0] sm:$0xff]
      %v6467 = vld [vmem:[%s3 + $0x1a8] sm:$0xff]
      %v6468 = vld [vmem:[%s3 + $0x1b0] sm:$0xff]
      %v6469 = vld [vmem:[%s3 + $0x1b8] sm:$0xff]
      %v6470 = vld [vmem:[%s3 + $0x1c0] sm:$0xff]
      %v6471 = vld [vmem:[%s3 + $0x1c8] sm:$0xff]
      %v6472 = vld [vmem:[%s3 + $0x1d0] sm:$0xff]
      %v6473 = vld [vmem:[%s3 + $0x1d8] sm:$0xff]
      %v6474 = vld [vmem:[%s3 + $0x1e0] sm:$0xff]
      %v6475 = vld [vmem:[%s3 + $0x1e8] sm:$0xff]
      %v6476 = vld [vmem:[%s3 + $0x1f0] sm:$0xff]
      %v6477 = vld [vmem:[%s3 + $0x1f8] sm:$0xff]
      %v6478 = vld [vmem:[%s3 + $0x200] sm:$0xff]
      %v6479 = vld [vmem:[%s3 + $0x208] sm:$0xff]
      %v6480 = vld [vmem:[%s3 + $0x210] sm:$0xff]
      %v6481 = vld [vmem:[%s3 + $0x218] sm:$0xff]
      %v6482 = vld [vmem:[%s3 + $0x220] sm:$0xff]
      %v6483 = vld [vmem:[%s3 + $0x228] sm:$0xff]
      %v6484 = vld [vmem:[%s3 + $0x230] sm:$0xff]
      %v6485 = vld [vmem:[%s3 + $0x238] sm:$0xff]
      %v6486 = vld [vmem:[%s3 + $0x240] sm:$0xff]
      %v6487 = vld [vmem:[%s3 + $0x248] sm:$0xff]
      %v6488 = vld [vmem:[%s3 + $0x250] sm:$0xff]
      %v6489 = vld [vmem:[%s3 + $0x258] sm:$0xff]
      %v6490 = vld [vmem:[%s3 + $0x260] sm:$0xff]
      %v6491 = vld [vmem:[%s3 + $0x268] sm:$0xff]
      %v6492 = vld [vmem:[%s3 + $0x270] sm:$0xff]
      %v6493 = vld [vmem:[%s3 + $0x278] sm:$0xff]
      %v6494 = vld [vmem:[%s3 + $0x280] sm:$0xff]
      %v6495 = vld [vmem:[%s3 + $0x288] sm:$0xff]
      %v6496 = vld [vmem:[%s3 + $0x290] sm:$0xff]
      %v6497 = vld [vmem:[%s3 + $0x298] sm:$0xff]
      %v6498 = vld [vmem:[%s3 + $0x2a0] sm:$0xff]
      %v6499 = vld [vmem:[%s3 + $0x2a8] sm:$0xff]
      %v6500 = vld [vmem:[%s3 + $0x2b0] sm:$0xff]
      %v6501 = vld [vmem:[%s3 + $0x2b8] sm:$0xff]
      %v6502 = vld [vmem:[%s3 + $0x2c0] sm:$0xff]
      %v6503 = vld [vmem:[%s3 + $0x2c8] sm:$0xff]
      %v6504 = vld [vmem:[%s3 + $0x2d0] sm:$0xff]
      %v6505 = vld [vmem:[%s3 + $0x2d8] sm:$0xff]
      %v6506 = vld [vmem:[%s3 + $0x2e0] sm:$0xff]
      %v6507 = vld [vmem:[%s3 + $0x2e8] sm:$0xff]
      %v6508 = vld [vmem:[%s3 + $0x2f0] sm:$0xff]
      %v6509 = vld [vmem:[%s3 + $0x2f8] sm:$0xff]
      %v6510 = vld [vmem:[%s3 + $0x300] sm:$0xff]
      %v6511 = vld [vmem:[%s3 + $0x308] sm:$0xff]
      %v6512 = vld [vmem:[%s3 + $0x310] sm:$0xff]
      %v6513 = vld [vmem:[%s3 + $0x318] sm:$0xff]
      %v6514 = vld [vmem:[%s3 + $0x320] sm:$0xff]
      %v6515 = vld [vmem:[%s3 + $0x328] sm:$0xff]
      %v6516 = vld [vmem:[%s3 + $0x330] sm:$0xff]
      %v6517 = vld [vmem:[%s3 + $0x338] sm:$0xff]
      %v6518 = vld [vmem:[%s3 + $0x340] sm:$0xff]
      %v6519 = vld [vmem:[%s3 + $0x348] sm:$0xff]
      %v6520 = vld [vmem:[%s3 + $0x350] sm:$0xff]
      %v6521 = vld [vmem:[%s3 + $0x358] sm:$0xff]
      %v6522 = vld [vmem:[%s3 + $0x360] sm:$0xff]
      %v6523 = vld [vmem:[%s3 + $0x368] sm:$0xff]
      %v6524 = vld [vmem:[%s3 + $0x370] sm:$0xff]
      %v6525 = vld [vmem:[%s3 + $0x378] sm:$0xff]
      %v6526 = vld [vmem:[%s3 + $0x380] sm:$0xff]
      %v6527 = vld [vmem:[%s3 + $0x388] sm:$0xff]
      %v6528 = vld [vmem:[%s3 + $0x390] sm:$0xff]
      %v6529 = vld [vmem:[%s3 + $0x398] sm:$0xff]
      %v6530 = vld [vmem:[%s3 + $0x3a0] sm:$0xff]
      %v6531 = vld [vmem:[%s3 + $0x3a8] sm:$0xff]
      %v6532 = vld [vmem:[%s3 + $0x3b0] sm:$0xff]
      %v6533 = vld [vmem:[%s3 + $0x3b8] sm:$0xff]
      %v6534 = vld [vmem:[%s3 + $0x3c0] sm:$0xff]
      %v6535 = vld [vmem:[%s3 + $0x3c8] sm:$0xff]
      %v6536 = vld [vmem:[%s3 + $0x3d0] sm:$0xff]
      %v6537 = vld [vmem:[%s3 + $0x3d8] sm:$0xff]
      %v6538 = vld [vmem:[%s3 + $0x3e0] sm:$0xff]
      %v6539 = vld [vmem:[%s3 + $0x3e8] sm:$0xff]
      %v6540 = vld [vmem:[%s3 + $0x3f0] sm:$0xff]
      %v6541 = vld [vmem:[%s3 + $0x3f8] sm:$0xff]
      %v6542 = vld [vmem:[%s3 + $0x400] sm:$0xff]
      %v6543 = vld [vmem:[%s3 + $0x408] sm:$0xff]
      %v6544 = vld [vmem:[%s3 + $0x410] sm:$0xff]
      %v6545 = vld [vmem:[%s3 + $0x418] sm:$0xff]
      %v6546 = vld [vmem:[%s3 + $0x420] sm:$0xff]
      %v6547 = vld [vmem:[%s3 + $0x428] sm:$0xff]
      %v6548 = vld [vmem:[%s3 + $0x430] sm:$0xff]
      %v6549 = vld [vmem:[%s3 + $0x438] sm:$0xff]
      %v6550 = vld [vmem:[%s3 + $0x440] sm:$0xff]
      %v6551 = vld [vmem:[%s3 + $0x448] sm:$0xff]
      %v6552 = vld [vmem:[%s3 + $0x450] sm:$0xff]
      %v6553 = vld [vmem:[%s3 + $0x458] sm:$0xff]
      %v6554 = vld [vmem:[%s3 + $0x460] sm:$0xff]
      %v6555 = vld [vmem:[%s3 + $0x468] sm:$0xff]
      %v6556 = vld [vmem:[%s3 + $0x470] sm:$0xff]
      %v6557 = vld [vmem:[%s3 + $0x478] sm:$0xff]
      %v6558 = vld [vmem:[%s3 + $0x480] sm:$0xff]
      %v6559 = vld [vmem:[%s3 + $0x488] sm:$0xff]
      %v6560 = vld [vmem:[%s3 + $0x490] sm:$0xff]
      %v6561 = vld [vmem:[%s3 + $0x498] sm:$0xff]
      %v6562 = vld [vmem:[%s3 + $0x4a0] sm:$0xff]
      %v6563 = vld [vmem:[%s3 + $0x4a8] sm:$0xff]
      %v6564 = vld [vmem:[%s3 + $0x4b0] sm:$0xff]
      %v6565 = vld [vmem:[%s3 + $0x4b8] sm:$0xff]
      %v6566 = vld [vmem:[%s3 + $0x4c0] sm:$0xff]
      %v6567 = vld [vmem:[%s3 + $0x4c8] sm:$0xff]
      %v6568 = vld [vmem:[%s3 + $0x4d0] sm:$0xff]
      %v6569 = vld [vmem:[%s3 + $0x4d8] sm:$0xff]
      %v6570 = vld [vmem:[%s3 + $0x4e0] sm:$0xff]
      %v6571 = vld [vmem:[%s3 + $0x4e8] sm:$0xff]
      %v6572 = vld [vmem:[%s3 + $0x4f0] sm:$0xff]
      %v6573 = vld [vmem:[%s3 + $0x4f8] sm:$0xff]
      %v6574 = vld [vmem:[%s3 + $0x500] sm:$0xff]
      %v6575 = vld [vmem:[%s3 + $0x508] sm:$0xff]
      %v6576 = vld [vmem:[%s3 + $0x510] sm:$0xff]
      %v6577 = vld [vmem:[%s3 + $0x518] sm:$0xff]
      %v6578 = vld [vmem:[%s3 + $0x520] sm:$0xff]
      %v6579 = vld [vmem:[%s3 + $0x528] sm:$0xff]
      %v6580 = vld [vmem:[%s3 + $0x530] sm:$0xff]
      %v6581 = vld [vmem:[%s3 + $0x538] sm:$0xff]
      %v6582 = vld [vmem:[%s3 + $0x540] sm:$0xff]
      %v6583 = vld [vmem:[%s3 + $0x548] sm:$0xff]
      %v6584 = vld [vmem:[%s3 + $0x550] sm:$0xff]
      %v6585 = vld [vmem:[%s3 + $0x558] sm:$0xff]
      %v6586 = vld [vmem:[%s3 + $0x560] sm:$0xff]
      %v6587 = vld [vmem:[%s3 + $0x568] sm:$0xff]
      %v6588 = vld [vmem:[%s3 + $0x570] sm:$0xff]
      %v6589 = vld [vmem:[%s3 + $0x578] sm:$0xff]
      %v6590 = vld [vmem:[%s3 + $0x580] sm:$0xff]
      %v6591 = vld [vmem:[%s3 + $0x588] sm:$0xff]
      %v6592 = vld [vmem:[%s3 + $0x590] sm:$0xff]
      %v6593 = vld [vmem:[%s3 + $0x598] sm:$0xff]
      %v6594 = vld [vmem:[%s3 + $0x5a0] sm:$0xff]
      %v6595 = vld [vmem:[%s3 + $0x5a8] sm:$0xff]
      %v6596 = vld [vmem:[%s3 + $0x5b0] sm:$0xff]
      %v6597 = vld [vmem:[%s3 + $0x5b8] sm:$0xff]
      %v6598 = vld [vmem:[%s3 + $0x5c0] sm:$0xff]
      %v6599 = vld [vmem:[%s3 + $0x5c8] sm:$0xff]
      %v6600 = vld [vmem:[%s3 + $0x5d0] sm:$0xff]
      %v6601 = vld [vmem:[%s3 + $0x5d8] sm:$0xff]
      %v6602 = vld [vmem:[%s3 + $0x5e0] sm:$0xff]
      %v6603 = vld [vmem:[%s3 + $0x5e8] sm:$0xff]
      %v6604 = vld [vmem:[%s3 + $0x5f0] sm:$0xff]
      %v6605 = vld [vmem:[%s3 + $0x5f8] sm:$0xff]
      %v6606 = vld [vmem:[%s3 + $0x600] sm:$0xff]
      %v6607 = vld [vmem:[%s3 + $0x608] sm:$0xff]
      %v6608 = vld [vmem:[%s3 + $0x610] sm:$0xff]
      %v6609 = vld [vmem:[%s3 + $0x618] sm:$0xff]
      %v6610 = vld [vmem:[%s3 + $0x620] sm:$0xff]
      %v6611 = vld [vmem:[%s3 + $0x628] sm:$0xff]
      %v6612 = vld [vmem:[%s3 + $0x630] sm:$0xff]
      %v6613 = vld [vmem:[%s3 + $0x638] sm:$0xff]
      %v6614 = vld [vmem:[%s3 + $0x640] sm:$0xff]
      %v6615 = vld [vmem:[%s3 + $0x648] sm:$0xff]
      %v6616 = vld [vmem:[%s3 + $0x650] sm:$0xff]
      %v6617 = vld [vmem:[%s3 + $0x658] sm:$0xff]
      %v6618 = vld [vmem:[%s3 + $0x660] sm:$0xff]
      %v6619 = vld [vmem:[%s3 + $0x668] sm:$0xff]
      %v6620 = vld [vmem:[%s3 + $0x670] sm:$0xff]
      %v6621 = vld [vmem:[%s3 + $0x678] sm:$0xff]
      %v6622 = vld [vmem:[%s3 + $0x680] sm:$0xff]
      %v6623 = vld [vmem:[%s3 + $0x688] sm:$0xff]
      %v6624 = vld [vmem:[%s3 + $0x690] sm:$0xff]
      %v6625 = vld [vmem:[%s3 + $0x698] sm:$0xff]
      %v6626 = vld [vmem:[%s3 + $0x6a0] sm:$0xff]
      %v6627 = vld [vmem:[%s3 + $0x6a8] sm:$0xff]
      %v6628 = vld [vmem:[%s3 + $0x6b0] sm:$0xff]
      %v6629 = vld [vmem:[%s3 + $0x6b8] sm:$0xff]
      %v6630 = vld [vmem:[%s3 + $0x6c0] sm:$0xff]
      %v6631 = vld [vmem:[%s3 + $0x6c8] sm:$0xff]
      %v6632 = vld [vmem:[%s3 + $0x6d0] sm:$0xff]
      %v6633 = vld [vmem:[%s3 + $0x6d8] sm:$0xff]
      %v6634 = vld [vmem:[%s3 + $0x6e0] sm:$0xff]
      %v6635 = vld [vmem:[%s3 + $0x6e8] sm:$0xff]
      %v6636 = vld [vmem:[%s3 + $0x6f0] sm:$0xff]
      %v6637 = vld [vmem:[%s3 + $0x6f8] sm:$0xff]
      %v6638 = vld [vmem:[%s3 + $0x700] sm:$0xff]
      %v6639 = vld [vmem:[%s3 + $0x708] sm:$0xff]
      %v6640 = vld [vmem:[%s3 + $0x710] sm:$0xff]
      %v6641 = vld [vmem:[%s3 + $0x718] sm:$0xff]
      %v6642 = vld [vmem:[%s3 + $0x720] sm:$0xff]
      %v6643 = vld [vmem:[%s3 + $0x728] sm:$0xff]
      %v6644 = vld [vmem:[%s3 + $0x730] sm:$0xff]
      %v6645 = vld [vmem:[%s3 + $0x738] sm:$0xff]
      %v6646 = vld [vmem:[%s3 + $0x740] sm:$0xff]
      %v6647 = vld [vmem:[%s3 + $0x748] sm:$0xff]
      %v6648 = vld [vmem:[%s3 + $0x750] sm:$0xff]
      %v6649 = vld [vmem:[%s3 + $0x758] sm:$0xff]
      %v6650 = vld [vmem:[%s3 + $0x760] sm:$0xff]
      %v6651 = vld [vmem:[%s3 + $0x768] sm:$0xff]
      %v6652 = vld [vmem:[%s3 + $0x770] sm:$0xff]
      %v6653 = vld [vmem:[%s3 + $0x778] sm:$0xff]
      %v6654 = vld [vmem:[%s3 + $0x780] sm:$0xff]
      %v6655 = vld [vmem:[%s3 + $0x788] sm:$0xff]
      %v6656 = vld [vmem:[%s3 + $0x790] sm:$0xff]
      %v6657 = vld [vmem:[%s3 + $0x798] sm:$0xff]
      %v6658 = vld [vmem:[%s3 + $0x7a0] sm:$0xff]
      %v6659 = vld [vmem:[%s3 + $0x7a8] sm:$0xff]
      %v6660 = vld [vmem:[%s3 + $0x7b0] sm:$0xff]
      %v6661 = vld [vmem:[%s3 + $0x7b8] sm:$0xff]
      %v6662 = vld [vmem:[%s3 + $0x7c0] sm:$0xff]
      %v6663 = vld [vmem:[%s3 + $0x7c8] sm:$0xff]
      %v6664 = vld [vmem:[%s3 + $0x7d0] sm:$0xff]
      %v6665 = vld [vmem:[%s3 + $0x7d8] sm:$0xff]
      %v6666 = vld [vmem:[%s3 + $0x7e0] sm:$0xff]
      %v6667 = vld [vmem:[%s3 + $0x7e8] sm:$0xff]
      %v6668 = vld [vmem:[%s3 + $0x7f0] sm:$0xff]
      %v6669 = vld [vmem:[%s3 + $0x7f8] sm:$0xff]
      %v6670 = vld [vmem:[%s3 + $0x800] sm:$0xff]
      %v6671 = vld [vmem:[%s3 + $0x808] sm:$0xff]
      %v6672 = vld [vmem:[%s3 + $0x810] sm:$0xff]
      %v6673 = vld [vmem:[%s3 + $0x818] sm:$0xff]
      %v6674 = vld [vmem:[%s3 + $0x820] sm:$0xff]
      %v6675 = vld [vmem:[%s3 + $0x828] sm:$0xff]
      %v6676 = vld [vmem:[%s3 + $0x830] sm:$0xff]
      %v6677 = vld [vmem:[%s3 + $0x838] sm:$0xff]
      %v6678 = vld [vmem:[%s3 + $0x840] sm:$0xff]
      %v6679 = vld [vmem:[%s3 + $0x848] sm:$0xff]
      %v6680 = vld [vmem:[%s3 + $0x850] sm:$0xff]
      %v6681 = vld [vmem:[%s3 + $0x858] sm:$0xff]
      %v6682 = vld [vmem:[%s3 + $0x860] sm:$0xff]
      %v6683 = vld [vmem:[%s3 + $0x868] sm:$0xff]
      %v6684 = vld [vmem:[%s3 + $0x870] sm:$0xff]
      %v6685 = vld [vmem:[%s3 + $0x878] sm:$0xff]
      %v6686 = vld [vmem:[%s3 + $0x880] sm:$0xff]
      %v6687 = vld [vmem:[%s3 + $0x888] sm:$0xff]
      %v6688 = vld [vmem:[%s3 + $0x890] sm:$0xff]
      %v6689 = vld [vmem:[%s3 + $0x898] sm:$0xff]
      %v6690 = vld [vmem:[%s3 + $0x8a0] sm:$0xff]
      %v6691 = vld [vmem:[%s3 + $0x8a8] sm:$0xff]
      %v6692 = vld [vmem:[%s3 + $0x8b0] sm:$0xff]
      %v6693 = vld [vmem:[%s3 + $0x8b8] sm:$0xff]
      %v6694 = vld [vmem:[%s3 + $0x8c0] sm:$0xff]
      %v6695 = vld [vmem:[%s3 + $0x8c8] sm:$0xff]
      %v6696 = vld [vmem:[%s3 + $0x8d0] sm:$0xff]
      %v6697 = vld [vmem:[%s3 + $0x8d8] sm:$0xff]
      %v6698 = vld [vmem:[%s3 + $0x8e0] sm:$0xff]
      %v6699 = vld [vmem:[%s3 + $0x8e8] sm:$0xff]
      %v6700 = vld [vmem:[%s3 + $0x8f0] sm:$0xff]
      %v6701 = vld [vmem:[%s3 + $0x8f8] sm:$0xff]
      %v6702 = vld [vmem:[%s3 + $0x900] sm:$0xff]
      %v6703 = vld [vmem:[%s3 + $0x908] sm:$0xff]
      %v6704 = vld [vmem:[%s3 + $0x910] sm:$0xff]
      %v6705 = vld [vmem:[%s3 + $0x918] sm:$0xff]
      %v6706 = vld [vmem:[%s3 + $0x920] sm:$0xff]
      %v6707 = vld [vmem:[%s3 + $0x928] sm:$0xff]
      %v6708 = vld [vmem:[%s3 + $0x930] sm:$0xff]
      %v6709 = vld [vmem:[%s3 + $0x938] sm:$0xff]
      %v6710 = vld [vmem:[%s3 + $0x940] sm:$0xff]
      %v6711 = vld [vmem:[%s3 + $0x948] sm:$0xff]
      %v6712 = vld [vmem:[%s3 + $0x950] sm:$0xff]
      %v6713 = vld [vmem:[%s3 + $0x958] sm:$0xff]
      %v6714 = vld [vmem:[%s3 + $0x960] sm:$0xff]
      %v6715 = vld [vmem:[%s3 + $0x968] sm:$0xff]
      %v6716 = vld [vmem:[%s3 + $0x970] sm:$0xff]
      %v6717 = vld [vmem:[%s3 + $0x978] sm:$0xff]
      %v6718 = vld [vmem:[%s3 + $0x980] sm:$0xff]
      %v6719 = vld [vmem:[%s3 + $0x988] sm:$0xff]
      %v6720 = vld [vmem:[%s3 + $0x990] sm:$0xff]
      %v6721 = vld [vmem:[%s3 + $0x998] sm:$0xff]
      %v6722 = vld [vmem:[%s3 + $0x9a0] sm:$0xff]
      %v6723 = vld [vmem:[%s3 + $0x9a8] sm:$0xff]
      %v6724 = vld [vmem:[%s3 + $0x9b0] sm:$0xff]
      %v6725 = vld [vmem:[%s3 + $0x9b8] sm:$0xff]
      %v6726 = vld [vmem:[%s3 + $0x9c0] sm:$0xff]
      %v6727 = vld [vmem:[%s3 + $0x9c8] sm:$0xff]
      %v6728 = vld [vmem:[%s3 + $0x9d0] sm:$0xff]
      %v6729 = vld [vmem:[%s3 + $0x9d8] sm:$0xff]
      %v6730 = vld [vmem:[%s3 + $0x9e0] sm:$0xff]
      %v6731 = vld [vmem:[%s3 + $0x9e8] sm:$0xff]
      %v6732 = vld [vmem:[%s3 + $0x9f0] sm:$0xff]
      %v6733 = vld [vmem:[%s3 + $0x9f8] sm:$0xff]
      %v6734 = vld [vmem:[%s3 + $0xa00] sm:$0xff]
      %v6735 = vld [vmem:[%s3 + $0xa08] sm:$0xff]
      %v6736 = vld [vmem:[%s3 + $0xa10] sm:$0xff]
      %v6737 = vld [vmem:[%s3 + $0xa18] sm:$0xff]
      %v6738 = vld [vmem:[%s3 + $0xa20] sm:$0xff]
      %v6739 = vld [vmem:[%s3 + $0xa28] sm:$0xff]
      %v6740 = vld [vmem:[%s3 + $0xa30] sm:$0xff]
      %v6741 = vld [vmem:[%s3 + $0xa38] sm:$0xff]
      %v6742 = vld [vmem:[%s3 + $0xa40] sm:$0xff]
      %v6743 = vld [vmem:[%s3 + $0xa48] sm:$0xff]
      %v6744 = vld [vmem:[%s3 + $0xa50] sm:$0xff]
      %v6745 = vld [vmem:[%s3 + $0xa58] sm:$0xff]
      %v6746 = vld [vmem:[%s3 + $0xa60] sm:$0xff]
      %v6747 = vld [vmem:[%s3 + $0xa68] sm:$0xff]
      %v6748 = vld [vmem:[%s3 + $0xa70] sm:$0xff]
      %v6749 = vld [vmem:[%s3 + $0xa78] sm:$0xff]
      %v6750 = vld [vmem:[%s3 + $0xa80] sm:$0xff]
      %v6751 = vld [vmem:[%s3 + $0xa88] sm:$0xff]
      %v6752 = vld [vmem:[%s3 + $0xa90] sm:$0xff]
      %v6753 = vld [vmem:[%s3 + $0xa98] sm:$0xff]
      %v6754 = vld [vmem:[%s3 + $0xaa0] sm:$0xff]
      %v6755 = vld [vmem:[%s3 + $0xaa8] sm:$0xff]
      %v6756 = vld [vmem:[%s3 + $0xab0] sm:$0xff]
      %v6757 = vld [vmem:[%s3 + $0xab8] sm:$0xff]
      %v6758 = vld [vmem:[%s3 + $0xac0] sm:$0xff]
      %v6759 = vld [vmem:[%s3 + $0xac8] sm:$0xff]
      %v6760 = vld [vmem:[%s3 + $0xad0] sm:$0xff]
      %v6761 = vld [vmem:[%s3 + $0xad8] sm:$0xff]
      %v6762 = vld [vmem:[%s3 + $0xae0] sm:$0xff]
      %v6763 = vld [vmem:[%s3 + $0xae8] sm:$0xff]
      %v6764 = vld [vmem:[%s3 + $0xaf0] sm:$0xff]
      %v6765 = vld [vmem:[%s3 + $0xaf8] sm:$0xff]
      %v6766 = vld [vmem:[%s3 + $0xb00] sm:$0xff]
      %v6767 = vld [vmem:[%s3 + $0xb08] sm:$0xff]
      %v6768 = vld [vmem:[%s3 + $0xb10] sm:$0xff]
      %v6769 = vld [vmem:[%s3 + $0xb18] sm:$0xff]
      %v6770 = vld [vmem:[%s3 + $0xb20] sm:$0xff]
      %v6771 = vld [vmem:[%s3 + $0xb28] sm:$0xff]
      %v6772 = vld [vmem:[%s3 + $0xb30] sm:$0xff]
      %v6773 = vld [vmem:[%s3 + $0xb38] sm:$0xff]
      %v6774 = vld [vmem:[%s3 + $0xb40] sm:$0xff]
      %v6775 = vld [vmem:[%s3 + $0xb48] sm:$0xff]
      %v6776 = vld [vmem:[%s3 + $0xb50] sm:$0xff]
      %v6777 = vld [vmem:[%s3 + $0xb58] sm:$0xff]
      %v6778 = vld [vmem:[%s3 + $0xb60] sm:$0xff]
      %v6779 = vld [vmem:[%s3 + $0xb68] sm:$0xff]
      %v6780 = vld [vmem:[%s3 + $0xb70] sm:$0xff]
      %v6781 = vld [vmem:[%s3 + $0xb78] sm:$0xff]
      %v6782 = vld [vmem:[%s3 + $0xb80] sm:$0xff]
      %v6783 = vld [vmem:[%s3 + $0xb88] sm:$0xff]
      %v6784 = vld [vmem:[%s3 + $0xb90] sm:$0xff]
      %v6785 = vld [vmem:[%s3 + $0xb98] sm:$0xff]
      %v6786 = vld [vmem:[%s3 + $0xba0] sm:$0xff]
      %v6787 = vld [vmem:[%s3 + $0xba8] sm:$0xff]
      %v6788 = vld [vmem:[%s3 + $0xbb0] sm:$0xff]
      %v6789 = vld [vmem:[%s3 + $0xbb8] sm:$0xff]
      %v6790 = vld [vmem:[%s3 + $0xbc0] sm:$0xff]
      %v6791 = vld [vmem:[%s3 + $0xbc8] sm:$0xff]
      %v6792 = vld [vmem:[%s3 + $0xbd0] sm:$0xff]
      %v6793 = vld [vmem:[%s3 + $0xbd8] sm:$0xff]
      %v6794 = vld [vmem:[%s3 + $0xbe0] sm:$0xff]
      %v6795 = vld [vmem:[%s3 + $0xbe8] sm:$0xff]
      %v6796 = vld [vmem:[%s3 + $0xbf0] sm:$0xff]
      %v6797 = vld [vmem:[%s3 + $0xbf8] sm:$0xff]
      %v6798 = vld [vmem:[%s3 + $0xc00] sm:$0xff]
      %v6799 = vld [vmem:[%s3 + $0xc08] sm:$0xff]
      %v6800 = vld [vmem:[%s3 + $0xc10] sm:$0xff]
      %v6801 = vld [vmem:[%s3 + $0xc18] sm:$0xff]
      %v6802 = vld [vmem:[%s3 + $0xc20] sm:$0xff]
      %v6803 = vld [vmem:[%s3 + $0xc28] sm:$0xff]
      %v6804 = vld [vmem:[%s3 + $0xc30] sm:$0xff]
      %v6805 = vld [vmem:[%s3 + $0xc38] sm:$0xff]
      %v6806 = vld [vmem:[%s3 + $0xc40] sm:$0xff]
      %v6807 = vld [vmem:[%s3 + $0xc48] sm:$0xff]
      %v6808 = vld [vmem:[%s3 + $0xc50] sm:$0xff]
      %v6809 = vld [vmem:[%s3 + $0xc58] sm:$0xff]
      %v6810 = vld [vmem:[%s3 + $0xc60] sm:$0xff]
      %v6811 = vld [vmem:[%s3 + $0xc68] sm:$0xff]
      %v6812 = vld [vmem:[%s3 + $0xc70] sm:$0xff]
      %v6813 = vld [vmem:[%s3 + $0xc78] sm:$0xff]
      %v6814 = vld [vmem:[%s3 + $0xc80] sm:$0xff]
      %v6815 = vld [vmem:[%s3 + $0xc88] sm:$0xff]
      %v6816 = vld [vmem:[%s3 + $0xc90] sm:$0xff]
      %v6817 = vld [vmem:[%s3 + $0xc98] sm:$0xff]
      %v6818 = vld [vmem:[%s3 + $0xca0] sm:$0xff]
      %v6819 = vld [vmem:[%s3 + $0xca8] sm:$0xff]
      %v6820 = vld [vmem:[%s3 + $0xcb0] sm:$0xff]
      %v6821 = vld [vmem:[%s3 + $0xcb8] sm:$0xff]
      %v6822 = vld [vmem:[%s3 + $0xcc0] sm:$0xff]
      %v6823 = vld [vmem:[%s3 + $0xcc8] sm:$0xff]
      %v6824 = vld [vmem:[%s3 + $0xcd0] sm:$0xff]
      %v6825 = vld [vmem:[%s3 + $0xcd8] sm:$0xff]
      %v6826 = vld [vmem:[%s3 + $0xce0] sm:$0xff]
      %v6827 = vld [vmem:[%s3 + $0xce8] sm:$0xff]
      %v6828 = vld [vmem:[%s3 + $0xcf0] sm:$0xff]
      %v6829 = vld [vmem:[%s3 + $0xcf8] sm:$0xff]
      %v6830 = vld [vmem:[%s3 + $0xd00] sm:$0xff]
      %v6831 = vld [vmem:[%s3 + $0xd08] sm:$0xff]
      %v6832 = vld [vmem:[%s3 + $0xd10] sm:$0xff]
      %v6833 = vld [vmem:[%s3 + $0xd18] sm:$0xff]
      %v6834 = vld [vmem:[%s3 + $0xd20] sm:$0xff]
      %v6835 = vld [vmem:[%s3 + $0xd28] sm:$0xff]
      %v6836 = vld [vmem:[%s3 + $0xd30] sm:$0xff]
      %v6837 = vld [vmem:[%s3 + $0xd38] sm:$0xff]
      %v6838 = vld [vmem:[%s3 + $0xd40] sm:$0xff]
      %v6839 = vld [vmem:[%s3 + $0xd48] sm:$0xff]
      %v6840 = vld [vmem:[%s3 + $0xd50] sm:$0xff]
      %v6841 = vld [vmem:[%s3 + $0xd58] sm:$0xff]
      %v6842 = vld [vmem:[%s3 + $0xd60] sm:$0xff]
      %v6843 = vld [vmem:[%s3 + $0xd68] sm:$0xff]
      %v6844 = vld [vmem:[%s3 + $0xd70] sm:$0xff]
      %v6845 = vld [vmem:[%s3 + $0xd78] sm:$0xff]
      %v6846 = vld [vmem:[%s3 + $0xd80] sm:$0xff]
      %v6847 = vld [vmem:[%s3 + $0xd88] sm:$0xff]
      %v6848 = vld [vmem:[%s3 + $0xd90] sm:$0xff]
      %v6849 = vld [vmem:[%s3 + $0xd98] sm:$0xff]
      %v6850 = vld [vmem:[%s3 + $0xda0] sm:$0xff]
      %v6851 = vld [vmem:[%s3 + $0xda8] sm:$0xff]
      %v6852 = vld [vmem:[%s3 + $0xdb0] sm:$0xff]
      %v6853 = vld [vmem:[%s3 + $0xdb8] sm:$0xff]
      %v6854 = vld [vmem:[%s3 + $0xdc0] sm:$0xff]
      %v6855 = vld [vmem:[%s3 + $0xdc8] sm:$0xff]
      %v6856 = vld [vmem:[%s3 + $0xdd0] sm:$0xff]
      %v6857 = vld [vmem:[%s3 + $0xdd8] sm:$0xff]
      %v6858 = vld [vmem:[%s3 + $0xde0] sm:$0xff]
      %v6859 = vld [vmem:[%s3 + $0xde8] sm:$0xff]
      %v6860 = vld [vmem:[%s3 + $0xdf0] sm:$0xff]
      %v6861 = vld [vmem:[%s3 + $0xdf8] sm:$0xff]
      %v6862 = vld [vmem:[%s3 + $0xe00] sm:$0xff]
      %v6863 = vld [vmem:[%s3 + $0xe08] sm:$0xff]
      %v6864 = vld [vmem:[%s3 + $0xe10] sm:$0xff]
      %v6865 = vld [vmem:[%s3 + $0xe18] sm:$0xff]
      %v6866 = vld [vmem:[%s3 + $0xe20] sm:$0xff]
      %v6867 = vld [vmem:[%s3 + $0xe28] sm:$0xff]
      %v6868 = vld [vmem:[%s3 + $0xe30] sm:$0xff]
      %v6869 = vld [vmem:[%s3 + $0xe38] sm:$0xff]
      %v6870 = vld [vmem:[%s3 + $0xe40] sm:$0xff]
      %v6871 = vld [vmem:[%s3 + $0xe48] sm:$0xff]
      %v6872 = vld [vmem:[%s3 + $0xe50] sm:$0xff]
      %v6873 = vld [vmem:[%s3 + $0xe58] sm:$0xff]
      %v6874 = vld [vmem:[%s3 + $0xe60] sm:$0xff]
      %v6875 = vld [vmem:[%s3 + $0xe68] sm:$0xff]
      %v6876 = vld [vmem:[%s3 + $0xe70] sm:$0xff]
      %v6877 = vld [vmem:[%s3 + $0xe78] sm:$0xff]
      %v6878 = vld [vmem:[%s3 + $0xe80] sm:$0xff]
      %v6879 = vld [vmem:[%s3 + $0xe88] sm:$0xff]
      %v6880 = vld [vmem:[%s3 + $0xe90] sm:$0xff]
      %v6881 = vld [vmem:[%s3 + $0xe98] sm:$0xff]
      %v6882 = vld [vmem:[%s3 + $0xea0] sm:$0xff]
      %v6883 = vld [vmem:[%s3 + $0xea8] sm:$0xff]
      %v6884 = vld [vmem:[%s3 + $0xeb0] sm:$0xff]
      %v6885 = vld [vmem:[%s3 + $0xeb8] sm:$0xff]
      %v6886 = vld [vmem:[%s3 + $0xec0] sm:$0xff]
      %v6887 = vld [vmem:[%s3 + $0xec8] sm:$0xff]
      %v6888 = vld [vmem:[%s3 + $0xed0] sm:$0xff]
      %v6889 = vld [vmem:[%s3 + $0xed8] sm:$0xff]
      %v6890 = vld [vmem:[%s3 + $0xee0] sm:$0xff]
      %v6891 = vld [vmem:[%s3 + $0xee8] sm:$0xff]
      %v6892 = vld [vmem:[%s3 + $0xef0] sm:$0xff]
      %v6893 = vld [vmem:[%s3 + $0xef8] sm:$0xff]
      %v6894 = vld [vmem:[%s3 + $0xf00] sm:$0xff]
      %v6895 = vld [vmem:[%s3 + $0xf08] sm:$0xff]
      %v6896 = vld [vmem:[%s3 + $0xf10] sm:$0xff]
      %v6897 = vld [vmem:[%s3 + $0xf18] sm:$0xff]
      %v6898 = vld [vmem:[%s3 + $0xf20] sm:$0xff]
      %v6899 = vld [vmem:[%s3 + $0xf28] sm:$0xff]
      %v6900 = vld [vmem:[%s3 + $0xf30] sm:$0xff]
      %v6901 = vld [vmem:[%s3 + $0xf38] sm:$0xff]
      %v6902 = vld [vmem:[%s3 + $0xf40] sm:$0xff]
      %v6903 = vld [vmem:[%s3 + $0xf48] sm:$0xff]
      %v6904 = vld [vmem:[%s3 + $0xf50] sm:$0xff]
      %v6905 = vld [vmem:[%s3 + $0xf58] sm:$0xff]
      %v6906 = vld [vmem:[%s3 + $0xf60] sm:$0xff]
      %v6907 = vld [vmem:[%s3 + $0xf68] sm:$0xff]
      %v6908 = vld [vmem:[%s3 + $0xf70] sm:$0xff]
      %v6909 = vld [vmem:[%s3 + $0xf78] sm:$0xff]
      %v6910 = vld [vmem:[%s3 + $0xf80] sm:$0xff]
      %v6911 = vld [vmem:[%s3 + $0xf88] sm:$0xff]
      %v6912 = vld [vmem:[%s3 + $0xf90] sm:$0xff]
      %v6913 = vld [vmem:[%s3 + $0xf98] sm:$0xff]
      %v6914 = vld [vmem:[%s3 + $0xfa0] sm:$0xff]
      %v6915 = vld [vmem:[%s3 + $0xfa8] sm:$0xff]
      %v6916 = vld [vmem:[%s3 + $0xfb0] sm:$0xff]
      %v6917 = vld [vmem:[%s3 + $0xfb8] sm:$0xff]
      %v6918 = vld [vmem:[%s3 + $0xfc0] sm:$0xff]
      %v6919 = vld [vmem:[%s3 + $0xfc8] sm:$0xff]
      %v6920 = vld [vmem:[%s3 + $0xfd0] sm:$0xff]
      %v6921 = vld [vmem:[%s3 + $0xfd8] sm:$0xff]
      %v6922 = vld [vmem:[%s3 + $0xfe0] sm:$0xff]
      %v6923 = vld [vmem:[%s3 + $0xfe8] sm:$0xff]
      %v6924 = vld [vmem:[%s3 + $0xff0] sm:$0xff]
      %v6925 = vld [vmem:[%s3 + $0xff8] sm:$0xff]
      %6926 = vmatprep.subr.mxu0 %v6415
      %6927 = vmatpush1.msra.mxu0 %v6414
      %6928 = vmatprep.subr.mxu0 %v6417
      %6929 = vmatpush1.msra.mxu0 %v6416
      %6930 = vmatprep.subr.mxu0 %v6419
      %6931 = vmatpush1.msra.mxu0 %v6418
      %6932 = vmatprep.subr.mxu0 %v6421
      %6933 = vmatpush1.msra.mxu0 %v6420
      %6934 = vmatprep.subr.mxu0 %v6423
      %6935 = vmatpush1.msra.mxu0 %v6422
      %6936 = vmatprep.subr.mxu0 %v6425
      %6937 = vmatpush1.msra.mxu0 %v6424
      %6938 = vmatprep.subr.mxu0 %v6427
      %6939 = vmatpush1.msra.mxu0 %v6426
      %6940 = vmatprep.subr.mxu0 %v6429
      %6941 = vmatpush1.msra.mxu0 %v6428
      %6942 = vmatprep.subr.mxu0 %v6431
      %6943 = vmatpush1.msra.mxu0 %v6430
      %6944 = vmatprep.subr.mxu0 %v6433
      %6945 = vmatpush1.msra.mxu0 %v6432
      %6946 = vmatprep.subr.mxu0 %v6435
      %6947 = vmatpush1.msra.mxu0 %v6434
      %6948 = vmatprep.subr.mxu0 %v6437
      %6949 = vmatpush1.msra.mxu0 %v6436
      %6950 = vmatprep.subr.mxu0 %v6439
      %6951 = vmatpush1.msra.mxu0 %v6438
      %6952 = vmatprep.subr.mxu0 %v6441
      %6953 = vmatpush1.msra.mxu0 %v6440
      %6954 = vmatprep.subr.mxu0 %v6443
      %6955 = vmatpush1.msra.mxu0 %v6442
      %6956 = vmatprep.subr.mxu0 %v6445
      %6957 = vmatpush1.msra.mxu0 %v6444
      %6958 = vmatprep.subr.mxu0 %v6447
      %6959 = vmatpush1.msra.mxu0 %v6446
      %6960 = vmatprep.subr.mxu0 %v6449
      %6961 = vmatpush1.msra.mxu0 %v6448
      %6962 = vmatprep.subr.mxu0 %v6451
      %6963 = vmatpush1.msra.mxu0 %v6450
      %6964 = vmatprep.subr.mxu0 %v6453
      %6965 = vmatpush1.msra.mxu0 %v6452
      %6966 = vmatprep.subr.mxu0 %v6455
      %6967 = vmatpush1.msra.mxu0 %v6454
      %6968 = vmatprep.subr.mxu0 %v6457
      %6969 = vmatpush1.msra.mxu0 %v6456
      %6970 = vmatprep.subr.mxu0 %v6459
      %6971 = vmatpush1.msra.mxu0 %v6458
      %6972 = vmatprep.subr.mxu0 %v6461
      %6973 = vmatpush1.msra.mxu0 %v6460
      %6974 = vmatprep.subr.mxu0 %v6463
      %6975 = vmatpush1.msra.mxu0 %v6462
      %6976 = vmatprep.subr.mxu0 %v6465
      %6977 = vmatpush1.msra.mxu0 %v6464
      %6978 = vmatprep.subr.mxu0 %v6467
      %6979 = vmatpush1.msra.mxu0 %v6466
      %6980 = vmatprep.subr.mxu0 %v6469
      %6981 = vmatpush1.msra.mxu0 %v6468
      %6982 = vmatprep.subr.mxu0 %v6471
      %6983 = vmatpush1.msra.mxu0 %v6470
      %6984 = vmatprep.subr.mxu0 %v6473
      %6985 = vmatpush1.msra.mxu0 %v6472
      %6986 = vmatprep.subr.mxu0 %v6475
      %6987 = vmatpush1.msra.mxu0 %v6474
      %6988 = vmatprep.subr.mxu0 %v6477
      %6989 = vmatpush1.msra.mxu0 %v6476
      %6990 = vmatprep.mubr.f32.mxu0 %v6399
      %6991 = vmatmul.mubr.f32.gmra.mrb[0].mxu0 %v6398
      %v6992 = vpop.f32.mrb[0].mxu0
      %v6993 = vadd.f32 0.0, %v6992
      %v6994 = vpop.f32.mrb[0].mxu0
      %v6995 = vadd.f32 0.0, %v6994
      %6996 = vdwg.mxu0
      %6997 = vmatprep.subr.mxu0 %v6479
      %6998 = vmatpush1.msra.mxu0 %v6478
      %6999 = vmatprep.subr.mxu0 %v6481
      %7000 = vmatpush1.msra.mxu0 %v6480
      %7001 = vmatprep.subr.mxu0 %v6483
      %7002 = vmatpush1.msra.mxu0 %v6482
      %7003 = vmatprep.subr.mxu0 %v6485
      %7004 = vmatpush1.msra.mxu0 %v6484
      %7005 = vmatprep.subr.mxu0 %v6487
      %7006 = vmatpush1.msra.mxu0 %v6486
      %7007 = vmatprep.subr.mxu0 %v6489
      %7008 = vmatpush1.msra.mxu0 %v6488
      %7009 = vmatprep.subr.mxu0 %v6491
      %7010 = vmatpush1.msra.mxu0 %v6490
      %7011 = vmatprep.subr.mxu0 %v6493
      %7012 = vmatpush1.msra.mxu0 %v6492
      %7013 = vmatprep.subr.mxu0 %v6495
      %7014 = vmatpush1.msra.mxu0 %v6494
      %7015 = vmatprep.subr.mxu0 %v6497
      %7016 = vmatpush1.msra.mxu0 %v6496
      %7017 = vmatprep.subr.mxu0 %v6499
      %7018 = vmatpush1.msra.mxu0 %v6498
      %7019 = vmatprep.subr.mxu0 %v6501
      %7020 = vmatpush1.msra.mxu0 %v6500
      %7021 = vmatprep.subr.mxu0 %v6503
      %7022 = vmatpush1.msra.mxu0 %v6502
      %7023 = vmatprep.subr.mxu0 %v6505
      %7024 = vmatpush1.msra.mxu0 %v6504
      %7025 = vmatprep.subr.mxu0 %v6507
      %7026 = vmatpush1.msra.mxu0 %v6506
      %7027 = vmatprep.subr.mxu0 %v6509
      %7028 = vmatpush1.msra.mxu0 %v6508
      %7029 = vmatprep.subr.mxu0 %v6511
      %7030 = vmatpush1.msra.mxu0 %v6510
      %7031 = vmatprep.subr.mxu0 %v6513
      %7032 = vmatpush1.msra.mxu0 %v6512
      %7033 = vmatprep.subr.mxu0 %v6515
      %7034 = vmatpush1.msra.mxu0 %v6514
      %7035 = vmatprep.subr.mxu0 %v6517
      %7036 = vmatpush1.msra.mxu0 %v6516
      %7037 = vmatprep.subr.mxu0 %v6519
      %7038 = vmatpush1.msra.mxu0 %v6518
      %7039 = vmatprep.subr.mxu0 %v6521
      %7040 = vmatpush1.msra.mxu0 %v6520
      %7041 = vmatprep.subr.mxu0 %v6523
      %7042 = vmatpush1.msra.mxu0 %v6522
      %7043 = vmatprep.subr.mxu0 %v6525
      %7044 = vmatpush1.msra.mxu0 %v6524
      %7045 = vmatprep.subr.mxu0 %v6527
      %7046 = vmatpush1.msra.mxu0 %v6526
      %7047 = vmatprep.subr.mxu0 %v6529
      %7048 = vmatpush1.msra.mxu0 %v6528
      %7049 = vmatprep.subr.mxu0 %v6531
      %7050 = vmatpush1.msra.mxu0 %v6530
      %7051 = vmatprep.subr.mxu0 %v6533
      %7052 = vmatpush1.msra.mxu0 %v6532
      %7053 = vmatprep.subr.mxu0 %v6535
      %7054 = vmatpush1.msra.mxu0 %v6534
      %7055 = vmatprep.subr.mxu0 %v6537
      %7056 = vmatpush1.msra.mxu0 %v6536
      %7057 = vmatprep.subr.mxu0 %v6539
      %7058 = vmatpush1.msra.mxu0 %v6538
      %7059 = vmatprep.subr.mxu0 %v6541
      %7060 = vmatpush1.msra.mxu0 %v6540
      %7061 = vmatprep.mubr.f32.mxu0 %v6401
      %7062 = vmatmul.mubr.f32.gmra.mrb[0].mxu0 %v6400
      %v7063 = vpop.f32.mrb[0].mxu0
      %v7064 = vadd.f32 %v6993, %v7063
      %v7065 = vpop.f32.mrb[0].mxu0
      %v7066 = vadd.f32 %v6995, %v7065
      %7067 = vdwg.mxu0
      %7068 = vmatprep.subr.mxu0 %v6543
      %7069 = vmatpush1.msra.mxu0 %v6542
      %7070 = vmatprep.subr.mxu0 %v6545
      %7071 = vmatpush1.msra.mxu0 %v6544
      %7072 = vmatprep.subr.mxu0 %v6547
      %7073 = vmatpush1.msra.mxu0 %v6546
      %7074 = vmatprep.subr.mxu0 %v6549
      %7075 = vmatpush1.msra.mxu0 %v6548
      %7076 = vmatprep.subr.mxu0 %v6551
      %7077 = vmatpush1.msra.mxu0 %v6550
      %7078 = vmatprep.subr.mxu0 %v6553
      %7079 = vmatpush1.msra.mxu0 %v6552
      %7080 = vmatprep.subr.mxu0 %v6555
      %7081 = vmatpush1.msra.mxu0 %v6554
      %7082 = vmatprep.subr.mxu0 %v6557
      %7083 = vmatpush1.msra.mxu0 %v6556
      %7084 = vmatprep.subr.mxu0 %v6559
      %7085 = vmatpush1.msra.mxu0 %v6558
      %7086 = vmatprep.subr.mxu0 %v6561
      %7087 = vmatpush1.msra.mxu0 %v6560
      %7088 = vmatprep.subr.mxu0 %v6563
      %7089 = vmatpush1.msra.mxu0 %v6562
      %7090 = vmatprep.subr.mxu0 %v6565
      %7091 = vmatpush1.msra.mxu0 %v6564
      %7092 = vmatprep.subr.mxu0 %v6567
      %7093 = vmatpush1.msra.mxu0 %v6566
      %7094 = vmatprep.subr.mxu0 %v6569
      %7095 = vmatpush1.msra.mxu0 %v6568
      %7096 = vmatprep.subr.mxu0 %v6571
      %7097 = vmatpush1.msra.mxu0 %v6570
      %7098 = vmatprep.subr.mxu0 %v6573
      %7099 = vmatpush1.msra.mxu0 %v6572
      %7100 = vmatprep.subr.mxu0 %v6575
      %7101 = vmatpush1.msra.mxu0 %v6574
      %7102 = vmatprep.subr.mxu0 %v6577
      %7103 = vmatpush1.msra.mxu0 %v6576
      %7104 = vmatprep.subr.mxu0 %v6579
      %7105 = vmatpush1.msra.mxu0 %v6578
      %7106 = vmatprep.subr.mxu0 %v6581
      %7107 = vmatpush1.msra.mxu0 %v6580
      %7108 = vmatprep.subr.mxu0 %v6583
      %7109 = vmatpush1.msra.mxu0 %v6582
      %7110 = vmatprep.subr.mxu0 %v6585
      %7111 = vmatpush1.msra.mxu0 %v6584
      %7112 = vmatprep.subr.mxu0 %v6587
      %7113 = vmatpush1.msra.mxu0 %v6586
      %7114 = vmatprep.subr.mxu0 %v6589
      %7115 = vmatpush1.msra.mxu0 %v6588
      %7116 = vmatprep.subr.mxu0 %v6591
      %7117 = vmatpush1.msra.mxu0 %v6590
      %7118 = vmatprep.subr.mxu0 %v6593
      %7119 = vmatpush1.msra.mxu0 %v6592
      %7120 = vmatprep.subr.mxu0 %v6595
      %7121 = vmatpush1.msra.mxu0 %v6594
      %7122 = vmatprep.subr.mxu0 %v6597
      %7123 = vmatpush1.msra.mxu0 %v6596
      %7124 = vmatprep.subr.mxu0 %v6599
      %7125 = vmatpush1.msra.mxu0 %v6598
      %7126 = vmatprep.subr.mxu0 %v6601
      %7127 = vmatpush1.msra.mxu0 %v6600
      %7128 = vmatprep.subr.mxu0 %v6603
      %7129 = vmatpush1.msra.mxu0 %v6602
      %7130 = vmatprep.subr.mxu0 %v6605
      %7131 = vmatpush1.msra.mxu0 %v6604
      %7132 = vmatprep.mubr.f32.mxu0 %v6403
      %7133 = vmatmul.mubr.f32.gmra.mrb[0].mxu0 %v6402
      %v7134 = vpop.f32.mrb[0].mxu0
      %v7135 = vadd.f32 %v7064, %v7134
      %v7136 = vpop.f32.mrb[0].mxu0
      %v7137 = vadd.f32 %v7066, %v7136
      %7138 = vdwg.mxu0
      %7139 = vmatprep.subr.mxu0 %v6607
      %7140 = vmatpush1.msra.mxu0 %v6606
      %7141 = vmatprep.subr.mxu0 %v6609
      %7142 = vmatpush1.msra.mxu0 %v6608
      %7143 = vmatprep.subr.mxu0 %v6611
      %7144 = vmatpush1.msra.mxu0 %v6610
      %7145 = vmatprep.subr.mxu0 %v6613
      %7146 = vmatpush1.msra.mxu0 %v6612
      %7147 = vmatprep.subr.mxu0 %v6615
      %7148 = vmatpush1.msra.mxu0 %v6614
      %7149 = vmatprep.subr.mxu0 %v6617
      %7150 = vmatpush1.msra.mxu0 %v6616
      %7151 = vmatprep.subr.mxu0 %v6619
      %7152 = vmatpush1.msra.mxu0 %v6618
      %7153 = vmatprep.subr.mxu0 %v6621
      %7154 = vmatpush1.msra.mxu0 %v6620
      %7155 = vmatprep.subr.mxu0 %v6623
      %7156 = vmatpush1.msra.mxu0 %v6622
      %7157 = vmatprep.subr.mxu0 %v6625
      %7158 = vmatpush1.msra.mxu0 %v6624
      %7159 = vmatprep.subr.mxu0 %v6627
      %7160 = vmatpush1.msra.mxu0 %v6626
      %7161 = vmatprep.subr.mxu0 %v6629
      %7162 = vmatpush1.msra.mxu0 %v6628
      %7163 = vmatprep.subr.mxu0 %v6631
      %7164 = vmatpush1.msra.mxu0 %v6630
      %7165 = vmatprep.subr.mxu0 %v6633
      %7166 = vmatpush1.msra.mxu0 %v6632
      %7167 = vmatprep.subr.mxu0 %v6635
      %7168 = vmatpush1.msra.mxu0 %v6634
      %7169 = vmatprep.subr.mxu0 %v6637
      %7170 = vmatpush1.msra.mxu0 %v6636
      %7171 = vmatprep.subr.mxu0 %v6639
      %7172 = vmatpush1.msra.mxu0 %v6638
      %7173 = vmatprep.subr.mxu0 %v6641
      %7174 = vmatpush1.msra.mxu0 %v6640
      %7175 = vmatprep.subr.mxu0 %v6643
      %7176 = vmatpush1.msra.mxu0 %v6642
      %7177 = vmatprep.subr.mxu0 %v6645
      %7178 = vmatpush1.msra.mxu0 %v6644
      %7179 = vmatprep.subr.mxu0 %v6647
      %7180 = vmatpush1.msra.mxu0 %v6646
      %7181 = vmatprep.subr.mxu0 %v6649
      %7182 = vmatpush1.msra.mxu0 %v6648
      %7183 = vmatprep.subr.mxu0 %v6651
      %7184 = vmatpush1.msra.mxu0 %v6650
      %7185 = vmatprep.subr.mxu0 %v6653
      %7186 = vmatpush1.msra.mxu0 %v6652
      %7187 = vmatprep.subr.mxu0 %v6655
      %7188 = vmatpush1.msra.mxu0 %v6654
      %7189 = vmatprep.subr.mxu0 %v6657
      %7190 = vmatpush1.msra.mxu0 %v6656
      %7191 = vmatprep.subr.mxu0 %v6659
      %7192 = vmatpush1.msra.mxu0 %v6658
      %7193 = vmatprep.subr.mxu0 %v6661
      %7194 = vmatpush1.msra.mxu0 %v6660
      %7195 = vmatprep.subr.mxu0 %v6663
      %7196 = vmatpush1.msra.mxu0 %v6662
      %7197 = vmatprep.subr.mxu0 %v6665
      %7198 = vmatpush1.msra.mxu0 %v6664
      %7199 = vmatprep.subr.mxu0 %v6667
      %7200 = vmatpush1.msra.mxu0 %v6666
      %7201 = vmatprep.subr.mxu0 %v6669
      %7202 = vmatpush1.msra.mxu0 %v6668
      %7203 = vmatprep.mubr.f32.mxu0 %v6405
      %7204 = vmatmul.mubr.f32.gmra.mrb[0].mxu0 %v6404
      %v7205 = vpop.f32.mrb[0].mxu0
      %v7206 = vadd.f32 %v7135, %v7205
      %v7207 = vpop.f32.mrb[0].mxu0
      %v7208 = vadd.f32 %v7137, %v7207
      %7209 = vdwg.mxu0
      %7210 = vmatprep.subr.mxu0 %v6671
      %7211 = vmatpush1.msra.mxu0 %v6670
      %7212 = vmatprep.subr.mxu0 %v6673
      %7213 = vmatpush1.msra.mxu0 %v6672
      %7214 = vmatprep.subr.mxu0 %v6675
      %7215 = vmatpush1.msra.mxu0 %v6674
      %7216 = vmatprep.subr.mxu0 %v6677
      %7217 = vmatpush1.msra.mxu0 %v6676
      %7218 = vmatprep.subr.mxu0 %v6679
      %7219 = vmatpush1.msra.mxu0 %v6678
      %7220 = vmatprep.subr.mxu0 %v6681
      %7221 = vmatpush1.msra.mxu0 %v6680
      %7222 = vmatprep.subr.mxu0 %v6683
      %7223 = vmatpush1.msra.mxu0 %v6682
      %7224 = vmatprep.subr.mxu0 %v6685
      %7225 = vmatpush1.msra.mxu0 %v6684
      %7226 = vmatprep.subr.mxu0 %v6687
      %7227 = vmatpush1.msra.mxu0 %v6686
      %7228 = vmatprep.subr.mxu0 %v6689
      %7229 = vmatpush1.msra.mxu0 %v6688
      %7230 = vmatprep.subr.mxu0 %v6691
      %7231 = vmatpush1.msra.mxu0 %v6690
      %7232 = vmatprep.subr.mxu0 %v6693
      %7233 = vmatpush1.msra.mxu0 %v6692
      %7234 = vmatprep.subr.mxu0 %v6695
      %7235 = vmatpush1.msra.mxu0 %v6694
      %7236 = vmatprep.subr.mxu0 %v6697
      %7237 = vmatpush1.msra.mxu0 %v6696
      %7238 = vmatprep.subr.mxu0 %v6699
      %7239 = vmatpush1.msra.mxu0 %v6698
      %7240 = vmatprep.subr.mxu0 %v6701
      %7241 = vmatpush1.msra.mxu0 %v6700
      %7242 = vmatprep.subr.mxu0 %v6703
      %7243 = vmatpush1.msra.mxu0 %v6702
      %7244 = vmatprep.subr.mxu0 %v6705
      %7245 = vmatpush1.msra.mxu0 %v6704
      %7246 = vmatprep.subr.mxu0 %v6707
      %7247 = vmatpush1.msra.mxu0 %v6706
      %7248 = vmatprep.subr.mxu0 %v6709
      %7249 = vmatpush1.msra.mxu0 %v6708
      %7250 = vmatprep.subr.mxu0 %v6711
      %7251 = vmatpush1.msra.mxu0 %v6710
      %7252 = vmatprep.subr.mxu0 %v6713
      %7253 = vmatpush1.msra.mxu0 %v6712
      %7254 = vmatprep.subr.mxu0 %v6715
      %7255 = vmatpush1.msra.mxu0 %v6714
      %7256 = vmatprep.subr.mxu0 %v6717
      %7257 = vmatpush1.msra.mxu0 %v6716
      %7258 = vmatprep.subr.mxu0 %v6719
      %7259 = vmatpush1.msra.mxu0 %v6718
      %7260 = vmatprep.subr.mxu0 %v6721
      %7261 = vmatpush1.msra.mxu0 %v6720
      %7262 = vmatprep.subr.mxu0 %v6723
      %7263 = vmatpush1.msra.mxu0 %v6722
      %7264 = vmatprep.subr.mxu0 %v6725
      %7265 = vmatpush1.msra.mxu0 %v6724
      %7266 = vmatprep.subr.mxu0 %v6727
      %7267 = vmatpush1.msra.mxu0 %v6726
      %7268 = vmatprep.subr.mxu0 %v6729
      %7269 = vmatpush1.msra.mxu0 %v6728
      %7270 = vmatprep.subr.mxu0 %v6731
      %7271 = vmatpush1.msra.mxu0 %v6730
      %7272 = vmatprep.subr.mxu0 %v6733
      %7273 = vmatpush1.msra.mxu0 %v6732
      %7274 = vmatprep.mubr.f32.mxu0 %v6407
      %7275 = vmatmul.mubr.f32.gmra.mrb[0].mxu0 %v6406
      %v7276 = vpop.f32.mrb[0].mxu0
      %v7277 = vadd.f32 %v7206, %v7276
      %v7278 = vpop.f32.mrb[0].mxu0
      %v7279 = vadd.f32 %v7208, %v7278
      %7280 = vdwg.mxu0
      %7281 = vmatprep.subr.mxu0 %v6735
      %7282 = vmatpush1.msra.mxu0 %v6734
      %7283 = vmatprep.subr.mxu0 %v6737
      %7284 = vmatpush1.msra.mxu0 %v6736
      %7285 = vmatprep.subr.mxu0 %v6739
      %7286 = vmatpush1.msra.mxu0 %v6738
      %7287 = vmatprep.subr.mxu0 %v6741
      %7288 = vmatpush1.msra.mxu0 %v6740
      %7289 = vmatprep.subr.mxu0 %v6743
      %7290 = vmatpush1.msra.mxu0 %v6742
      %7291 = vmatprep.subr.mxu0 %v6745
      %7292 = vmatpush1.msra.mxu0 %v6744
      %7293 = vmatprep.subr.mxu0 %v6747
      %7294 = vmatpush1.msra.mxu0 %v6746
      %7295 = vmatprep.subr.mxu0 %v6749
      %7296 = vmatpush1.msra.mxu0 %v6748
      %7297 = vmatprep.subr.mxu0 %v6751
      %7298 = vmatpush1.msra.mxu0 %v6750
      %7299 = vmatprep.subr.mxu0 %v6753
      %7300 = vmatpush1.msra.mxu0 %v6752
      %7301 = vmatprep.subr.mxu0 %v6755
      %7302 = vmatpush1.msra.mxu0 %v6754
      %7303 = vmatprep.subr.mxu0 %v6757
      %7304 = vmatpush1.msra.mxu0 %v6756
      %7305 = vmatprep.subr.mxu0 %v6759
      %7306 = vmatpush1.msra.mxu0 %v6758
      %7307 = vmatprep.subr.mxu0 %v6761
      %7308 = vmatpush1.msra.mxu0 %v6760
      %7309 = vmatprep.subr.mxu0 %v6763
      %7310 = vmatpush1.msra.mxu0 %v6762
      %7311 = vmatprep.subr.mxu0 %v6765
      %7312 = vmatpush1.msra.mxu0 %v6764
      %7313 = vmatprep.subr.mxu0 %v6767
      %7314 = vmatpush1.msra.mxu0 %v6766
      %7315 = vmatprep.subr.mxu0 %v6769
      %7316 = vmatpush1.msra.mxu0 %v6768
      %7317 = vmatprep.subr.mxu0 %v6771
      %7318 = vmatpush1.msra.mxu0 %v6770
      %7319 = vmatprep.subr.mxu0 %v6773
      %7320 = vmatpush1.msra.mxu0 %v6772
      %7321 = vmatprep.subr.mxu0 %v6775
      %7322 = vmatpush1.msra.mxu0 %v6774
      %7323 = vmatprep.subr.mxu0 %v6777
      %7324 = vmatpush1.msra.mxu0 %v6776
      %7325 = vmatprep.subr.mxu0 %v6779
      %7326 = vmatpush1.msra.mxu0 %v6778
      %7327 = vmatprep.subr.mxu0 %v6781
      %7328 = vmatpush1.msra.mxu0 %v6780
      %7329 = vmatprep.subr.mxu0 %v6783
      %7330 = vmatpush1.msra.mxu0 %v6782
      %7331 = vmatprep.subr.mxu0 %v6785
      %7332 = vmatpush1.msra.mxu0 %v6784
      %7333 = vmatprep.subr.mxu0 %v6787
      %7334 = vmatpush1.msra.mxu0 %v6786
      %7335 = vmatprep.subr.mxu0 %v6789
      %7336 = vmatpush1.msra.mxu0 %v6788
      %7337 = vmatprep.subr.mxu0 %v6791
      %7338 = vmatpush1.msra.mxu0 %v6790
      %7339 = vmatprep.subr.mxu0 %v6793
      %7340 = vmatpush1.msra.mxu0 %v6792
      %7341 = vmatprep.subr.mxu0 %v6795
      %7342 = vmatpush1.msra.mxu0 %v6794
      %7343 = vmatprep.subr.mxu0 %v6797
      %7344 = vmatpush1.msra.mxu0 %v6796
      %7345 = vmatprep.mubr.f32.mxu0 %v6409
      %7346 = vmatmul.mubr.f32.gmra.mrb[0].mxu0 %v6408
      %v7347 = vpop.f32.mrb[0].mxu0
      %v7348 = vadd.f32 %v7277, %v7347
      %v7349 = vpop.f32.mrb[0].mxu0
      %v7350 = vadd.f32 %v7279, %v7349
      %7351 = vdwg.mxu0
      %7352 = vmatprep.subr.mxu0 %v6799
      %7353 = vmatpush1.msra.mxu0 %v6798
      %7354 = vmatprep.subr.mxu0 %v6801
      %7355 = vmatpush1.msra.mxu0 %v6800
      %7356 = vmatprep.subr.mxu0 %v6803
      %7357 = vmatpush1.msra.mxu0 %v6802
      %7358 = vmatprep.subr.mxu0 %v6805
      %7359 = vmatpush1.msra.mxu0 %v6804
      %7360 = vmatprep.subr.mxu0 %v6807
      %7361 = vmatpush1.msra.mxu0 %v6806
      %7362 = vmatprep.subr.mxu0 %v6809
      %7363 = vmatpush1.msra.mxu0 %v6808
      %7364 = vmatprep.subr.mxu0 %v6811
      %7365 = vmatpush1.msra.mxu0 %v6810
      %7366 = vmatprep.subr.mxu0 %v6813
      %7367 = vmatpush1.msra.mxu0 %v6812
      %7368 = vmatprep.subr.mxu0 %v6815
      %7369 = vmatpush1.msra.mxu0 %v6814
      %7370 = vmatprep.subr.mxu0 %v6817
      %7371 = vmatpush1.msra.mxu0 %v6816
      %7372 = vmatprep.subr.mxu0 %v6819
      %7373 = vmatpush1.msra.mxu0 %v6818
      %7374 = vmatprep.subr.mxu0 %v6821
      %7375 = vmatpush1.msra.mxu0 %v6820
      %7376 = vmatprep.subr.mxu0 %v6823
      %7377 = vmatpush1.msra.mxu0 %v6822
      %7378 = vmatprep.subr.mxu0 %v6825
      %7379 = vmatpush1.msra.mxu0 %v6824
      %7380 = vmatprep.subr.mxu0 %v6827
      %7381 = vmatpush1.msra.mxu0 %v6826
      %7382 = vmatprep.subr.mxu0 %v6829
      %7383 = vmatpush1.msra.mxu0 %v6828
      %7384 = vmatprep.subr.mxu0 %v6831
      %7385 = vmatpush1.msra.mxu0 %v6830
      %7386 = vmatprep.subr.mxu0 %v6833
      %7387 = vmatpush1.msra.mxu0 %v6832
      %7388 = vmatprep.subr.mxu0 %v6835
      %7389 = vmatpush1.msra.mxu0 %v6834
      %7390 = vmatprep.subr.mxu0 %v6837
      %7391 = vmatpush1.msra.mxu0 %v6836
      %7392 = vmatprep.subr.mxu0 %v6839
      %7393 = vmatpush1.msra.mxu0 %v6838
      %7394 = vmatprep.subr.mxu0 %v6841
      %7395 = vmatpush1.msra.mxu0 %v6840
      %7396 = vmatprep.subr.mxu0 %v6843
      %7397 = vmatpush1.msra.mxu0 %v6842
      %7398 = vmatprep.subr.mxu0 %v6845
      %7399 = vmatpush1.msra.mxu0 %v6844
      %7400 = vmatprep.subr.mxu0 %v6847
      %7401 = vmatpush1.msra.mxu0 %v6846
      %7402 = vmatprep.subr.mxu0 %v6849
      %7403 = vmatpush1.msra.mxu0 %v6848
      %7404 = vmatprep.subr.mxu0 %v6851
      %7405 = vmatpush1.msra.mxu0 %v6850
      %7406 = vmatprep.subr.mxu0 %v6853
      %7407 = vmatpush1.msra.mxu0 %v6852
      %7408 = vmatprep.subr.mxu0 %v6855
      %7409 = vmatpush1.msra.mxu0 %v6854
      %7410 = vmatprep.subr.mxu0 %v6857
      %7411 = vmatpush1.msra.mxu0 %v6856
      %7412 = vmatprep.subr.mxu0 %v6859
      %7413 = vmatpush1.msra.mxu0 %v6858
      %7414 = vmatprep.subr.mxu0 %v6861
      %7415 = vmatpush1.msra.mxu0 %v6860
      %7416 = vmatprep.mubr.f32.mxu0 %v6411
      %7417 = vmatmul.mubr.f32.gmra.mrb[0].mxu0 %v6410
      %v7418 = vpop.f32.mrb[0].mxu0
      %v7419 = vadd.f32 %v7348, %v7418
      %v7420 = vpop.f32.mrb[0].mxu0
      %v7421 = vadd.f32 %v7350, %v7420
      %7422 = vdwg.mxu0
      %7423 = vmatprep.subr.mxu0 %v6863
      %7424 = vmatpush1.msra.mxu0 %v6862
      %7425 = vmatprep.subr.mxu0 %v6865
      %7426 = vmatpush1.msra.mxu0 %v6864
      %7427 = vmatprep.subr.mxu0 %v6867
      %7428 = vmatpush1.msra.mxu0 %v6866
      %7429 = vmatprep.subr.mxu0 %v6869
      %7430 = vmatpush1.msra.mxu0 %v6868
      %7431 = vmatprep.subr.mxu0 %v6871
      %7432 = vmatpush1.msra.mxu0 %v6870
      %7433 = vmatprep.subr.mxu0 %v6873
      %7434 = vmatpush1.msra.mxu0 %v6872
      %7435 = vmatprep.subr.mxu0 %v6875
      %7436 = vmatpush1.msra.mxu0 %v6874
      %7437 = vmatprep.subr.mxu0 %v6877
      %7438 = vmatpush1.msra.mxu0 %v6876
      %7439 = vmatprep.subr.mxu0 %v6879
      %7440 = vmatpush1.msra.mxu0 %v6878
      %7441 = vmatprep.subr.mxu0 %v6881
      %7442 = vmatpush1.msra.mxu0 %v6880
      %7443 = vmatprep.subr.mxu0 %v6883
      %7444 = vmatpush1.msra.mxu0 %v6882
      %7445 = vmatprep.subr.mxu0 %v6885
      %7446 = vmatpush1.msra.mxu0 %v6884
      %7447 = vmatprep.subr.mxu0 %v6887
      %7448 = vmatpush1.msra.mxu0 %v6886
      %7449 = vmatprep.subr.mxu0 %v6889
      %7450 = vmatpush1.msra.mxu0 %v6888
      %7451 = vmatprep.subr.mxu0 %v6891
      %7452 = vmatpush1.msra.mxu0 %v6890
      %7453 = vmatprep.subr.mxu0 %v6893
      %7454 = vmatpush1.msra.mxu0 %v6892
      %7455 = vmatprep.subr.mxu0 %v6895
      %7456 = vmatpush1.msra.mxu0 %v6894
      %7457 = vmatprep.subr.mxu0 %v6897
      %7458 = vmatpush1.msra.mxu0 %v6896
      %7459 = vmatprep.subr.mxu0 %v6899
      %7460 = vmatpush1.msra.mxu0 %v6898
      %7461 = vmatprep.subr.mxu0 %v6901
      %7462 = vmatpush1.msra.mxu0 %v6900
      %7463 = vmatprep.subr.mxu0 %v6903
      %7464 = vmatpush1.msra.mxu0 %v6902
      %7465 = vmatprep.subr.mxu0 %v6905
      %7466 = vmatpush1.msra.mxu0 %v6904
      %7467 = vmatprep.subr.mxu0 %v6907
      %7468 = vmatpush1.msra.mxu0 %v6906
      %7469 = vmatprep.subr.mxu0 %v6909
      %7470 = vmatpush1.msra.mxu0 %v6908
      %7471 = vmatprep.subr.mxu0 %v6911
      %7472 = vmatpush1.msra.mxu0 %v6910
      %7473 = vmatprep.subr.mxu0 %v6913
      %7474 = vmatpush1.msra.mxu0 %v6912
      %7475 = vmatprep.subr.mxu0 %v6915
      %7476 = vmatpush1.msra.mxu0 %v6914
      %7477 = vmatprep.subr.mxu0 %v6917
      %7478 = vmatpush1.msra.mxu0 %v6916
      %7479 = vmatprep.subr.mxu0 %v6919
      %7480 = vmatpush1.msra.mxu0 %v6918
      %7481 = vmatprep.subr.mxu0 %v6921
      %7482 = vmatpush1.msra.mxu0 %v6920
      %7483 = vmatprep.subr.mxu0 %v6923
      %7484 = vmatpush1.msra.mxu0 %v6922
      %7485 = vmatprep.subr.mxu0 %v6925
      %7486 = vmatpush1.msra.mxu0 %v6924
      %7487 = vmatprep.mubr.f32.mxu0 %v6413
      %7488 = vmatmul.mubr.f32.gmra.mrb[0].mxu0 %v6412
      %v7489 = vpop.f32.mrb[0].mxu0
      %v7490 = vadd.f32 %v7419, %v7489
      %v7491 = vpop.f32.mrb[0].mxu0
      %v7492 = vadd.f32 %v7421, %v7491
      %7493 = vdwg.mxu0
      %v7494 = vld [vmem:[%s4] sm:$0x1]
      %v7495 = vadd.f32 %v7494, %v7490
      %v7498 = vunpack.c.l.s4 1966171168
      %v7499 = vunpack.c.0.s8 %v7498
      %v7500 = vlaneseq
      %v7501 = vshrl.u32 %v7500, 7
      %v7502 = vsub.s32 %v7499, %v7501
      %v7503 = vrot.slane %v7490, %v7502
      %v7504 = vcombine.high %v7503, %v7503
      %v7506 = vunpack.c.l.s4 1966171168
      %v7507 = vunpack.c.0.s8 %v7506
      %v7508 = vlaneseq
      %v7509 = vshrl.u32 %v7508, 7
      %v7510 = vsub.s32 %v7507, %v7509
      %v7511 = vrot.slane %v7503, %v7510
      %v7513 = vunpack.c.l.s4 1966171168
      %v7514 = vunpack.c.0.s8 %v7513
      %v7515 = vlaneseq
      %v7516 = vshrl.u32 %v7515, 7
      %v7517 = vsub.s32 %v7514, %v7516
      %v7518 = vrot.slane %v7504, %v7517
      %7519 = vrot.lane.b32.xlu0 %v7518, 104
      %v7520 = vpop.permute.xlu0 %7519
      %v7522 = vadd.f32 %v7495, %v7520
      %v7523 = vcombine.high %v7511, %v7511
      %7524 = vrot.lane.b32.xlu0 %v7523, 80
      %v7525 = vpop.permute.xlu0 %7524
      %v7527 = vadd.f32 %v7522, %v7525
      %v7528 = vcombine.high %v7518, %v7518
      %7529 = vrot.lane.b32.xlu0 %v7528, 56
      %v7530 = vpop.permute.xlu0 %7529
      %v7532 = vadd.f32 %v7527, %v7530
      %v7533 = vcombine.high %v7490, %v7490
      %v7535 = vunpack.c.l.s4 1966171168
      %v7536 = vunpack.c.0.s8 %v7535
      %v7537 = vlaneseq
      %v7538 = vshrl.u32 %v7537, 7
      %v7539 = vsub.s32 %v7536, %v7538
      %v7540 = vrot.slane %v7533, %v7539
      %v7542 = vunpack.c.l.s4 1966171168
      %v7543 = vunpack.c.0.s8 %v7542
      %v7544 = vlaneseq
      %v7545 = vshrl.u32 %v7544, 7
      %v7546 = vsub.s32 %v7543, %v7545
      %v7547 = vrot.slane %v7540, %v7546
      %7548 = vrot.lane.b32.xlu0 %v7547, 32
      %v7549 = vpop.permute.xlu0 %7548
      %v7551 = vadd.f32 %v7532, %v7549
      %v7553 = vcombine.high %v7490, %v7492
      %v7555 = vunpack.c.l.s4 1966171168
      %v7556 = vunpack.c.0.s8 %v7555
      %v7557 = vlaneseq
      %v7558 = vshrl.u32 %v7557, 7
      %v7559 = vsub.s32 %v7556, %v7558
      %v7560 = vrot.slane %v7553, %v7559
      %v7561 = vcombine.high %v7560, %v7560
      %v7563 = vunpack.c.l.s4 1966171168
      %v7564 = vunpack.c.0.s8 %v7563
      %v7565 = vlaneseq
      %v7566 = vshrl.u32 %v7565, 7
      %v7567 = vsub.s32 %v7564, %v7566
      %v7568 = vrot.slane %v7561, %v7567
      %7569 = vrot.lane.b32.xlu0 %v7568, 8
      %v7570 = vpop.permute.xlu0 %7569
      %v7571 = vrot.slane %v7570, 1
      %vm7572 = vcmask 64512
      %v7573 = vsel %vm7572, %v7570, %v7571
      %v7575 = vadd.f32 %v7551, %v7573
      %vm7576 = vcmask 188416
      %7577 = vst.msk [vmem:[%s220] sm:$0x1] %vm7576, %v7575
      %p7578 = scmp.lt.s32.totalorder %s16, 3
      %s7579 = scalar_select %p7578, %s16, 3
      %s7580 = scalar_lea.vmem %s5, %s7579
      // Predicated region
      $region41: #{encoder_forward.2} parent=39 // pred_check
        %p7581 = pneg %p144
      $region42: #{encoder_forward.2} parent=39 // pred_check_branch
        %7583 = sbr.rel (%p7581) target = $region44
      $region43: #{encoder_forward.2} parent=39 // pred_region
        _
      $region44: #{encoder_forward.2} parent=39 // pred_fallthru
        _
    $region40: #{encoder_forward.2} parent=5 // pred_fallthru
      _
    %p7584 = scmp.le.s32.totalorder 2, %s11
    // Predicated region
    $region45: #{encoder_forward.2} parent=5 // pred_check
      %p7585 = pneg %p7584
    $region46: #{encoder_forward.2} parent=5 // pred_check_branch
      %7587 = sbr.rel (%p7585) target = $region48
    $region47: #{encoder_forward.2} parent=5 // pred_region
      %s7588 = ssub.s32 %s11, 2
      // Predicated region
      $region49: #{encoder_forward.2} parent=47 // pred_check
        %p7589 = pneg %p150
      $region50: #{encoder_forward.2} parent=47 // pred_check_branch
        %7591 = sbr.rel (%p7589) target = $region52
      $region51: #{encoder_forward.2} parent=47 // pred_region
        %p7592 = scmp.lt.s32.totalorder %s17, 3
        %s7593 = scalar_select %p7592, %s17, 3
        %s7594 = scalar_lea.vmem %s5, %s7593
      $region52: #{encoder_forward.2} parent=47 // pred_fallthru
        _
    $region48: #{encoder_forward.2} parent=5 // pred_fallthru
      _
  $region6: #{encoder_forward.2} parent=0 // loop_footer
    %s15 = sadd.s32 1, %s11
  $region7: #{encoder_forward.2} parent=0 // loop_footer_branch
    %10 = sbr.rel target = $region3
  $region8: #{encoder_forward.2} parent=0 // loop_exit
    _

</llo_original>
